<compile_context>
chip_gen: v7x
topology: tpu7x:2x2x1
jax: 0.10.0
libtpu: 0.0.40
codegen_flags: <defaults>
</compile_context>

<pallas_src>
import numpy as np
import jax
import jax.numpy as jnp
from jax.experimental import pallas as pl
from jax.experimental.pallas import tpu as pltpu

# ----------------------------- small, deterministic config -----------------------------
D_MODEL = 32          # d_model
D_FF = 64             # encoder/decoder ffn dim
FEATURE_SIZE = 1      # univariate series
MOVING_AVG = 5        # decomposition moving-average window (odd)
CONTEXT_LEN = 16      # past_values length
PRED_LEN = 4          # horizon / prediction_length
LABEL_LEN = 4         # decoder warm-up length
DEC_LEN = LABEL_LEN + PRED_LEN
N_ENC_LAYERS = 2
N_DEC_LAYERS = 1
LN_EPS = 1e-5

_SLAB_COLS = 128      # lane-dense parameter slab width


# --------------------------------- host-side constants ---------------------------------
def _moving_avg_matrix(L, kernel_size):
    # Replicate-padded moving average (matches AvgPool1d on an edge-padded series).
    pad = (kernel_size - 1) // 2
    A = np.zeros((L, L), np.float32)
    for t in range(L):
        for j in range(kernel_size):
            s = min(max(t - pad + j, 0), L - 1)
            A[t, s] += 1.0 / kernel_size
    return A


def _sinusoidal_pos_emb(L, D, offset=0):
    pos = np.arange(offset, offset + L, dtype=np.float32)[:, None]
    i = np.arange(0, D, 2, dtype=np.float32)[None, :]
    angle = pos / (10000.0 ** (i / D))
    emb = np.zeros((L, D), np.float32)
    emb[:, 0::2] = np.sin(angle)
    emb[:, 1::2] = np.cos(angle)
    return emb


# ------------------------------- parameter slab layout ----------------------------------
def _build_layout():
    layout = {}
    row = [0]

    def add(name, nrows, ncols):
        layout[name] = (row[0], nrows, ncols)
        row[0] += -(-nrows // 8) * 8           # 8-row alignment per block

    D, DF = D_MODEL, D_FF
    add("A_enc", CONTEXT_LEN, CONTEXT_LEN)
    add("A_dec", DEC_LEN, DEC_LEN)
    add("pos_enc", CONTEXT_LEN, D)
    add("pos_dec", DEC_LEN, D)
    add("emb_w", 2, D)                         # row 0: encoder value-emb, row 1: decoder
    add("emb_ln", 4, D)                        # enc ln (g, b), dec ln (g, b)
    for l in range(N_ENC_LAYERS):
        add(f"enc{l}_win", D, 3 * D)           # [wq | wk | wv]
        add(f"enc{l}_bin", 1, 3 * D)
        add(f"enc{l}_wout", D, D)
        add(f"enc{l}_bout", 1, D)
        add(f"enc{l}_ln", 4, D)
        add(f"enc{l}_fc1", D, DF)
        add(f"enc{l}_fc2", DF, D)
        add(f"enc{l}_fcb", 1, DF + D)
    for l in range(N_DEC_LAYERS):
        add(f"dec{l}_sa_win", D, 3 * D)
        add(f"dec{l}_sa_bin", 1, 3 * D)
        add(f"dec{l}_sa_wout", D, D)
        add(f"dec{l}_sa_bout", 1, D)
        add(f"dec{l}_ca_win", D, 3 * D)
        add(f"dec{l}_ca_bin", 1, 3 * D)
        add(f"dec{l}_ca_wout", D, D)
        add(f"dec{l}_ca_bout", 1, D)
        add(f"dec{l}_ln", 6, D)
        add(f"dec{l}_fc1", D, DF)
        add(f"dec{l}_fc2", DF, D)
        add(f"dec{l}_fcb", 1, DF + D)
        add(f"dec{l}_trend", 1, 3 * D)         # Conv1d(k=3) taps [prev | cur | next]
    total = -(-row[0] // 8) * 8
    return layout, total


_LAYOUT, _SLAB_ROWS = _build_layout()


def _pack_slab(parts):
    slab = np.zeros((_SLAB_ROWS, _SLAB_COLS), np.float32)
    for name, arr in parts.items():
        o, nr, nc = _LAYOUT[name]
        a = np.asarray(arr, np.float32)
        assert a.shape == (nr, nc), (name, a.shape, (nr, nc))
        slab[o:o + nr, :nc] = a
    return jnp.asarray(slab)


# --------------------------------- fused Pallas kernel ---------------------------------
def _fused_autoformer_kernel(ctx_ref, slab_ref, out_ref):
    D, DF = D_MODEL, D_FF
    Lc, Ld = CONTEXT_LEN, DEC_LEN

    def get(name):
        o, nr, nc = _LAYOUT[name]
        return slab_ref[o:o + nr, 0:nc]

    def layer_norm(x, g, b):
        mu = jnp.mean(x, axis=-1, keepdims=True)
        var = jnp.mean(jnp.square(x - mu), axis=-1, keepdims=True)
        return (x - mu) * jax.lax.rsqrt(var + LN_EPS) * g + b

    # ---- per-length delay masks / lane one-hots, built ONCE per kernel invocation ----
    def build_masks(L):
        t_idx = jax.lax.broadcasted_iota(jnp.int32, (L, L), 0)
        s_idx = jax.lax.broadcasted_iota(jnp.int32, (L, L), 1)
        d = s_idx - t_idx
        delay = jnp.where(d < 0, d + L, d)                  # (s - t) mod L
        lane = jax.lax.broadcasted_iota(jnp.int32, (1, L), 1)
        masks = [jnp.where(delay == tau, 1.0, 0.0) for tau in range(L)]
        onehots = [jnp.where(lane == tau, 1.0, 0.0) for tau in range(L)]
        return masks, onehots

    masks_c, onehots_c = build_masks(Lc)
    masks_d, onehots_d = build_masks(Ld)

    def autocorrelation(q, k, v, masks, onehots):
        # corr[tau] = (1/D) sum_{t,d} q[t,d] k[(t+tau)%L, d]
        # out[t]    = sum_tau softmax(corr)[tau] v[(t+tau)%L]
        # TODO(synk): HF uses rFFT correlation + top-k(c*logL) delay selection per head;
        # here a full softmax over all delays with one aggregated head is used.
        L = q.shape[0]
        scores = jax.lax.dot_general(q, k, (((1,), (1,)), ((), ())),
                                     preferred_element_type=jnp.float32)     # [L, L]
        corr = jnp.zeros((1, L), jnp.float32)
        for tau in range(L):                                  # static unroll, L <= 16
            c = jnp.sum(jnp.sum(scores * masks[tau], axis=1, keepdims=True),
                        axis=0, keepdims=True)                                # [1, 1]
            corr = corr + c * onehots[tau]
        corr = corr * (1.0 / D)

        mx = jnp.max(corr, axis=1, keepdims=True)
        e = jnp.exp(corr - mx)
        w = e * pl.reciprocal(jnp.sum(e, axis=1, keepdims=True), approx=True)  # [1, L]

        agg = jnp.zeros((L, L), jnp.float32)                  # agg[t, s] = w[(s-t) % L]
        for tau in range(L):
            agg = agg + w[:, tau:tau + 1] * masks[tau]
        return jnp.dot(agg, v, preferred_element_type=jnp.float32)            # [L, D]

    def attention(prefix, q_in, kv_in, cross, masks, onehots):
        w_in, b_in = get(prefix + "_win"), get(prefix + "_bin")       # [D, 3D], [1, 3D]
        w_out, b_out = get(prefix + "_wout"), get(prefix + "_bout")   # [D, D],  [1, D]
        Lq = q_in.shape[0]
        if not cross:      # self-attention: single fused QKV matmul, slice results only
            qkv = jnp.dot(q_in, w_in, preferred_element_type=jnp.float32) + b_in
            q, k, v = qkv[:, :D], qkv[:, D:2 * D], qkv[:, 2 * D:]
        else:              # cross-attention: full-slab matmuls, slice result columns
            qp = jnp.dot(q_in, w_in, preferred_element_type=jnp.float32) + b_in
            q = qp[:, :D]
            kvp = jnp.dot(kv_in, w_in, preferred_element_type=jnp.float32) + b_in
            k, v = kvp[:, D:2 * D], kvp[:, 2 * D:]
        Lkv = k.shape[0]
        if Lkv >= Lq:      # truncate keys / values to query length (HF behavior)
            k, v = k[:Lq], v[:Lq]
        else:              # zero-pad keys / values to query length (not hit here)
            z = jnp.zeros((Lq - Lkv, D), jnp.float32)
            k = jnp.concatenate([k, z], axis=0)
            v = jnp.concatenate([v, z], axis=0)
        o = autocorrelation(q, k, v, masks, onehots)
        return jnp.dot(o, w_out, preferred_element_type=jnp.float32) + b_out

    # ------------------------------------ encoder --------------------------------------
    A_enc = get("A_enc")
    A_dec = get("A_dec")
    emb_w = get("emb_w")
    emb_ln = get("emb_ln")

    ctx = ctx_ref[0]                                         # [Lc, 1] scaled past values
    h = ctx * emb_w[0:1, :]                                  # value embedding (no bias)
    h = h + get("pos_enc")
    h = layer_norm(h, emb_ln[0:1, :], emb_ln[1:2, :])
    for l in range(N_ENC_LAYERS):
        lnp = get(f"enc{l}_ln")
        fcb = get(f"enc{l}_fcb")
        h = h + attention(f"enc{l}", h, h, False, masks_c, onehots_c)
        h = layer_norm(h, lnp[0:1, :], lnp[1:2, :])
        h = h - jnp.dot(A_enc, h, preferred_element_type=jnp.float32)  # decomp: seasonal
        f = jnp.dot(h, get(f"enc{l}_fc1"),
                    preferred_element_type=jnp.float32) + fcb[:, :DF]
        f = jax.nn.gelu(f, approximate=True)
        f = jnp.dot(f, get(f"enc{l}_fc2"),
                    preferred_element_type=jnp.float32) + fcb[:, DF:]
        h = h + f
        h = layer_norm(h, lnp[2:3, :], lnp[3:4, :])
        h = h - jnp.dot(A_enc, h, preferred_element_type=jnp.float32)
    enc_h = h

    # ----------- decoder seasonal / trend initialisation (static slices + concat) -------
    trend_ctx = jnp.dot(A_enc, ctx, preferred_element_type=jnp.float32)      # [Lc, 1]
    seasonal_ctx = ctx - trend_ctx
    mean_ctx = jnp.mean(ctx, axis=0, keepdims=True)                          # [1, 1]
    seasonal_in = jnp.concatenate(
        [seasonal_ctx[Lc - LABEL_LEN:, :], jnp.zeros((PRED_LEN, 1), jnp.float32)], axis=0)
    trend_acc = jnp.concatenate(
        [trend_ctx[Lc - LABEL_LEN:, :],
         jnp.zeros((PRED_LEN, 1), jnp.float32) + mean_ctx], axis=0)          # [Ld, 1]

    # ------------------------------------ decoder --------------------------------------
    hd = seasonal_in * emb_w[1:2, :]                          # value embedding (no bias)
    hd = hd + get("pos_dec")
    hd = layer_norm(hd, emb_ln[2:3, :], emb_ln[3:4, :])
    for l in range(N_DEC_LAYERS):
        lnp = get(f"dec{l}_ln")
        fcb = get(f"dec{l}_fcb")
        tw = get(f"dec{l}_trend")                             # [1, 3D] = [prev|cur|next]

        h1 = hd + attention(f"dec{l}_sa", hd, hd, False, masks_d, onehots_d)
        trend1 = jnp.dot(A_dec, h1, preferred_element_type=jnp.float32)
        h1 = layer_norm(h1 - trend1, lnp[0:1, :], lnp[1:2, :])

        h2 = h1 + attention(f"dec{l}_ca", h1, enc_h, True, masks_d, onehots_d)
        trend2 = jnp.dot(A_dec, h2, preferred_element_type=jnp.float32)
        h2 = layer_norm(h2 - trend2, lnp[2:3, :], lnp[3:4, :])

        f = jnp.dot(h2, get(f"dec{l}_fc1"),
                    preferred_element_type=jnp.float32) + fcb[:, :DF]
        f = jax.nn.gelu(f, approximate=True)
        f = jnp.dot(f, get(f"dec{l}_fc2"),
                    preferred_element_type=jnp.float32) + fcb[:, DF:]
        h3 = h2 + f
        trend3 = jnp.dot(A_dec, h3, preferred_element_type=jnp.float32)
        hd = layer_norm(h3 - trend3, lnp[4:5, :], lnp[5:6, :])

        # Conv1d(d_model -> 1, kernel=3, circular padding, no bias) on the trend:
        # circular shifts via static slice+concat (no shift matmuls).
        th = trend1 + trend2 + trend3                                        # [Ld, D]
        prev = jnp.concatenate([th[Ld - 1:, :], th[:Ld - 1, :]], axis=0)     # x[(t-1)%Ld]
        nxt = jnp.concatenate([th[1:, :], th[:1, :]], axis=0)                # x[(t+1)%Ld]
        res_trend = (jnp.sum(prev * tw[:, :D], axis=-1, keepdims=True)
                     + jnp.sum(th * tw[:, D:2 * D], axis=-1, keepdims=True)
                     + jnp.sum(nxt * tw[:, 2 * D:], axis=-1, keepdims=True))  # [Ld, 1]
        trend_acc = trend_acc + res_trend

    # --------- lane-dense packed output: one unmasked [Lc, 128] store per step ---------
    hd_p = jnp.concatenate([hd, jnp.zeros((Lc - Ld, D), jnp.float32)], axis=0)
    tr_p = jnp.concatenate([trend_acc, jnp.zeros((Ld, D - 1), jnp.float32)], axis=1)
    tr_p = jnp.concatenate([tr_p, jnp.zeros((Lc - Ld, D), jnp.float32)], axis=0)
    pad = jnp.zeros((Lc, _SLAB_COLS - 3 * D), jnp.float32)
    out_ref[0] = jnp.concatenate([enc_h, hd_p, tr_p, pad], axis=1)


def _autoformer_pallas(context, slab):
    B = context.shape[0]
    return pl.pallas_call(
        _fused_autoformer_kernel,
        out_shape=jax.ShapeDtypeStruct((B, CONTEXT_LEN, _SLAB_COLS), jnp.float32),
        grid=(B,),
        in_specs=[
            pl.BlockSpec((1, CONTEXT_LEN, 1), lambda b: (b, 0, 0)),       # scaled context
            pl.BlockSpec((_SLAB_ROWS, _SLAB_COLS), lambda b: (0, 0)),     # parameter slab
        ],
        out_specs=pl.BlockSpec((1, CONTEXT_LEN, _SLAB_COLS), lambda b: (b, 0, 0)),
        compiler_params=pltpu.CompilerParams(
            dimension_semantics=("parallel",)),   # batch axis feeds both v7x TensorCores
    )(context, slab)


# -------------------------------------- forward -----------------------------------------
def autoformer_forward(slab, src, tgt):
    """Mirrors Autoformer.forward(src, tgt) (HF AutoformerModel, eval mode).

    src: [B, CONTEXT_LEN, 1] past values, tgt: [B, PRED_LEN, 1] future values.
    Returns (last_hidden_state, trend, encoder_last_hidden_state, loc, scale) - the main
    fields of HF Seq2SeqTSModelOutput.
    """
    src = jnp.squeeze(src, axis=2)
    _ = jnp.squeeze(tgt, axis=2)
    # TODO(synk): future_values only enter HF AutoformerModel through lagged-subsequence
    # features; lags / time features / observed mask / static covariates are omitted here.

    # mean scaler (config.scaling == "mean"): scale = mean(|past|), loc = 0
    scale = jnp.maximum(jnp.mean(jnp.abs(src), axis=1, keepdims=True), 1e-10)
    loc = jnp.zeros_like(scale)
    context = (src / scale)[..., None]                                     # [B, Lc, 1]

    packed = _autoformer_pallas(context, slab)                             # [B, Lc, 128]
    enc_out = packed[:, :, 0:D_MODEL]
    hd = packed[:, :DEC_LEN, D_MODEL:2 * D_MODEL]
    trend = packed[:, :DEC_LEN, 2 * D_MODEL:2 * D_MODEL + 1]
    return hd, trend, enc_out, loc, scale


# ------------------------------------ parameters ---------------------------------------
def init_params(key):
    """Builds all parameters + config constants and packs them into one [R, 128] slab."""
    D, DF = D_MODEL, D_FF
    keys = iter(jax.random.split(key, 64))

    def w(shape, s=0.02):
        return np.asarray(jax.random.normal(next(keys), shape, jnp.float32)) * s

    def ln_rows(n_pairs):
        rows = []
        for _ in range(n_pairs):
            rows.append(np.ones(D, np.float32))
            rows.append(np.zeros(D, np.float32))
        return np.stack(rows).astype(np.float32)

    parts = {
        "A_enc": _moving_avg_matrix(CONTEXT_LEN, MOVING_AVG),
        "A_dec": _moving_avg_matrix(DEC_LEN, MOVING_AVG),
        "pos_enc": _sinusoidal_pos_emb(CONTEXT_LEN, D),
        "pos_dec": _sinusoidal_pos_emb(DEC_LEN, D, offset=CONTEXT_LEN - LABEL_LEN),
        "emb_w": w((2, D)),
        "emb_ln": ln_rows(2),
    }
    for l in range(N_ENC_LAYERS):
        parts[f"enc{l}_win"] = w((D, 3 * D))
        parts[f"enc{l}_bin"] = np.zeros((1, 3 * D), np.float32)
        parts[f"enc{l}_wout"] = w((D, D))
        parts[f"enc{l}_bout"] = np.zeros((1, D), np.float32)
        parts[f"enc{l}_ln"] = ln_rows(2)
        parts[f"enc{l}_fc1"] = w((D, DF))
        parts[f"enc{l}_fc2"] = w((DF, D))
        parts[f"enc{l}_fcb"] = np.zeros((1, DF + D), np.float32)
    for l in range(N_DEC_LAYERS):
        parts[f"dec{l}_sa_win"] = w((D, 3 * D))
        parts[f"dec{l}_sa_bin"] = np.zeros((1, 3 * D), np.float32)
        parts[f"dec{l}_sa_wout"] = w((D, D))
        parts[f"dec{l}_sa_bout"] = np.zeros((1, D), np.float32)
        parts[f"dec{l}_ca_win"] = w((D, 3 * D))
        parts[f"dec{l}_ca_bin"] = np.zeros((1, 3 * D), np.float32)
        parts[f"dec{l}_ca_wout"] = w((D, D))
        parts[f"dec{l}_ca_bout"] = np.zeros((1, D), np.float32)
        parts[f"dec{l}_ln"] = ln_rows(3)
        parts[f"dec{l}_fc1"] = w((D, DF))
        parts[f"dec{l}_fc2"] = w((DF, D))
        parts[f"dec{l}_fcb"] = np.zeros((1, DF + D), np.float32)
        parts[f"dec{l}_trend"] = w((1, 3 * D))
    return _pack_slab(parts)


# ---------------------------------------- main ------------------------------------------
if __name__ == "__main__":
    key = jax.random.PRNGKey(0)
    k_src, k_tgt, k_par = jax.random.split(key, 3)
    src = jax.random.normal(k_src, (2, CONTEXT_LEN, 1), jnp.float32)   # past_values
    tgt = jax.random.normal(k_tgt, (2, PRED_LEN, 1), jnp.float32)      # future_values
    slab = init_params(k_par)

    fwd = jax.jit(autoformer_forward)
    out = fwd(slab, src, tgt)
    jax.block_until_ready(out)

    last_hidden, trend, enc_last, loc, scale = out
    assert last_hidden.shape == (2, DEC_LEN, D_MODEL)
    assert trend.shape == (2, DEC_LEN, FEATURE_SIZE)
    assert enc_last.shape == (2, CONTEXT_LEN, D_MODEL)
    assert bool(jnp.all(jnp.isfinite(last_hidden))) and bool(jnp.all(jnp.isfinite(trend)))
    print("KERNEL_OK")
</pallas_src>

<mosaic_0001>
module attributes {stable_mosaic.version = 11 : i64} {
  func.func @_fused_autoformer_kernel(%arg0: i32, %arg1: memref<1x16x1xf32, #tpu.memory_space<vmem>>, %arg2: memref<728x128xf32, #tpu.memory_space<vmem>>, %arg3: memref<1x16x128xf32, #tpu.memory_space<vmem>>) attributes {dimension_semantics = [#tpu.dimension_semantics<parallel>], iteration_bounds = array<i64: 2>, scalar_prefetch = 0 : i64, scratch_operands = 0 : i64, tpu.core_type = #tpu.core_type<tc>, window_params = [{transform_indices = @transform_0, window_bounds = array<i64: 1, 16, 1>}, {pipeline_mode = #tpu.pipeline_mode<synchronous>, transform_indices = @transform_1, window_bounds = array<i64: 728, 128>}, {transform_indices = @transform_2, window_bounds = array<i64: 1, 16, 128>}]} {
    %0 = tpu.iota {dimensions = array<i32: 0>} : vector<16x16xi32>
    %1 = tpu.iota {dimensions = array<i32: 1>} : vector<16x16xi32>
    %2 = arith.subi %1, %0 : vector<16x16xi32>
    %c0_i32 = arith.constant 0 : i32
    %3 = vector.broadcast %c0_i32 : i32 to vector<16x16xi32>
    %4 = arith.cmpi slt, %2, %3 : vector<16x16xi32>
    %c16_i32 = arith.constant 16 : i32
    %5 = vector.broadcast %c16_i32 : i32 to vector<16x16xi32>
    %6 = arith.addi %2, %5 : vector<16x16xi32>
    %7 = arith.select %4, %6, %2 : vector<16x16xi1>, vector<16x16xi32>
    %8 = tpu.iota {dimensions = array<i32: 1>} : vector<1x16xi32>
    %c0_i32_0 = arith.constant 0 : i32
    %9 = vector.broadcast %c0_i32_0 : i32 to vector<16x16xi32>
    %10 = arith.cmpi eq, %7, %9 : vector<16x16xi32>
    %cst = arith.constant 1.000000e+00 : f32
    %cst_1 = arith.constant 0.000000e+00 : f32
    %11 = vector.broadcast %cst : f32 to vector<16x16xf32>
    %12 = vector.broadcast %cst_1 : f32 to vector<16x16xf32>
    %13 = arith.select %10, %11, %12 : vector<16x16xi1>, vector<16x16xf32>
    %c1_i32 = arith.constant 1 : i32
    %14 = vector.broadcast %c1_i32 : i32 to vector<16x16xi32>
    %15 = arith.cmpi eq, %7, %14 : vector<16x16xi32>
    %cst_2 = arith.constant 1.000000e+00 : f32
    %cst_3 = arith.constant 0.000000e+00 : f32
    %16 = vector.broadcast %cst_2 : f32 to vector<16x16xf32>
    %17 = vector.broadcast %cst_3 : f32 to vector<16x16xf32>
    %18 = arith.select %15, %16, %17 : vector<16x16xi1>, vector<16x16xf32>
    %c2_i32 = arith.constant 2 : i32
    %19 = vector.broadcast %c2_i32 : i32 to vector<16x16xi32>
    %20 = arith.cmpi eq, %7, %19 : vector<16x16xi32>
    %cst_4 = arith.constant 1.000000e+00 : f32
    %cst_5 = arith.constant 0.000000e+00 : f32
    %21 = vector.broadcast %cst_4 : f32 to vector<16x16xf32>
    %22 = vector.broadcast %cst_5 : f32 to vector<16x16xf32>
    %23 = arith.select %20, %21, %22 : vector<16x16xi1>, vector<16x16xf32>
    %c3_i32 = arith.constant 3 : i32
    %24 = vector.broadcast %c3_i32 : i32 to vector<16x16xi32>
    %25 = arith.cmpi eq, %7, %24 : vector<16x16xi32>
    %cst_6 = arith.constant 1.000000e+00 : f32
    %cst_7 = arith.constant 0.000000e+00 : f32
    %26 = vector.broadcast %cst_6 : f32 to vector<16x16xf32>
    %27 = vector.broadcast %cst_7 : f32 to vector<16x16xf32>
    %28 = arith.select %25, %26, %27 : vector<16x16xi1>, vector<16x16xf32>
    %c4_i32 = arith.constant 4 : i32
    %29 = vector.broadcast %c4_i32 : i32 to vector<16x16xi32>
    %30 = arith.cmpi eq, %7, %29 : vector<16x16xi32>
    %cst_8 = arith.constant 1.000000e+00 : f32
    %cst_9 = arith.constant 0.000000e+00 : f32
    %31 = vector.broadcast %cst_8 : f32 to vector<16x16xf32>
    %32 = vector.broadcast %cst_9 : f32 to vector<16x16xf32>
    %33 = arith.select %30, %31, %32 : vector<16x16xi1>, vector<16x16xf32>
    %c5_i32 = arith.constant 5 : i32
    %34 = vector.broadcast %c5_i32 : i32 to vector<16x16xi32>
    %35 = arith.cmpi eq, %7, %34 : vector<16x16xi32>
    %cst_10 = arith.constant 1.000000e+00 : f32
    %cst_11 = arith.constant 0.000000e+00 : f32
    %36 = vector.broadcast %cst_10 : f32 to vector<16x16xf32>
    %37 = vector.broadcast %cst_11 : f32 to vector<16x16xf32>
    %38 = arith.select %35, %36, %37 : vector<16x16xi1>, vector<16x16xf32>
    %c6_i32 = arith.constant 6 : i32
    %39 = vector.broadcast %c6_i32 : i32 to vector<16x16xi32>
    %40 = arith.cmpi eq, %7, %39 : vector<16x16xi32>
    %cst_12 = arith.constant 1.000000e+00 : f32
    %cst_13 = arith.constant 0.000000e+00 : f32
    %41 = vector.broadcast %cst_12 : f32 to vector<16x16xf32>
    %42 = vector.broadcast %cst_13 : f32 to vector<16x16xf32>
    %43 = arith.select %40, %41, %42 : vector<16x16xi1>, vector<16x16xf32>
    %c7_i32 = arith.constant 7 : i32
    %44 = vector.broadcast %c7_i32 : i32 to vector<16x16xi32>
    %45 = arith.cmpi eq, %7, %44 : vector<16x16xi32>
    %cst_14 = arith.constant 1.000000e+00 : f32
    %cst_15 = arith.constant 0.000000e+00 : f32
    %46 = vector.broadcast %cst_14 : f32 to vector<16x16xf32>
    %47 = vector.broadcast %cst_15 : f32 to vector<16x16xf32>
    %48 = arith.select %45, %46, %47 : vector<16x16xi1>, vector<16x16xf32>
    %c8_i32 = arith.constant 8 : i32
    %49 = vector.broadcast %c8_i32 : i32 to vector<16x16xi32>
    %50 = arith.cmpi eq, %7, %49 : vector<16x16xi32>
    %cst_16 = arith.constant 1.000000e+00 : f32
    %cst_17 = arith.constant 0.000000e+00 : f32
    %51 = vector.broadcast %cst_16 : f32 to vector<16x16xf32>
    %52 = vector.broadcast %cst_17 : f32 to vector<16x16xf32>
    %53 = arith.select %50, %51, %52 : vector<16x16xi1>, vector<16x16xf32>
    %c9_i32 = arith.constant 9 : i32
    %54 = vector.broadcast %c9_i32 : i32 to vector<16x16xi32>
    %55 = arith.cmpi eq, %7, %54 : vector<16x16xi32>
    %cst_18 = arith.constant 1.000000e+00 : f32
    %cst_19 = arith.constant 0.000000e+00 : f32
    %56 = vector.broadcast %cst_18 : f32 to vector<16x16xf32>
    %57 = vector.broadcast %cst_19 : f32 to vector<16x16xf32>
    %58 = arith.select %55, %56, %57 : vector<16x16xi1>, vector<16x16xf32>
    %c10_i32 = arith.constant 10 : i32
    %59 = vector.broadcast %c10_i32 : i32 to vector<16x16xi32>
    %60 = arith.cmpi eq, %7, %59 : vector<16x16xi32>
    %cst_20 = arith.constant 1.000000e+00 : f32
    %cst_21 = arith.constant 0.000000e+00 : f32
    %61 = vector.broadcast %cst_20 : f32 to vector<16x16xf32>
    %62 = vector.broadcast %cst_21 : f32 to vector<16x16xf32>
    %63 = arith.select %60, %61, %62 : vector<16x16xi1>, vector<16x16xf32>
    %c11_i32 = arith.constant 11 : i32
    %64 = vector.broadcast %c11_i32 : i32 to vector<16x16xi32>
    %65 = arith.cmpi eq, %7, %64 : vector<16x16xi32>
    %cst_22 = arith.constant 1.000000e+00 : f32
    %cst_23 = arith.constant 0.000000e+00 : f32
    %66 = vector.broadcast %cst_22 : f32 to vector<16x16xf32>
    %67 = vector.broadcast %cst_23 : f32 to vector<16x16xf32>
    %68 = arith.select %65, %66, %67 : vector<16x16xi1>, vector<16x16xf32>
    %c12_i32 = arith.constant 12 : i32
    %69 = vector.broadcast %c12_i32 : i32 to vector<16x16xi32>
    %70 = arith.cmpi eq, %7, %69 : vector<16x16xi32>
    %cst_24 = arith.constant 1.000000e+00 : f32
    %cst_25 = arith.constant 0.000000e+00 : f32
    %71 = vector.broadcast %cst_24 : f32 to vector<16x16xf32>
    %72 = vector.broadcast %cst_25 : f32 to vector<16x16xf32>
    %73 = arith.select %70, %71, %72 : vector<16x16xi1>, vector<16x16xf32>
    %c13_i32 = arith.constant 13 : i32
    %74 = vector.broadcast %c13_i32 : i32 to vector<16x16xi32>
    %75 = arith.cmpi eq, %7, %74 : vector<16x16xi32>
    %cst_26 = arith.constant 1.000000e+00 : f32
    %cst_27 = arith.constant 0.000000e+00 : f32
    %76 = vector.broadcast %cst_26 : f32 to vector<16x16xf32>
    %77 = vector.broadcast %cst_27 : f32 to vector<16x16xf32>
    %78 = arith.select %75, %76, %77 : vector<16x16xi1>, vector<16x16xf32>
    %c14_i32 = arith.constant 14 : i32
    %79 = vector.broadcast %c14_i32 : i32 to vector<16x16xi32>
    %80 = arith.cmpi eq, %7, %79 : vector<16x16xi32>
    %cst_28 = arith.constant 1.000000e+00 : f32
    %cst_29 = arith.constant 0.000000e+00 : f32
    %81 = vector.broadcast %cst_28 : f32 to vector<16x16xf32>
    %82 = vector.broadcast %cst_29 : f32 to vector<16x16xf32>
    %83 = arith.select %80, %81, %82 : vector<16x16xi1>, vector<16x16xf32>
    %c15_i32 = arith.constant 15 : i32
    %84 = vector.broadcast %c15_i32 : i32 to vector<16x16xi32>
    %85 = arith.cmpi eq, %7, %84 : vector<16x16xi32>
    %cst_30 = arith.constant 1.000000e+00 : f32
    %cst_31 = arith.constant 0.000000e+00 : f32
    %86 = vector.broadcast %cst_30 : f32 to vector<16x16xf32>
    %87 = vector.broadcast %cst_31 : f32 to vector<16x16xf32>
    %88 = arith.select %85, %86, %87 : vector<16x16xi1>, vector<16x16xf32>
    %c0_i32_32 = arith.constant 0 : i32
    %89 = vector.broadcast %c0_i32_32 : i32 to vector<1x16xi32>
    %90 = arith.cmpi eq, %8, %89 : vector<1x16xi32>
    %cst_33 = arith.constant 1.000000e+00 : f32
    %cst_34 = arith.constant 0.000000e+00 : f32
    %91 = vector.broadcast %cst_33 : f32 to vector<1x16xf32>
    %92 = vector.broadcast %cst_34 : f32 to vector<1x16xf32>
    %93 = arith.select %90, %91, %92 : vector<1x16xi1>, vector<1x16xf32>
    %c1_i32_35 = arith.constant 1 : i32
    %94 = vector.broadcast %c1_i32_35 : i32 to vector<1x16xi32>
    %95 = arith.cmpi eq, %8, %94 : vector<1x16xi32>
    %cst_36 = arith.constant 1.000000e+00 : f32
    %cst_37 = arith.constant 0.000000e+00 : f32
    %96 = vector.broadcast %cst_36 : f32 to vector<1x16xf32>
    %97 = vector.broadcast %cst_37 : f32 to vector<1x16xf32>
    %98 = arith.select %95, %96, %97 : vector<1x16xi1>, vector<1x16xf32>
    %c2_i32_38 = arith.constant 2 : i32
    %99 = vector.broadcast %c2_i32_38 : i32 to vector<1x16xi32>
    %100 = arith.cmpi eq, %8, %99 : vector<1x16xi32>
    %cst_39 = arith.constant 1.000000e+00 : f32
    %cst_40 = arith.constant 0.000000e+00 : f32
    %101 = vector.broadcast %cst_39 : f32 to vector<1x16xf32>
    %102 = vector.broadcast %cst_40 : f32 to vector<1x16xf32>
    %103 = arith.select %100, %101, %102 : vector<1x16xi1>, vector<1x16xf32>
    %c3_i32_41 = arith.constant 3 : i32
    %104 = vector.broadcast %c3_i32_41 : i32 to vector<1x16xi32>
    %105 = arith.cmpi eq, %8, %104 : vector<1x16xi32>
    %cst_42 = arith.constant 1.000000e+00 : f32
    %cst_43 = arith.constant 0.000000e+00 : f32
    %106 = vector.broadcast %cst_42 : f32 to vector<1x16xf32>
    %107 = vector.broadcast %cst_43 : f32 to vector<1x16xf32>
    %108 = arith.select %105, %106, %107 : vector<1x16xi1>, vector<1x16xf32>
    %c4_i32_44 = arith.constant 4 : i32
    %109 = vector.broadcast %c4_i32_44 : i32 to vector<1x16xi32>
    %110 = arith.cmpi eq, %8, %109 : vector<1x16xi32>
    %cst_45 = arith.constant 1.000000e+00 : f32
    %cst_46 = arith.constant 0.000000e+00 : f32
    %111 = vector.broadcast %cst_45 : f32 to vector<1x16xf32>
    %112 = vector.broadcast %cst_46 : f32 to vector<1x16xf32>
    %113 = arith.select %110, %111, %112 : vector<1x16xi1>, vector<1x16xf32>
    %c5_i32_47 = arith.constant 5 : i32
    %114 = vector.broadcast %c5_i32_47 : i32 to vector<1x16xi32>
    %115 = arith.cmpi eq, %8, %114 : vector<1x16xi32>
    %cst_48 = arith.constant 1.000000e+00 : f32
    %cst_49 = arith.constant 0.000000e+00 : f32
    %116 = vector.broadcast %cst_48 : f32 to vector<1x16xf32>
    %117 = vector.broadcast %cst_49 : f32 to vector<1x16xf32>
    %118 = arith.select %115, %116, %117 : vector<1x16xi1>, vector<1x16xf32>
    %c6_i32_50 = arith.constant 6 : i32
    %119 = vector.broadcast %c6_i32_50 : i32 to vector<1x16xi32>
    %120 = arith.cmpi eq, %8, %119 : vector<1x16xi32>
    %cst_51 = arith.constant 1.000000e+00 : f32
    %cst_52 = arith.constant 0.000000e+00 : f32
    %121 = vector.broadcast %cst_51 : f32 to vector<1x16xf32>
    %122 = vector.broadcast %cst_52 : f32 to vector<1x16xf32>
    %123 = arith.select %120, %121, %122 : vector<1x16xi1>, vector<1x16xf32>
    %c7_i32_53 = arith.constant 7 : i32
    %124 = vector.broadcast %c7_i32_53 : i32 to vector<1x16xi32>
    %125 = arith.cmpi eq, %8, %124 : vector<1x16xi32>
    %cst_54 = arith.constant 1.000000e+00 : f32
    %cst_55 = arith.constant 0.000000e+00 : f32
    %126 = vector.broadcast %cst_54 : f32 to vector<1x16xf32>
    %127 = vector.broadcast %cst_55 : f32 to vector<1x16xf32>
    %128 = arith.select %125, %126, %127 : vector<1x16xi1>, vector<1x16xf32>
    %c8_i32_56 = arith.constant 8 : i32
    %129 = vector.broadcast %c8_i32_56 : i32 to vector<1x16xi32>
    %130 = arith.cmpi eq, %8, %129 : vector<1x16xi32>
    %cst_57 = arith.constant 1.000000e+00 : f32
    %cst_58 = arith.constant 0.000000e+00 : f32
    %131 = vector.broadcast %cst_57 : f32 to vector<1x16xf32>
    %132 = vector.broadcast %cst_58 : f32 to vector<1x16xf32>
    %133 = arith.select %130, %131, %132 : vector<1x16xi1>, vector<1x16xf32>
    %c9_i32_59 = arith.constant 9 : i32
    %134 = vector.broadcast %c9_i32_59 : i32 to vector<1x16xi32>
    %135 = arith.cmpi eq, %8, %134 : vector<1x16xi32>
    %cst_60 = arith.constant 1.000000e+00 : f32
    %cst_61 = arith.constant 0.000000e+00 : f32
    %136 = vector.broadcast %cst_60 : f32 to vector<1x16xf32>
    %137 = vector.broadcast %cst_61 : f32 to vector<1x16xf32>
    %138 = arith.select %135, %136, %137 : vector<1x16xi1>, vector<1x16xf32>
    %c10_i32_62 = arith.constant 10 : i32
    %139 = vector.broadcast %c10_i32_62 : i32 to vector<1x16xi32>
    %140 = arith.cmpi eq, %8, %139 : vector<1x16xi32>
    %cst_63 = arith.constant 1.000000e+00 : f32
    %cst_64 = arith.constant 0.000000e+00 : f32
    %141 = vector.broadcast %cst_63 : f32 to vector<1x16xf32>
    %142 = vector.broadcast %cst_64 : f32 to vector<1x16xf32>
    %143 = arith.select %140, %141, %142 : vector<1x16xi1>, vector<1x16xf32>
    %c11_i32_65 = arith.constant 11 : i32
    %144 = vector.broadcast %c11_i32_65 : i32 to vector<1x16xi32>
    %145 = arith.cmpi eq, %8, %144 : vector<1x16xi32>
    %cst_66 = arith.constant 1.000000e+00 : f32
    %cst_67 = arith.constant 0.000000e+00 : f32
    %146 = vector.broadcast %cst_66 : f32 to vector<1x16xf32>
    %147 = vector.broadcast %cst_67 : f32 to vector<1x16xf32>
    %148 = arith.select %145, %146, %147 : vector<1x16xi1>, vector<1x16xf32>
    %c12_i32_68 = arith.constant 12 : i32
    %149 = vector.broadcast %c12_i32_68 : i32 to vector<1x16xi32>
    %150 = arith.cmpi eq, %8, %149 : vector<1x16xi32>
    %cst_69 = arith.constant 1.000000e+00 : f32
    %cst_70 = arith.constant 0.000000e+00 : f32
    %151 = vector.broadcast %cst_69 : f32 to vector<1x16xf32>
    %152 = vector.broadcast %cst_70 : f32 to vector<1x16xf32>
    %153 = arith.select %150, %151, %152 : vector<1x16xi1>, vector<1x16xf32>
    %c13_i32_71 = arith.constant 13 : i32
    %154 = vector.broadcast %c13_i32_71 : i32 to vector<1x16xi32>
    %155 = arith.cmpi eq, %8, %154 : vector<1x16xi32>
    %cst_72 = arith.constant 1.000000e+00 : f32
    %cst_73 = arith.constant 0.000000e+00 : f32
    %156 = vector.broadcast %cst_72 : f32 to vector<1x16xf32>
    %157 = vector.broadcast %cst_73 : f32 to vector<1x16xf32>
    %158 = arith.select %155, %156, %157 : vector<1x16xi1>, vector<1x16xf32>
    %c14_i32_74 = arith.constant 14 : i32
    %159 = vector.broadcast %c14_i32_74 : i32 to vector<1x16xi32>
    %160 = arith.cmpi eq, %8, %159 : vector<1x16xi32>
    %cst_75 = arith.constant 1.000000e+00 : f32
    %cst_76 = arith.constant 0.000000e+00 : f32
    %161 = vector.broadcast %cst_75 : f32 to vector<1x16xf32>
    %162 = vector.broadcast %cst_76 : f32 to vector<1x16xf32>
    %163 = arith.select %160, %161, %162 : vector<1x16xi1>, vector<1x16xf32>
    %c15_i32_77 = arith.constant 15 : i32
    %164 = vector.broadcast %c15_i32_77 : i32 to vector<1x16xi32>
    %165 = arith.cmpi eq, %8, %164 : vector<1x16xi32>
    %cst_78 = arith.constant 1.000000e+00 : f32
    %cst_79 = arith.constant 0.000000e+00 : f32
    %166 = vector.broadcast %cst_78 : f32 to vector<1x16xf32>
    %167 = vector.broadcast %cst_79 : f32 to vector<1x16xf32>
    %168 = arith.select %165, %166, %167 : vector<1x16xi1>, vector<1x16xf32>
    %169 = tpu.iota {dimensions = array<i32: 0>} : vector<8x8xi32>
    %170 = tpu.iota {dimensions = array<i32: 1>} : vector<8x8xi32>
    %171 = arith.subi %170, %169 : vector<8x8xi32>
    %c0_i32_80 = arith.constant 0 : i32
    %172 = vector.broadcast %c0_i32_80 : i32 to vector<8x8xi32>
    %173 = arith.cmpi slt, %171, %172 : vector<8x8xi32>
    %c8_i32_81 = arith.constant 8 : i32
    %174 = vector.broadcast %c8_i32_81 : i32 to vector<8x8xi32>
    %175 = arith.addi %171, %174 : vector<8x8xi32>
    %176 = arith.select %173, %175, %171 : vector<8x8xi1>, vector<8x8xi32>
    %177 = tpu.iota {dimensions = array<i32: 1>} : vector<1x8xi32>
    %c0_i32_82 = arith.constant 0 : i32
    %178 = vector.broadcast %c0_i32_82 : i32 to vector<8x8xi32>
    %179 = arith.cmpi eq, %176, %178 : vector<8x8xi32>
    %cst_83 = arith.constant 1.000000e+00 : f32
    %cst_84 = arith.constant 0.000000e+00 : f32
    %180 = vector.broadcast %cst_83 : f32 to vector<8x8xf32>
    %181 = vector.broadcast %cst_84 : f32 to vector<8x8xf32>
    %182 = arith.select %179, %180, %181 : vector<8x8xi1>, vector<8x8xf32>
    %c1_i32_85 = arith.constant 1 : i32
    %183 = vector.broadcast %c1_i32_85 : i32 to vector<8x8xi32>
    %184 = arith.cmpi eq, %176, %183 : vector<8x8xi32>
    %cst_86 = arith.constant 1.000000e+00 : f32
    %cst_87 = arith.constant 0.000000e+00 : f32
    %185 = vector.broadcast %cst_86 : f32 to vector<8x8xf32>
    %186 = vector.broadcast %cst_87 : f32 to vector<8x8xf32>
    %187 = arith.select %184, %185, %186 : vector<8x8xi1>, vector<8x8xf32>
    %c2_i32_88 = arith.constant 2 : i32
    %188 = vector.broadcast %c2_i32_88 : i32 to vector<8x8xi32>
    %189 = arith.cmpi eq, %176, %188 : vector<8x8xi32>
    %cst_89 = arith.constant 1.000000e+00 : f32
    %cst_90 = arith.constant 0.000000e+00 : f32
    %190 = vector.broadcast %cst_89 : f32 to vector<8x8xf32>
    %191 = vector.broadcast %cst_90 : f32 to vector<8x8xf32>
    %192 = arith.select %189, %190, %191 : vector<8x8xi1>, vector<8x8xf32>
    %c3_i32_91 = arith.constant 3 : i32
    %193 = vector.broadcast %c3_i32_91 : i32 to vector<8x8xi32>
    %194 = arith.cmpi eq, %176, %193 : vector<8x8xi32>
    %cst_92 = arith.constant 1.000000e+00 : f32
    %cst_93 = arith.constant 0.000000e+00 : f32
    %195 = vector.broadcast %cst_92 : f32 to vector<8x8xf32>
    %196 = vector.broadcast %cst_93 : f32 to vector<8x8xf32>
    %197 = arith.select %194, %195, %196 : vector<8x8xi1>, vector<8x8xf32>
    %c4_i32_94 = arith.constant 4 : i32
    %198 = vector.broadcast %c4_i32_94 : i32 to vector<8x8xi32>
    %199 = arith.cmpi eq, %176, %198 : vector<8x8xi32>
    %cst_95 = arith.constant 1.000000e+00 : f32
    %cst_96 = arith.constant 0.000000e+00 : f32
    %200 = vector.broadcast %cst_95 : f32 to vector<8x8xf32>
    %201 = vector.broadcast %cst_96 : f32 to vector<8x8xf32>
    %202 = arith.select %199, %200, %201 : vector<8x8xi1>, vector<8x8xf32>
    %c5_i32_97 = arith.constant 5 : i32
    %203 = vector.broadcast %c5_i32_97 : i32 to vector<8x8xi32>
    %204 = arith.cmpi eq, %176, %203 : vector<8x8xi32>
    %cst_98 = arith.constant 1.000000e+00 : f32
    %cst_99 = arith.constant 0.000000e+00 : f32
    %205 = vector.broadcast %cst_98 : f32 to vector<8x8xf32>
    %206 = vector.broadcast %cst_99 : f32 to vector<8x8xf32>
    %207 = arith.select %204, %205, %206 : vector<8x8xi1>, vector<8x8xf32>
    %c6_i32_100 = arith.constant 6 : i32
    %208 = vector.broadcast %c6_i32_100 : i32 to vector<8x8xi32>
    %209 = arith.cmpi eq, %176, %208 : vector<8x8xi32>
    %cst_101 = arith.constant 1.000000e+00 : f32
    %cst_102 = arith.constant 0.000000e+00 : f32
    %210 = vector.broadcast %cst_101 : f32 to vector<8x8xf32>
    %211 = vector.broadcast %cst_102 : f32 to vector<8x8xf32>
    %212 = arith.select %209, %210, %211 : vector<8x8xi1>, vector<8x8xf32>
    %c7_i32_103 = arith.constant 7 : i32
    %213 = vector.broadcast %c7_i32_103 : i32 to vector<8x8xi32>
    %214 = arith.cmpi eq, %176, %213 : vector<8x8xi32>
    %cst_104 = arith.constant 1.000000e+00 : f32
    %cst_105 = arith.constant 0.000000e+00 : f32
    %215 = vector.broadcast %cst_104 : f32 to vector<8x8xf32>
    %216 = vector.broadcast %cst_105 : f32 to vector<8x8xf32>
    %217 = arith.select %214, %215, %216 : vector<8x8xi1>, vector<8x8xf32>
    %c0_i32_106 = arith.constant 0 : i32
    %218 = vector.broadcast %c0_i32_106 : i32 to vector<1x8xi32>
    %219 = arith.cmpi eq, %177, %218 : vector<1x8xi32>
    %cst_107 = arith.constant 1.000000e+00 : f32
    %cst_108 = arith.constant 0.000000e+00 : f32
    %220 = vector.broadcast %cst_107 : f32 to vector<1x8xf32>
    %221 = vector.broadcast %cst_108 : f32 to vector<1x8xf32>
    %222 = arith.select %219, %220, %221 : vector<1x8xi1>, vector<1x8xf32>
    %c1_i32_109 = arith.constant 1 : i32
    %223 = vector.broadcast %c1_i32_109 : i32 to vector<1x8xi32>
    %224 = arith.cmpi eq, %177, %223 : vector<1x8xi32>
    %cst_110 = arith.constant 1.000000e+00 : f32
    %cst_111 = arith.constant 0.000000e+00 : f32
    %225 = vector.broadcast %cst_110 : f32 to vector<1x8xf32>
    %226 = vector.broadcast %cst_111 : f32 to vector<1x8xf32>
    %227 = arith.select %224, %225, %226 : vector<1x8xi1>, vector<1x8xf32>
    %c2_i32_112 = arith.constant 2 : i32
    %228 = vector.broadcast %c2_i32_112 : i32 to vector<1x8xi32>
    %229 = arith.cmpi eq, %177, %228 : vector<1x8xi32>
    %cst_113 = arith.constant 1.000000e+00 : f32
    %cst_114 = arith.constant 0.000000e+00 : f32
    %230 = vector.broadcast %cst_113 : f32 to vector<1x8xf32>
    %231 = vector.broadcast %cst_114 : f32 to vector<1x8xf32>
    %232 = arith.select %229, %230, %231 : vector<1x8xi1>, vector<1x8xf32>
    %c3_i32_115 = arith.constant 3 : i32
    %233 = vector.broadcast %c3_i32_115 : i32 to vector<1x8xi32>
    %234 = arith.cmpi eq, %177, %233 : vector<1x8xi32>
    %cst_116 = arith.constant 1.000000e+00 : f32
    %cst_117 = arith.constant 0.000000e+00 : f32
    %235 = vector.broadcast %cst_116 : f32 to vector<1x8xf32>
    %236 = vector.broadcast %cst_117 : f32 to vector<1x8xf32>
    %237 = arith.select %234, %235, %236 : vector<1x8xi1>, vector<1x8xf32>
    %c4_i32_118 = arith.constant 4 : i32
    %238 = vector.broadcast %c4_i32_118 : i32 to vector<1x8xi32>
    %239 = arith.cmpi eq, %177, %238 : vector<1x8xi32>
    %cst_119 = arith.constant 1.000000e+00 : f32
    %cst_120 = arith.constant 0.000000e+00 : f32
    %240 = vector.broadcast %cst_119 : f32 to vector<1x8xf32>
    %241 = vector.broadcast %cst_120 : f32 to vector<1x8xf32>
    %242 = arith.select %239, %240, %241 : vector<1x8xi1>, vector<1x8xf32>
    %c5_i32_121 = arith.constant 5 : i32
    %243 = vector.broadcast %c5_i32_121 : i32 to vector<1x8xi32>
    %244 = arith.cmpi eq, %177, %243 : vector<1x8xi32>
    %cst_122 = arith.constant 1.000000e+00 : f32
    %cst_123 = arith.constant 0.000000e+00 : f32
    %245 = vector.broadcast %cst_122 : f32 to vector<1x8xf32>
    %246 = vector.broadcast %cst_123 : f32 to vector<1x8xf32>
    %247 = arith.select %244, %245, %246 : vector<1x8xi1>, vector<1x8xf32>
    %c6_i32_124 = arith.constant 6 : i32
    %248 = vector.broadcast %c6_i32_124 : i32 to vector<1x8xi32>
    %249 = arith.cmpi eq, %177, %248 : vector<1x8xi32>
    %cst_125 = arith.constant 1.000000e+00 : f32
    %cst_126 = arith.constant 0.000000e+00 : f32
    %250 = vector.broadcast %cst_125 : f32 to vector<1x8xf32>
    %251 = vector.broadcast %cst_126 : f32 to vector<1x8xf32>
    %252 = arith.select %249, %250, %251 : vector<1x8xi1>, vector<1x8xf32>
    %c7_i32_127 = arith.constant 7 : i32
    %253 = vector.broadcast %c7_i32_127 : i32 to vector<1x8xi32>
    %254 = arith.cmpi eq, %177, %253 : vector<1x8xi32>
    %cst_128 = arith.constant 1.000000e+00 : f32
    %cst_129 = arith.constant 0.000000e+00 : f32
    %255 = vector.broadcast %cst_128 : f32 to vector<1x8xf32>
    %256 = vector.broadcast %cst_129 : f32 to vector<1x8xf32>
    %257 = arith.select %254, %255, %256 : vector<1x8xi1>, vector<1x8xf32>
    %c0 = arith.constant 0 : index
    %c0_130 = arith.constant 0 : index
    %258 = vector.load %arg2[%c0, %c0_130] : memref<728x128xf32, #tpu.memory_space<vmem>>, vector<16x16xf32>
    %c16 = arith.constant 16 : index
    %c0_131 = arith.constant 0 : index
    %259 = vector.load %arg2[%c16, %c0_131] : memref<728x128xf32, #tpu.memory_space<vmem>>, vector<8x8xf32>
    %c48 = arith.constant 48 : index
    %c0_132 = arith.constant 0 : index
    %260 = vector.load %arg2[%c48, %c0_132] : memref<728x128xf32, #tpu.memory_space<vmem>>, vector<2x32xf32>
    %c56 = arith.constant 56 : index
    %c0_133 = arith.constant 0 : index
    %261 = vector.load %arg2[%c56, %c0_133] : memref<728x128xf32, #tpu.memory_space<vmem>>, vector<4x32xf32>
    %c0_134 = arith.constant 0 : index
    %c0_135 = arith.constant 0 : index
    %c0_136 = arith.constant 0 : index
    %262 = vector.load %arg1[%c0_134, %c0_135, %c0_136] : memref<1x16x1xf32, #tpu.memory_space<vmem>>, vector<1x16x1xf32>
    %263 = vector.shape_cast %262 : vector<1x16x1xf32> to vector<16x1xf32>
    %264 = vector.extract_strided_slice %260 {offsets = [0, 0], sizes = [1, 32], strides = [1, 1]} : vector<2x32xf32> to vector<1x32xf32>
    %265 = vector.broadcast %263 : vector<16x1xf32> to vector<16x32xf32>
    %266 = vector.broadcast %264 : vector<1x32xf32> to vector<16x32xf32>
    %267 = arith.mulf %265, %266 : vector<16x32xf32>
    %c24 = arith.constant 24 : index
    %c0_137 = arith.constant 0 : index
    %268 = vector.load %arg2[%c24, %c0_137] : memref<728x128xf32, #tpu.memory_space<vmem>>, vector<16x32xf32>
    %269 = arith.addf %267, %268 : vector<16x32xf32>
    %270 = vector.extract_strided_slice %261 {offsets = [0, 0], sizes = [1, 32], strides = [1, 1]} : vector<4x32xf32> to vector<1x32xf32>
    %271 = vector.extract_strided_slice %261 {offsets = [1, 0], sizes = [1, 32], strides = [1, 1]} : vector<4x32xf32> to vector<1x32xf32>
    %cst_138 = arith.constant dense<0.000000e+00> : vector<16xf32>
    %272 = vector.multi_reduction <add>, %269, %cst_138 [1] : vector<16x32xf32> to vector<16xf32>
    %273 = vector.shape_cast %272 : vector<16xf32> to vector<16x1xf32>
    %cst_139 = arith.constant 3.200000e+01 : f32
    %274 = vector.broadcast %cst_139 : f32 to vector<16x1xf32>
    %275 = arith.divf %273, %274 : vector<16x1xf32>
    %276 = vector.broadcast %275 : vector<16x1xf32> to vector<16x32xf32>
    %277 = arith.subf %269, %276 : vector<16x32xf32>
    %278 = arith.mulf %277, %277 : vector<16x32xf32>
    %cst_140 = arith.constant dense<0.000000e+00> : vector<16xf32>
    %279 = vector.multi_reduction <add>, %278, %cst_140 [1] : vector<16x32xf32> to vector<16xf32>
    %280 = vector.shape_cast %279 : vector<16xf32> to vector<16x1xf32>
    %cst_141 = arith.constant 3.200000e+01 : f32
    %281 = vector.broadcast %cst_141 : f32 to vector<16x1xf32>
    %282 = arith.divf %280, %281 : vector<16x1xf32>
    %283 = vector.broadcast %275 : vector<16x1xf32> to vector<16x32xf32>
    %284 = arith.subf %269, %283 : vector<16x32xf32>
    %cst_142 = arith.constant 9.99999974E-6 : f32
    %285 = vector.broadcast %cst_142 : f32 to vector<16x1xf32>
    %286 = arith.addf %282, %285 : vector<16x1xf32>
    %287 = math.rsqrt %286 : vector<16x1xf32>
    %288 = vector.broadcast %287 : vector<16x1xf32> to vector<16x32xf32>
    %289 = arith.mulf %284, %288 : vector<16x32xf32>
    %290 = vector.broadcast %270 : vector<1x32xf32> to vector<16x32xf32>
    %291 = arith.mulf %289, %290 : vector<16x32xf32>
    %292 = vector.broadcast %271 : vector<1x32xf32> to vector<16x32xf32>
    %293 = arith.addf %291, %292 : vector<16x32xf32>
    %c144 = arith.constant 144 : index
    %c0_143 = arith.constant 0 : index
    %294 = vector.load %arg2[%c144, %c0_143] : memref<728x128xf32, #tpu.memory_space<vmem>>, vector<4x32xf32>
    %c248 = arith.constant 248 : index
    %c0_144 = arith.constant 0 : index
    %295 = vector.load %arg2[%c248, %c0_144] : memref<728x128xf32, #tpu.memory_space<vmem>>, vector<1x96xf32>
    %c64 = arith.constant 64 : index
    %c0_145 = arith.constant 0 : index
    %296 = vector.load %arg2[%c64, %c0_145] : memref<728x128xf32, #tpu.memory_space<vmem>>, vector<32x96xf32>
    %c96 = arith.constant 96 : index
    %c0_146 = arith.constant 0 : index
    %297 = vector.load %arg2[%c96, %c0_146] : memref<728x128xf32, #tpu.memory_space<vmem>>, vector<1x96xf32>
    %c104 = arith.constant 104 : index
    %c0_147 = arith.constant 0 : index
    %298 = vector.load %arg2[%c104, %c0_147] : memref<728x128xf32, #tpu.memory_space<vmem>>, vector<32x32xf32>
    %c136 = arith.constant 136 : index
    %c0_148 = arith.constant 0 : index
    %299 = vector.load %arg2[%c136, %c0_148] : memref<728x128xf32, #tpu.memory_space<vmem>>, vector<1x32xf32>
    %cst_149 = arith.constant dense<0.000000e+00> : vector<16x96xf32>
    %300 = tpu.matmul %293, %296, %cst_149 {dimension_numbers = #tpu.dot_dimension_numbers<[1], [0], [0], [1], [0, 0, 1, 1], [], []>} : vector<16x32xf32>, vector<32x96xf32>, vector<16x96xf32> -> vector<16x96xf32>
    %301 = vector.broadcast %297 : vector<1x96xf32> to vector<16x96xf32>
    %302 = arith.addf %300, %301 : vector<16x96xf32>
    %303 = vector.extract_strided_slice %302 {offsets = [0, 0], sizes = [16, 32], strides = [1, 1]} : vector<16x96xf32> to vector<16x32xf32>
    %304 = vector.extract_strided_slice %302 {offsets = [0, 32], sizes = [16, 32], strides = [1, 1]} : vector<16x96xf32> to vector<16x32xf32>
    %305 = vector.extract_strided_slice %302 {offsets = [0, 64], sizes = [16, 32], strides = [1, 1]} : vector<16x96xf32> to vector<16x32xf32>
    %cst_150 = arith.constant dense<0.000000e+00> : vector<16x16xf32>
    %306 = tpu.matmul %303, %304, %cst_150 {dimension_numbers = #tpu.dot_dimension_numbers<[1], [1], [0], [0], [0, 0, 1, 0], [], []>} : vector<16x32xf32>, vector<16x32xf32>, vector<16x16xf32> -> vector<16x16xf32>
    %cst_151 = arith.constant 0.000000e+00 : f32
    %307 = vector.broadcast %cst_151 : f32 to vector<1x16xf32>
    %308 = arith.mulf %306, %13 : vector<16x16xf32>
    %cst_152 = arith.constant dense<0.000000e+00> : vector<16xf32>
    %309 = vector.multi_reduction <add>, %308, %cst_152 [1] : vector<16x16xf32> to vector<16xf32>
    %310 = vector.shape_cast %309 : vector<16xf32> to vector<16x1xf32>
    %cst_153 = arith.constant dense<0.000000e+00> : vector<1xf32>
    %311 = vector.multi_reduction <add>, %310, %cst_153 [0] : vector<16x1xf32> to vector<1xf32>
    %312 = vector.shape_cast %311 : vector<1xf32> to vector<1x1xf32>
    %313 = vector.broadcast %312 : vector<1x1xf32> to vector<1x16xf32>
    %314 = arith.mulf %313, %93 : vector<1x16xf32>
    %315 = arith.addf %307, %314 : vector<1x16xf32>
    %316 = arith.mulf %306, %18 : vector<16x16xf32>
    %cst_154 = arith.constant dense<0.000000e+00> : vector<16xf32>
    %317 = vector.multi_reduction <add>, %316, %cst_154 [1] : vector<16x16xf32> to vector<16xf32>
    %318 = vector.shape_cast %317 : vector<16xf32> to vector<16x1xf32>
    %cst_155 = arith.constant dense<0.000000e+00> : vector<1xf32>
    %319 = vector.multi_reduction <add>, %318, %cst_155 [0] : vector<16x1xf32> to vector<1xf32>
    %320 = vector.shape_cast %319 : vector<1xf32> to vector<1x1xf32>
    %321 = vector.broadcast %320 : vector<1x1xf32> to vector<1x16xf32>
    %322 = arith.mulf %321, %98 : vector<1x16xf32>
    %323 = arith.addf %315, %322 : vector<1x16xf32>
    %324 = arith.mulf %306, %23 : vector<16x16xf32>
    %cst_156 = arith.constant dense<0.000000e+00> : vector<16xf32>
    %325 = vector.multi_reduction <add>, %324, %cst_156 [1] : vector<16x16xf32> to vector<16xf32>
    %326 = vector.shape_cast %325 : vector<16xf32> to vector<16x1xf32>
    %cst_157 = arith.constant dense<0.000000e+00> : vector<1xf32>
    %327 = vector.multi_reduction <add>, %326, %cst_157 [0] : vector<16x1xf32> to vector<1xf32>
    %328 = vector.shape_cast %327 : vector<1xf32> to vector<1x1xf32>
    %329 = vector.broadcast %328 : vector<1x1xf32> to vector<1x16xf32>
    %330 = arith.mulf %329, %103 : vector<1x16xf32>
    %331 = arith.addf %323, %330 : vector<1x16xf32>
    %332 = arith.mulf %306, %28 : vector<16x16xf32>
    %cst_158 = arith.constant dense<0.000000e+00> : vector<16xf32>
    %333 = vector.multi_reduction <add>, %332, %cst_158 [1] : vector<16x16xf32> to vector<16xf32>
    %334 = vector.shape_cast %333 : vector<16xf32> to vector<16x1xf32>
    %cst_159 = arith.constant dense<0.000000e+00> : vector<1xf32>
    %335 = vector.multi_reduction <add>, %334, %cst_159 [0] : vector<16x1xf32> to vector<1xf32>
    %336 = vector.shape_cast %335 : vector<1xf32> to vector<1x1xf32>
    %337 = vector.broadcast %336 : vector<1x1xf32> to vector<1x16xf32>
    %338 = arith.mulf %337, %108 : vector<1x16xf32>
    %339 = arith.addf %331, %338 : vector<1x16xf32>
    %340 = arith.mulf %306, %33 : vector<16x16xf32>
    %cst_160 = arith.constant dense<0.000000e+00> : vector<16xf32>
    %341 = vector.multi_reduction <add>, %340, %cst_160 [1] : vector<16x16xf32> to vector<16xf32>
    %342 = vector.shape_cast %341 : vector<16xf32> to vector<16x1xf32>
    %cst_161 = arith.constant dense<0.000000e+00> : vector<1xf32>
    %343 = vector.multi_reduction <add>, %342, %cst_161 [0] : vector<16x1xf32> to vector<1xf32>
    %344 = vector.shape_cast %343 : vector<1xf32> to vector<1x1xf32>
    %345 = vector.broadcast %344 : vector<1x1xf32> to vector<1x16xf32>
    %346 = arith.mulf %345, %113 : vector<1x16xf32>
    %347 = arith.addf %339, %346 : vector<1x16xf32>
    %348 = arith.mulf %306, %38 : vector<16x16xf32>
    %cst_162 = arith.constant dense<0.000000e+00> : vector<16xf32>
    %349 = vector.multi_reduction <add>, %348, %cst_162 [1] : vector<16x16xf32> to vector<16xf32>
    %350 = vector.shape_cast %349 : vector<16xf32> to vector<16x1xf32>
    %cst_163 = arith.constant dense<0.000000e+00> : vector<1xf32>
    %351 = vector.multi_reduction <add>, %350, %cst_163 [0] : vector<16x1xf32> to vector<1xf32>
    %352 = vector.shape_cast %351 : vector<1xf32> to vector<1x1xf32>
    %353 = vector.broadcast %352 : vector<1x1xf32> to vector<1x16xf32>
    %354 = arith.mulf %353, %118 : vector<1x16xf32>
    %355 = arith.addf %347, %354 : vector<1x16xf32>
    %356 = arith.mulf %306, %43 : vector<16x16xf32>
    %cst_164 = arith.constant dense<0.000000e+00> : vector<16xf32>
    %357 = vector.multi_reduction <add>, %356, %cst_164 [1] : vector<16x16xf32> to vector<16xf32>
    %358 = vector.shape_cast %357 : vector<16xf32> to vector<16x1xf32>
    %cst_165 = arith.constant dense<0.000000e+00> : vector<1xf32>
    %359 = vector.multi_reduction <add>, %358, %cst_165 [0] : vector<16x1xf32> to vector<1xf32>
    %360 = vector.shape_cast %359 : vector<1xf32> to vector<1x1xf32>
    %361 = vector.broadcast %360 : vector<1x1xf32> to vector<1x16xf32>
    %362 = arith.mulf %361, %123 : vector<1x16xf32>
    %363 = arith.addf %355, %362 : vector<1x16xf32>
    %364 = arith.mulf %306, %48 : vector<16x16xf32>
    %cst_166 = arith.constant dense<0.000000e+00> : vector<16xf32>
    %365 = vector.multi_reduction <add>, %364, %cst_166 [1] : vector<16x16xf32> to vector<16xf32>
    %366 = vector.shape_cast %365 : vector<16xf32> to vector<16x1xf32>
    %cst_167 = arith.constant dense<0.000000e+00> : vector<1xf32>
    %367 = vector.multi_reduction <add>, %366, %cst_167 [0] : vector<16x1xf32> to vector<1xf32>
    %368 = vector.shape_cast %367 : vector<1xf32> to vector<1x1xf32>
    %369 = vector.broadcast %368 : vector<1x1xf32> to vector<1x16xf32>
    %370 = arith.mulf %369, %128 : vector<1x16xf32>
    %371 = arith.addf %363, %370 : vector<1x16xf32>
    %372 = arith.mulf %306, %53 : vector<16x16xf32>
    %cst_168 = arith.constant dense<0.000000e+00> : vector<16xf32>
    %373 = vector.multi_reduction <add>, %372, %cst_168 [1] : vector<16x16xf32> to vector<16xf32>
    %374 = vector.shape_cast %373 : vector<16xf32> to vector<16x1xf32>
    %cst_169 = arith.constant dense<0.000000e+00> : vector<1xf32>
    %375 = vector.multi_reduction <add>, %374, %cst_169 [0] : vector<16x1xf32> to vector<1xf32>
    %376 = vector.shape_cast %375 : vector<1xf32> to vector<1x1xf32>
    %377 = vector.broadcast %376 : vector<1x1xf32> to vector<1x16xf32>
    %378 = arith.mulf %377, %133 : vector<1x16xf32>
    %379 = arith.addf %371, %378 : vector<1x16xf32>
    %380 = arith.mulf %306, %58 : vector<16x16xf32>
    %cst_170 = arith.constant dense<0.000000e+00> : vector<16xf32>
    %381 = vector.multi_reduction <add>, %380, %cst_170 [1] : vector<16x16xf32> to vector<16xf32>
    %382 = vector.shape_cast %381 : vector<16xf32> to vector<16x1xf32>
    %cst_171 = arith.constant dense<0.000000e+00> : vector<1xf32>
    %383 = vector.multi_reduction <add>, %382, %cst_171 [0] : vector<16x1xf32> to vector<1xf32>
    %384 = vector.shape_cast %383 : vector<1xf32> to vector<1x1xf32>
    %385 = vector.broadcast %384 : vector<1x1xf32> to vector<1x16xf32>
    %386 = arith.mulf %385, %138 : vector<1x16xf32>
    %387 = arith.addf %379, %386 : vector<1x16xf32>
    %388 = arith.mulf %306, %63 : vector<16x16xf32>
    %cst_172 = arith.constant dense<0.000000e+00> : vector<16xf32>
    %389 = vector.multi_reduction <add>, %388, %cst_172 [1] : vector<16x16xf32> to vector<16xf32>
    %390 = vector.shape_cast %389 : vector<16xf32> to vector<16x1xf32>
    %cst_173 = arith.constant dense<0.000000e+00> : vector<1xf32>
    %391 = vector.multi_reduction <add>, %390, %cst_173 [0] : vector<16x1xf32> to vector<1xf32>
    %392 = vector.shape_cast %391 : vector<1xf32> to vector<1x1xf32>
    %393 = vector.broadcast %392 : vector<1x1xf32> to vector<1x16xf32>
    %394 = arith.mulf %393, %143 : vector<1x16xf32>
    %395 = arith.addf %387, %394 : vector<1x16xf32>
    %396 = arith.mulf %306, %68 : vector<16x16xf32>
    %cst_174 = arith.constant dense<0.000000e+00> : vector<16xf32>
    %397 = vector.multi_reduction <add>, %396, %cst_174 [1] : vector<16x16xf32> to vector<16xf32>
    %398 = vector.shape_cast %397 : vector<16xf32> to vector<16x1xf32>
    %cst_175 = arith.constant dense<0.000000e+00> : vector<1xf32>
    %399 = vector.multi_reduction <add>, %398, %cst_175 [0] : vector<16x1xf32> to vector<1xf32>
    %400 = vector.shape_cast %399 : vector<1xf32> to vector<1x1xf32>
    %401 = vector.broadcast %400 : vector<1x1xf32> to vector<1x16xf32>
    %402 = arith.mulf %401, %148 : vector<1x16xf32>
    %403 = arith.addf %395, %402 : vector<1x16xf32>
    %404 = arith.mulf %306, %73 : vector<16x16xf32>
    %cst_176 = arith.constant dense<0.000000e+00> : vector<16xf32>
    %405 = vector.multi_reduction <add>, %404, %cst_176 [1] : vector<16x16xf32> to vector<16xf32>
    %406 = vector.shape_cast %405 : vector<16xf32> to vector<16x1xf32>
    %cst_177 = arith.constant dense<0.000000e+00> : vector<1xf32>
    %407 = vector.multi_reduction <add>, %406, %cst_177 [0] : vector<16x1xf32> to vector<1xf32>
    %408 = vector.shape_cast %407 : vector<1xf32> to vector<1x1xf32>
    %409 = vector.broadcast %408 : vector<1x1xf32> to vector<1x16xf32>
    %410 = arith.mulf %409, %153 : vector<1x16xf32>
    %411 = arith.addf %403, %410 : vector<1x16xf32>
    %412 = arith.mulf %306, %78 : vector<16x16xf32>
    %cst_178 = arith.constant dense<0.000000e+00> : vector<16xf32>
    %413 = vector.multi_reduction <add>, %412, %cst_178 [1] : vector<16x16xf32> to vector<16xf32>
    %414 = vector.shape_cast %413 : vector<16xf32> to vector<16x1xf32>
    %cst_179 = arith.constant dense<0.000000e+00> : vector<1xf32>
    %415 = vector.multi_reduction <add>, %414, %cst_179 [0] : vector<16x1xf32> to vector<1xf32>
    %416 = vector.shape_cast %415 : vector<1xf32> to vector<1x1xf32>
    %417 = vector.broadcast %416 : vector<1x1xf32> to vector<1x16xf32>
    %418 = arith.mulf %417, %158 : vector<1x16xf32>
    %419 = arith.addf %411, %418 : vector<1x16xf32>
    %420 = arith.mulf %306, %83 : vector<16x16xf32>
    %cst_180 = arith.constant dense<0.000000e+00> : vector<16xf32>
    %421 = vector.multi_reduction <add>, %420, %cst_180 [1] : vector<16x16xf32> to vector<16xf32>
    %422 = vector.shape_cast %421 : vector<16xf32> to vector<16x1xf32>
    %cst_181 = arith.constant dense<0.000000e+00> : vector<1xf32>
    %423 = vector.multi_reduction <add>, %422, %cst_181 [0] : vector<16x1xf32> to vector<1xf32>
    %424 = vector.shape_cast %423 : vector<1xf32> to vector<1x1xf32>
    %425 = vector.broadcast %424 : vector<1x1xf32> to vector<1x16xf32>
    %426 = arith.mulf %425, %163 : vector<1x16xf32>
    %427 = arith.addf %419, %426 : vector<1x16xf32>
    %428 = arith.mulf %306, %88 : vector<16x16xf32>
    %cst_182 = arith.constant dense<0.000000e+00> : vector<16xf32>
    %429 = vector.multi_reduction <add>, %428, %cst_182 [1] : vector<16x16xf32> to vector<16xf32>
    %430 = vector.shape_cast %429 : vector<16xf32> to vector<16x1xf32>
    %cst_183 = arith.constant dense<0.000000e+00> : vector<1xf32>
    %431 = vector.multi_reduction <add>, %430, %cst_183 [0] : vector<16x1xf32> to vector<1xf32>
    %432 = vector.shape_cast %431 : vector<1xf32> to vector<1x1xf32>
    %433 = vector.broadcast %432 : vector<1x1xf32> to vector<1x16xf32>
    %434 = arith.mulf %433, %168 : vector<1x16xf32>
    %435 = arith.addf %427, %434 : vector<1x16xf32>
    %cst_184 = arith.constant 3.125000e-02 : f32
    %436 = vector.broadcast %cst_184 : f32 to vector<1x16xf32>
    %437 = arith.mulf %435, %436 : vector<1x16xf32>
    %cst_185 = arith.constant dense<0xFF800000> : vector<1xf32>
    %438 = vector.multi_reduction <maximumf>, %437, %cst_185 [1] : vector<1x16xf32> to vector<1xf32>
    %439 = vector.shape_cast %438 : vector<1xf32> to vector<1x1xf32>
    %440 = vector.broadcast %439 : vector<1x1xf32> to vector<1x16xf32>
    %441 = arith.subf %437, %440 : vector<1x16xf32>
    %442 = math.exp %441 : vector<1x16xf32>
    %cst_186 = arith.constant dense<0.000000e+00> : vector<1xf32>
    %443 = vector.multi_reduction <add>, %442, %cst_186 [1] : vector<1x16xf32> to vector<1xf32>
    %444 = vector.shape_cast %443 : vector<1xf32> to vector<1x1xf32>
    %445 = tpu.reciprocal %444 {approx = true} : vector<1x1xf32> -> vector<1x1xf32>
    %446 = vector.broadcast %445 : vector<1x1xf32> to vector<1x16xf32>
    %447 = arith.mulf %442, %446 : vector<1x16xf32>
    %cst_187 = arith.constant 0.000000e+00 : f32
    %448 = vector.broadcast %cst_187 : f32 to vector<16x16xf32>
    %449 = vector.extract_strided_slice %447 {offsets = [0, 0], sizes = [1, 1], strides = [1, 1]} : vector<1x16xf32> to vector<1x1xf32>
    %450 = vector.broadcast %449 : vector<1x1xf32> to vector<16x16xf32>
    %451 = arith.mulf %450, %13 : vector<16x16xf32>
    %452 = arith.addf %448, %451 : vector<16x16xf32>
    %453 = vector.extract_strided_slice %447 {offsets = [0, 1], sizes = [1, 1], strides = [1, 1]} : vector<1x16xf32> to vector<1x1xf32>
    %454 = vector.broadcast %453 : vector<1x1xf32> to vector<16x16xf32>
    %455 = arith.mulf %454, %18 : vector<16x16xf32>
    %456 = arith.addf %452, %455 : vector<16x16xf32>
    %457 = vector.extract_strided_slice %447 {offsets = [0, 2], sizes = [1, 1], strides = [1, 1]} : vector<1x16xf32> to vector<1x1xf32>
    %458 = vector.broadcast %457 : vector<1x1xf32> to vector<16x16xf32>
    %459 = arith.mulf %458, %23 : vector<16x16xf32>
    %460 = arith.addf %456, %459 : vector<16x16xf32>
    %461 = vector.extract_strided_slice %447 {offsets = [0, 3], sizes = [1, 1], strides = [1, 1]} : vector<1x16xf32> to vector<1x1xf32>
    %462 = vector.broadcast %461 : vector<1x1xf32> to vector<16x16xf32>
    %463 = arith.mulf %462, %28 : vector<16x16xf32>
    %464 = arith.addf %460, %463 : vector<16x16xf32>
    %465 = vector.extract_strided_slice %447 {offsets = [0, 4], sizes = [1, 1], strides = [1, 1]} : vector<1x16xf32> to vector<1x1xf32>
    %466 = vector.broadcast %465 : vector<1x1xf32> to vector<16x16xf32>
    %467 = arith.mulf %466, %33 : vector<16x16xf32>
    %468 = arith.addf %464, %467 : vector<16x16xf32>
    %469 = vector.extract_strided_slice %447 {offsets = [0, 5], sizes = [1, 1], strides = [1, 1]} : vector<1x16xf32> to vector<1x1xf32>
    %470 = vector.broadcast %469 : vector<1x1xf32> to vector<16x16xf32>
    %471 = arith.mulf %470, %38 : vector<16x16xf32>
    %472 = arith.addf %468, %471 : vector<16x16xf32>
    %473 = vector.extract_strided_slice %447 {offsets = [0, 6], sizes = [1, 1], strides = [1, 1]} : vector<1x16xf32> to vector<1x1xf32>
    %474 = vector.broadcast %473 : vector<1x1xf32> to vector<16x16xf32>
    %475 = arith.mulf %474, %43 : vector<16x16xf32>
    %476 = arith.addf %472, %475 : vector<16x16xf32>
    %477 = vector.extract_strided_slice %447 {offsets = [0, 7], sizes = [1, 1], strides = [1, 1]} : vector<1x16xf32> to vector<1x1xf32>
    %478 = vector.broadcast %477 : vector<1x1xf32> to vector<16x16xf32>
    %479 = arith.mulf %478, %48 : vector<16x16xf32>
    %480 = arith.addf %476, %479 : vector<16x16xf32>
    %481 = vector.extract_strided_slice %447 {offsets = [0, 8], sizes = [1, 1], strides = [1, 1]} : vector<1x16xf32> to vector<1x1xf32>
    %482 = vector.broadcast %481 : vector<1x1xf32> to vector<16x16xf32>
    %483 = arith.mulf %482, %53 : vector<16x16xf32>
    %484 = arith.addf %480, %483 : vector<16x16xf32>
    %485 = vector.extract_strided_slice %447 {offsets = [0, 9], sizes = [1, 1], strides = [1, 1]} : vector<1x16xf32> to vector<1x1xf32>
    %486 = vector.broadcast %485 : vector<1x1xf32> to vector<16x16xf32>
    %487 = arith.mulf %486, %58 : vector<16x16xf32>
    %488 = arith.addf %484, %487 : vector<16x16xf32>
    %489 = vector.extract_strided_slice %447 {offsets = [0, 10], sizes = [1, 1], strides = [1, 1]} : vector<1x16xf32> to vector<1x1xf32>
    %490 = vector.broadcast %489 : vector<1x1xf32> to vector<16x16xf32>
    %491 = arith.mulf %490, %63 : vector<16x16xf32>
    %492 = arith.addf %488, %491 : vector<16x16xf32>
    %493 = vector.extract_strided_slice %447 {offsets = [0, 11], sizes = [1, 1], strides = [1, 1]} : vector<1x16xf32> to vector<1x1xf32>
    %494 = vector.broadcast %493 : vector<1x1xf32> to vector<16x16xf32>
    %495 = arith.mulf %494, %68 : vector<16x16xf32>
    %496 = arith.addf %492, %495 : vector<16x16xf32>
    %497 = vector.extract_strided_slice %447 {offsets = [0, 12], sizes = [1, 1], strides = [1, 1]} : vector<1x16xf32> to vector<1x1xf32>
    %498 = vector.broadcast %497 : vector<1x1xf32> to vector<16x16xf32>
    %499 = arith.mulf %498, %73 : vector<16x16xf32>
    %500 = arith.addf %496, %499 : vector<16x16xf32>
    %501 = vector.extract_strided_slice %447 {offsets = [0, 13], sizes = [1, 1], strides = [1, 1]} : vector<1x16xf32> to vector<1x1xf32>
    %502 = vector.broadcast %501 : vector<1x1xf32> to vector<16x16xf32>
    %503 = arith.mulf %502, %78 : vector<16x16xf32>
    %504 = arith.addf %500, %503 : vector<16x16xf32>
    %505 = vector.extract_strided_slice %447 {offsets = [0, 14], sizes = [1, 1], strides = [1, 1]} : vector<1x16xf32> to vector<1x1xf32>
    %506 = vector.broadcast %505 : vector<1x1xf32> to vector<16x16xf32>
    %507 = arith.mulf %506, %83 : vector<16x16xf32>
    %508 = arith.addf %504, %507 : vector<16x16xf32>
    %509 = vector.extract_strided_slice %447 {offsets = [0, 15], sizes = [1, 1], strides = [1, 1]} : vector<1x16xf32> to vector<1x1xf32>
    %510 = vector.broadcast %509 : vector<1x1xf32> to vector<16x16xf32>
    %511 = arith.mulf %510, %88 : vector<16x16xf32>
    %512 = arith.addf %508, %511 : vector<16x16xf32>
    %cst_188 = arith.constant dense<0.000000e+00> : vector<16x32xf32>
    %513 = tpu.matmul %512, %305, %cst_188 {dimension_numbers = #tpu.dot_dimension_numbers<[1], [0], [0], [1], [0, 0, 1, 1], [], []>} : vector<16x16xf32>, vector<16x32xf32>, vector<16x32xf32> -> vector<16x32xf32>
    %cst_189 = arith.constant dense<0.000000e+00> : vector<16x32xf32>
    %514 = tpu.matmul %513, %298, %cst_189 {dimension_numbers = #tpu.dot_dimension_numbers<[1], [0], [0], [1], [0, 0, 1, 1], [], []>} : vector<16x32xf32>, vector<32x32xf32>, vector<16x32xf32> -> vector<16x32xf32>
    %515 = vector.broadcast %299 : vector<1x32xf32> to vector<16x32xf32>
    %516 = arith.addf %514, %515 : vector<16x32xf32>
    %517 = arith.addf %293, %516 : vector<16x32xf32>
    %518 = vector.extract_strided_slice %294 {offsets = [0, 0], sizes = [1, 32], strides = [1, 1]} : vector<4x32xf32> to vector<1x32xf32>
    %519 = vector.extract_strided_slice %294 {offsets = [1, 0], sizes = [1, 32], strides = [1, 1]} : vector<4x32xf32> to vector<1x32xf32>
    %cst_190 = arith.constant dense<0.000000e+00> : vector<16xf32>
    %520 = vector.multi_reduction <add>, %517, %cst_190 [1] : vector<16x32xf32> to vector<16xf32>
    %521 = vector.shape_cast %520 : vector<16xf32> to vector<16x1xf32>
    %cst_191 = arith.constant 3.200000e+01 : f32
    %522 = vector.broadcast %cst_191 : f32 to vector<16x1xf32>
    %523 = arith.divf %521, %522 : vector<16x1xf32>
    %524 = vector.broadcast %523 : vector<16x1xf32> to vector<16x32xf32>
    %525 = arith.subf %517, %524 : vector<16x32xf32>
    %526 = arith.mulf %525, %525 : vector<16x32xf32>
    %cst_192 = arith.constant dense<0.000000e+00> : vector<16xf32>
    %527 = vector.multi_reduction <add>, %526, %cst_192 [1] : vector<16x32xf32> to vector<16xf32>
    %528 = vector.shape_cast %527 : vector<16xf32> to vector<16x1xf32>
    %cst_193 = arith.constant 3.200000e+01 : f32
    %529 = vector.broadcast %cst_193 : f32 to vector<16x1xf32>
    %530 = arith.divf %528, %529 : vector<16x1xf32>
    %531 = vector.broadcast %523 : vector<16x1xf32> to vector<16x32xf32>
    %532 = arith.subf %517, %531 : vector<16x32xf32>
    %cst_194 = arith.constant 9.99999974E-6 : f32
    %533 = vector.broadcast %cst_194 : f32 to vector<16x1xf32>
    %534 = arith.addf %530, %533 : vector<16x1xf32>
    %535 = math.rsqrt %534 : vector<16x1xf32>
    %536 = vector.broadcast %535 : vector<16x1xf32> to vector<16x32xf32>
    %537 = arith.mulf %532, %536 : vector<16x32xf32>
    %538 = vector.broadcast %518 : vector<1x32xf32> to vector<16x32xf32>
    %539 = arith.mulf %537, %538 : vector<16x32xf32>
    %540 = vector.broadcast %519 : vector<1x32xf32> to vector<16x32xf32>
    %541 = arith.addf %539, %540 : vector<16x32xf32>
    %cst_195 = arith.constant dense<0.000000e+00> : vector<16x32xf32>
    %542 = tpu.matmul %258, %541, %cst_195 {dimension_numbers = #tpu.dot_dimension_numbers<[1], [0], [0], [1], [0, 0, 1, 1], [], []>} : vector<16x16xf32>, vector<16x32xf32>, vector<16x32xf32> -> vector<16x32xf32>
    %543 = arith.subf %541, %542 : vector<16x32xf32>
    %c152 = arith.constant 152 : index
    %c0_196 = arith.constant 0 : index
    %544 = vector.load %arg2[%c152, %c0_196] : memref<728x128xf32, #tpu.memory_space<vmem>>, vector<32x64xf32>
    %cst_197 = arith.constant dense<0.000000e+00> : vector<16x64xf32>
    %545 = tpu.matmul %543, %544, %cst_197 {dimension_numbers = #tpu.dot_dimension_numbers<[1], [0], [0], [1], [0, 0, 1, 1], [], []>} : vector<16x32xf32>, vector<32x64xf32>, vector<16x64xf32> -> vector<16x64xf32>
    %546 = vector.extract_strided_slice %295 {offsets = [0, 0], sizes = [1, 64], strides = [1, 1]} : vector<1x96xf32> to vector<1x64xf32>
    %547 = vector.broadcast %546 : vector<1x64xf32> to vector<16x64xf32>
    %548 = arith.addf %545, %547 : vector<16x64xf32>
    %549 = arith.mulf %548, %548 : vector<16x64xf32>
    %550 = arith.mulf %548, %549 : vector<16x64xf32>
    %cst_198 = arith.constant 4.471500e-02 : f32
    %551 = vector.broadcast %cst_198 : f32 to vector<16x64xf32>
    %552 = arith.mulf %551, %550 : vector<16x64xf32>
    %553 = arith.addf %548, %552 : vector<16x64xf32>
    %cst_199 = arith.constant 0.797884583 : f32
    %554 = vector.broadcast %cst_199 : f32 to vector<16x64xf32>
    %555 = arith.mulf %554, %553 : vector<16x64xf32>
    %556 = math.tanh %555 : vector<16x64xf32>
    %cst_200 = arith.constant 1.000000e+00 : f32
    %557 = vector.broadcast %cst_200 : f32 to vector<16x64xf32>
    %558 = arith.addf %557, %556 : vector<16x64xf32>
    %cst_201 = arith.constant 5.000000e-01 : f32
    %559 = vector.broadcast %cst_201 : f32 to vector<16x64xf32>
    %560 = arith.mulf %559, %558 : vector<16x64xf32>
    %561 = arith.mulf %548, %560 : vector<16x64xf32>
    %c184 = arith.constant 184 : index
    %c0_202 = arith.constant 0 : index
    %562 = vector.load %arg2[%c184, %c0_202] : memref<728x128xf32, #tpu.memory_space<vmem>>, vector<64x32xf32>
    %cst_203 = arith.constant dense<0.000000e+00> : vector<16x32xf32>
    %563 = tpu.matmul %561, %562, %cst_203 {dimension_numbers = #tpu.dot_dimension_numbers<[1], [0], [0], [1], [0, 0, 1, 1], [], []>} : vector<16x64xf32>, vector<64x32xf32>, vector<16x32xf32> -> vector<16x32xf32>
    %564 = vector.extract_strided_slice %295 {offsets = [0, 64], sizes = [1, 32], strides = [1, 1]} : vector<1x96xf32> to vector<1x32xf32>
    %565 = vector.broadcast %564 : vector<1x32xf32> to vector<16x32xf32>
    %566 = arith.addf %563, %565 : vector<16x32xf32>
    %567 = arith.addf %543, %566 : vector<16x32xf32>
    %568 = vector.extract_strided_slice %294 {offsets = [2, 0], sizes = [1, 32], strides = [1, 1]} : vector<4x32xf32> to vector<1x32xf32>
    %569 = vector.extract_strided_slice %294 {offsets = [3, 0], sizes = [1, 32], strides = [1, 1]} : vector<4x32xf32> to vector<1x32xf32>
    %cst_204 = arith.constant dense<0.000000e+00> : vector<16xf32>
    %570 = vector.multi_reduction <add>, %567, %cst_204 [1] : vector<16x32xf32> to vector<16xf32>
    %571 = vector.shape_cast %570 : vector<16xf32> to vector<16x1xf32>
    %cst_205 = arith.constant 3.200000e+01 : f32
    %572 = vector.broadcast %cst_205 : f32 to vector<16x1xf32>
    %573 = arith.divf %571, %572 : vector<16x1xf32>
    %574 = vector.broadcast %573 : vector<16x1xf32> to vector<16x32xf32>
    %575 = arith.subf %567, %574 : vector<16x32xf32>
    %576 = arith.mulf %575, %575 : vector<16x32xf32>
    %cst_206 = arith.constant dense<0.000000e+00> : vector<16xf32>
    %577 = vector.multi_reduction <add>, %576, %cst_206 [1] : vector<16x32xf32> to vector<16xf32>
    %578 = vector.shape_cast %577 : vector<16xf32> to vector<16x1xf32>
    %cst_207 = arith.constant 3.200000e+01 : f32
    %579 = vector.broadcast %cst_207 : f32 to vector<16x1xf32>
    %580 = arith.divf %578, %579 : vector<16x1xf32>
    %581 = vector.broadcast %573 : vector<16x1xf32> to vector<16x32xf32>
    %582 = arith.subf %567, %581 : vector<16x32xf32>
    %cst_208 = arith.constant 9.99999974E-6 : f32
    %583 = vector.broadcast %cst_208 : f32 to vector<16x1xf32>
    %584 = arith.addf %580, %583 : vector<16x1xf32>
    %585 = math.rsqrt %584 : vector<16x1xf32>
    %586 = vector.broadcast %585 : vector<16x1xf32> to vector<16x32xf32>
    %587 = arith.mulf %582, %586 : vector<16x32xf32>
    %588 = vector.broadcast %568 : vector<1x32xf32> to vector<16x32xf32>
    %589 = arith.mulf %587, %588 : vector<16x32xf32>
    %590 = vector.broadcast %569 : vector<1x32xf32> to vector<16x32xf32>
    %591 = arith.addf %589, %590 : vector<16x32xf32>
    %cst_209 = arith.constant dense<0.000000e+00> : vector<16x32xf32>
    %592 = tpu.matmul %258, %591, %cst_209 {dimension_numbers = #tpu.dot_dimension_numbers<[1], [0], [0], [1], [0, 0, 1, 1], [], []>} : vector<16x16xf32>, vector<16x32xf32>, vector<16x32xf32> -> vector<16x32xf32>
    %593 = arith.subf %591, %592 : vector<16x32xf32>
    %c336 = arith.constant 336 : index
    %c0_210 = arith.constant 0 : index
    %594 = vector.load %arg2[%c336, %c0_210] : memref<728x128xf32, #tpu.memory_space<vmem>>, vector<4x32xf32>
    %c440 = arith.constant 440 : index
    %c0_211 = arith.constant 0 : index
    %595 = vector.load %arg2[%c440, %c0_211] : memref<728x128xf32, #tpu.memory_space<vmem>>, vector<1x96xf32>
    %c256 = arith.constant 256 : index
    %c0_212 = arith.constant 0 : index
    %596 = vector.load %arg2[%c256, %c0_212] : memref<728x128xf32, #tpu.memory_space<vmem>>, vector<32x96xf32>
    %c288 = arith.constant 288 : index
    %c0_213 = arith.constant 0 : index
    %597 = vector.load %arg2[%c288, %c0_213] : memref<728x128xf32, #tpu.memory_space<vmem>>, vector<1x96xf32>
    %c296 = arith.constant 296 : index
    %c0_214 = arith.constant 0 : index
    %598 = vector.load %arg2[%c296, %c0_214] : memref<728x128xf32, #tpu.memory_space<vmem>>, vector<32x32xf32>
    %c328 = arith.constant 328 : index
    %c0_215 = arith.constant 0 : index
    %599 = vector.load %arg2[%c328, %c0_215] : memref<728x128xf32, #tpu.memory_space<vmem>>, vector<1x32xf32>
    %cst_216 = arith.constant dense<0.000000e+00> : vector<16x96xf32>
    %600 = tpu.matmul %593, %596, %cst_216 {dimension_numbers = #tpu.dot_dimension_numbers<[1], [0], [0], [1], [0, 0, 1, 1], [], []>} : vector<16x32xf32>, vector<32x96xf32>, vector<16x96xf32> -> vector<16x96xf32>
    %601 = vector.broadcast %597 : vector<1x96xf32> to vector<16x96xf32>
    %602 = arith.addf %600, %601 : vector<16x96xf32>
    %603 = vector.extract_strided_slice %602 {offsets = [0, 0], sizes = [16, 32], strides = [1, 1]} : vector<16x96xf32> to vector<16x32xf32>
    %604 = vector.extract_strided_slice %602 {offsets = [0, 32], sizes = [16, 32], strides = [1, 1]} : vector<16x96xf32> to vector<16x32xf32>
    %605 = vector.extract_strided_slice %602 {offsets = [0, 64], sizes = [16, 32], strides = [1, 1]} : vector<16x96xf32> to vector<16x32xf32>
    %cst_217 = arith.constant dense<0.000000e+00> : vector<16x16xf32>
    %606 = tpu.matmul %603, %604, %cst_217 {dimension_numbers = #tpu.dot_dimension_numbers<[1], [1], [0], [0], [0, 0, 1, 0], [], []>} : vector<16x32xf32>, vector<16x32xf32>, vector<16x16xf32> -> vector<16x16xf32>
    %cst_218 = arith.constant 0.000000e+00 : f32
    %607 = vector.broadcast %cst_218 : f32 to vector<1x16xf32>
    %608 = arith.mulf %606, %13 : vector<16x16xf32>
    %cst_219 = arith.constant dense<0.000000e+00> : vector<16xf32>
    %609 = vector.multi_reduction <add>, %608, %cst_219 [1] : vector<16x16xf32> to vector<16xf32>
    %610 = vector.shape_cast %609 : vector<16xf32> to vector<16x1xf32>
    %cst_220 = arith.constant dense<0.000000e+00> : vector<1xf32>
    %611 = vector.multi_reduction <add>, %610, %cst_220 [0] : vector<16x1xf32> to vector<1xf32>
    %612 = vector.shape_cast %611 : vector<1xf32> to vector<1x1xf32>
    %613 = vector.broadcast %612 : vector<1x1xf32> to vector<1x16xf32>
    %614 = arith.mulf %613, %93 : vector<1x16xf32>
    %615 = arith.addf %607, %614 : vector<1x16xf32>
    %616 = arith.mulf %606, %18 : vector<16x16xf32>
    %cst_221 = arith.constant dense<0.000000e+00> : vector<16xf32>
    %617 = vector.multi_reduction <add>, %616, %cst_221 [1] : vector<16x16xf32> to vector<16xf32>
    %618 = vector.shape_cast %617 : vector<16xf32> to vector<16x1xf32>
    %cst_222 = arith.constant dense<0.000000e+00> : vector<1xf32>
    %619 = vector.multi_reduction <add>, %618, %cst_222 [0] : vector<16x1xf32> to vector<1xf32>
    %620 = vector.shape_cast %619 : vector<1xf32> to vector<1x1xf32>
    %621 = vector.broadcast %620 : vector<1x1xf32> to vector<1x16xf32>
    %622 = arith.mulf %621, %98 : vector<1x16xf32>
    %623 = arith.addf %615, %622 : vector<1x16xf32>
    %624 = arith.mulf %606, %23 : vector<16x16xf32>
    %cst_223 = arith.constant dense<0.000000e+00> : vector<16xf32>
    %625 = vector.multi_reduction <add>, %624, %cst_223 [1] : vector<16x16xf32> to vector<16xf32>
    %626 = vector.shape_cast %625 : vector<16xf32> to vector<16x1xf32>
    %cst_224 = arith.constant dense<0.000000e+00> : vector<1xf32>
    %627 = vector.multi_reduction <add>, %626, %cst_224 [0] : vector<16x1xf32> to vector<1xf32>
    %628 = vector.shape_cast %627 : vector<1xf32> to vector<1x1xf32>
    %629 = vector.broadcast %628 : vector<1x1xf32> to vector<1x16xf32>
    %630 = arith.mulf %629, %103 : vector<1x16xf32>
    %631 = arith.addf %623, %630 : vector<1x16xf32>
    %632 = arith.mulf %606, %28 : vector<16x16xf32>
    %cst_225 = arith.constant dense<0.000000e+00> : vector<16xf32>
    %633 = vector.multi_reduction <add>, %632, %cst_225 [1] : vector<16x16xf32> to vector<16xf32>
    %634 = vector.shape_cast %633 : vector<16xf32> to vector<16x1xf32>
    %cst_226 = arith.constant dense<0.000000e+00> : vector<1xf32>
    %635 = vector.multi_reduction <add>, %634, %cst_226 [0] : vector<16x1xf32> to vector<1xf32>
    %636 = vector.shape_cast %635 : vector<1xf32> to vector<1x1xf32>
    %637 = vector.broadcast %636 : vector<1x1xf32> to vector<1x16xf32>
    %638 = arith.mulf %637, %108 : vector<1x16xf32>
    %639 = arith.addf %631, %638 : vector<1x16xf32>
    %640 = arith.mulf %606, %33 : vector<16x16xf32>
    %cst_227 = arith.constant dense<0.000000e+00> : vector<16xf32>
    %641 = vector.multi_reduction <add>, %640, %cst_227 [1] : vector<16x16xf32> to vector<16xf32>
    %642 = vector.shape_cast %641 : vector<16xf32> to vector<16x1xf32>
    %cst_228 = arith.constant dense<0.000000e+00> : vector<1xf32>
    %643 = vector.multi_reduction <add>, %642, %cst_228 [0] : vector<16x1xf32> to vector<1xf32>
    %644 = vector.shape_cast %643 : vector<1xf32> to vector<1x1xf32>
    %645 = vector.broadcast %644 : vector<1x1xf32> to vector<1x16xf32>
    %646 = arith.mulf %645, %113 : vector<1x16xf32>
    %647 = arith.addf %639, %646 : vector<1x16xf32>
    %648 = arith.mulf %606, %38 : vector<16x16xf32>
    %cst_229 = arith.constant dense<0.000000e+00> : vector<16xf32>
    %649 = vector.multi_reduction <add>, %648, %cst_229 [1] : vector<16x16xf32> to vector<16xf32>
    %650 = vector.shape_cast %649 : vector<16xf32> to vector<16x1xf32>
    %cst_230 = arith.constant dense<0.000000e+00> : vector<1xf32>
    %651 = vector.multi_reduction <add>, %650, %cst_230 [0] : vector<16x1xf32> to vector<1xf32>
    %652 = vector.shape_cast %651 : vector<1xf32> to vector<1x1xf32>
    %653 = vector.broadcast %652 : vector<1x1xf32> to vector<1x16xf32>
    %654 = arith.mulf %653, %118 : vector<1x16xf32>
    %655 = arith.addf %647, %654 : vector<1x16xf32>
    %656 = arith.mulf %606, %43 : vector<16x16xf32>
    %cst_231 = arith.constant dense<0.000000e+00> : vector<16xf32>
    %657 = vector.multi_reduction <add>, %656, %cst_231 [1] : vector<16x16xf32> to vector<16xf32>
    %658 = vector.shape_cast %657 : vector<16xf32> to vector<16x1xf32>
    %cst_232 = arith.constant dense<0.000000e+00> : vector<1xf32>
    %659 = vector.multi_reduction <add>, %658, %cst_232 [0] : vector<16x1xf32> to vector<1xf32>
    %660 = vector.shape_cast %659 : vector<1xf32> to vector<1x1xf32>
    %661 = vector.broadcast %660 : vector<1x1xf32> to vector<1x16xf32>
    %662 = arith.mulf %661, %123 : vector<1x16xf32>
    %663 = arith.addf %655, %662 : vector<1x16xf32>
    %664 = arith.mulf %606, %48 : vector<16x16xf32>
    %cst_233 = arith.constant dense<0.000000e+00> : vector<16xf32>
    %665 = vector.multi_reduction <add>, %664, %cst_233 [1] : vector<16x16xf32> to vector<16xf32>
    %666 = vector.shape_cast %665 : vector<16xf32> to vector<16x1xf32>
    %cst_234 = arith.constant dense<0.000000e+00> : vector<1xf32>
    %667 = vector.multi_reduction <add>, %666, %cst_234 [0] : vector<16x1xf32> to vector<1xf32>
    %668 = vector.shape_cast %667 : vector<1xf32> to vector<1x1xf32>
    %669 = vector.broadcast %668 : vector<1x1xf32> to vector<1x16xf32>
    %670 = arith.mulf %669, %128 : vector<1x16xf32>
    %671 = arith.addf %663, %670 : vector<1x16xf32>
    %672 = arith.mulf %606, %53 : vector<16x16xf32>
    %cst_235 = arith.constant dense<0.000000e+00> : vector<16xf32>
    %673 = vector.multi_reduction <add>, %672, %cst_235 [1] : vector<16x16xf32> to vector<16xf32>
    %674 = vector.shape_cast %673 : vector<16xf32> to vector<16x1xf32>
    %cst_236 = arith.constant dense<0.000000e+00> : vector<1xf32>
    %675 = vector.multi_reduction <add>, %674, %cst_236 [0] : vector<16x1xf32> to vector<1xf32>
    %676 = vector.shape_cast %675 : vector<1xf32> to vector<1x1xf32>
    %677 = vector.broadcast %676 : vector<1x1xf32> to vector<1x16xf32>
    %678 = arith.mulf %677, %133 : vector<1x16xf32>
    %679 = arith.addf %671, %678 : vector<1x16xf32>
    %680 = arith.mulf %606, %58 : vector<16x16xf32>
    %cst_237 = arith.constant dense<0.000000e+00> : vector<16xf32>
    %681 = vector.multi_reduction <add>, %680, %cst_237 [1] : vector<16x16xf32> to vector<16xf32>
    %682 = vector.shape_cast %681 : vector<16xf32> to vector<16x1xf32>
    %cst_238 = arith.constant dense<0.000000e+00> : vector<1xf32>
    %683 = vector.multi_reduction <add>, %682, %cst_238 [0] : vector<16x1xf32> to vector<1xf32>
    %684 = vector.shape_cast %683 : vector<1xf32> to vector<1x1xf32>
    %685 = vector.broadcast %684 : vector<1x1xf32> to vector<1x16xf32>
    %686 = arith.mulf %685, %138 : vector<1x16xf32>
    %687 = arith.addf %679, %686 : vector<1x16xf32>
    %688 = arith.mulf %606, %63 : vector<16x16xf32>
    %cst_239 = arith.constant dense<0.000000e+00> : vector<16xf32>
    %689 = vector.multi_reduction <add>, %688, %cst_239 [1] : vector<16x16xf32> to vector<16xf32>
    %690 = vector.shape_cast %689 : vector<16xf32> to vector<16x1xf32>
    %cst_240 = arith.constant dense<0.000000e+00> : vector<1xf32>
    %691 = vector.multi_reduction <add>, %690, %cst_240 [0] : vector<16x1xf32> to vector<1xf32>
    %692 = vector.shape_cast %691 : vector<1xf32> to vector<1x1xf32>
    %693 = vector.broadcast %692 : vector<1x1xf32> to vector<1x16xf32>
    %694 = arith.mulf %693, %143 : vector<1x16xf32>
    %695 = arith.addf %687, %694 : vector<1x16xf32>
    %696 = arith.mulf %606, %68 : vector<16x16xf32>
    %cst_241 = arith.constant dense<0.000000e+00> : vector<16xf32>
    %697 = vector.multi_reduction <add>, %696, %cst_241 [1] : vector<16x16xf32> to vector<16xf32>
    %698 = vector.shape_cast %697 : vector<16xf32> to vector<16x1xf32>
    %cst_242 = arith.constant dense<0.000000e+00> : vector<1xf32>
    %699 = vector.multi_reduction <add>, %698, %cst_242 [0] : vector<16x1xf32> to vector<1xf32>
    %700 = vector.shape_cast %699 : vector<1xf32> to vector<1x1xf32>
    %701 = vector.broadcast %700 : vector<1x1xf32> to vector<1x16xf32>
    %702 = arith.mulf %701, %148 : vector<1x16xf32>
    %703 = arith.addf %695, %702 : vector<1x16xf32>
    %704 = arith.mulf %606, %73 : vector<16x16xf32>
    %cst_243 = arith.constant dense<0.000000e+00> : vector<16xf32>
    %705 = vector.multi_reduction <add>, %704, %cst_243 [1] : vector<16x16xf32> to vector<16xf32>
    %706 = vector.shape_cast %705 : vector<16xf32> to vector<16x1xf32>
    %cst_244 = arith.constant dense<0.000000e+00> : vector<1xf32>
    %707 = vector.multi_reduction <add>, %706, %cst_244 [0] : vector<16x1xf32> to vector<1xf32>
    %708 = vector.shape_cast %707 : vector<1xf32> to vector<1x1xf32>
    %709 = vector.broadcast %708 : vector<1x1xf32> to vector<1x16xf32>
    %710 = arith.mulf %709, %153 : vector<1x16xf32>
    %711 = arith.addf %703, %710 : vector<1x16xf32>
    %712 = arith.mulf %606, %78 : vector<16x16xf32>
    %cst_245 = arith.constant dense<0.000000e+00> : vector<16xf32>
    %713 = vector.multi_reduction <add>, %712, %cst_245 [1] : vector<16x16xf32> to vector<16xf32>
    %714 = vector.shape_cast %713 : vector<16xf32> to vector<16x1xf32>
    %cst_246 = arith.constant dense<0.000000e+00> : vector<1xf32>
    %715 = vector.multi_reduction <add>, %714, %cst_246 [0] : vector<16x1xf32> to vector<1xf32>
    %716 = vector.shape_cast %715 : vector<1xf32> to vector<1x1xf32>
    %717 = vector.broadcast %716 : vector<1x1xf32> to vector<1x16xf32>
    %718 = arith.mulf %717, %158 : vector<1x16xf32>
    %719 = arith.addf %711, %718 : vector<1x16xf32>
    %720 = arith.mulf %606, %83 : vector<16x16xf32>
    %cst_247 = arith.constant dense<0.000000e+00> : vector<16xf32>
    %721 = vector.multi_reduction <add>, %720, %cst_247 [1] : vector<16x16xf32> to vector<16xf32>
    %722 = vector.shape_cast %721 : vector<16xf32> to vector<16x1xf32>
    %cst_248 = arith.constant dense<0.000000e+00> : vector<1xf32>
    %723 = vector.multi_reduction <add>, %722, %cst_248 [0] : vector<16x1xf32> to vector<1xf32>
    %724 = vector.shape_cast %723 : vector<1xf32> to vector<1x1xf32>
    %725 = vector.broadcast %724 : vector<1x1xf32> to vector<1x16xf32>
    %726 = arith.mulf %725, %163 : vector<1x16xf32>
    %727 = arith.addf %719, %726 : vector<1x16xf32>
    %728 = arith.mulf %606, %88 : vector<16x16xf32>
    %cst_249 = arith.constant dense<0.000000e+00> : vector<16xf32>
    %729 = vector.multi_reduction <add>, %728, %cst_249 [1] : vector<16x16xf32> to vector<16xf32>
    %730 = vector.shape_cast %729 : vector<16xf32> to vector<16x1xf32>
    %cst_250 = arith.constant dense<0.000000e+00> : vector<1xf32>
    %731 = vector.multi_reduction <add>, %730, %cst_250 [0] : vector<16x1xf32> to vector<1xf32>
    %732 = vector.shape_cast %731 : vector<1xf32> to vector<1x1xf32>
    %733 = vector.broadcast %732 : vector<1x1xf32> to vector<1x16xf32>
    %734 = arith.mulf %733, %168 : vector<1x16xf32>
    %735 = arith.addf %727, %734 : vector<1x16xf32>
    %cst_251 = arith.constant 3.125000e-02 : f32
    %736 = vector.broadcast %cst_251 : f32 to vector<1x16xf32>
    %737 = arith.mulf %735, %736 : vector<1x16xf32>
    %cst_252 = arith.constant dense<0xFF800000> : vector<1xf32>
    %738 = vector.multi_reduction <maximumf>, %737, %cst_252 [1] : vector<1x16xf32> to vector<1xf32>
    %739 = vector.shape_cast %738 : vector<1xf32> to vector<1x1xf32>
    %740 = vector.broadcast %739 : vector<1x1xf32> to vector<1x16xf32>
    %741 = arith.subf %737, %740 : vector<1x16xf32>
    %742 = math.exp %741 : vector<1x16xf32>
    %cst_253 = arith.constant dense<0.000000e+00> : vector<1xf32>
    %743 = vector.multi_reduction <add>, %742, %cst_253 [1] : vector<1x16xf32> to vector<1xf32>
    %744 = vector.shape_cast %743 : vector<1xf32> to vector<1x1xf32>
    %745 = tpu.reciprocal %744 {approx = true} : vector<1x1xf32> -> vector<1x1xf32>
    %746 = vector.broadcast %745 : vector<1x1xf32> to vector<1x16xf32>
    %747 = arith.mulf %742, %746 : vector<1x16xf32>
    %cst_254 = arith.constant 0.000000e+00 : f32
    %748 = vector.broadcast %cst_254 : f32 to vector<16x16xf32>
    %749 = vector.extract_strided_slice %747 {offsets = [0, 0], sizes = [1, 1], strides = [1, 1]} : vector<1x16xf32> to vector<1x1xf32>
    %750 = vector.broadcast %749 : vector<1x1xf32> to vector<16x16xf32>
    %751 = arith.mulf %750, %13 : vector<16x16xf32>
    %752 = arith.addf %748, %751 : vector<16x16xf32>
    %753 = vector.extract_strided_slice %747 {offsets = [0, 1], sizes = [1, 1], strides = [1, 1]} : vector<1x16xf32> to vector<1x1xf32>
    %754 = vector.broadcast %753 : vector<1x1xf32> to vector<16x16xf32>
    %755 = arith.mulf %754, %18 : vector<16x16xf32>
    %756 = arith.addf %752, %755 : vector<16x16xf32>
    %757 = vector.extract_strided_slice %747 {offsets = [0, 2], sizes = [1, 1], strides = [1, 1]} : vector<1x16xf32> to vector<1x1xf32>
    %758 = vector.broadcast %757 : vector<1x1xf32> to vector<16x16xf32>
    %759 = arith.mulf %758, %23 : vector<16x16xf32>
    %760 = arith.addf %756, %759 : vector<16x16xf32>
    %761 = vector.extract_strided_slice %747 {offsets = [0, 3], sizes = [1, 1], strides = [1, 1]} : vector<1x16xf32> to vector<1x1xf32>
    %762 = vector.broadcast %761 : vector<1x1xf32> to vector<16x16xf32>
    %763 = arith.mulf %762, %28 : vector<16x16xf32>
    %764 = arith.addf %760, %763 : vector<16x16xf32>
    %765 = vector.extract_strided_slice %747 {offsets = [0, 4], sizes = [1, 1], strides = [1, 1]} : vector<1x16xf32> to vector<1x1xf32>
    %766 = vector.broadcast %765 : vector<1x1xf32> to vector<16x16xf32>
    %767 = arith.mulf %766, %33 : vector<16x16xf32>
    %768 = arith.addf %764, %767 : vector<16x16xf32>
    %769 = vector.extract_strided_slice %747 {offsets = [0, 5], sizes = [1, 1], strides = [1, 1]} : vector<1x16xf32> to vector<1x1xf32>
    %770 = vector.broadcast %769 : vector<1x1xf32> to vector<16x16xf32>
    %771 = arith.mulf %770, %38 : vector<16x16xf32>
    %772 = arith.addf %768, %771 : vector<16x16xf32>
    %773 = vector.extract_strided_slice %747 {offsets = [0, 6], sizes = [1, 1], strides = [1, 1]} : vector<1x16xf32> to vector<1x1xf32>
    %774 = vector.broadcast %773 : vector<1x1xf32> to vector<16x16xf32>
    %775 = arith.mulf %774, %43 : vector<16x16xf32>
    %776 = arith.addf %772, %775 : vector<16x16xf32>
    %777 = vector.extract_strided_slice %747 {offsets = [0, 7], sizes = [1, 1], strides = [1, 1]} : vector<1x16xf32> to vector<1x1xf32>
    %778 = vector.broadcast %777 : vector<1x1xf32> to vector<16x16xf32>
    %779 = arith.mulf %778, %48 : vector<16x16xf32>
    %780 = arith.addf %776, %779 : vector<16x16xf32>
    %781 = vector.extract_strided_slice %747 {offsets = [0, 8], sizes = [1, 1], strides = [1, 1]} : vector<1x16xf32> to vector<1x1xf32>
    %782 = vector.broadcast %781 : vector<1x1xf32> to vector<16x16xf32>
    %783 = arith.mulf %782, %53 : vector<16x16xf32>
    %784 = arith.addf %780, %783 : vector<16x16xf32>
    %785 = vector.extract_strided_slice %747 {offsets = [0, 9], sizes = [1, 1], strides = [1, 1]} : vector<1x16xf32> to vector<1x1xf32>
    %786 = vector.broadcast %785 : vector<1x1xf32> to vector<16x16xf32>
    %787 = arith.mulf %786, %58 : vector<16x16xf32>
    %788 = arith.addf %784, %787 : vector<16x16xf32>
    %789 = vector.extract_strided_slice %747 {offsets = [0, 10], sizes = [1, 1], strides = [1, 1]} : vector<1x16xf32> to vector<1x1xf32>
    %790 = vector.broadcast %789 : vector<1x1xf32> to vector<16x16xf32>
    %791 = arith.mulf %790, %63 : vector<16x16xf32>
    %792 = arith.addf %788, %791 : vector<16x16xf32>
    %793 = vector.extract_strided_slice %747 {offsets = [0, 11], sizes = [1, 1], strides = [1, 1]} : vector<1x16xf32> to vector<1x1xf32>
    %794 = vector.broadcast %793 : vector<1x1xf32> to vector<16x16xf32>
    %795 = arith.mulf %794, %68 : vector<16x16xf32>
    %796 = arith.addf %792, %795 : vector<16x16xf32>
    %797 = vector.extract_strided_slice %747 {offsets = [0, 12], sizes = [1, 1], strides = [1, 1]} : vector<1x16xf32> to vector<1x1xf32>
    %798 = vector.broadcast %797 : vector<1x1xf32> to vector<16x16xf32>
    %799 = arith.mulf %798, %73 : vector<16x16xf32>
    %800 = arith.addf %796, %799 : vector<16x16xf32>
    %801 = vector.extract_strided_slice %747 {offsets = [0, 13], sizes = [1, 1], strides = [1, 1]} : vector<1x16xf32> to vector<1x1xf32>
    %802 = vector.broadcast %801 : vector<1x1xf32> to vector<16x16xf32>
    %803 = arith.mulf %802, %78 : vector<16x16xf32>
    %804 = arith.addf %800, %803 : vector<16x16xf32>
    %805 = vector.extract_strided_slice %747 {offsets = [0, 14], sizes = [1, 1], strides = [1, 1]} : vector<1x16xf32> to vector<1x1xf32>
    %806 = vector.broadcast %805 : vector<1x1xf32> to vector<16x16xf32>
    %807 = arith.mulf %806, %83 : vector<16x16xf32>
    %808 = arith.addf %804, %807 : vector<16x16xf32>
    %809 = vector.extract_strided_slice %747 {offsets = [0, 15], sizes = [1, 1], strides = [1, 1]} : vector<1x16xf32> to vector<1x1xf32>
    %810 = vector.broadcast %809 : vector<1x1xf32> to vector<16x16xf32>
    %811 = arith.mulf %810, %88 : vector<16x16xf32>
    %812 = arith.addf %808, %811 : vector<16x16xf32>
    %cst_255 = arith.constant dense<0.000000e+00> : vector<16x32xf32>
    %813 = tpu.matmul %812, %605, %cst_255 {dimension_numbers = #tpu.dot_dimension_numbers<[1], [0], [0], [1], [0, 0, 1, 1], [], []>} : vector<16x16xf32>, vector<16x32xf32>, vector<16x32xf32> -> vector<16x32xf32>
    %cst_256 = arith.constant dense<0.000000e+00> : vector<16x32xf32>
    %814 = tpu.matmul %813, %598, %cst_256 {dimension_numbers = #tpu.dot_dimension_numbers<[1], [0], [0], [1], [0, 0, 1, 1], [], []>} : vector<16x32xf32>, vector<32x32xf32>, vector<16x32xf32> -> vector<16x32xf32>
    %815 = vector.broadcast %599 : vector<1x32xf32> to vector<16x32xf32>
    %816 = arith.addf %814, %815 : vector<16x32xf32>
    %817 = arith.addf %593, %816 : vector<16x32xf32>
    %818 = vector.extract_strided_slice %594 {offsets = [0, 0], sizes = [1, 32], strides = [1, 1]} : vector<4x32xf32> to vector<1x32xf32>
    %819 = vector.extract_strided_slice %594 {offsets = [1, 0], sizes = [1, 32], strides = [1, 1]} : vector<4x32xf32> to vector<1x32xf32>
    %cst_257 = arith.constant dense<0.000000e+00> : vector<16xf32>
    %820 = vector.multi_reduction <add>, %817, %cst_257 [1] : vector<16x32xf32> to vector<16xf32>
    %821 = vector.shape_cast %820 : vector<16xf32> to vector<16x1xf32>
    %cst_258 = arith.constant 3.200000e+01 : f32
    %822 = vector.broadcast %cst_258 : f32 to vector<16x1xf32>
    %823 = arith.divf %821, %822 : vector<16x1xf32>
    %824 = vector.broadcast %823 : vector<16x1xf32> to vector<16x32xf32>
    %825 = arith.subf %817, %824 : vector<16x32xf32>
    %826 = arith.mulf %825, %825 : vector<16x32xf32>
    %cst_259 = arith.constant dense<0.000000e+00> : vector<16xf32>
    %827 = vector.multi_reduction <add>, %826, %cst_259 [1] : vector<16x32xf32> to vector<16xf32>
    %828 = vector.shape_cast %827 : vector<16xf32> to vector<16x1xf32>
    %cst_260 = arith.constant 3.200000e+01 : f32
    %829 = vector.broadcast %cst_260 : f32 to vector<16x1xf32>
    %830 = arith.divf %828, %829 : vector<16x1xf32>
    %831 = vector.broadcast %823 : vector<16x1xf32> to vector<16x32xf32>
    %832 = arith.subf %817, %831 : vector<16x32xf32>
    %cst_261 = arith.constant 9.99999974E-6 : f32
    %833 = vector.broadcast %cst_261 : f32 to vector<16x1xf32>
    %834 = arith.addf %830, %833 : vector<16x1xf32>
    %835 = math.rsqrt %834 : vector<16x1xf32>
    %836 = vector.broadcast %835 : vector<16x1xf32> to vector<16x32xf32>
    %837 = arith.mulf %832, %836 : vector<16x32xf32>
    %838 = vector.broadcast %818 : vector<1x32xf32> to vector<16x32xf32>
    %839 = arith.mulf %837, %838 : vector<16x32xf32>
    %840 = vector.broadcast %819 : vector<1x32xf32> to vector<16x32xf32>
    %841 = arith.addf %839, %840 : vector<16x32xf32>
    %cst_262 = arith.constant dense<0.000000e+00> : vector<16x32xf32>
    %842 = tpu.matmul %258, %841, %cst_262 {dimension_numbers = #tpu.dot_dimension_numbers<[1], [0], [0], [1], [0, 0, 1, 1], [], []>} : vector<16x16xf32>, vector<16x32xf32>, vector<16x32xf32> -> vector<16x32xf32>
    %843 = arith.subf %841, %842 : vector<16x32xf32>
    %c344 = arith.constant 344 : index
    %c0_263 = arith.constant 0 : index
    %844 = vector.load %arg2[%c344, %c0_263] : memref<728x128xf32, #tpu.memory_space<vmem>>, vector<32x64xf32>
    %cst_264 = arith.constant dense<0.000000e+00> : vector<16x64xf32>
    %845 = tpu.matmul %843, %844, %cst_264 {dimension_numbers = #tpu.dot_dimension_numbers<[1], [0], [0], [1], [0, 0, 1, 1], [], []>} : vector<16x32xf32>, vector<32x64xf32>, vector<16x64xf32> -> vector<16x64xf32>
    %846 = vector.extract_strided_slice %595 {offsets = [0, 0], sizes = [1, 64], strides = [1, 1]} : vector<1x96xf32> to vector<1x64xf32>
    %847 = vector.broadcast %846 : vector<1x64xf32> to vector<16x64xf32>
    %848 = arith.addf %845, %847 : vector<16x64xf32>
    %849 = arith.mulf %848, %848 : vector<16x64xf32>
    %850 = arith.mulf %848, %849 : vector<16x64xf32>
    %cst_265 = arith.constant 4.471500e-02 : f32
    %851 = vector.broadcast %cst_265 : f32 to vector<16x64xf32>
    %852 = arith.mulf %851, %850 : vector<16x64xf32>
    %853 = arith.addf %848, %852 : vector<16x64xf32>
    %cst_266 = arith.constant 0.797884583 : f32
    %854 = vector.broadcast %cst_266 : f32 to vector<16x64xf32>
    %855 = arith.mulf %854, %853 : vector<16x64xf32>
    %856 = math.tanh %855 : vector<16x64xf32>
    %cst_267 = arith.constant 1.000000e+00 : f32
    %857 = vector.broadcast %cst_267 : f32 to vector<16x64xf32>
    %858 = arith.addf %857, %856 : vector<16x64xf32>
    %cst_268 = arith.constant 5.000000e-01 : f32
    %859 = vector.broadcast %cst_268 : f32 to vector<16x64xf32>
    %860 = arith.mulf %859, %858 : vector<16x64xf32>
    %861 = arith.mulf %848, %860 : vector<16x64xf32>
    %c376 = arith.constant 376 : index
    %c0_269 = arith.constant 0 : index
    %862 = vector.load %arg2[%c376, %c0_269] : memref<728x128xf32, #tpu.memory_space<vmem>>, vector<64x32xf32>
    %cst_270 = arith.constant dense<0.000000e+00> : vector<16x32xf32>
    %863 = tpu.matmul %861, %862, %cst_270 {dimension_numbers = #tpu.dot_dimension_numbers<[1], [0], [0], [1], [0, 0, 1, 1], [], []>} : vector<16x64xf32>, vector<64x32xf32>, vector<16x32xf32> -> vector<16x32xf32>
    %864 = vector.extract_strided_slice %595 {offsets = [0, 64], sizes = [1, 32], strides = [1, 1]} : vector<1x96xf32> to vector<1x32xf32>
    %865 = vector.broadcast %864 : vector<1x32xf32> to vector<16x32xf32>
    %866 = arith.addf %863, %865 : vector<16x32xf32>
    %867 = arith.addf %843, %866 : vector<16x32xf32>
    %868 = vector.extract_strided_slice %594 {offsets = [2, 0], sizes = [1, 32], strides = [1, 1]} : vector<4x32xf32> to vector<1x32xf32>
    %869 = vector.extract_strided_slice %594 {offsets = [3, 0], sizes = [1, 32], strides = [1, 1]} : vector<4x32xf32> to vector<1x32xf32>
    %cst_271 = arith.constant dense<0.000000e+00> : vector<16xf32>
    %870 = vector.multi_reduction <add>, %867, %cst_271 [1] : vector<16x32xf32> to vector<16xf32>
    %871 = vector.shape_cast %870 : vector<16xf32> to vector<16x1xf32>
    %cst_272 = arith.constant 3.200000e+01 : f32
    %872 = vector.broadcast %cst_272 : f32 to vector<16x1xf32>
    %873 = arith.divf %871, %872 : vector<16x1xf32>
    %874 = vector.broadcast %873 : vector<16x1xf32> to vector<16x32xf32>
    %875 = arith.subf %867, %874 : vector<16x32xf32>
    %876 = arith.mulf %875, %875 : vector<16x32xf32>
    %cst_273 = arith.constant dense<0.000000e+00> : vector<16xf32>
    %877 = vector.multi_reduction <add>, %876, %cst_273 [1] : vector<16x32xf32> to vector<16xf32>
    %878 = vector.shape_cast %877 : vector<16xf32> to vector<16x1xf32>
    %cst_274 = arith.constant 3.200000e+01 : f32
    %879 = vector.broadcast %cst_274 : f32 to vector<16x1xf32>
    %880 = arith.divf %878, %879 : vector<16x1xf32>
    %881 = vector.broadcast %873 : vector<16x1xf32> to vector<16x32xf32>
    %882 = arith.subf %867, %881 : vector<16x32xf32>
    %cst_275 = arith.constant 9.99999974E-6 : f32
    %883 = vector.broadcast %cst_275 : f32 to vector<16x1xf32>
    %884 = arith.addf %880, %883 : vector<16x1xf32>
    %885 = math.rsqrt %884 : vector<16x1xf32>
    %886 = vector.broadcast %885 : vector<16x1xf32> to vector<16x32xf32>
    %887 = arith.mulf %882, %886 : vector<16x32xf32>
    %888 = vector.broadcast %868 : vector<1x32xf32> to vector<16x32xf32>
    %889 = arith.mulf %887, %888 : vector<16x32xf32>
    %890 = vector.broadcast %869 : vector<1x32xf32> to vector<16x32xf32>
    %891 = arith.addf %889, %890 : vector<16x32xf32>
    %cst_276 = arith.constant dense<0.000000e+00> : vector<16x32xf32>
    %892 = tpu.matmul %258, %891, %cst_276 {dimension_numbers = #tpu.dot_dimension_numbers<[1], [0], [0], [1], [0, 0, 1, 1], [], []>} : vector<16x16xf32>, vector<16x32xf32>, vector<16x32xf32> -> vector<16x32xf32>
    %893 = arith.subf %891, %892 : vector<16x32xf32>
    %cst_277 = arith.constant dense<0.000000e+00> : vector<16x1xf32>
    %894 = tpu.matmul %258, %263, %cst_277 {dimension_numbers = #tpu.dot_dimension_numbers<[1], [0], [0], [1], [0, 0, 1, 1], [], []>} : vector<16x16xf32>, vector<16x1xf32>, vector<16x1xf32> -> vector<16x1xf32>
    %895 = arith.subf %263, %894 : vector<16x1xf32>
    %cst_278 = arith.constant dense<0.000000e+00> : vector<1xf32>
    %896 = vector.multi_reduction <add>, %263, %cst_278 [0] : vector<16x1xf32> to vector<1xf32>
    %897 = vector.shape_cast %896 : vector<1xf32> to vector<1x1xf32>
    %cst_279 = arith.constant 1.600000e+01 : f32
    %898 = vector.broadcast %cst_279 : f32 to vector<1x1xf32>
    %899 = arith.divf %897, %898 : vector<1x1xf32>
    %900 = vector.extract_strided_slice %895 {offsets = [12, 0], sizes = [4, 1], strides = [1, 1]} : vector<16x1xf32> to vector<4x1xf32>
    %cst_280 = arith.constant 0.000000e+00 : f32
    %901 = vector.broadcast %cst_280 : f32 to vector<4x1xf32>
    %902 = tpu.concatenate %900, %901 in 0 : vector<4x1xf32>, vector<4x1xf32> -> vector<8x1xf32>
    %903 = vector.extract_strided_slice %894 {offsets = [12, 0], sizes = [4, 1], strides = [1, 1]} : vector<16x1xf32> to vector<4x1xf32>
    %cst_281 = arith.constant 0.000000e+00 : f32
    %904 = vector.broadcast %cst_281 : f32 to vector<4x1xf32>
    %905 = vector.broadcast %899 : vector<1x1xf32> to vector<4x1xf32>
    %906 = arith.addf %904, %905 : vector<4x1xf32>
    %907 = tpu.concatenate %903, %906 in 0 : vector<4x1xf32>, vector<4x1xf32> -> vector<8x1xf32>
    %908 = vector.extract_strided_slice %260 {offsets = [1, 0], sizes = [1, 32], strides = [1, 1]} : vector<2x32xf32> to vector<1x32xf32>
    %909 = vector.broadcast %902 : vector<8x1xf32> to vector<8x32xf32>
    %910 = vector.broadcast %908 : vector<1x32xf32> to vector<8x32xf32>
    %911 = arith.mulf %909, %910 : vector<8x32xf32>
    %c40 = arith.constant 40 : index
    %c0_282 = arith.constant 0 : index
    %912 = vector.load %arg2[%c40, %c0_282] : memref<728x128xf32, #tpu.memory_space<vmem>>, vector<8x32xf32>
    %913 = arith.addf %911, %912 : vector<8x32xf32>
    %914 = vector.extract_strided_slice %261 {offsets = [2, 0], sizes = [1, 32], strides = [1, 1]} : vector<4x32xf32> to vector<1x32xf32>
    %915 = vector.extract_strided_slice %261 {offsets = [3, 0], sizes = [1, 32], strides = [1, 1]} : vector<4x32xf32> to vector<1x32xf32>
    %cst_283 = arith.constant dense<0.000000e+00> : vector<8xf32>
    %916 = vector.multi_reduction <add>, %913, %cst_283 [1] : vector<8x32xf32> to vector<8xf32>
    %917 = vector.shape_cast %916 : vector<8xf32> to vector<8x1xf32>
    %cst_284 = arith.constant 3.200000e+01 : f32
    %918 = vector.broadcast %cst_284 : f32 to vector<8x1xf32>
    %919 = arith.divf %917, %918 : vector<8x1xf32>
    %920 = vector.broadcast %919 : vector<8x1xf32> to vector<8x32xf32>
    %921 = arith.subf %913, %920 : vector<8x32xf32>
    %922 = arith.mulf %921, %921 : vector<8x32xf32>
    %cst_285 = arith.constant dense<0.000000e+00> : vector<8xf32>
    %923 = vector.multi_reduction <add>, %922, %cst_285 [1] : vector<8x32xf32> to vector<8xf32>
    %924 = vector.shape_cast %923 : vector<8xf32> to vector<8x1xf32>
    %cst_286 = arith.constant 3.200000e+01 : f32
    %925 = vector.broadcast %cst_286 : f32 to vector<8x1xf32>
    %926 = arith.divf %924, %925 : vector<8x1xf32>
    %927 = vector.broadcast %919 : vector<8x1xf32> to vector<8x32xf32>
    %928 = arith.subf %913, %927 : vector<8x32xf32>
    %cst_287 = arith.constant 9.99999974E-6 : f32
    %929 = vector.broadcast %cst_287 : f32 to vector<8x1xf32>
    %930 = arith.addf %926, %929 : vector<8x1xf32>
    %931 = math.rsqrt %930 : vector<8x1xf32>
    %932 = vector.broadcast %931 : vector<8x1xf32> to vector<8x32xf32>
    %933 = arith.mulf %928, %932 : vector<8x32xf32>
    %934 = vector.broadcast %914 : vector<1x32xf32> to vector<8x32xf32>
    %935 = arith.mulf %933, %934 : vector<8x32xf32>
    %936 = vector.broadcast %915 : vector<1x32xf32> to vector<8x32xf32>
    %937 = arith.addf %935, %936 : vector<8x32xf32>
    %c608 = arith.constant 608 : index
    %c0_288 = arith.constant 0 : index
    %938 = vector.load %arg2[%c608, %c0_288] : memref<728x128xf32, #tpu.memory_space<vmem>>, vector<6x32xf32>
    %c712 = arith.constant 712 : index
    %c0_289 = arith.constant 0 : index
    %939 = vector.load %arg2[%c712, %c0_289] : memref<728x128xf32, #tpu.memory_space<vmem>>, vector<1x96xf32>
    %c720 = arith.constant 720 : index
    %c0_290 = arith.constant 0 : index
    %940 = vector.load %arg2[%c720, %c0_290] : memref<728x128xf32, #tpu.memory_space<vmem>>, vector<1x96xf32>
    %c448 = arith.constant 448 : index
    %c0_291 = arith.constant 0 : index
    %941 = vector.load %arg2[%c448, %c0_291] : memref<728x128xf32, #tpu.memory_space<vmem>>, vector<32x96xf32>
    %c480 = arith.constant 480 : index
    %c0_292 = arith.constant 0 : index
    %942 = vector.load %arg2[%c480, %c0_292] : memref<728x128xf32, #tpu.memory_space<vmem>>, vector<1x96xf32>
    %c488 = arith.constant 488 : index
    %c0_293 = arith.constant 0 : index
    %943 = vector.load %arg2[%c488, %c0_293] : memref<728x128xf32, #tpu.memory_space<vmem>>, vector<32x32xf32>
    %c520 = arith.constant 520 : index
    %c0_294 = arith.constant 0 : index
    %944 = vector.load %arg2[%c520, %c0_294] : memref<728x128xf32, #tpu.memory_space<vmem>>, vector<1x32xf32>
    %cst_295 = arith.constant dense<0.000000e+00> : vector<8x96xf32>
    %945 = tpu.matmul %937, %941, %cst_295 {dimension_numbers = #tpu.dot_dimension_numbers<[1], [0], [0], [1], [0, 0, 1, 1], [], []>} : vector<8x32xf32>, vector<32x96xf32>, vector<8x96xf32> -> vector<8x96xf32>
    %946 = vector.broadcast %942 : vector<1x96xf32> to vector<8x96xf32>
    %947 = arith.addf %945, %946 : vector<8x96xf32>
    %948 = vector.extract_strided_slice %947 {offsets = [0, 0], sizes = [8, 32], strides = [1, 1]} : vector<8x96xf32> to vector<8x32xf32>
    %949 = vector.extract_strided_slice %947 {offsets = [0, 32], sizes = [8, 32], strides = [1, 1]} : vector<8x96xf32> to vector<8x32xf32>
    %950 = vector.extract_strided_slice %947 {offsets = [0, 64], sizes = [8, 32], strides = [1, 1]} : vector<8x96xf32> to vector<8x32xf32>
    %cst_296 = arith.constant dense<0.000000e+00> : vector<8x8xf32>
    %951 = tpu.matmul %948, %949, %cst_296 {dimension_numbers = #tpu.dot_dimension_numbers<[1], [1], [0], [0], [0, 0, 1, 0], [], []>} : vector<8x32xf32>, vector<8x32xf32>, vector<8x8xf32> -> vector<8x8xf32>
    %cst_297 = arith.constant 0.000000e+00 : f32
    %952 = vector.broadcast %cst_297 : f32 to vector<1x8xf32>
    %953 = arith.mulf %951, %182 : vector<8x8xf32>
    %cst_298 = arith.constant dense<0.000000e+00> : vector<8xf32>
    %954 = vector.multi_reduction <add>, %953, %cst_298 [1] : vector<8x8xf32> to vector<8xf32>
    %955 = vector.shape_cast %954 : vector<8xf32> to vector<8x1xf32>
    %cst_299 = arith.constant dense<0.000000e+00> : vector<1xf32>
    %956 = vector.multi_reduction <add>, %955, %cst_299 [0] : vector<8x1xf32> to vector<1xf32>
    %957 = vector.shape_cast %956 : vector<1xf32> to vector<1x1xf32>
    %958 = vector.broadcast %957 : vector<1x1xf32> to vector<1x8xf32>
    %959 = arith.mulf %958, %222 : vector<1x8xf32>
    %960 = arith.addf %952, %959 : vector<1x8xf32>
    %961 = arith.mulf %951, %187 : vector<8x8xf32>
    %cst_300 = arith.constant dense<0.000000e+00> : vector<8xf32>
    %962 = vector.multi_reduction <add>, %961, %cst_300 [1] : vector<8x8xf32> to vector<8xf32>
    %963 = vector.shape_cast %962 : vector<8xf32> to vector<8x1xf32>
    %cst_301 = arith.constant dense<0.000000e+00> : vector<1xf32>
    %964 = vector.multi_reduction <add>, %963, %cst_301 [0] : vector<8x1xf32> to vector<1xf32>
    %965 = vector.shape_cast %964 : vector<1xf32> to vector<1x1xf32>
    %966 = vector.broadcast %965 : vector<1x1xf32> to vector<1x8xf32>
    %967 = arith.mulf %966, %227 : vector<1x8xf32>
    %968 = arith.addf %960, %967 : vector<1x8xf32>
    %969 = arith.mulf %951, %192 : vector<8x8xf32>
    %cst_302 = arith.constant dense<0.000000e+00> : vector<8xf32>
    %970 = vector.multi_reduction <add>, %969, %cst_302 [1] : vector<8x8xf32> to vector<8xf32>
    %971 = vector.shape_cast %970 : vector<8xf32> to vector<8x1xf32>
    %cst_303 = arith.constant dense<0.000000e+00> : vector<1xf32>
    %972 = vector.multi_reduction <add>, %971, %cst_303 [0] : vector<8x1xf32> to vector<1xf32>
    %973 = vector.shape_cast %972 : vector<1xf32> to vector<1x1xf32>
    %974 = vector.broadcast %973 : vector<1x1xf32> to vector<1x8xf32>
    %975 = arith.mulf %974, %232 : vector<1x8xf32>
    %976 = arith.addf %968, %975 : vector<1x8xf32>
    %977 = arith.mulf %951, %197 : vector<8x8xf32>
    %cst_304 = arith.constant dense<0.000000e+00> : vector<8xf32>
    %978 = vector.multi_reduction <add>, %977, %cst_304 [1] : vector<8x8xf32> to vector<8xf32>
    %979 = vector.shape_cast %978 : vector<8xf32> to vector<8x1xf32>
    %cst_305 = arith.constant dense<0.000000e+00> : vector<1xf32>
    %980 = vector.multi_reduction <add>, %979, %cst_305 [0] : vector<8x1xf32> to vector<1xf32>
    %981 = vector.shape_cast %980 : vector<1xf32> to vector<1x1xf32>
    %982 = vector.broadcast %981 : vector<1x1xf32> to vector<1x8xf32>
    %983 = arith.mulf %982, %237 : vector<1x8xf32>
    %984 = arith.addf %976, %983 : vector<1x8xf32>
    %985 = arith.mulf %951, %202 : vector<8x8xf32>
    %cst_306 = arith.constant dense<0.000000e+00> : vector<8xf32>
    %986 = vector.multi_reduction <add>, %985, %cst_306 [1] : vector<8x8xf32> to vector<8xf32>
    %987 = vector.shape_cast %986 : vector<8xf32> to vector<8x1xf32>
    %cst_307 = arith.constant dense<0.000000e+00> : vector<1xf32>
    %988 = vector.multi_reduction <add>, %987, %cst_307 [0] : vector<8x1xf32> to vector<1xf32>
    %989 = vector.shape_cast %988 : vector<1xf32> to vector<1x1xf32>
    %990 = vector.broadcast %989 : vector<1x1xf32> to vector<1x8xf32>
    %991 = arith.mulf %990, %242 : vector<1x8xf32>
    %992 = arith.addf %984, %991 : vector<1x8xf32>
    %993 = arith.mulf %951, %207 : vector<8x8xf32>
    %cst_308 = arith.constant dense<0.000000e+00> : vector<8xf32>
    %994 = vector.multi_reduction <add>, %993, %cst_308 [1] : vector<8x8xf32> to vector<8xf32>
    %995 = vector.shape_cast %994 : vector<8xf32> to vector<8x1xf32>
    %cst_309 = arith.constant dense<0.000000e+00> : vector<1xf32>
    %996 = vector.multi_reduction <add>, %995, %cst_309 [0] : vector<8x1xf32> to vector<1xf32>
    %997 = vector.shape_cast %996 : vector<1xf32> to vector<1x1xf32>
    %998 = vector.broadcast %997 : vector<1x1xf32> to vector<1x8xf32>
    %999 = arith.mulf %998, %247 : vector<1x8xf32>
    %1000 = arith.addf %992, %999 : vector<1x8xf32>
    %1001 = arith.mulf %951, %212 : vector<8x8xf32>
    %cst_310 = arith.constant dense<0.000000e+00> : vector<8xf32>
    %1002 = vector.multi_reduction <add>, %1001, %cst_310 [1] : vector<8x8xf32> to vector<8xf32>
    %1003 = vector.shape_cast %1002 : vector<8xf32> to vector<8x1xf32>
    %cst_311 = arith.constant dense<0.000000e+00> : vector<1xf32>
    %1004 = vector.multi_reduction <add>, %1003, %cst_311 [0] : vector<8x1xf32> to vector<1xf32>
    %1005 = vector.shape_cast %1004 : vector<1xf32> to vector<1x1xf32>
    %1006 = vector.broadcast %1005 : vector<1x1xf32> to vector<1x8xf32>
    %1007 = arith.mulf %1006, %252 : vector<1x8xf32>
    %1008 = arith.addf %1000, %1007 : vector<1x8xf32>
    %1009 = arith.mulf %951, %217 : vector<8x8xf32>
    %cst_312 = arith.constant dense<0.000000e+00> : vector<8xf32>
    %1010 = vector.multi_reduction <add>, %1009, %cst_312 [1] : vector<8x8xf32> to vector<8xf32>
    %1011 = vector.shape_cast %1010 : vector<8xf32> to vector<8x1xf32>
    %cst_313 = arith.constant dense<0.000000e+00> : vector<1xf32>
    %1012 = vector.multi_reduction <add>, %1011, %cst_313 [0] : vector<8x1xf32> to vector<1xf32>
    %1013 = vector.shape_cast %1012 : vector<1xf32> to vector<1x1xf32>
    %1014 = vector.broadcast %1013 : vector<1x1xf32> to vector<1x8xf32>
    %1015 = arith.mulf %1014, %257 : vector<1x8xf32>
    %1016 = arith.addf %1008, %1015 : vector<1x8xf32>
    %cst_314 = arith.constant 3.125000e-02 : f32
    %1017 = vector.broadcast %cst_314 : f32 to vector<1x8xf32>
    %1018 = arith.mulf %1016, %1017 : vector<1x8xf32>
    %cst_315 = arith.constant dense<0xFF800000> : vector<1xf32>
    %1019 = vector.multi_reduction <maximumf>, %1018, %cst_315 [1] : vector<1x8xf32> to vector<1xf32>
    %1020 = vector.shape_cast %1019 : vector<1xf32> to vector<1x1xf32>
    %1021 = vector.broadcast %1020 : vector<1x1xf32> to vector<1x8xf32>
    %1022 = arith.subf %1018, %1021 : vector<1x8xf32>
    %1023 = math.exp %1022 : vector<1x8xf32>
    %cst_316 = arith.constant dense<0.000000e+00> : vector<1xf32>
    %1024 = vector.multi_reduction <add>, %1023, %cst_316 [1] : vector<1x8xf32> to vector<1xf32>
    %1025 = vector.shape_cast %1024 : vector<1xf32> to vector<1x1xf32>
    %1026 = tpu.reciprocal %1025 {approx = true} : vector<1x1xf32> -> vector<1x1xf32>
    %1027 = vector.broadcast %1026 : vector<1x1xf32> to vector<1x8xf32>
    %1028 = arith.mulf %1023, %1027 : vector<1x8xf32>
    %cst_317 = arith.constant 0.000000e+00 : f32
    %1029 = vector.broadcast %cst_317 : f32 to vector<8x8xf32>
    %1030 = vector.extract_strided_slice %1028 {offsets = [0, 0], sizes = [1, 1], strides = [1, 1]} : vector<1x8xf32> to vector<1x1xf32>
    %1031 = vector.broadcast %1030 : vector<1x1xf32> to vector<8x8xf32>
    %1032 = arith.mulf %1031, %182 : vector<8x8xf32>
    %1033 = arith.addf %1029, %1032 : vector<8x8xf32>
    %1034 = vector.extract_strided_slice %1028 {offsets = [0, 1], sizes = [1, 1], strides = [1, 1]} : vector<1x8xf32> to vector<1x1xf32>
    %1035 = vector.broadcast %1034 : vector<1x1xf32> to vector<8x8xf32>
    %1036 = arith.mulf %1035, %187 : vector<8x8xf32>
    %1037 = arith.addf %1033, %1036 : vector<8x8xf32>
    %1038 = vector.extract_strided_slice %1028 {offsets = [0, 2], sizes = [1, 1], strides = [1, 1]} : vector<1x8xf32> to vector<1x1xf32>
    %1039 = vector.broadcast %1038 : vector<1x1xf32> to vector<8x8xf32>
    %1040 = arith.mulf %1039, %192 : vector<8x8xf32>
    %1041 = arith.addf %1037, %1040 : vector<8x8xf32>
    %1042 = vector.extract_strided_slice %1028 {offsets = [0, 3], sizes = [1, 1], strides = [1, 1]} : vector<1x8xf32> to vector<1x1xf32>
    %1043 = vector.broadcast %1042 : vector<1x1xf32> to vector<8x8xf32>
    %1044 = arith.mulf %1043, %197 : vector<8x8xf32>
    %1045 = arith.addf %1041, %1044 : vector<8x8xf32>
    %1046 = vector.extract_strided_slice %1028 {offsets = [0, 4], sizes = [1, 1], strides = [1, 1]} : vector<1x8xf32> to vector<1x1xf32>
    %1047 = vector.broadcast %1046 : vector<1x1xf32> to vector<8x8xf32>
    %1048 = arith.mulf %1047, %202 : vector<8x8xf32>
    %1049 = arith.addf %1045, %1048 : vector<8x8xf32>
    %1050 = vector.extract_strided_slice %1028 {offsets = [0, 5], sizes = [1, 1], strides = [1, 1]} : vector<1x8xf32> to vector<1x1xf32>
    %1051 = vector.broadcast %1050 : vector<1x1xf32> to vector<8x8xf32>
    %1052 = arith.mulf %1051, %207 : vector<8x8xf32>
    %1053 = arith.addf %1049, %1052 : vector<8x8xf32>
    %1054 = vector.extract_strided_slice %1028 {offsets = [0, 6], sizes = [1, 1], strides = [1, 1]} : vector<1x8xf32> to vector<1x1xf32>
    %1055 = vector.broadcast %1054 : vector<1x1xf32> to vector<8x8xf32>
    %1056 = arith.mulf %1055, %212 : vector<8x8xf32>
    %1057 = arith.addf %1053, %1056 : vector<8x8xf32>
    %1058 = vector.extract_strided_slice %1028 {offsets = [0, 7], sizes = [1, 1], strides = [1, 1]} : vector<1x8xf32> to vector<1x1xf32>
    %1059 = vector.broadcast %1058 : vector<1x1xf32> to vector<8x8xf32>
    %1060 = arith.mulf %1059, %217 : vector<8x8xf32>
    %1061 = arith.addf %1057, %1060 : vector<8x8xf32>
    %cst_318 = arith.constant dense<0.000000e+00> : vector<8x32xf32>
    %1062 = tpu.matmul %1061, %950, %cst_318 {dimension_numbers = #tpu.dot_dimension_numbers<[1], [0], [0], [1], [0, 0, 1, 1], [], []>} : vector<8x8xf32>, vector<8x32xf32>, vector<8x32xf32> -> vector<8x32xf32>
    %cst_319 = arith.constant dense<0.000000e+00> : vector<8x32xf32>
    %1063 = tpu.matmul %1062, %943, %cst_319 {dimension_numbers = #tpu.dot_dimension_numbers<[1], [0], [0], [1], [0, 0, 1, 1], [], []>} : vector<8x32xf32>, vector<32x32xf32>, vector<8x32xf32> -> vector<8x32xf32>
    %1064 = vector.broadcast %944 : vector<1x32xf32> to vector<8x32xf32>
    %1065 = arith.addf %1063, %1064 : vector<8x32xf32>
    %1066 = arith.addf %937, %1065 : vector<8x32xf32>
    %cst_320 = arith.constant dense<0.000000e+00> : vector<8x32xf32>
    %1067 = tpu.matmul %259, %1066, %cst_320 {dimension_numbers = #tpu.dot_dimension_numbers<[1], [0], [0], [1], [0, 0, 1, 1], [], []>} : vector<8x8xf32>, vector<8x32xf32>, vector<8x32xf32> -> vector<8x32xf32>
    %1068 = arith.subf %1066, %1067 : vector<8x32xf32>
    %1069 = vector.extract_strided_slice %938 {offsets = [0, 0], sizes = [1, 32], strides = [1, 1]} : vector<6x32xf32> to vector<1x32xf32>
    %1070 = vector.extract_strided_slice %938 {offsets = [1, 0], sizes = [1, 32], strides = [1, 1]} : vector<6x32xf32> to vector<1x32xf32>
    %cst_321 = arith.constant dense<0.000000e+00> : vector<8xf32>
    %1071 = vector.multi_reduction <add>, %1068, %cst_321 [1] : vector<8x32xf32> to vector<8xf32>
    %1072 = vector.shape_cast %1071 : vector<8xf32> to vector<8x1xf32>
    %cst_322 = arith.constant 3.200000e+01 : f32
    %1073 = vector.broadcast %cst_322 : f32 to vector<8x1xf32>
    %1074 = arith.divf %1072, %1073 : vector<8x1xf32>
    %1075 = vector.broadcast %1074 : vector<8x1xf32> to vector<8x32xf32>
    %1076 = arith.subf %1068, %1075 : vector<8x32xf32>
    %1077 = arith.mulf %1076, %1076 : vector<8x32xf32>
    %cst_323 = arith.constant dense<0.000000e+00> : vector<8xf32>
    %1078 = vector.multi_reduction <add>, %1077, %cst_323 [1] : vector<8x32xf32> to vector<8xf32>
    %1079 = vector.shape_cast %1078 : vector<8xf32> to vector<8x1xf32>
    %cst_324 = arith.constant 3.200000e+01 : f32
    %1080 = vector.broadcast %cst_324 : f32 to vector<8x1xf32>
    %1081 = arith.divf %1079, %1080 : vector<8x1xf32>
    %1082 = vector.broadcast %1074 : vector<8x1xf32> to vector<8x32xf32>
    %1083 = arith.subf %1068, %1082 : vector<8x32xf32>
    %cst_325 = arith.constant 9.99999974E-6 : f32
    %1084 = vector.broadcast %cst_325 : f32 to vector<8x1xf32>
    %1085 = arith.addf %1081, %1084 : vector<8x1xf32>
    %1086 = math.rsqrt %1085 : vector<8x1xf32>
    %1087 = vector.broadcast %1086 : vector<8x1xf32> to vector<8x32xf32>
    %1088 = arith.mulf %1083, %1087 : vector<8x32xf32>
    %1089 = vector.broadcast %1069 : vector<1x32xf32> to vector<8x32xf32>
    %1090 = arith.mulf %1088, %1089 : vector<8x32xf32>
    %1091 = vector.broadcast %1070 : vector<1x32xf32> to vector<8x32xf32>
    %1092 = arith.addf %1090, %1091 : vector<8x32xf32>
    %c528 = arith.constant 528 : index
    %c0_326 = arith.constant 0 : index
    %1093 = vector.load %arg2[%c528, %c0_326] : memref<728x128xf32, #tpu.memory_space<vmem>>, vector<32x96xf32>
    %c560 = arith.constant 560 : index
    %c0_327 = arith.constant 0 : index
    %1094 = vector.load %arg2[%c560, %c0_327] : memref<728x128xf32, #tpu.memory_space<vmem>>, vector<1x96xf32>
    %c568 = arith.constant 568 : index
    %c0_328 = arith.constant 0 : index
    %1095 = vector.load %arg2[%c568, %c0_328] : memref<728x128xf32, #tpu.memory_space<vmem>>, vector<32x32xf32>
    %c600 = arith.constant 600 : index
    %c0_329 = arith.constant 0 : index
    %1096 = vector.load %arg2[%c600, %c0_329] : memref<728x128xf32, #tpu.memory_space<vmem>>, vector<1x32xf32>
    %cst_330 = arith.constant dense<0.000000e+00> : vector<8x96xf32>
    %1097 = tpu.matmul %1092, %1093, %cst_330 {dimension_numbers = #tpu.dot_dimension_numbers<[1], [0], [0], [1], [0, 0, 1, 1], [], []>} : vector<8x32xf32>, vector<32x96xf32>, vector<8x96xf32> -> vector<8x96xf32>
    %1098 = vector.broadcast %1094 : vector<1x96xf32> to vector<8x96xf32>
    %1099 = arith.addf %1097, %1098 : vector<8x96xf32>
    %1100 = vector.extract_strided_slice %1099 {offsets = [0, 0], sizes = [8, 32], strides = [1, 1]} : vector<8x96xf32> to vector<8x32xf32>
    %cst_331 = arith.constant dense<0.000000e+00> : vector<16x96xf32>
    %1101 = tpu.matmul %893, %1093, %cst_331 {dimension_numbers = #tpu.dot_dimension_numbers<[1], [0], [0], [1], [0, 0, 1, 1], [], []>} : vector<16x32xf32>, vector<32x96xf32>, vector<16x96xf32> -> vector<16x96xf32>
    %1102 = vector.broadcast %1094 : vector<1x96xf32> to vector<16x96xf32>
    %1103 = arith.addf %1101, %1102 : vector<16x96xf32>
    %1104 = vector.extract_strided_slice %1103 {offsets = [0, 32], sizes = [16, 32], strides = [1, 1]} : vector<16x96xf32> to vector<16x32xf32>
    %1105 = vector.extract_strided_slice %1103 {offsets = [0, 64], sizes = [16, 32], strides = [1, 1]} : vector<16x96xf32> to vector<16x32xf32>
    %1106 = vector.extract_strided_slice %1104 {offsets = [0, 0], sizes = [8, 32], strides = [1, 1]} : vector<16x32xf32> to vector<8x32xf32>
    %1107 = vector.extract_strided_slice %1105 {offsets = [0, 0], sizes = [8, 32], strides = [1, 1]} : vector<16x32xf32> to vector<8x32xf32>
    %cst_332 = arith.constant dense<0.000000e+00> : vector<8x8xf32>
    %1108 = tpu.matmul %1100, %1106, %cst_332 {dimension_numbers = #tpu.dot_dimension_numbers<[1], [1], [0], [0], [0, 0, 1, 0], [], []>} : vector<8x32xf32>, vector<8x32xf32>, vector<8x8xf32> -> vector<8x8xf32>
    %cst_333 = arith.constant 0.000000e+00 : f32
    %1109 = vector.broadcast %cst_333 : f32 to vector<1x8xf32>
    %1110 = arith.mulf %1108, %182 : vector<8x8xf32>
    %cst_334 = arith.constant dense<0.000000e+00> : vector<8xf32>
    %1111 = vector.multi_reduction <add>, %1110, %cst_334 [1] : vector<8x8xf32> to vector<8xf32>
    %1112 = vector.shape_cast %1111 : vector<8xf32> to vector<8x1xf32>
    %cst_335 = arith.constant dense<0.000000e+00> : vector<1xf32>
    %1113 = vector.multi_reduction <add>, %1112, %cst_335 [0] : vector<8x1xf32> to vector<1xf32>
    %1114 = vector.shape_cast %1113 : vector<1xf32> to vector<1x1xf32>
    %1115 = vector.broadcast %1114 : vector<1x1xf32> to vector<1x8xf32>
    %1116 = arith.mulf %1115, %222 : vector<1x8xf32>
    %1117 = arith.addf %1109, %1116 : vector<1x8xf32>
    %1118 = arith.mulf %1108, %187 : vector<8x8xf32>
    %cst_336 = arith.constant dense<0.000000e+00> : vector<8xf32>
    %1119 = vector.multi_reduction <add>, %1118, %cst_336 [1] : vector<8x8xf32> to vector<8xf32>
    %1120 = vector.shape_cast %1119 : vector<8xf32> to vector<8x1xf32>
    %cst_337 = arith.constant dense<0.000000e+00> : vector<1xf32>
    %1121 = vector.multi_reduction <add>, %1120, %cst_337 [0] : vector<8x1xf32> to vector<1xf32>
    %1122 = vector.shape_cast %1121 : vector<1xf32> to vector<1x1xf32>
    %1123 = vector.broadcast %1122 : vector<1x1xf32> to vector<1x8xf32>
    %1124 = arith.mulf %1123, %227 : vector<1x8xf32>
    %1125 = arith.addf %1117, %1124 : vector<1x8xf32>
    %1126 = arith.mulf %1108, %192 : vector<8x8xf32>
    %cst_338 = arith.constant dense<0.000000e+00> : vector<8xf32>
    %1127 = vector.multi_reduction <add>, %1126, %cst_338 [1] : vector<8x8xf32> to vector<8xf32>
    %1128 = vector.shape_cast %1127 : vector<8xf32> to vector<8x1xf32>
    %cst_339 = arith.constant dense<0.000000e+00> : vector<1xf32>
    %1129 = vector.multi_reduction <add>, %1128, %cst_339 [0] : vector<8x1xf32> to vector<1xf32>
    %1130 = vector.shape_cast %1129 : vector<1xf32> to vector<1x1xf32>
    %1131 = vector.broadcast %1130 : vector<1x1xf32> to vector<1x8xf32>
    %1132 = arith.mulf %1131, %232 : vector<1x8xf32>
    %1133 = arith.addf %1125, %1132 : vector<1x8xf32>
    %1134 = arith.mulf %1108, %197 : vector<8x8xf32>
    %cst_340 = arith.constant dense<0.000000e+00> : vector<8xf32>
    %1135 = vector.multi_reduction <add>, %1134, %cst_340 [1] : vector<8x8xf32> to vector<8xf32>
    %1136 = vector.shape_cast %1135 : vector<8xf32> to vector<8x1xf32>
    %cst_341 = arith.constant dense<0.000000e+00> : vector<1xf32>
    %1137 = vector.multi_reduction <add>, %1136, %cst_341 [0] : vector<8x1xf32> to vector<1xf32>
    %1138 = vector.shape_cast %1137 : vector<1xf32> to vector<1x1xf32>
    %1139 = vector.broadcast %1138 : vector<1x1xf32> to vector<1x8xf32>
    %1140 = arith.mulf %1139, %237 : vector<1x8xf32>
    %1141 = arith.addf %1133, %1140 : vector<1x8xf32>
    %1142 = arith.mulf %1108, %202 : vector<8x8xf32>
    %cst_342 = arith.constant dense<0.000000e+00> : vector<8xf32>
    %1143 = vector.multi_reduction <add>, %1142, %cst_342 [1] : vector<8x8xf32> to vector<8xf32>
    %1144 = vector.shape_cast %1143 : vector<8xf32> to vector<8x1xf32>
    %cst_343 = arith.constant dense<0.000000e+00> : vector<1xf32>
    %1145 = vector.multi_reduction <add>, %1144, %cst_343 [0] : vector<8x1xf32> to vector<1xf32>
    %1146 = vector.shape_cast %1145 : vector<1xf32> to vector<1x1xf32>
    %1147 = vector.broadcast %1146 : vector<1x1xf32> to vector<1x8xf32>
    %1148 = arith.mulf %1147, %242 : vector<1x8xf32>
    %1149 = arith.addf %1141, %1148 : vector<1x8xf32>
    %1150 = arith.mulf %1108, %207 : vector<8x8xf32>
    %cst_344 = arith.constant dense<0.000000e+00> : vector<8xf32>
    %1151 = vector.multi_reduction <add>, %1150, %cst_344 [1] : vector<8x8xf32> to vector<8xf32>
    %1152 = vector.shape_cast %1151 : vector<8xf32> to vector<8x1xf32>
    %cst_345 = arith.constant dense<0.000000e+00> : vector<1xf32>
    %1153 = vector.multi_reduction <add>, %1152, %cst_345 [0] : vector<8x1xf32> to vector<1xf32>
    %1154 = vector.shape_cast %1153 : vector<1xf32> to vector<1x1xf32>
    %1155 = vector.broadcast %1154 : vector<1x1xf32> to vector<1x8xf32>
    %1156 = arith.mulf %1155, %247 : vector<1x8xf32>
    %1157 = arith.addf %1149, %1156 : vector<1x8xf32>
    %1158 = arith.mulf %1108, %212 : vector<8x8xf32>
    %cst_346 = arith.constant dense<0.000000e+00> : vector<8xf32>
    %1159 = vector.multi_reduction <add>, %1158, %cst_346 [1] : vector<8x8xf32> to vector<8xf32>
    %1160 = vector.shape_cast %1159 : vector<8xf32> to vector<8x1xf32>
    %cst_347 = arith.constant dense<0.000000e+00> : vector<1xf32>
    %1161 = vector.multi_reduction <add>, %1160, %cst_347 [0] : vector<8x1xf32> to vector<1xf32>
    %1162 = vector.shape_cast %1161 : vector<1xf32> to vector<1x1xf32>
    %1163 = vector.broadcast %1162 : vector<1x1xf32> to vector<1x8xf32>
    %1164 = arith.mulf %1163, %252 : vector<1x8xf32>
    %1165 = arith.addf %1157, %1164 : vector<1x8xf32>
    %1166 = arith.mulf %1108, %217 : vector<8x8xf32>
    %cst_348 = arith.constant dense<0.000000e+00> : vector<8xf32>
    %1167 = vector.multi_reduction <add>, %1166, %cst_348 [1] : vector<8x8xf32> to vector<8xf32>
    %1168 = vector.shape_cast %1167 : vector<8xf32> to vector<8x1xf32>
    %cst_349 = arith.constant dense<0.000000e+00> : vector<1xf32>
    %1169 = vector.multi_reduction <add>, %1168, %cst_349 [0] : vector<8x1xf32> to vector<1xf32>
    %1170 = vector.shape_cast %1169 : vector<1xf32> to vector<1x1xf32>
    %1171 = vector.broadcast %1170 : vector<1x1xf32> to vector<1x8xf32>
    %1172 = arith.mulf %1171, %257 : vector<1x8xf32>
    %1173 = arith.addf %1165, %1172 : vector<1x8xf32>
    %cst_350 = arith.constant 3.125000e-02 : f32
    %1174 = vector.broadcast %cst_350 : f32 to vector<1x8xf32>
    %1175 = arith.mulf %1173, %1174 : vector<1x8xf32>
    %cst_351 = arith.constant dense<0xFF800000> : vector<1xf32>
    %1176 = vector.multi_reduction <maximumf>, %1175, %cst_351 [1] : vector<1x8xf32> to vector<1xf32>
    %1177 = vector.shape_cast %1176 : vector<1xf32> to vector<1x1xf32>
    %1178 = vector.broadcast %1177 : vector<1x1xf32> to vector<1x8xf32>
    %1179 = arith.subf %1175, %1178 : vector<1x8xf32>
    %1180 = math.exp %1179 : vector<1x8xf32>
    %cst_352 = arith.constant dense<0.000000e+00> : vector<1xf32>
    %1181 = vector.multi_reduction <add>, %1180, %cst_352 [1] : vector<1x8xf32> to vector<1xf32>
    %1182 = vector.shape_cast %1181 : vector<1xf32> to vector<1x1xf32>
    %1183 = tpu.reciprocal %1182 {approx = true} : vector<1x1xf32> -> vector<1x1xf32>
    %1184 = vector.broadcast %1183 : vector<1x1xf32> to vector<1x8xf32>
    %1185 = arith.mulf %1180, %1184 : vector<1x8xf32>
    %cst_353 = arith.constant 0.000000e+00 : f32
    %1186 = vector.broadcast %cst_353 : f32 to vector<8x8xf32>
    %1187 = vector.extract_strided_slice %1185 {offsets = [0, 0], sizes = [1, 1], strides = [1, 1]} : vector<1x8xf32> to vector<1x1xf32>
    %1188 = vector.broadcast %1187 : vector<1x1xf32> to vector<8x8xf32>
    %1189 = arith.mulf %1188, %182 : vector<8x8xf32>
    %1190 = arith.addf %1186, %1189 : vector<8x8xf32>
    %1191 = vector.extract_strided_slice %1185 {offsets = [0, 1], sizes = [1, 1], strides = [1, 1]} : vector<1x8xf32> to vector<1x1xf32>
    %1192 = vector.broadcast %1191 : vector<1x1xf32> to vector<8x8xf32>
    %1193 = arith.mulf %1192, %187 : vector<8x8xf32>
    %1194 = arith.addf %1190, %1193 : vector<8x8xf32>
    %1195 = vector.extract_strided_slice %1185 {offsets = [0, 2], sizes = [1, 1], strides = [1, 1]} : vector<1x8xf32> to vector<1x1xf32>
    %1196 = vector.broadcast %1195 : vector<1x1xf32> to vector<8x8xf32>
    %1197 = arith.mulf %1196, %192 : vector<8x8xf32>
    %1198 = arith.addf %1194, %1197 : vector<8x8xf32>
    %1199 = vector.extract_strided_slice %1185 {offsets = [0, 3], sizes = [1, 1], strides = [1, 1]} : vector<1x8xf32> to vector<1x1xf32>
    %1200 = vector.broadcast %1199 : vector<1x1xf32> to vector<8x8xf32>
    %1201 = arith.mulf %1200, %197 : vector<8x8xf32>
    %1202 = arith.addf %1198, %1201 : vector<8x8xf32>
    %1203 = vector.extract_strided_slice %1185 {offsets = [0, 4], sizes = [1, 1], strides = [1, 1]} : vector<1x8xf32> to vector<1x1xf32>
    %1204 = vector.broadcast %1203 : vector<1x1xf32> to vector<8x8xf32>
    %1205 = arith.mulf %1204, %202 : vector<8x8xf32>
    %1206 = arith.addf %1202, %1205 : vector<8x8xf32>
    %1207 = vector.extract_strided_slice %1185 {offsets = [0, 5], sizes = [1, 1], strides = [1, 1]} : vector<1x8xf32> to vector<1x1xf32>
    %1208 = vector.broadcast %1207 : vector<1x1xf32> to vector<8x8xf32>
    %1209 = arith.mulf %1208, %207 : vector<8x8xf32>
    %1210 = arith.addf %1206, %1209 : vector<8x8xf32>
    %1211 = vector.extract_strided_slice %1185 {offsets = [0, 6], sizes = [1, 1], strides = [1, 1]} : vector<1x8xf32> to vector<1x1xf32>
    %1212 = vector.broadcast %1211 : vector<1x1xf32> to vector<8x8xf32>
    %1213 = arith.mulf %1212, %212 : vector<8x8xf32>
    %1214 = arith.addf %1210, %1213 : vector<8x8xf32>
    %1215 = vector.extract_strided_slice %1185 {offsets = [0, 7], sizes = [1, 1], strides = [1, 1]} : vector<1x8xf32> to vector<1x1xf32>
    %1216 = vector.broadcast %1215 : vector<1x1xf32> to vector<8x8xf32>
    %1217 = arith.mulf %1216, %217 : vector<8x8xf32>
    %1218 = arith.addf %1214, %1217 : vector<8x8xf32>
    %cst_354 = arith.constant dense<0.000000e+00> : vector<8x32xf32>
    %1219 = tpu.matmul %1218, %1107, %cst_354 {dimension_numbers = #tpu.dot_dimension_numbers<[1], [0], [0], [1], [0, 0, 1, 1], [], []>} : vector<8x8xf32>, vector<8x32xf32>, vector<8x32xf32> -> vector<8x32xf32>
    %cst_355 = arith.constant dense<0.000000e+00> : vector<8x32xf32>
    %1220 = tpu.matmul %1219, %1095, %cst_355 {dimension_numbers = #tpu.dot_dimension_numbers<[1], [0], [0], [1], [0, 0, 1, 1], [], []>} : vector<8x32xf32>, vector<32x32xf32>, vector<8x32xf32> -> vector<8x32xf32>
    %1221 = vector.broadcast %1096 : vector<1x32xf32> to vector<8x32xf32>
    %1222 = arith.addf %1220, %1221 : vector<8x32xf32>
    %1223 = arith.addf %1092, %1222 : vector<8x32xf32>
    %cst_356 = arith.constant dense<0.000000e+00> : vector<8x32xf32>
    %1224 = tpu.matmul %259, %1223, %cst_356 {dimension_numbers = #tpu.dot_dimension_numbers<[1], [0], [0], [1], [0, 0, 1, 1], [], []>} : vector<8x8xf32>, vector<8x32xf32>, vector<8x32xf32> -> vector<8x32xf32>
    %1225 = arith.subf %1223, %1224 : vector<8x32xf32>
    %1226 = vector.extract_strided_slice %938 {offsets = [2, 0], sizes = [1, 32], strides = [1, 1]} : vector<6x32xf32> to vector<1x32xf32>
    %1227 = vector.extract_strided_slice %938 {offsets = [3, 0], sizes = [1, 32], strides = [1, 1]} : vector<6x32xf32> to vector<1x32xf32>
    %cst_357 = arith.constant dense<0.000000e+00> : vector<8xf32>
    %1228 = vector.multi_reduction <add>, %1225, %cst_357 [1] : vector<8x32xf32> to vector<8xf32>
    %1229 = vector.shape_cast %1228 : vector<8xf32> to vector<8x1xf32>
    %cst_358 = arith.constant 3.200000e+01 : f32
    %1230 = vector.broadcast %cst_358 : f32 to vector<8x1xf32>
    %1231 = arith.divf %1229, %1230 : vector<8x1xf32>
    %1232 = vector.broadcast %1231 : vector<8x1xf32> to vector<8x32xf32>
    %1233 = arith.subf %1225, %1232 : vector<8x32xf32>
    %1234 = arith.mulf %1233, %1233 : vector<8x32xf32>
    %cst_359 = arith.constant dense<0.000000e+00> : vector<8xf32>
    %1235 = vector.multi_reduction <add>, %1234, %cst_359 [1] : vector<8x32xf32> to vector<8xf32>
    %1236 = vector.shape_cast %1235 : vector<8xf32> to vector<8x1xf32>
    %cst_360 = arith.constant 3.200000e+01 : f32
    %1237 = vector.broadcast %cst_360 : f32 to vector<8x1xf32>
    %1238 = arith.divf %1236, %1237 : vector<8x1xf32>
    %1239 = vector.broadcast %1231 : vector<8x1xf32> to vector<8x32xf32>
    %1240 = arith.subf %1225, %1239 : vector<8x32xf32>
    %cst_361 = arith.constant 9.99999974E-6 : f32
    %1241 = vector.broadcast %cst_361 : f32 to vector<8x1xf32>
    %1242 = arith.addf %1238, %1241 : vector<8x1xf32>
    %1243 = math.rsqrt %1242 : vector<8x1xf32>
    %1244 = vector.broadcast %1243 : vector<8x1xf32> to vector<8x32xf32>
    %1245 = arith.mulf %1240, %1244 : vector<8x32xf32>
    %1246 = vector.broadcast %1226 : vector<1x32xf32> to vector<8x32xf32>
    %1247 = arith.mulf %1245, %1246 : vector<8x32xf32>
    %1248 = vector.broadcast %1227 : vector<1x32xf32> to vector<8x32xf32>
    %1249 = arith.addf %1247, %1248 : vector<8x32xf32>
    %c616 = arith.constant 616 : index
    %c0_362 = arith.constant 0 : index
    %1250 = vector.load %arg2[%c616, %c0_362] : memref<728x128xf32, #tpu.memory_space<vmem>>, vector<32x64xf32>
    %cst_363 = arith.constant dense<0.000000e+00> : vector<8x64xf32>
    %1251 = tpu.matmul %1249, %1250, %cst_363 {dimension_numbers = #tpu.dot_dimension_numbers<[1], [0], [0], [1], [0, 0, 1, 1], [], []>} : vector<8x32xf32>, vector<32x64xf32>, vector<8x64xf32> -> vector<8x64xf32>
    %1252 = vector.extract_strided_slice %939 {offsets = [0, 0], sizes = [1, 64], strides = [1, 1]} : vector<1x96xf32> to vector<1x64xf32>
    %1253 = vector.broadcast %1252 : vector<1x64xf32> to vector<8x64xf32>
    %1254 = arith.addf %1251, %1253 : vector<8x64xf32>
    %1255 = arith.mulf %1254, %1254 : vector<8x64xf32>
    %1256 = arith.mulf %1254, %1255 : vector<8x64xf32>
    %cst_364 = arith.constant 4.471500e-02 : f32
    %1257 = vector.broadcast %cst_364 : f32 to vector<8x64xf32>
    %1258 = arith.mulf %1257, %1256 : vector<8x64xf32>
    %1259 = arith.addf %1254, %1258 : vector<8x64xf32>
    %cst_365 = arith.constant 0.797884583 : f32
    %1260 = vector.broadcast %cst_365 : f32 to vector<8x64xf32>
    %1261 = arith.mulf %1260, %1259 : vector<8x64xf32>
    %1262 = math.tanh %1261 : vector<8x64xf32>
    %cst_366 = arith.constant 1.000000e+00 : f32
    %1263 = vector.broadcast %cst_366 : f32 to vector<8x64xf32>
    %1264 = arith.addf %1263, %1262 : vector<8x64xf32>
    %cst_367 = arith.constant 5.000000e-01 : f32
    %1265 = vector.broadcast %cst_367 : f32 to vector<8x64xf32>
    %1266 = arith.mulf %1265, %1264 : vector<8x64xf32>
    %1267 = arith.mulf %1254, %1266 : vector<8x64xf32>
    %c648 = arith.constant 648 : index
    %c0_368 = arith.constant 0 : index
    %1268 = vector.load %arg2[%c648, %c0_368] : memref<728x128xf32, #tpu.memory_space<vmem>>, vector<64x32xf32>
    %cst_369 = arith.constant dense<0.000000e+00> : vector<8x32xf32>
    %1269 = tpu.matmul %1267, %1268, %cst_369 {dimension_numbers = #tpu.dot_dimension_numbers<[1], [0], [0], [1], [0, 0, 1, 1], [], []>} : vector<8x64xf32>, vector<64x32xf32>, vector<8x32xf32> -> vector<8x32xf32>
    %1270 = vector.extract_strided_slice %939 {offsets = [0, 64], sizes = [1, 32], strides = [1, 1]} : vector<1x96xf32> to vector<1x32xf32>
    %1271 = vector.broadcast %1270 : vector<1x32xf32> to vector<8x32xf32>
    %1272 = arith.addf %1269, %1271 : vector<8x32xf32>
    %1273 = arith.addf %1249, %1272 : vector<8x32xf32>
    %cst_370 = arith.constant dense<0.000000e+00> : vector<8x32xf32>
    %1274 = tpu.matmul %259, %1273, %cst_370 {dimension_numbers = #tpu.dot_dimension_numbers<[1], [0], [0], [1], [0, 0, 1, 1], [], []>} : vector<8x8xf32>, vector<8x32xf32>, vector<8x32xf32> -> vector<8x32xf32>
    %1275 = arith.subf %1273, %1274 : vector<8x32xf32>
    %1276 = vector.extract_strided_slice %938 {offsets = [4, 0], sizes = [1, 32], strides = [1, 1]} : vector<6x32xf32> to vector<1x32xf32>
    %1277 = vector.extract_strided_slice %938 {offsets = [5, 0], sizes = [1, 32], strides = [1, 1]} : vector<6x32xf32> to vector<1x32xf32>
    %cst_371 = arith.constant dense<0.000000e+00> : vector<8xf32>
    %1278 = vector.multi_reduction <add>, %1275, %cst_371 [1] : vector<8x32xf32> to vector<8xf32>
    %1279 = vector.shape_cast %1278 : vector<8xf32> to vector<8x1xf32>
    %cst_372 = arith.constant 3.200000e+01 : f32
    %1280 = vector.broadcast %cst_372 : f32 to vector<8x1xf32>
    %1281 = arith.divf %1279, %1280 : vector<8x1xf32>
    %1282 = vector.broadcast %1281 : vector<8x1xf32> to vector<8x32xf32>
    %1283 = arith.subf %1275, %1282 : vector<8x32xf32>
    %1284 = arith.mulf %1283, %1283 : vector<8x32xf32>
    %cst_373 = arith.constant dense<0.000000e+00> : vector<8xf32>
    %1285 = vector.multi_reduction <add>, %1284, %cst_373 [1] : vector<8x32xf32> to vector<8xf32>
    %1286 = vector.shape_cast %1285 : vector<8xf32> to vector<8x1xf32>
    %cst_374 = arith.constant 3.200000e+01 : f32
    %1287 = vector.broadcast %cst_374 : f32 to vector<8x1xf32>
    %1288 = arith.divf %1286, %1287 : vector<8x1xf32>
    %1289 = vector.broadcast %1281 : vector<8x1xf32> to vector<8x32xf32>
    %1290 = arith.subf %1275, %1289 : vector<8x32xf32>
    %cst_375 = arith.constant 9.99999974E-6 : f32
    %1291 = vector.broadcast %cst_375 : f32 to vector<8x1xf32>
    %1292 = arith.addf %1288, %1291 : vector<8x1xf32>
    %1293 = math.rsqrt %1292 : vector<8x1xf32>
    %1294 = vector.broadcast %1293 : vector<8x1xf32> to vector<8x32xf32>
    %1295 = arith.mulf %1290, %1294 : vector<8x32xf32>
    %1296 = vector.broadcast %1276 : vector<1x32xf32> to vector<8x32xf32>
    %1297 = arith.mulf %1295, %1296 : vector<8x32xf32>
    %1298 = vector.broadcast %1277 : vector<1x32xf32> to vector<8x32xf32>
    %1299 = arith.addf %1297, %1298 : vector<8x32xf32>
    %1300 = arith.addf %1067, %1224 : vector<8x32xf32>
    %1301 = arith.addf %1300, %1274 : vector<8x32xf32>
    %1302 = vector.extract_strided_slice %1301 {offsets = [7, 0], sizes = [1, 32], strides = [1, 1]} : vector<8x32xf32> to vector<1x32xf32>
    %1303 = vector.extract_strided_slice %1301 {offsets = [0, 0], sizes = [7, 32], strides = [1, 1]} : vector<8x32xf32> to vector<7x32xf32>
    %1304 = tpu.concatenate %1302, %1303 in 0 : vector<1x32xf32>, vector<7x32xf32> -> vector<8x32xf32>
    %1305 = vector.extract_strided_slice %1301 {offsets = [1, 0], sizes = [7, 32], strides = [1, 1]} : vector<8x32xf32> to vector<7x32xf32>
    %1306 = vector.extract_strided_slice %1301 {offsets = [0, 0], sizes = [1, 32], strides = [1, 1]} : vector<8x32xf32> to vector<1x32xf32>
    %1307 = tpu.concatenate %1305, %1306 in 0 : vector<7x32xf32>, vector<1x32xf32> -> vector<8x32xf32>
    %1308 = vector.extract_strided_slice %940 {offsets = [0, 0], sizes = [1, 32], strides = [1, 1]} : vector<1x96xf32> to vector<1x32xf32>
    %1309 = vector.broadcast %1308 : vector<1x32xf32> to vector<8x32xf32>
    %1310 = arith.mulf %1304, %1309 : vector<8x32xf32>
    %cst_376 = arith.constant dense<0.000000e+00> : vector<8xf32>
    %1311 = vector.multi_reduction <add>, %1310, %cst_376 [1] : vector<8x32xf32> to vector<8xf32>
    %1312 = vector.shape_cast %1311 : vector<8xf32> to vector<8x1xf32>
    %1313 = vector.extract_strided_slice %940 {offsets = [0, 32], sizes = [1, 32], strides = [1, 1]} : vector<1x96xf32> to vector<1x32xf32>
    %1314 = vector.broadcast %1313 : vector<1x32xf32> to vector<8x32xf32>
    %1315 = arith.mulf %1301, %1314 : vector<8x32xf32>
    %cst_377 = arith.constant dense<0.000000e+00> : vector<8xf32>
    %1316 = vector.multi_reduction <add>, %1315, %cst_377 [1] : vector<8x32xf32> to vector<8xf32>
    %1317 = vector.shape_cast %1316 : vector<8xf32> to vector<8x1xf32>
    %1318 = arith.addf %1312, %1317 : vector<8x1xf32>
    %1319 = vector.extract_strided_slice %940 {offsets = [0, 64], sizes = [1, 32], strides = [1, 1]} : vector<1x96xf32> to vector<1x32xf32>
    %1320 = vector.broadcast %1319 : vector<1x32xf32> to vector<8x32xf32>
    %1321 = arith.mulf %1307, %1320 : vector<8x32xf32>
    %cst_378 = arith.constant dense<0.000000e+00> : vector<8xf32>
    %1322 = vector.multi_reduction <add>, %1321, %cst_378 [1] : vector<8x32xf32> to vector<8xf32>
    %1323 = vector.shape_cast %1322 : vector<8xf32> to vector<8x1xf32>
    %1324 = arith.addf %1318, %1323 : vector<8x1xf32>
    %1325 = arith.addf %907, %1324 : vector<8x1xf32>
    %cst_379 = arith.constant 0.000000e+00 : f32
    %1326 = vector.broadcast %cst_379 : f32 to vector<8x32xf32>
    %1327 = tpu.concatenate %1299, %1326 in 0 : vector<8x32xf32>, vector<8x32xf32> -> vector<16x32xf32>
    %cst_380 = arith.constant 0.000000e+00 : f32
    %1328 = vector.broadcast %cst_380 : f32 to vector<8x31xf32>
    %1329 = tpu.concatenate %1325, %1328 in 1 : vector<8x1xf32>, vector<8x31xf32> -> vector<8x32xf32>
    %cst_381 = arith.constant 0.000000e+00 : f32
    %1330 = vector.broadcast %cst_381 : f32 to vector<8x32xf32>
    %1331 = tpu.concatenate %1329, %1330 in 0 : vector<8x32xf32>, vector<8x32xf32> -> vector<16x32xf32>
    %cst_382 = arith.constant 0.000000e+00 : f32
    %1332 = vector.broadcast %cst_382 : f32 to vector<16x32xf32>
    %1333 = tpu.concatenate %893, %1327, %1331, %1332 in 1 : vector<16x32xf32>, vector<16x32xf32>, vector<16x32xf32>, vector<16x32xf32> -> vector<16x128xf32>
    %c0_383 = arith.constant 0 : index
    %c0_384 = arith.constant 0 : index
    %c0_385 = arith.constant 0 : index
    %1334 = vector.load %arg3[%c0_383, %c0_384, %c0_385] : memref<1x16x128xf32, #tpu.memory_space<vmem>>, vector<1x16x128xf32>
    %1335 = vector.shape_cast %1334 : vector<1x16x128xf32> to vector<16x128xf32>
    %1336 = vector.shape_cast %1333 : vector<16x128xf32> to vector<1x16x128xf32>
    tpu.vector_store %arg3[%c0_383, %c0_384, %c0_385], %1336 {strides = array<i32>} : memref<1x16x128xf32, #tpu.memory_space<vmem>>, vector<1x16x128xf32>,
    return
  }
  func.func @transform_0(%arg0: i32) -> (i32, i32, i32) {
    %c0_i32 = arith.constant 0 : i32
    %c0_i32_0 = arith.constant 0 : i32
    %c0_i32_1 = arith.constant 0 : i32
    return %arg0, %c0_i32, %c0_i32_0 : i32, i32, i32
  }
  func.func @transform_1(%arg0: i32) -> (i32, i32) {
    %c0_i32 = arith.constant 0 : i32
    %c0_i32_0 = arith.constant 0 : i32
    %c0_i32_1 = arith.constant 0 : i32
    return %c0_i32, %c0_i32_0 : i32, i32
  }
  func.func @transform_2(%arg0: i32) -> (i32, i32, i32) {
    %c0_i32 = arith.constant 0 : i32
    %c0_i32_0 = arith.constant 0 : i32
    %c0_i32_1 = arith.constant 0 : i32
    return %arg0, %c0_i32, %c0_i32_0 : i32, i32, i32
  }
}

</mosaic_0001>

<llo_original>
// kernel: autoformer_forward.1
$region0: #{autoformer_forward.1}
  #allocation0 [shape = 'u32[]', space=smem, size = 0x4, offset = 0x4, fixed_abs, tag = 'smem constant byte address 0x4 - core index']
  #allocation1 [shape = 'u32[144,128]{1,0:T(1,128)}', space=vmem, size = 0x12000, scoped, tag = 'internal scratch']
  %s0 = inlined_call_operand.vmem [shape: f32[2,16,1], index: 0, kind: input, shape index: {}]
  %s1 = inlined_call_operand.hbm [shape: f32[728,128], index: 1, kind: input, shape index: {}]
  %s2 = inlined_call_operand.vmem [shape: f32[2,16,128], index: 2, kind: output, shape index: {}]
  %s3 = sld [smem:[#allocation0]]
  $region45: #{autoformer_forward.1} parent=0
    _
  %s5 = ssub.s32 1, %s3
  %s6 = scalar_select 0, %s5, %s3
  $region1: #{autoformer_forward.1} parent=0
    #allocation2 [shape = 'u8[372736]{0}', space=vmem, size = 0x5b000, scoped, tag = 'input window, operand 1, single buffered']
    #allocation3 [shape = 's32[2]{0}', space=sflag, size = 0x8, scoped, tag = 'scoped memory for autoformer_forward.1']
    %7 = vsyncpa [#allocation3], 0
    loop: start=0, step=1, limit=4
    $region2: #{autoformer_forward.1} parent=1 // loop_pre_header
      _
    $region3: #{autoformer_forward.1} parent=1 // loop_header
      %s9 = sphi 0, %s13
      %p10 = scmp.ge.s32.totalorder %s9, 4
      %s19 = sphi 0, %s21
      %s22 = sphi 0, %s19
      %s23 = sphi 0, %s22
      %s39 = sphi 0, %s23
      %s43 = sphi 0, %s43
      %s45 = sphi 0, %s43
      %s46 = sphi 0, %s45
      %s60 = sphi 0, %s46
      %s66 = sphi 0, %s68
      %s69 = sphi 0, %s66
      %s70 = sphi 0, %s69
      %s86 = sphi 0, %s70
    $region4: #{autoformer_forward.1} parent=1 // loop_header_branch
      %12 = sbr.rel (%p10) target = $region8
    $region5: #{autoformer_forward.1} parent=1 // loop_body
      %s14 = ssub.s32 %s9, 1
      %s15 = ssub.s32 %s9, 2
      %s16 = sadd.s32 %s9, 1
      %s17 = ssub.s32 %s9, %s16
      %p18 = scmp.eq.s32.totalorder %s17, 0
      %s20 = sadd.s32 %s19, 1
      %s21 = scalar_select %p18, %s19, %s20
      %p24 = pneg %p18
      %p25 = scmp.eq.s32.totalorder %s9, 1
      %p26 = por %p24, %p25
      %p27 = scmp.ne.s32.totalorder %s19, %s22
      %p28 = scmp.eq.s32.totalorder %s9, 0
      %p29 = por %p27, %p28
      %p30 = scmp.ne.s32.totalorder %s19, %s22
      %p31 = scmp.eq.s32.totalorder %s14, 1
      %p32 = por %p30, %p31
      %p33 = scmp.ne.s32.totalorder %s22, %s23
      %p34 = scmp.eq.s32.totalorder %s14, 0
      %p35 = por %p33, %p34
      %p36 = scmp.ne.s32.totalorder %s22, %s23
      %p37 = scmp.eq.s32.totalorder %s15, 1
      %p38 = por %p36, %p37
      %p40 = scmp.ne.s32.totalorder %s23, %s39
      %p41 = scmp.eq.s32.totalorder %s15, 0
      %p42 = por %p40, %p41
      %s44 = sadd.s32 %s43, 1
      %p47 = scmp.eq.s32.totalorder %s9, 1
      %p48 = scmp.ne.s32.totalorder %s43, %s45
      %p49 = scmp.eq.s32.totalorder %s9, 0
      %p50 = por %p48, %p49
      %p51 = scmp.ne.s32.totalorder %s43, %s45
      %p52 = scmp.eq.s32.totalorder %s14, 1
      %p53 = por %p51, %p52
      %p54 = scmp.ne.s32.totalorder %s45, %s46
      %p55 = scmp.eq.s32.totalorder %s14, 0
      %p56 = por %p54, %p55
      %p57 = scmp.ne.s32.totalorder %s45, %s46
      %p58 = scmp.eq.s32.totalorder %s15, 1
      %p59 = por %p57, %p58
      %p61 = scmp.ne.s32.totalorder %s46, %s60
      %p62 = scmp.eq.s32.totalorder %s15, 0
      %p63 = por %p61, %p62
      %s64 = ssub.s32 %s9, %s16
      %p65 = scmp.eq.s32.totalorder %s64, 0
      %s67 = sadd.s32 %s66, 1
      %s68 = scalar_select %p65, %s66, %s67
      %p71 = pneg %p65
      %p72 = scmp.eq.s32.totalorder %s9, 1
      %p73 = por %p71, %p72
      %p74 = scmp.ne.s32.totalorder %s66, %s69
      %p75 = scmp.eq.s32.totalorder %s9, 0
      %p76 = por %p74, %p75
      %p77 = scmp.ne.s32.totalorder %s66, %s69
      %p78 = scmp.eq.s32.totalorder %s14, 1
      %p79 = por %p77, %p78
      %p80 = scmp.ne.s32.totalorder %s69, %s70
      %p81 = scmp.eq.s32.totalorder %s14, 0
      %p82 = por %p80, %p81
      %p83 = scmp.ne.s32.totalorder %s69, %s70
      %p84 = scmp.eq.s32.totalorder %s15, 1
      %p85 = por %p83, %p84
      %p87 = scmp.ne.s32.totalorder %s70, %s86
      %p88 = scmp.eq.s32.totalorder %s15, 0
      %p89 = por %p87, %p88
      %p90 = scmp.le.s32.totalorder 1, %s9
      %p91 = scmp.lt.s32.totalorder %s9, 3
      %p92 = pnand %p90, %p91
      %p93 = pneg %p92
      // Predicated region
      $region9: #{autoformer_forward.1} parent=5 // pred_check
        _
      $region10: #{autoformer_forward.1} parent=5 // pred_check_branch
        %95 = sbr.rel (%p92) target = $region12
      $region11: #{autoformer_forward.1} parent=5 // pred_region
        %s96 = ssub.s32 %s9, 1
        // Predicated region
        $region13: #{autoformer_forward.1} parent=11 // pred_check
          %p97 = pneg %p56
        $region14: #{autoformer_forward.1} parent=11 // pred_check_branch
          %99 = sbr.rel (%p97) target = $region16
        $region15: #{autoformer_forward.1} parent=11 // pred_region
          %s101 = ssub.s32 11648, 11648
          %102 = vsyncadd [#allocation3], %s101
          %s103 = sshll.u32 [#allocation2], 4
          %s104 = int_to_ptr.vmem [resolvable:$true] %s103
          %109 = dma.hbm_to_vmem [thread:$0]  %s1, 11648, %s104, [#allocation3], 128, 128, 8
        $region16: #{autoformer_forward.1} parent=11 // pred_fallthru
          _
      $region12: #{autoformer_forward.1} parent=5 // pred_fallthru
        _
      %p110 = scmp.lt.s32.totalorder %s9, 2
      // Predicated region
      $region17: #{autoformer_forward.1} parent=5 // pred_check
        %p111 = pneg %p110
      $region18: #{autoformer_forward.1} parent=5 // pred_check_branch
        %113 = sbr.rel (%p111) target = $region20
      $region19: #{autoformer_forward.1} parent=5 // pred_region
        // Predicated region
        $region21: #{autoformer_forward.1} parent=19 // pred_check
          %p114 = pneg %p29
        $region22: #{autoformer_forward.1} parent=19 // pred_check_branch
          %116 = sbr.rel (%p114) target = $region24
        $region23: #{autoformer_forward.1} parent=19 // pred_region
          %p117 = scmp.lt.s32.totalorder %s9, 1
          %s118 = scalar_select %p117, %s9, 1
          %s119 = smul.addr %s118, 2
          %s120 = smul.addr %s119, 8
          %s121 = scalar_lea.vmem %s0, %s120
        $region24: #{autoformer_forward.1} parent=19 // pred_fallthru
          _
      $region20: #{autoformer_forward.1} parent=5 // pred_fallthru
        _
      %p122 = scmp.le.s32.totalorder 1, %s9
      %p123 = scmp.lt.s32.totalorder %s9, 3
      %p124 = pnand %p122, %p123
      %p125 = pneg %p124
      // Predicated region
      $region25: #{autoformer_forward.1} parent=5 // pred_check
        _
      $region26: #{autoformer_forward.1} parent=5 // pred_check_branch
        %127 = sbr.rel (%p124) target = $region28
      $region27: #{autoformer_forward.1} parent=5 // pred_region
        %s128 = ssub.s32 %s9, 1
        // Predicated region
        $region29: #{autoformer_forward.1} parent=27 // pred_check
          %p129 = pneg %p56
        $region30: #{autoformer_forward.1} parent=27 // pred_check_branch
          %131 = sbr.rel (%p129) target = $region32
        $region31: #{autoformer_forward.1} parent=27 // pred_region
          %132 = dma.done [#allocation3], 11648
        $region32: #{autoformer_forward.1} parent=27 // pred_fallthru
          _
        %p133 = scmp.lt.s32.totalorder %s14, 1
        %s134 = scalar_select %p133, %s14, 1
        %s135 = smul.addr %s134, 2
        %s136 = smul.addr %s135, 8
        %s137 = scalar_lea.vmem %s0, %s136
        %p138 = pneg %p35
        %p139 = pneg %p32
        %p140 = pneg %p56
        %p141 = pneg %p53
        %p142 = pneg %p82
        %p143 = pneg %p79
        %p144 = scmp.lt.s32.totalorder %s14, 1
        %s145 = scalar_select %p144, %s14, 1
        %s146 = smul.addr %s145, 2
        %s147 = smul.addr %s146, 8
        %s148 = scalar_lea.vmem %s2, %s147
        %p149 = scmp.lt.s32.totalorder %s14, 1
        %s150 = scalar_select %p149, %s14, 1
        %s151 = smul.addr %s150, 2
        %s152 = smul.addr %s151, 8
        %s153 = scalar_lea.vmem %s0, %s152
        %p154 = scmp.lt.s32.totalorder %s14, 1
        %s155 = scalar_select %p154, %s14, 1
        %s156 = smul.addr %s155, 2
        %s157 = smul.addr %s156, 8
        %s158 = scalar_lea.vmem %s2, %s157
        %v159 = vlaneseq
        %v160 = vshrl.u32 %v159, 7
        %v161 = vadd.s32 %v160, 8
        %v162 = vlaneseq
        %v163 = vand.u32 %v162, 127
        %v164 = vsub.s32 %v163, %v160
        %v165 = vsub.s32 %v163, %v161
        %vm166 = vcmp.lt.s32.totalorder %v164, 0
        %vm167 = vcmp.lt.s32.totalorder %v165, 0
        %v168 = vadd.s32 %v164, 16
        %v169 = vadd.s32 %v165, 16
        %v170 = vsel %vm166, %v168, %v164
        %v171 = vsel %vm167, %v169, %v165
        %vm172 = vcmp.eq.s32.totalorder %v170, 0
        %vm173 = vcmp.eq.s32.totalorder %v171, 0
        %v174 = vsel %vm172, 1.0, 0.0
        %v175 = vsel %vm173, 1.0, 0.0
        %vm176 = vcmp.eq.s32.totalorder %v170, 1
        %vm177 = vcmp.eq.s32.totalorder %v171, 1
        %v178 = vsel %vm176, 1.0, 0.0
        %v179 = vsel %vm177, 1.0, 0.0
        %vm180 = vcmp.eq.s32.totalorder %v170, 2
        %vm181 = vcmp.eq.s32.totalorder %v171, 2
        %v182 = vsel %vm180, 1.0, 0.0
        %v183 = vsel %vm181, 1.0, 0.0
        %vm184 = vcmp.eq.s32.totalorder %v170, 3
        %vm185 = vcmp.eq.s32.totalorder %v171, 3
        %v186 = vsel %vm184, 1.0, 0.0
        %v187 = vsel %vm185, 1.0, 0.0
        %vm188 = vcmp.eq.s32.totalorder %v170, 4
        %vm189 = vcmp.eq.s32.totalorder %v171, 4
        %v190 = vsel %vm188, 1.0, 0.0
        %v191 = vsel %vm189, 1.0, 0.0
        %vm192 = vcmp.eq.s32.totalorder %v170, 5
        %vm193 = vcmp.eq.s32.totalorder %v171, 5
        %v194 = vsel %vm192, 1.0, 0.0
        %v195 = vsel %vm193, 1.0, 0.0
        %vm196 = vcmp.eq.s32.totalorder %v170, 6
        %vm197 = vcmp.eq.s32.totalorder %v171, 6
        %v198 = vsel %vm196, 1.0, 0.0
        %v199 = vsel %vm197, 1.0, 0.0
        %vm200 = vcmp.eq.s32.totalorder %v170, 7
        %vm201 = vcmp.eq.s32.totalorder %v171, 7
        %v202 = vsel %vm200, 1.0, 0.0
        %v203 = vsel %vm201, 1.0, 0.0
        %vm204 = vcmp.eq.s32.totalorder %v170, 8
        %vm205 = vcmp.eq.s32.totalorder %v171, 8
        %v206 = vsel %vm204, 1.0, 0.0
        %v207 = vsel %vm205, 1.0, 0.0
        %vm208 = vcmp.eq.s32.totalorder %v170, 9
        %vm209 = vcmp.eq.s32.totalorder %v171, 9
        %v210 = vsel %vm208, 1.0, 0.0
        %v211 = vsel %vm209, 1.0, 0.0
        %vm212 = vcmp.eq.s32.totalorder %v170, 10
        %vm213 = vcmp.eq.s32.totalorder %v171, 10
        %v214 = vsel %vm212, 1.0, 0.0
        %v215 = vsel %vm213, 1.0, 0.0
        %vm216 = vcmp.eq.s32.totalorder %v170, 11
        %vm217 = vcmp.eq.s32.totalorder %v171, 11
        %v218 = vsel %vm216, 1.0, 0.0
        %v219 = vsel %vm217, 1.0, 0.0
        %vm220 = vcmp.eq.s32.totalorder %v170, 12
        %vm221 = vcmp.eq.s32.totalorder %v171, 12
        %v222 = vsel %vm220, 1.0, 0.0
        %v223 = vsel %vm221, 1.0, 0.0
        %vm224 = vcmp.eq.s32.totalorder %v170, 13
        %vm225 = vcmp.eq.s32.totalorder %v171, 13
        %v226 = vsel %vm224, 1.0, 0.0
        %v227 = vsel %vm225, 1.0, 0.0
        %vm228 = vcmp.eq.s32.totalorder %v170, 14
        %vm229 = vcmp.eq.s32.totalorder %v171, 14
        %v230 = vsel %vm228, 1.0, 0.0
        %v231 = vsel %vm229, 1.0, 0.0
        %vm232 = vcmp.eq.s32.totalorder %v170, 15
        %vm233 = vcmp.eq.s32.totalorder %v171, 15
        %v234 = vsel %vm232, 1.0, 0.0
        %v235 = vsel %vm233, 1.0, 0.0
        %vm236 = vcmp.eq.s32.totalorder %v163, 0
        %v237 = vsel %vm236, 1.0, 0.0
        %vm238 = vcmp.eq.s32.totalorder %v163, 1
        %v239 = vsel %vm238, 1.0, 0.0
        %vm240 = vcmp.eq.s32.totalorder %v163, 2
        %v241 = vsel %vm240, 1.0, 0.0
        %vm242 = vcmp.eq.s32.totalorder %v163, 3
        %v243 = vsel %vm242, 1.0, 0.0
        %vm244 = vcmp.eq.s32.totalorder %v163, 4
        %v245 = vsel %vm244, 1.0, 0.0
        %vm246 = vcmp.eq.s32.totalorder %v163, 5
        %v247 = vsel %vm246, 1.0, 0.0
        %vm248 = vcmp.eq.s32.totalorder %v163, 6
        %v249 = vsel %vm248, 1.0, 0.0
        %vm250 = vcmp.eq.s32.totalorder %v163, 7
        %v251 = vsel %vm250, 1.0, 0.0
        %vm252 = vcmp.eq.s32.totalorder %v163, 8
        %v253 = vsel %vm252, 1.0, 0.0
        %vm254 = vcmp.eq.s32.totalorder %v163, 9
        %v255 = vsel %vm254, 1.0, 0.0
        %vm256 = vcmp.eq.s32.totalorder %v163, 10
        %v257 = vsel %vm256, 1.0, 0.0
        %vm258 = vcmp.eq.s32.totalorder %v163, 11
        %v259 = vsel %vm258, 1.0, 0.0
        %vm260 = vcmp.eq.s32.totalorder %v163, 12
        %v261 = vsel %vm260, 1.0, 0.0
        %vm262 = vcmp.eq.s32.totalorder %v163, 13
        %v263 = vsel %vm262, 1.0, 0.0
        %vm264 = vcmp.eq.s32.totalorder %v163, 14
        %v265 = vsel %vm264, 1.0, 0.0
        %vm266 = vcmp.eq.s32.totalorder %v163, 15
        %v267 = vsel %vm266, 1.0, 0.0
        %v268 = vadd.s32 %v164, 8
        %v269 = vsel %vm166, %v268, %v164
        %vm270 = vcmp.eq.s32.totalorder %v269, 0
        %v271 = vsel %vm270, 1.0, 0.0
        %vm272 = vcmp.eq.s32.totalorder %v269, 1
        %v273 = vsel %vm272, 1.0, 0.0
        %vm274 = vcmp.eq.s32.totalorder %v269, 2
        %v275 = vsel %vm274, 1.0, 0.0
        %vm276 = vcmp.eq.s32.totalorder %v269, 3
        %v277 = vsel %vm276, 1.0, 0.0
        %vm278 = vcmp.eq.s32.totalorder %v269, 4
        %v279 = vsel %vm278, 1.0, 0.0
        %vm280 = vcmp.eq.s32.totalorder %v269, 5
        %v281 = vsel %vm280, 1.0, 0.0
        %vm282 = vcmp.eq.s32.totalorder %v269, 6
        %v283 = vsel %vm282, 1.0, 0.0
        %vm284 = vcmp.eq.s32.totalorder %v269, 7
        %v285 = vsel %vm284, 1.0, 0.0
        %v286 = vld [vmem:[#allocation2] sm:$0xff]
        %v287 = vld [vmem:[#allocation2 + $0x8] sm:$0xff]
        %v288 = vld [vmem:[#allocation2 + $0x10] sm:$0xff]
        %v289 = vld [vmem:[#allocation2 + $0x30] sm:$0x3]
        %v290 = vld [vmem:[#allocation2 + $0x38] sm:$0xf]
        %v291 = vld [vmem:[%s153] sm:$0xff]
        %v292 = vld [vmem:[%s153 + $0x8] sm:$0xff]
        %294 = vset.pattern.permute.xlu0 0
        %295 = vperm.xlu0 %294, %v291
        %v296 = vpop.permute.xlu0 %295
        %299 = vset.pattern.permute.xlu0 0
        %300 = vperm.xlu0 %299, %v292
        %v301 = vpop.permute.xlu0 %300
        %v303 = vlaneseq
        %v304 = vshrl.u32 %v303, 7
        %v305 = vsub.s32 0, %v304
        %v306 = vrot.slane %v289, %v305
        %v307 = vmul.f32 %v296, %v306
        %v308 = vmul.f32 %v301, %v306
        %v309 = vld [vmem:[#allocation2 + $0x18] sm:$0xff]
        %v310 = vld [vmem:[#allocation2 + $0x20] sm:$0xff]
        %v311 = vadd.f32 %v307, %v309
        %v312 = vadd.f32 %v308, %v310
        %vm313 = vcmask 261120
        %v314 = vsel %vm313, %v311, 0.0
        %315 = vadd.xlane.f32.xlu0 %v314
        %v316 = vpop.xlane.xlu0 %315
        %v317 = vsel %vm313, %v312, 0.0
        %318 = vadd.xlane.f32.xlu0 %v317
        %v319 = vpop.xlane.xlu0 %318
        %v320 = vrcp.pop 32.0
        %v321 = vmul.f32 %v316, %v320
        %v322 = vmul.f32 %v319, %v320
        %v323 = vsub.f32 %v311, %v321
        %v324 = vsub.f32 %v312, %v322
        %v325 = vmul.f32 %v323, %v323
        %v326 = vmul.f32 %v324, %v324
        %v327 = vsel %vm313, %v325, 0.0
        %328 = vadd.xlane.f32.xlu0 %v327
        %v329 = vpop.xlane.xlu0 %328
        %v330 = vsel %vm313, %v326, 0.0
        %331 = vadd.xlane.f32.xlu0 %v330
        %v332 = vpop.xlane.xlu0 %331
        %v333 = vmul.f32 %v329, %v320
        %v334 = vmul.f32 %v332, %v320
        %v335 = vadd.f32 %v333, 1e-05
        %v336 = vadd.f32 %v334, 1e-05
        %v337 = vrsqrt.pop %v335
        %v338 = vrsqrt.pop %v336
        %v339 = vmul.f32 %v323, %v337
        %v340 = vmul.f32 %v324, %v338
        %v341 = vlaneseq
        %v342 = vshrl.u32 %v341, 7
        %v343 = vsub.s32 0, %v342
        %v344 = vrot.slane %v290, %v343
        %v345 = vmul.f32 %v339, %v344
        %v346 = vmul.f32 %v340, %v344
        %v347 = vlaneseq
        %v348 = vshrl.u32 %v347, 7
        %v349 = vsub.s32 1, %v348
        %v350 = vrot.slane %v290, %v349
        %v351 = vadd.f32 %v345, %v350
        %v352 = vadd.f32 %v346, %v350
        %v353 = vld [vmem:[#allocation2 + $0x90] sm:$0xf]
        %v354 = vld [vmem:[#allocation2 + $0xf8] sm:$0x1]
        %v355 = vld [vmem:[#allocation2 + $0x40] sm:$0xff]
        %v356 = vld [vmem:[#allocation2 + $0x48] sm:$0xff]
        %v357 = vld [vmem:[#allocation2 + $0x50] sm:$0xff]
        %v358 = vld [vmem:[#allocation2 + $0x58] sm:$0xff]
        %v359 = vld [vmem:[#allocation2 + $0x60] sm:$0x1]
        %v360 = vld [vmem:[#allocation2 + $0x68] sm:$0xff]
        %v361 = vld [vmem:[#allocation2 + $0x70] sm:$0xff]
        %v362 = vld [vmem:[#allocation2 + $0x78] sm:$0xff]
        %v363 = vld [vmem:[#allocation2 + $0x80] sm:$0xff]
        %v364 = vld [vmem:[#allocation2 + $0x88] sm:$0x1]
        %v365 = vlaneseq
        %v366 = vshrl.u32 %v365, 7
        %v367 = vsub.s32 0, %v366
        %v368 = vrot.slane %v359, %v367
        %v370 = vsel %vm313, %v351, 0
        %v373 = vsel %vm313, %v352, 0
        %375 = vmatprep.subr.mxu0 0.0
        %376 = vmatpush1.msra.mxu0 %v355
        %377 = vmatprep.subr.mxu0 0.0
        %378 = vmatpush1.msra.mxu0 %v356
        %379 = vmatprep.subr.mxu0 0.0
        %380 = vmatpush1.msra.mxu0 %v357
        %381 = vmatprep.subr.mxu0 0.0
        %382 = vmatpush1.msra.mxu0 %v358
        %383 = vmatprep.subr.mxu0 0.0
        %384 = vmatpush1.msra.mxu0 0.0
        %385 = vmatprep.subr.mxu0 0.0
        %386 = vmatpush1.msra.mxu0 0.0
        %387 = vmatprep.subr.mxu0 0.0
        %388 = vmatpush1.msra.mxu0 0.0
        %389 = vmatprep.subr.mxu0 0.0
        %390 = vmatpush1.msra.mxu0 0.0
        %391 = vmatprep.subr.mxu0 0.0
        %392 = vmatpush1.msra.mxu0 0.0
        %393 = vmatprep.subr.mxu0 0.0
        %394 = vmatpush1.msra.mxu0 0.0
        %395 = vmatprep.subr.mxu0 0.0
        %396 = vmatpush1.msra.mxu0 0.0
        %397 = vmatprep.subr.mxu0 0.0
        %398 = vmatpush1.msra.mxu0 0.0
        %399 = vmatprep.subr.mxu0 0.0
        %400 = vmatpush1.msra.mxu0 0.0
        %401 = vmatprep.subr.mxu0 0.0
        %402 = vmatpush1.msra.mxu0 0.0
        %403 = vmatprep.subr.mxu0 0.0
        %404 = vmatpush1.msra.mxu0 0.0
        %405 = vmatprep.subr.mxu0 0.0
        %406 = vmatpush1.msra.mxu0 0.0
        %407 = vmatprep.subr.mxu0 0.0
        %408 = vmatpush1.msra.mxu0 0.0
        %409 = vmatprep.subr.mxu0 0.0
        %410 = vmatpush1.msra.mxu0 0.0
        %411 = vmatprep.subr.mxu0 0.0
        %412 = vmatpush1.msra.mxu0 0.0
        %413 = vmatprep.subr.mxu0 0.0
        %414 = vmatpush1.msra.mxu0 0.0
        %415 = vmatprep.subr.mxu0 0.0
        %416 = vmatpush1.msra.mxu0 0.0
        %417 = vmatprep.subr.mxu0 0.0
        %418 = vmatpush1.msra.mxu0 0.0
        %419 = vmatprep.subr.mxu0 0.0
        %420 = vmatpush1.msra.mxu0 0.0
        %421 = vmatprep.subr.mxu0 0.0
        %422 = vmatpush1.msra.mxu0 0.0
        %423 = vmatprep.subr.mxu0 0.0
        %424 = vmatpush1.msra.mxu0 0.0
        %425 = vmatprep.subr.mxu0 0.0
        %426 = vmatpush1.msra.mxu0 0.0
        %427 = vmatprep.subr.mxu0 0.0
        %428 = vmatpush1.msra.mxu0 0.0
        %429 = vmatprep.subr.mxu0 0.0
        %430 = vmatpush1.msra.mxu0 0.0
        %431 = vmatprep.subr.mxu0 0.0
        %432 = vmatpush1.msra.mxu0 0.0
        %433 = vmatprep.subr.mxu0 0.0
        %434 = vmatpush1.msra.mxu0 0.0
        %435 = vmatprep.subr.mxu0 0.0
        %436 = vmatpush1.msra.mxu0 0.0
        %437 = vmatprep.subr.mxu0 0.0
        %438 = vmatpush1.msra.mxu0 0.0
        %439 = vmatprep.mubr.f32.mxu0 0.0
        %440 = vmatmul.mubr.f32.gmra.mrb[0].mxu0 %v370
        %v441 = vpop.f32.mrb[0].mxu0
        %v442 = vadd.f32 %v368, %v441
        %v443 = vpop.f32.mrb[0].mxu0
        %444 = vmatprep.mubr.f32.mxu0 0.0
        %445 = vmatmul.mubr.f32.gmra.mrb[0].mxu0 %v373
        %v446 = vpop.f32.mrb[0].mxu0
        %v447 = vadd.f32 %v368, %v446
        %v448 = vpop.f32.mrb[0].mxu0
        %449 = vdwg.mxu0
        %452 = vrot.lane.b32.xlu0 %v442, 96
        %v453 = vpop.permute.xlu0 %452
        %454 = vrot.lane.b32.xlu0 %v447, 96
        %v455 = vpop.permute.xlu0 %454
        %v456 = vsel %vm313, %v442, 0
        %v458 = vsel %vm313, %v447, 0
        %v460 = vsel %vm313, %v453, 0
        %v462 = vsel %vm313, %v455, 0
        %464 = vmatprep.subr.mxu0 0.0
        %465 = vmatpush1.xpose.msra.mxu0 %v460
        %466 = vmatprep.subr.mxu0 0.0
        %467 = vmatpush1.xpose.msra.mxu0 %v462
        %468 = vmatprep.subr.mxu0 0.0
        %469 = vmatpush1.xpose.msra.mxu0 0.0
        %470 = vmatprep.subr.mxu0 0.0
        %471 = vmatpush1.xpose.msra.mxu0 0.0
        %472 = vmatprep.subr.mxu0 0.0
        %473 = vmatpush1.xpose.msra.mxu0 0.0
        %474 = vmatprep.subr.mxu0 0.0
        %475 = vmatpush1.xpose.msra.mxu0 0.0
        %476 = vmatprep.subr.mxu0 0.0
        %477 = vmatpush1.xpose.msra.mxu0 0.0
        %478 = vmatprep.subr.mxu0 0.0
        %479 = vmatpush1.xpose.msra.mxu0 0.0
        %480 = vmatprep.subr.mxu0 0.0
        %481 = vmatpush1.xpose.msra.mxu0 0.0
        %482 = vmatprep.subr.mxu0 0.0
        %483 = vmatpush1.xpose.msra.mxu0 0.0
        %484 = vmatprep.subr.mxu0 0.0
        %485 = vmatpush1.xpose.msra.mxu0 0.0
        %486 = vmatprep.subr.mxu0 0.0
        %487 = vmatpush1.xpose.msra.mxu0 0.0
        %488 = vmatprep.subr.mxu0 0.0
        %489 = vmatpush1.xpose.msra.mxu0 0.0
        %490 = vmatprep.subr.mxu0 0.0
        %491 = vmatpush1.xpose.msra.mxu0 0.0
        %492 = vmatprep.subr.mxu0 0.0
        %493 = vmatpush1.xpose.msra.mxu0 0.0
        %494 = vmatprep.subr.mxu0 0.0
        %495 = vmatpush1.xpose.msra.mxu0 0.0
        %496 = vmatprep.subr.mxu0 0.0
        %497 = vmatpush1.xpose.msra.mxu0 0.0
        %498 = vmatprep.subr.mxu0 0.0
        %499 = vmatpush1.xpose.msra.mxu0 0.0
        %500 = vmatprep.subr.mxu0 0.0
        %501 = vmatpush1.xpose.msra.mxu0 0.0
        %502 = vmatprep.subr.mxu0 0.0
        %503 = vmatpush1.xpose.msra.mxu0 0.0
        %504 = vmatprep.subr.mxu0 0.0
        %505 = vmatpush1.xpose.msra.mxu0 0.0
        %506 = vmatprep.subr.mxu0 0.0
        %507 = vmatpush1.xpose.msra.mxu0 0.0
        %508 = vmatprep.subr.mxu0 0.0
        %509 = vmatpush1.xpose.msra.mxu0 0.0
        %510 = vmatprep.subr.mxu0 0.0
        %511 = vmatpush1.xpose.msra.mxu0 0.0
        %512 = vmatprep.subr.mxu0 0.0
        %513 = vmatpush1.xpose.msra.mxu0 0.0
        %514 = vmatprep.subr.mxu0 0.0
        %515 = vmatpush1.xpose.msra.mxu0 0.0
        %516 = vmatprep.subr.mxu0 0.0
        %517 = vmatpush1.xpose.msra.mxu0 0.0
        %518 = vmatprep.subr.mxu0 0.0
        %519 = vmatpush1.xpose.msra.mxu0 0.0
        %520 = vmatprep.subr.mxu0 0.0
        %521 = vmatpush1.xpose.msra.mxu0 0.0
        %522 = vmatprep.subr.mxu0 0.0
        %523 = vmatpush1.xpose.msra.mxu0 0.0
        %524 = vmatprep.subr.mxu0 0.0
        %525 = vmatpush1.xpose.msra.mxu0 0.0
        %526 = vmatprep.subr.mxu0 0.0
        %527 = vmatpush1.xpose.msra.mxu0 0.0
        %528 = vmatprep.mubr.f32.mxu0 0.0
        %529 = vmatmul.mubr.f32.gmra.mrb[0].mxu0 %v456
        %v530 = vpop.f32.mrb[0].mxu0
        %v531 = vadd.f32 0.0, %v530
        %v532 = vpop.f32.mrb[0].mxu0
        %533 = vmatprep.mubr.f32.mxu0 0.0
        %534 = vmatmul.mubr.f32.gmra.mrb[0].mxu0 %v458
        %v535 = vpop.f32.mrb[0].mxu0
        %v536 = vadd.f32 0.0, %v535
        %v537 = vpop.f32.mrb[0].mxu0
        %538 = vdwg.mxu0
        %v539 = vmul.f32 %v531, %v174
        %v540 = vmul.f32 %v536, %v175
        %vm541 = vcmask 130048
        %v542 = vsel %vm541, %v539, 0.0
        %543 = vadd.xlane.f32.xlu0 %v542
        %v544 = vpop.xlane.xlu0 %543
        %v545 = vsel %vm541, %v540, 0.0
        %546 = vadd.xlane.f32.xlu0 %v545
        %v547 = vpop.xlane.xlu0 %546
        %v548 = vadd.f32 %v544, %v547
        %v549 = vrot.slane %v548, 4
        %v550 = vadd.f32 %v548, %v549
        %v551 = vrot.slane %v550, 2
        %v552 = vadd.f32 %v550, %v551
        %v553 = vrot.slane %v552, 1
        %v554 = vadd.f32 %v552, %v553
        %v555 = vmul.f32 %v554, %v237
        %v556 = vadd.f32 %v555, 0.0
        %v557 = vmul.f32 %v531, %v178
        %v558 = vmul.f32 %v536, %v179
        %v559 = vsel %vm541, %v557, 0.0
        %560 = vadd.xlane.f32.xlu0 %v559
        %v561 = vpop.xlane.xlu0 %560
        %v562 = vsel %vm541, %v558, 0.0
        %563 = vadd.xlane.f32.xlu0 %v562
        %v564 = vpop.xlane.xlu0 %563
        %v565 = vadd.f32 %v561, %v564
        %v566 = vrot.slane %v565, 4
        %v567 = vadd.f32 %v565, %v566
        %v568 = vrot.slane %v567, 2
        %v569 = vadd.f32 %v567, %v568
        %v570 = vrot.slane %v569, 1
        %v571 = vadd.f32 %v569, %v570
        %v572 = vmul.f32 %v571, %v239
        %v573 = vadd.f32 %v556, %v572
        %v574 = vmul.f32 %v531, %v182
        %v575 = vmul.f32 %v536, %v183
        %v576 = vsel %vm541, %v574, 0.0
        %577 = vadd.xlane.f32.xlu0 %v576
        %v578 = vpop.xlane.xlu0 %577
        %v579 = vsel %vm541, %v575, 0.0
        %580 = vadd.xlane.f32.xlu0 %v579
        %v581 = vpop.xlane.xlu0 %580
        %v582 = vadd.f32 %v578, %v581
        %v583 = vrot.slane %v582, 4
        %v584 = vadd.f32 %v582, %v583
        %v585 = vrot.slane %v584, 2
        %v586 = vadd.f32 %v584, %v585
        %v587 = vrot.slane %v586, 1
        %v588 = vadd.f32 %v586, %v587
        %v589 = vmul.f32 %v588, %v241
        %v590 = vadd.f32 %v573, %v589
        %v591 = vmul.f32 %v531, %v186
        %v592 = vmul.f32 %v536, %v187
        %v593 = vsel %vm541, %v591, 0.0
        %594 = vadd.xlane.f32.xlu0 %v593
        %v595 = vpop.xlane.xlu0 %594
        %v596 = vsel %vm541, %v592, 0.0
        %597 = vadd.xlane.f32.xlu0 %v596
        %v598 = vpop.xlane.xlu0 %597
        %v599 = vadd.f32 %v595, %v598
        %v600 = vrot.slane %v599, 4
        %v601 = vadd.f32 %v599, %v600
        %v602 = vrot.slane %v601, 2
        %v603 = vadd.f32 %v601, %v602
        %v604 = vrot.slane %v603, 1
        %v605 = vadd.f32 %v603, %v604
        %v606 = vmul.f32 %v605, %v243
        %v607 = vadd.f32 %v590, %v606
        %v608 = vmul.f32 %v531, %v190
        %v609 = vmul.f32 %v536, %v191
        %v610 = vsel %vm541, %v608, 0.0
        %611 = vadd.xlane.f32.xlu0 %v610
        %v612 = vpop.xlane.xlu0 %611
        %v613 = vsel %vm541, %v609, 0.0
        %614 = vadd.xlane.f32.xlu0 %v613
        %v615 = vpop.xlane.xlu0 %614
        %v616 = vadd.f32 %v612, %v615
        %v617 = vrot.slane %v616, 4
        %v618 = vadd.f32 %v616, %v617
        %v619 = vrot.slane %v618, 2
        %v620 = vadd.f32 %v618, %v619
        %v621 = vrot.slane %v620, 1
        %v622 = vadd.f32 %v620, %v621
        %v623 = vmul.f32 %v622, %v245
        %v624 = vadd.f32 %v607, %v623
        %v625 = vmul.f32 %v531, %v194
        %v626 = vmul.f32 %v536, %v195
        %v627 = vsel %vm541, %v625, 0.0
        %628 = vadd.xlane.f32.xlu0 %v627
        %v629 = vpop.xlane.xlu0 %628
        %v630 = vsel %vm541, %v626, 0.0
        %631 = vadd.xlane.f32.xlu0 %v630
        %v632 = vpop.xlane.xlu0 %631
        %v633 = vadd.f32 %v629, %v632
        %v634 = vrot.slane %v633, 4
        %v635 = vadd.f32 %v633, %v634
        %v636 = vrot.slane %v635, 2
        %v637 = vadd.f32 %v635, %v636
        %v638 = vrot.slane %v637, 1
        %v639 = vadd.f32 %v637, %v638
        %v640 = vmul.f32 %v639, %v247
        %v641 = vadd.f32 %v624, %v640
        %v642 = vmul.f32 %v531, %v198
        %v643 = vmul.f32 %v536, %v199
        %v644 = vsel %vm541, %v642, 0.0
        %645 = vadd.xlane.f32.xlu0 %v644
        %v646 = vpop.xlane.xlu0 %645
        %v647 = vsel %vm541, %v643, 0.0
        %648 = vadd.xlane.f32.xlu0 %v647
        %v649 = vpop.xlane.xlu0 %648
        %v650 = vadd.f32 %v646, %v649
        %v651 = vrot.slane %v650, 4
        %v652 = vadd.f32 %v650, %v651
        %v653 = vrot.slane %v652, 2
        %v654 = vadd.f32 %v652, %v653
        %v655 = vrot.slane %v654, 1
        %v656 = vadd.f32 %v654, %v655
        %v657 = vmul.f32 %v656, %v249
        %v658 = vadd.f32 %v641, %v657
        %v659 = vmul.f32 %v531, %v202
        %v660 = vmul.f32 %v536, %v203
        %v661 = vsel %vm541, %v659, 0.0
        %662 = vadd.xlane.f32.xlu0 %v661
        %v663 = vpop.xlane.xlu0 %662
        %v664 = vsel %vm541, %v660, 0.0
        %665 = vadd.xlane.f32.xlu0 %v664
        %v666 = vpop.xlane.xlu0 %665
        %v667 = vadd.f32 %v663, %v666
        %v668 = vrot.slane %v667, 4
        %v669 = vadd.f32 %v667, %v668
        %v670 = vrot.slane %v669, 2
        %v671 = vadd.f32 %v669, %v670
        %v672 = vrot.slane %v671, 1
        %v673 = vadd.f32 %v671, %v672
        %v674 = vmul.f32 %v673, %v251
        %v675 = vadd.f32 %v658, %v674
        %v676 = vmul.f32 %v531, %v206
        %v677 = vmul.f32 %v536, %v207
        %v678 = vsel %vm541, %v676, 0.0
        %679 = vadd.xlane.f32.xlu0 %v678
        %v680 = vpop.xlane.xlu0 %679
        %v681 = vsel %vm541, %v677, 0.0
        %682 = vadd.xlane.f32.xlu0 %v681
        %v683 = vpop.xlane.xlu0 %682
        %v684 = vadd.f32 %v680, %v683
        %v685 = vrot.slane %v684, 4
        %v686 = vadd.f32 %v684, %v685
        %v687 = vrot.slane %v686, 2
        %v688 = vadd.f32 %v686, %v687
        %v689 = vrot.slane %v688, 1
        %v690 = vadd.f32 %v688, %v689
        %v691 = vmul.f32 %v690, %v253
        %v692 = vadd.f32 %v675, %v691
        %v693 = vmul.f32 %v531, %v210
        %v694 = vmul.f32 %v536, %v211
        %v695 = vsel %vm541, %v693, 0.0
        %696 = vadd.xlane.f32.xlu0 %v695
        %v697 = vpop.xlane.xlu0 %696
        %v698 = vsel %vm541, %v694, 0.0
        %699 = vadd.xlane.f32.xlu0 %v698
        %v700 = vpop.xlane.xlu0 %699
        %v701 = vadd.f32 %v697, %v700
        %v702 = vrot.slane %v701, 4
        %v703 = vadd.f32 %v701, %v702
        %v704 = vrot.slane %v703, 2
        %v705 = vadd.f32 %v703, %v704
        %v706 = vrot.slane %v705, 1
        %v707 = vadd.f32 %v705, %v706
        %v708 = vmul.f32 %v707, %v255
        %v709 = vadd.f32 %v692, %v708
        %v710 = vmul.f32 %v531, %v214
        %v711 = vmul.f32 %v536, %v215
        %v712 = vsel %vm541, %v710, 0.0
        %713 = vadd.xlane.f32.xlu0 %v712
        %v714 = vpop.xlane.xlu0 %713
        %v715 = vsel %vm541, %v711, 0.0
        %716 = vadd.xlane.f32.xlu0 %v715
        %v717 = vpop.xlane.xlu0 %716
        %v718 = vadd.f32 %v714, %v717
        %v719 = vrot.slane %v718, 4
        %v720 = vadd.f32 %v718, %v719
        %v721 = vrot.slane %v720, 2
        %v722 = vadd.f32 %v720, %v721
        %v723 = vrot.slane %v722, 1
        %v724 = vadd.f32 %v722, %v723
        %v725 = vmul.f32 %v724, %v257
        %v726 = vadd.f32 %v709, %v725
        %v727 = vmul.f32 %v531, %v218
        %v728 = vmul.f32 %v536, %v219
        %v729 = vsel %vm541, %v727, 0.0
        %730 = vadd.xlane.f32.xlu0 %v729
        %v731 = vpop.xlane.xlu0 %730
        %v732 = vsel %vm541, %v728, 0.0
        %733 = vadd.xlane.f32.xlu0 %v732
        %v734 = vpop.xlane.xlu0 %733
        %v735 = vadd.f32 %v731, %v734
        %v736 = vrot.slane %v735, 4
        %v737 = vadd.f32 %v735, %v736
        %v738 = vrot.slane %v737, 2
        %v739 = vadd.f32 %v737, %v738
        %v740 = vrot.slane %v739, 1
        %v741 = vadd.f32 %v739, %v740
        %v742 = vmul.f32 %v741, %v259
        %v743 = vadd.f32 %v726, %v742
        %v744 = vmul.f32 %v531, %v222
        %v745 = vmul.f32 %v536, %v223
        %v746 = vsel %vm541, %v744, 0.0
        %747 = vadd.xlane.f32.xlu0 %v746
        %v748 = vpop.xlane.xlu0 %747
        %v749 = vsel %vm541, %v745, 0.0
        %750 = vadd.xlane.f32.xlu0 %v749
        %v751 = vpop.xlane.xlu0 %750
        %v752 = vadd.f32 %v748, %v751
        %v753 = vrot.slane %v752, 4
        %v754 = vadd.f32 %v752, %v753
        %v755 = vrot.slane %v754, 2
        %v756 = vadd.f32 %v754, %v755
        %v757 = vrot.slane %v756, 1
        %v758 = vadd.f32 %v756, %v757
        %v759 = vmul.f32 %v758, %v261
        %v760 = vadd.f32 %v743, %v759
        %v761 = vmul.f32 %v531, %v226
        %v762 = vmul.f32 %v536, %v227
        %v763 = vsel %vm541, %v761, 0.0
        %764 = vadd.xlane.f32.xlu0 %v763
        %v765 = vpop.xlane.xlu0 %764
        %v766 = vsel %vm541, %v762, 0.0
        %767 = vadd.xlane.f32.xlu0 %v766
        %v768 = vpop.xlane.xlu0 %767
        %v769 = vadd.f32 %v765, %v768
        %v770 = vrot.slane %v769, 4
        %v771 = vadd.f32 %v769, %v770
        %v772 = vrot.slane %v771, 2
        %v773 = vadd.f32 %v771, %v772
        %v774 = vrot.slane %v773, 1
        %v775 = vadd.f32 %v773, %v774
        %v776 = vmul.f32 %v775, %v263
        %v777 = vadd.f32 %v760, %v776
        %v778 = vmul.f32 %v531, %v230
        %v779 = vmul.f32 %v536, %v231
        %v780 = vsel %vm541, %v778, 0.0
        %781 = vadd.xlane.f32.xlu0 %v780
        %v782 = vpop.xlane.xlu0 %781
        %v783 = vsel %vm541, %v779, 0.0
        %784 = vadd.xlane.f32.xlu0 %v783
        %v785 = vpop.xlane.xlu0 %784
        %v786 = vadd.f32 %v782, %v785
        %v787 = vrot.slane %v786, 4
        %v788 = vadd.f32 %v786, %v787
        %v789 = vrot.slane %v788, 2
        %v790 = vadd.f32 %v788, %v789
        %v791 = vrot.slane %v790, 1
        %v792 = vadd.f32 %v790, %v791
        %v793 = vmul.f32 %v792, %v265
        %v794 = vadd.f32 %v777, %v793
        %v795 = vmul.f32 %v531, %v234
        %v796 = vmul.f32 %v536, %v235
        %v797 = vsel %vm541, %v795, 0.0
        %798 = vadd.xlane.f32.xlu0 %v797
        %v799 = vpop.xlane.xlu0 %798
        %v800 = vsel %vm541, %v796, 0.0
        %801 = vadd.xlane.f32.xlu0 %v800
        %v802 = vpop.xlane.xlu0 %801
        %v803 = vadd.f32 %v799, %v802
        %v804 = vrot.slane %v803, 4
        %v805 = vadd.f32 %v803, %v804
        %v806 = vrot.slane %v805, 2
        %v807 = vadd.f32 %v805, %v806
        %v808 = vrot.slane %v807, 1
        %v809 = vadd.f32 %v807, %v808
        %v810 = vmul.f32 %v809, %v267
        %v811 = vadd.f32 %v794, %v810
        %v812 = vmul.f32 %v811, 0.03125
        %v813 = vsel %vm541, %v812, -inf
        %814 = vmax.xlane.f32.xlu0 %v813
        %v815 = vpop.xlane.xlu0 %814
        %v816 = vsub.f32 %v812, %v815
        %v817 = vmul.f32 %v816, 1.442695
        %v818 = vpow.pop %v817
        %v819 = vsel %vm541, %v818, 0.0
        %820 = vadd.xlane.f32.xlu0 %v819
        %v821 = vpop.xlane.xlu0 %820
        %v822 = vrcp.pop %v821
        %v823 = vmul.f32 %v818, %v822
        %825 = vset.pattern.permute.xlu0 0
        %826 = vperm.xlu0 %825, %v823
        %v827 = vpop.permute.xlu0 %826
        %v829 = vmul.f32 %v827, %v174
        %v830 = vmul.f32 %v827, %v175
        %v831 = vadd.f32 %v829, 0.0
        %v832 = vadd.f32 %v830, 0.0
        %833 = vset.pattern.permute.xlu0 1
        %834 = vperm.xlu0 %833, %v823
        %v835 = vpop.permute.xlu0 %834
        %v837 = vmul.f32 %v835, %v178
        %v838 = vmul.f32 %v835, %v179
        %v839 = vadd.f32 %v831, %v837
        %v840 = vadd.f32 %v832, %v838
        %841 = vset.pattern.permute.xlu0 2
        %842 = vperm.xlu0 %841, %v823
        %v843 = vpop.permute.xlu0 %842
        %v845 = vmul.f32 %v843, %v182
        %v846 = vmul.f32 %v843, %v183
        %v847 = vadd.f32 %v839, %v845
        %v848 = vadd.f32 %v840, %v846
        %849 = vset.pattern.permute.xlu0 3
        %850 = vperm.xlu0 %849, %v823
        %v851 = vpop.permute.xlu0 %850
        %v853 = vmul.f32 %v851, %v186
        %v854 = vmul.f32 %v851, %v187
        %v855 = vadd.f32 %v847, %v853
        %v856 = vadd.f32 %v848, %v854
        %857 = vset.pattern.permute.xlu0 4
        %858 = vperm.xlu0 %857, %v823
        %v859 = vpop.permute.xlu0 %858
        %v861 = vmul.f32 %v859, %v190
        %v862 = vmul.f32 %v859, %v191
        %v863 = vadd.f32 %v855, %v861
        %v864 = vadd.f32 %v856, %v862
        %865 = vset.pattern.permute.xlu0 5
        %866 = vperm.xlu0 %865, %v823
        %v867 = vpop.permute.xlu0 %866
        %v869 = vmul.f32 %v867, %v194
        %v870 = vmul.f32 %v867, %v195
        %v871 = vadd.f32 %v863, %v869
        %v872 = vadd.f32 %v864, %v870
        %873 = vset.pattern.permute.xlu0 6
        %874 = vperm.xlu0 %873, %v823
        %v875 = vpop.permute.xlu0 %874
        %v877 = vmul.f32 %v875, %v198
        %v878 = vmul.f32 %v875, %v199
        %v879 = vadd.f32 %v871, %v877
        %v880 = vadd.f32 %v872, %v878
        %881 = vset.pattern.permute.xlu0 7
        %882 = vperm.xlu0 %881, %v823
        %v883 = vpop.permute.xlu0 %882
        %v885 = vmul.f32 %v883, %v202
        %v886 = vmul.f32 %v883, %v203
        %v887 = vadd.f32 %v879, %v885
        %v888 = vadd.f32 %v880, %v886
        %889 = vset.pattern.permute.xlu0 8
        %890 = vperm.xlu0 %889, %v823
        %v891 = vpop.permute.xlu0 %890
        %v893 = vmul.f32 %v891, %v206
        %v894 = vmul.f32 %v891, %v207
        %v895 = vadd.f32 %v887, %v893
        %v896 = vadd.f32 %v888, %v894
        %897 = vset.pattern.permute.xlu0 9
        %898 = vperm.xlu0 %897, %v823
        %v899 = vpop.permute.xlu0 %898
        %v901 = vmul.f32 %v899, %v210
        %v902 = vmul.f32 %v899, %v211
        %v903 = vadd.f32 %v895, %v901
        %v904 = vadd.f32 %v896, %v902
        %905 = vset.pattern.permute.xlu0 10
        %906 = vperm.xlu0 %905, %v823
        %v907 = vpop.permute.xlu0 %906
        %v909 = vmul.f32 %v907, %v214
        %v910 = vmul.f32 %v907, %v215
        %v911 = vadd.f32 %v903, %v909
        %v912 = vadd.f32 %v904, %v910
        %913 = vset.pattern.permute.xlu0 11
        %914 = vperm.xlu0 %913, %v823
        %v915 = vpop.permute.xlu0 %914
        %v917 = vmul.f32 %v915, %v218
        %v918 = vmul.f32 %v915, %v219
        %v919 = vadd.f32 %v911, %v917
        %v920 = vadd.f32 %v912, %v918
        %921 = vset.pattern.permute.xlu0 12
        %922 = vperm.xlu0 %921, %v823
        %v923 = vpop.permute.xlu0 %922
        %v925 = vmul.f32 %v923, %v222
        %v926 = vmul.f32 %v923, %v223
        %v927 = vadd.f32 %v919, %v925
        %v928 = vadd.f32 %v920, %v926
        %929 = vset.pattern.permute.xlu0 13
        %930 = vperm.xlu0 %929, %v823
        %v931 = vpop.permute.xlu0 %930
        %v933 = vmul.f32 %v931, %v226
        %v934 = vmul.f32 %v931, %v227
        %v935 = vadd.f32 %v927, %v933
        %v936 = vadd.f32 %v928, %v934
        %937 = vset.pattern.permute.xlu0 14
        %938 = vperm.xlu0 %937, %v823
        %v939 = vpop.permute.xlu0 %938
        %v941 = vmul.f32 %v939, %v230
        %v942 = vmul.f32 %v939, %v231
        %v943 = vadd.f32 %v935, %v941
        %v944 = vadd.f32 %v936, %v942
        %945 = vset.pattern.permute.xlu0 15
        %946 = vperm.xlu0 %945, %v823
        %v947 = vpop.permute.xlu0 %946
        %v949 = vmul.f32 %v947, %v234
        %v950 = vmul.f32 %v947, %v235
        %v951 = vadd.f32 %v943, %v949
        %v952 = vadd.f32 %v944, %v950
        %953 = vrot.lane.b32.xlu0 %v442, 64
        %v954 = vpop.permute.xlu0 %953
        %955 = vrot.lane.b32.xlu0 %v447, 64
        %v956 = vpop.permute.xlu0 %955
        %v960 = vsel %vm541, %v951, 0
        %v963 = vsel %vm541, %v952, 0
        %965 = vmatprep.subr.mxu0 0.0
        %966 = vmatpush1.msra.mxu0 %v954
        %967 = vmatprep.subr.mxu0 0.0
        %968 = vmatpush1.msra.mxu0 %v956
        %969 = vmatprep.subr.mxu0 0.0
        %970 = vmatpush1.msra.mxu0 0.0
        %971 = vmatprep.subr.mxu0 0.0
        %972 = vmatpush1.msra.mxu0 0.0
        %973 = vmatprep.subr.mxu0 0.0
        %974 = vmatpush1.msra.mxu0 0.0
        %975 = vmatprep.subr.mxu0 0.0
        %976 = vmatpush1.msra.mxu0 0.0
        %977 = vmatprep.subr.mxu0 0.0
        %978 = vmatpush1.msra.mxu0 0.0
        %979 = vmatprep.subr.mxu0 0.0
        %980 = vmatpush1.msra.mxu0 0.0
        %981 = vmatprep.subr.mxu0 0.0
        %982 = vmatpush1.msra.mxu0 0.0
        %983 = vmatprep.subr.mxu0 0.0
        %984 = vmatpush1.msra.mxu0 0.0
        %985 = vmatprep.subr.mxu0 0.0
        %986 = vmatpush1.msra.mxu0 0.0
        %987 = vmatprep.subr.mxu0 0.0
        %988 = vmatpush1.msra.mxu0 0.0
        %989 = vmatprep.subr.mxu0 0.0
        %990 = vmatpush1.msra.mxu0 0.0
        %991 = vmatprep.subr.mxu0 0.0
        %992 = vmatpush1.msra.mxu0 0.0
        %993 = vmatprep.subr.mxu0 0.0
        %994 = vmatpush1.msra.mxu0 0.0
        %995 = vmatprep.subr.mxu0 0.0
        %996 = vmatpush1.msra.mxu0 0.0
        %997 = vmatprep.subr.mxu0 0.0
        %998 = vmatpush1.msra.mxu0 0.0
        %999 = vmatprep.subr.mxu0 0.0
        %1000 = vmatpush1.msra.mxu0 0.0
        %1001 = vmatprep.subr.mxu0 0.0
        %1002 = vmatpush1.msra.mxu0 0.0
        %1003 = vmatprep.subr.mxu0 0.0
        %1004 = vmatpush1.msra.mxu0 0.0
        %1005 = vmatprep.subr.mxu0 0.0
        %1006 = vmatpush1.msra.mxu0 0.0
        %1007 = vmatprep.subr.mxu0 0.0
        %1008 = vmatpush1.msra.mxu0 0.0
        %1009 = vmatprep.subr.mxu0 0.0
        %1010 = vmatpush1.msra.mxu0 0.0
        %1011 = vmatprep.subr.mxu0 0.0
        %1012 = vmatpush1.msra.mxu0 0.0
        %1013 = vmatprep.subr.mxu0 0.0
        %1014 = vmatpush1.msra.mxu0 0.0
        %1015 = vmatprep.subr.mxu0 0.0
        %1016 = vmatpush1.msra.mxu0 0.0
        %1017 = vmatprep.subr.mxu0 0.0
        %1018 = vmatpush1.msra.mxu0 0.0
        %1019 = vmatprep.subr.mxu0 0.0
        %1020 = vmatpush1.msra.mxu0 0.0
        %1021 = vmatprep.subr.mxu0 0.0
        %1022 = vmatpush1.msra.mxu0 0.0
        %1023 = vmatprep.subr.mxu0 0.0
        %1024 = vmatpush1.msra.mxu0 0.0
        %1025 = vmatprep.subr.mxu0 0.0
        %1026 = vmatpush1.msra.mxu0 0.0
        %1027 = vmatprep.subr.mxu0 0.0
        %1028 = vmatpush1.msra.mxu0 0.0
        %1029 = vmatprep.mubr.f32.mxu0 0.0
        %1030 = vmatmul.mubr.f32.gmra.mrb[0].mxu0 %v960
        %v1031 = vpop.f32.mrb[0].mxu0
        %v1032 = vadd.f32 0.0, %v1031
        %v1033 = vpop.f32.mrb[0].mxu0
        %1034 = vmatprep.mubr.f32.mxu0 0.0
        %1035 = vmatmul.mubr.f32.gmra.mrb[0].mxu0 %v963
        %v1036 = vpop.f32.mrb[0].mxu0
        %v1037 = vadd.f32 0.0, %v1036
        %v1038 = vpop.f32.mrb[0].mxu0
        %1039 = vdwg.mxu0
        %v1040 = vlaneseq
        %v1041 = vshrl.u32 %v1040, 7
        %v1042 = vsub.s32 0, %v1041
        %v1043 = vrot.slane %v364, %v1042
        %v1045 = vsel %vm313, %v1032, 0
        %v1048 = vsel %vm313, %v1037, 0
        %1050 = vmatprep.subr.mxu0 0.0
        %1051 = vmatpush1.msra.mxu0 %v360
        %1052 = vmatprep.subr.mxu0 0.0
        %1053 = vmatpush1.msra.mxu0 %v361
        %1054 = vmatprep.subr.mxu0 0.0
        %1055 = vmatpush1.msra.mxu0 %v362
        %1056 = vmatprep.subr.mxu0 0.0
        %1057 = vmatpush1.msra.mxu0 %v363
        %1058 = vmatprep.subr.mxu0 0.0
        %1059 = vmatpush1.msra.mxu0 0.0
        %1060 = vmatprep.subr.mxu0 0.0
        %1061 = vmatpush1.msra.mxu0 0.0
        %1062 = vmatprep.subr.mxu0 0.0
        %1063 = vmatpush1.msra.mxu0 0.0
        %1064 = vmatprep.subr.mxu0 0.0
        %1065 = vmatpush1.msra.mxu0 0.0
        %1066 = vmatprep.subr.mxu0 0.0
        %1067 = vmatpush1.msra.mxu0 0.0
        %1068 = vmatprep.subr.mxu0 0.0
        %1069 = vmatpush1.msra.mxu0 0.0
        %1070 = vmatprep.subr.mxu0 0.0
        %1071 = vmatpush1.msra.mxu0 0.0
        %1072 = vmatprep.subr.mxu0 0.0
        %1073 = vmatpush1.msra.mxu0 0.0
        %1074 = vmatprep.subr.mxu0 0.0
        %1075 = vmatpush1.msra.mxu0 0.0
        %1076 = vmatprep.subr.mxu0 0.0
        %1077 = vmatpush1.msra.mxu0 0.0
        %1078 = vmatprep.subr.mxu0 0.0
        %1079 = vmatpush1.msra.mxu0 0.0
        %1080 = vmatprep.subr.mxu0 0.0
        %1081 = vmatpush1.msra.mxu0 0.0
        %1082 = vmatprep.subr.mxu0 0.0
        %1083 = vmatpush1.msra.mxu0 0.0
        %1084 = vmatprep.subr.mxu0 0.0
        %1085 = vmatpush1.msra.mxu0 0.0
        %1086 = vmatprep.subr.mxu0 0.0
        %1087 = vmatpush1.msra.mxu0 0.0
        %1088 = vmatprep.subr.mxu0 0.0
        %1089 = vmatpush1.msra.mxu0 0.0
        %1090 = vmatprep.subr.mxu0 0.0
        %1091 = vmatpush1.msra.mxu0 0.0
        %1092 = vmatprep.subr.mxu0 0.0
        %1093 = vmatpush1.msra.mxu0 0.0
        %1094 = vmatprep.subr.mxu0 0.0
        %1095 = vmatpush1.msra.mxu0 0.0
        %1096 = vmatprep.subr.mxu0 0.0
        %1097 = vmatpush1.msra.mxu0 0.0
        %1098 = vmatprep.subr.mxu0 0.0
        %1099 = vmatpush1.msra.mxu0 0.0
        %1100 = vmatprep.subr.mxu0 0.0
        %1101 = vmatpush1.msra.mxu0 0.0
        %1102 = vmatprep.subr.mxu0 0.0
        %1103 = vmatpush1.msra.mxu0 0.0
        %1104 = vmatprep.subr.mxu0 0.0
        %1105 = vmatpush1.msra.mxu0 0.0
        %1106 = vmatprep.subr.mxu0 0.0
        %1107 = vmatpush1.msra.mxu0 0.0
        %1108 = vmatprep.subr.mxu0 0.0
        %1109 = vmatpush1.msra.mxu0 0.0
        %1110 = vmatprep.subr.mxu0 0.0
        %1111 = vmatpush1.msra.mxu0 0.0
        %1112 = vmatprep.subr.mxu0 0.0
        %1113 = vmatpush1.msra.mxu0 0.0
        %1114 = vmatprep.mubr.f32.mxu0 0.0
        %1115 = vmatmul.mubr.f32.gmra.mrb[0].mxu0 %v1045
        %v1116 = vpop.f32.mrb[0].mxu0
        %v1117 = vadd.f32 %v1043, %v1116
        %v1118 = vpop.f32.mrb[0].mxu0
        %1119 = vmatprep.mubr.f32.mxu0 0.0
        %1120 = vmatmul.mubr.f32.gmra.mrb[0].mxu0 %v1048
        %v1121 = vpop.f32.mrb[0].mxu0
        %v1122 = vadd.f32 %v1043, %v1121
        %v1123 = vpop.f32.mrb[0].mxu0
        %1124 = vdwg.mxu0
        %v1125 = vadd.f32 %v351, %v1117
        %v1126 = vadd.f32 %v352, %v1122
        %v1127 = vsel %vm313, %v1125, 0.0
        %1128 = vadd.xlane.f32.xlu0 %v1127
        %v1129 = vpop.xlane.xlu0 %1128
        %v1130 = vsel %vm313, %v1126, 0.0
        %1131 = vadd.xlane.f32.xlu0 %v1130
        %v1132 = vpop.xlane.xlu0 %1131
        %v1133 = vmul.f32 %v1129, %v320
        %v1134 = vmul.f32 %v1132, %v320
        %v1135 = vsub.f32 %v1125, %v1133
        %v1136 = vsub.f32 %v1126, %v1134
        %v1137 = vmul.f32 %v1135, %v1135
        %v1138 = vmul.f32 %v1136, %v1136
        %v1139 = vsel %vm313, %v1137, 0.0
        %1140 = vadd.xlane.f32.xlu0 %v1139
        %v1141 = vpop.xlane.xlu0 %1140
        %v1142 = vsel %vm313, %v1138, 0.0
        %1143 = vadd.xlane.f32.xlu0 %v1142
        %v1144 = vpop.xlane.xlu0 %1143
        %v1145 = vmul.f32 %v1141, %v320
        %v1146 = vmul.f32 %v1144, %v320
        %v1147 = vadd.f32 %v1145, 1e-05
        %v1148 = vadd.f32 %v1146, 1e-05
        %v1149 = vrsqrt.pop %v1147
        %v1150 = vrsqrt.pop %v1148
        %v1151 = vmul.f32 %v1135, %v1149
        %v1152 = vmul.f32 %v1136, %v1150
        %v1153 = vlaneseq
        %v1154 = vshrl.u32 %v1153, 7
        %v1155 = vsub.s32 0, %v1154
        %v1156 = vrot.slane %v353, %v1155
        %v1157 = vmul.f32 %v1151, %v1156
        %v1158 = vmul.f32 %v1152, %v1156
        %v1159 = vlaneseq
        %v1160 = vshrl.u32 %v1159, 7
        %v1161 = vsub.s32 1, %v1160
        %v1162 = vrot.slane %v353, %v1161
        %v1163 = vadd.f32 %v1157, %v1162
        %v1164 = vadd.f32 %v1158, %v1162
        %v1166 = vsel %vm541, %v286, 0
        %v1169 = vsel %vm541, %v287, 0
        %1171 = vmatprep.subr.mxu0 0.0
        %1172 = vmatpush1.msra.mxu0 %v1163
        %1173 = vmatprep.subr.mxu0 0.0
        %1174 = vmatpush1.msra.mxu0 %v1164
        %1175 = vmatprep.subr.mxu0 0.0
        %1176 = vmatpush1.msra.mxu0 0.0
        %1177 = vmatprep.subr.mxu0 0.0
        %1178 = vmatpush1.msra.mxu0 0.0
        %1179 = vmatprep.subr.mxu0 0.0
        %1180 = vmatpush1.msra.mxu0 0.0
        %1181 = vmatprep.subr.mxu0 0.0
        %1182 = vmatpush1.msra.mxu0 0.0
        %1183 = vmatprep.subr.mxu0 0.0
        %1184 = vmatpush1.msra.mxu0 0.0
        %1185 = vmatprep.subr.mxu0 0.0
        %1186 = vmatpush1.msra.mxu0 0.0
        %1187 = vmatprep.subr.mxu0 0.0
        %1188 = vmatpush1.msra.mxu0 0.0
        %1189 = vmatprep.subr.mxu0 0.0
        %1190 = vmatpush1.msra.mxu0 0.0
        %1191 = vmatprep.subr.mxu0 0.0
        %1192 = vmatpush1.msra.mxu0 0.0
        %1193 = vmatprep.subr.mxu0 0.0
        %1194 = vmatpush1.msra.mxu0 0.0
        %1195 = vmatprep.subr.mxu0 0.0
        %1196 = vmatpush1.msra.mxu0 0.0
        %1197 = vmatprep.subr.mxu0 0.0
        %1198 = vmatpush1.msra.mxu0 0.0
        %1199 = vmatprep.subr.mxu0 0.0
        %1200 = vmatpush1.msra.mxu0 0.0
        %1201 = vmatprep.subr.mxu0 0.0
        %1202 = vmatpush1.msra.mxu0 0.0
        %1203 = vmatprep.subr.mxu0 0.0
        %1204 = vmatpush1.msra.mxu0 0.0
        %1205 = vmatprep.subr.mxu0 0.0
        %1206 = vmatpush1.msra.mxu0 0.0
        %1207 = vmatprep.subr.mxu0 0.0
        %1208 = vmatpush1.msra.mxu0 0.0
        %1209 = vmatprep.subr.mxu0 0.0
        %1210 = vmatpush1.msra.mxu0 0.0
        %1211 = vmatprep.subr.mxu0 0.0
        %1212 = vmatpush1.msra.mxu0 0.0
        %1213 = vmatprep.subr.mxu0 0.0
        %1214 = vmatpush1.msra.mxu0 0.0
        %1215 = vmatprep.subr.mxu0 0.0
        %1216 = vmatpush1.msra.mxu0 0.0
        %1217 = vmatprep.subr.mxu0 0.0
        %1218 = vmatpush1.msra.mxu0 0.0
        %1219 = vmatprep.subr.mxu0 0.0
        %1220 = vmatpush1.msra.mxu0 0.0
        %1221 = vmatprep.subr.mxu0 0.0
        %1222 = vmatpush1.msra.mxu0 0.0
        %1223 = vmatprep.subr.mxu0 0.0
        %1224 = vmatpush1.msra.mxu0 0.0
        %1225 = vmatprep.subr.mxu0 0.0
        %1226 = vmatpush1.msra.mxu0 0.0
        %1227 = vmatprep.subr.mxu0 0.0
        %1228 = vmatpush1.msra.mxu0 0.0
        %1229 = vmatprep.subr.mxu0 0.0
        %1230 = vmatpush1.msra.mxu0 0.0
        %1231 = vmatprep.subr.mxu0 0.0
        %1232 = vmatpush1.msra.mxu0 0.0
        %1233 = vmatprep.subr.mxu0 0.0
        %1234 = vmatpush1.msra.mxu0 0.0
        %1235 = vmatprep.mubr.f32.mxu0 0.0
        %1236 = vmatmul.mubr.f32.gmra.mrb[0].mxu0 %v1166
        %v1237 = vpop.f32.mrb[0].mxu0
        %v1238 = vadd.f32 0.0, %v1237
        %v1239 = vpop.f32.mrb[0].mxu0
        %1240 = vmatprep.mubr.f32.mxu0 0.0
        %1241 = vmatmul.mubr.f32.gmra.mrb[0].mxu0 %v1169
        %v1242 = vpop.f32.mrb[0].mxu0
        %v1243 = vadd.f32 0.0, %v1242
        %v1244 = vpop.f32.mrb[0].mxu0
        %1245 = vdwg.mxu0
        %v1246 = vsub.f32 %v1163, %v1238
        %v1247 = vsub.f32 %v1164, %v1243
        %v1248 = vld [vmem:[#allocation2 + $0x98] sm:$0xff]
        %v1249 = vld [vmem:[#allocation2 + $0xa0] sm:$0xff]
        %v1250 = vld [vmem:[#allocation2 + $0xa8] sm:$0xff]
        %v1251 = vld [vmem:[#allocation2 + $0xb0] sm:$0xff]
        %v1252 = vlaneseq
        %v1253 = vshrl.u32 %v1252, 7
        %v1254 = vsub.s32 0, %v1253
        %v1255 = vrot.slane %v354, %v1254
        %v1257 = vsel %vm313, %v1246, 0
        %v1260 = vsel %vm313, %v1247, 0
        %1262 = vmatprep.subr.mxu0 0.0
        %1263 = vmatpush1.msra.mxu0 %v1248
        %1264 = vmatprep.subr.mxu0 0.0
        %1265 = vmatpush1.msra.mxu0 %v1249
        %1266 = vmatprep.subr.mxu0 0.0
        %1267 = vmatpush1.msra.mxu0 %v1250
        %1268 = vmatprep.subr.mxu0 0.0
        %1269 = vmatpush1.msra.mxu0 %v1251
        %1270 = vmatprep.subr.mxu0 0.0
        %1271 = vmatpush1.msra.mxu0 0.0
        %1272 = vmatprep.subr.mxu0 0.0
        %1273 = vmatpush1.msra.mxu0 0.0
        %1274 = vmatprep.subr.mxu0 0.0
        %1275 = vmatpush1.msra.mxu0 0.0
        %1276 = vmatprep.subr.mxu0 0.0
        %1277 = vmatpush1.msra.mxu0 0.0
        %1278 = vmatprep.subr.mxu0 0.0
        %1279 = vmatpush1.msra.mxu0 0.0
        %1280 = vmatprep.subr.mxu0 0.0
        %1281 = vmatpush1.msra.mxu0 0.0
        %1282 = vmatprep.subr.mxu0 0.0
        %1283 = vmatpush1.msra.mxu0 0.0
        %1284 = vmatprep.subr.mxu0 0.0
        %1285 = vmatpush1.msra.mxu0 0.0
        %1286 = vmatprep.subr.mxu0 0.0
        %1287 = vmatpush1.msra.mxu0 0.0
        %1288 = vmatprep.subr.mxu0 0.0
        %1289 = vmatpush1.msra.mxu0 0.0
        %1290 = vmatprep.subr.mxu0 0.0
        %1291 = vmatpush1.msra.mxu0 0.0
        %1292 = vmatprep.subr.mxu0 0.0
        %1293 = vmatpush1.msra.mxu0 0.0
        %1294 = vmatprep.subr.mxu0 0.0
        %1295 = vmatpush1.msra.mxu0 0.0
        %1296 = vmatprep.subr.mxu0 0.0
        %1297 = vmatpush1.msra.mxu0 0.0
        %1298 = vmatprep.subr.mxu0 0.0
        %1299 = vmatpush1.msra.mxu0 0.0
        %1300 = vmatprep.subr.mxu0 0.0
        %1301 = vmatpush1.msra.mxu0 0.0
        %1302 = vmatprep.subr.mxu0 0.0
        %1303 = vmatpush1.msra.mxu0 0.0
        %1304 = vmatprep.subr.mxu0 0.0
        %1305 = vmatpush1.msra.mxu0 0.0
        %1306 = vmatprep.subr.mxu0 0.0
        %1307 = vmatpush1.msra.mxu0 0.0
        %1308 = vmatprep.subr.mxu0 0.0
        %1309 = vmatpush1.msra.mxu0 0.0
        %1310 = vmatprep.subr.mxu0 0.0
        %1311 = vmatpush1.msra.mxu0 0.0
        %1312 = vmatprep.subr.mxu0 0.0
        %1313 = vmatpush1.msra.mxu0 0.0
        %1314 = vmatprep.subr.mxu0 0.0
        %1315 = vmatpush1.msra.mxu0 0.0
        %1316 = vmatprep.subr.mxu0 0.0
        %1317 = vmatpush1.msra.mxu0 0.0
        %1318 = vmatprep.subr.mxu0 0.0
        %1319 = vmatpush1.msra.mxu0 0.0
        %1320 = vmatprep.subr.mxu0 0.0
        %1321 = vmatpush1.msra.mxu0 0.0
        %1322 = vmatprep.subr.mxu0 0.0
        %1323 = vmatpush1.msra.mxu0 0.0
        %1324 = vmatprep.subr.mxu0 0.0
        %1325 = vmatpush1.msra.mxu0 0.0
        %1326 = vmatprep.mubr.f32.mxu0 0.0
        %1327 = vmatmul.mubr.f32.gmra.mrb[0].mxu0 %v1257
        %v1328 = vpop.f32.mrb[0].mxu0
        %v1329 = vadd.f32 %v1255, %v1328
        %v1330 = vpop.f32.mrb[0].mxu0
        %1331 = vmatprep.mubr.f32.mxu0 0.0
        %1332 = vmatmul.mubr.f32.gmra.mrb[0].mxu0 %v1260
        %v1333 = vpop.f32.mrb[0].mxu0
        %v1334 = vadd.f32 %v1255, %v1333
        %v1335 = vpop.f32.mrb[0].mxu0
        %1336 = vdwg.mxu0
        %v1337 = vmul.f32 %v1329, %v1329
        %v1338 = vmul.f32 %v1334, %v1334
        %v1339 = vmul.f32 %v1329, %v1337
        %v1340 = vmul.f32 %v1334, %v1338
        %v1341 = vmul.f32 %v1339, 0.044715
        %v1342 = vmul.f32 %v1340, 0.044715
        %v1343 = vadd.f32 %v1329, %v1341
        %v1344 = vadd.f32 %v1334, %v1342
        %v1345 = vmul.f32 %v1343, 0.7978846
        %v1346 = vmul.f32 %v1344, 0.7978846
        %v1347 = vtanh.pop %v1345
        %v1348 = vtanh.pop %v1346
        %v1349 = vadd.f32 %v1347, 1.0
        %v1350 = vadd.f32 %v1348, 1.0
        %v1351 = vmul.f32 %v1349, 0.5
        %v1352 = vmul.f32 %v1350, 0.5
        %v1353 = vmul.f32 %v1329, %v1351
        %v1354 = vmul.f32 %v1334, %v1352
        %v1355 = vld [vmem:[#allocation2 + $0xb8] sm:$0xff]
        %v1356 = vld [vmem:[#allocation2 + $0xc0] sm:$0xff]
        %v1357 = vld [vmem:[#allocation2 + $0xc8] sm:$0xff]
        %v1358 = vld [vmem:[#allocation2 + $0xd0] sm:$0xff]
        %v1359 = vld [vmem:[#allocation2 + $0xd8] sm:$0xff]
        %v1360 = vld [vmem:[#allocation2 + $0xe0] sm:$0xff]
        %v1361 = vld [vmem:[#allocation2 + $0xe8] sm:$0xff]
        %v1362 = vld [vmem:[#allocation2 + $0xf0] sm:$0xff]
        %1364 = vrot.lane.b32.xlu0 %v1255, 64
        %v1365 = vpop.permute.xlu0 %1364
        %vm1367 = vcmask 523264
        %v1369 = vsel %vm1367, %v1353, 0
        %v1372 = vsel %vm1367, %v1354, 0
        %1374 = vmatprep.subr.mxu0 0.0
        %1375 = vmatpush1.msra.mxu0 %v1355
        %1376 = vmatprep.subr.mxu0 0.0
        %1377 = vmatpush1.msra.mxu0 %v1356
        %1378 = vmatprep.subr.mxu0 0.0
        %1379 = vmatpush1.msra.mxu0 %v1357
        %1380 = vmatprep.subr.mxu0 0.0
        %1381 = vmatpush1.msra.mxu0 %v1358
        %1382 = vmatprep.subr.mxu0 0.0
        %1383 = vmatpush1.msra.mxu0 %v1359
        %1384 = vmatprep.subr.mxu0 0.0
        %1385 = vmatpush1.msra.mxu0 %v1360
        %1386 = vmatprep.subr.mxu0 0.0
        %1387 = vmatpush1.msra.mxu0 %v1361
        %1388 = vmatprep.subr.mxu0 0.0
        %1389 = vmatpush1.msra.mxu0 %v1362
        %1390 = vmatprep.subr.mxu0 0.0
        %1391 = vmatpush1.msra.mxu0 0.0
        %1392 = vmatprep.subr.mxu0 0.0
        %1393 = vmatpush1.msra.mxu0 0.0
        %1394 = vmatprep.subr.mxu0 0.0
        %1395 = vmatpush1.msra.mxu0 0.0
        %1396 = vmatprep.subr.mxu0 0.0
        %1397 = vmatpush1.msra.mxu0 0.0
        %1398 = vmatprep.subr.mxu0 0.0
        %1399 = vmatpush1.msra.mxu0 0.0
        %1400 = vmatprep.subr.mxu0 0.0
        %1401 = vmatpush1.msra.mxu0 0.0
        %1402 = vmatprep.subr.mxu0 0.0
        %1403 = vmatpush1.msra.mxu0 0.0
        %1404 = vmatprep.subr.mxu0 0.0
        %1405 = vmatpush1.msra.mxu0 0.0
        %1406 = vmatprep.subr.mxu0 0.0
        %1407 = vmatpush1.msra.mxu0 0.0
        %1408 = vmatprep.subr.mxu0 0.0
        %1409 = vmatpush1.msra.mxu0 0.0
        %1410 = vmatprep.subr.mxu0 0.0
        %1411 = vmatpush1.msra.mxu0 0.0
        %1412 = vmatprep.subr.mxu0 0.0
        %1413 = vmatpush1.msra.mxu0 0.0
        %1414 = vmatprep.subr.mxu0 0.0
        %1415 = vmatpush1.msra.mxu0 0.0
        %1416 = vmatprep.subr.mxu0 0.0
        %1417 = vmatpush1.msra.mxu0 0.0
        %1418 = vmatprep.subr.mxu0 0.0
        %1419 = vmatpush1.msra.mxu0 0.0
        %1420 = vmatprep.subr.mxu0 0.0
        %1421 = vmatpush1.msra.mxu0 0.0
        %1422 = vmatprep.subr.mxu0 0.0
        %1423 = vmatpush1.msra.mxu0 0.0
        %1424 = vmatprep.subr.mxu0 0.0
        %1425 = vmatpush1.msra.mxu0 0.0
        %1426 = vmatprep.subr.mxu0 0.0
        %1427 = vmatpush1.msra.mxu0 0.0
        %1428 = vmatprep.subr.mxu0 0.0
        %1429 = vmatpush1.msra.mxu0 0.0
        %1430 = vmatprep.subr.mxu0 0.0
        %1431 = vmatpush1.msra.mxu0 0.0
        %1432 = vmatprep.subr.mxu0 0.0
        %1433 = vmatpush1.msra.mxu0 0.0
        %1434 = vmatprep.subr.mxu0 0.0
        %1435 = vmatpush1.msra.mxu0 0.0
        %1436 = vmatprep.subr.mxu0 0.0
        %1437 = vmatpush1.msra.mxu0 0.0
        %1438 = vmatprep.mubr.f32.mxu0 0.0
        %1439 = vmatmul.mubr.f32.gmra.mrb[0].mxu0 %v1369
        %v1440 = vpop.f32.mrb[0].mxu0
        %v1441 = vadd.f32 %v1365, %v1440
        %v1442 = vpop.f32.mrb[0].mxu0
        %1443 = vmatprep.mubr.f32.mxu0 0.0
        %1444 = vmatmul.mubr.f32.gmra.mrb[0].mxu0 %v1372
        %v1445 = vpop.f32.mrb[0].mxu0
        %v1446 = vadd.f32 %v1365, %v1445
        %v1447 = vpop.f32.mrb[0].mxu0
        %1448 = vdwg.mxu0
        %v1449 = vadd.f32 %v1246, %v1441
        %v1450 = vadd.f32 %v1247, %v1446
        %v1451 = vsel %vm313, %v1449, 0.0
        %1452 = vadd.xlane.f32.xlu0 %v1451
        %v1453 = vpop.xlane.xlu0 %1452
        %v1454 = vsel %vm313, %v1450, 0.0
        %1455 = vadd.xlane.f32.xlu0 %v1454
        %v1456 = vpop.xlane.xlu0 %1455
        %v1457 = vmul.f32 %v1453, %v320
        %v1458 = vmul.f32 %v1456, %v320
        %v1459 = vsub.f32 %v1449, %v1457
        %v1460 = vsub.f32 %v1450, %v1458
        %v1461 = vmul.f32 %v1459, %v1459
        %v1462 = vmul.f32 %v1460, %v1460
        %v1463 = vsel %vm313, %v1461, 0.0
        %1464 = vadd.xlane.f32.xlu0 %v1463
        %v1465 = vpop.xlane.xlu0 %1464
        %v1466 = vsel %vm313, %v1462, 0.0
        %1467 = vadd.xlane.f32.xlu0 %v1466
        %v1468 = vpop.xlane.xlu0 %1467
        %v1469 = vmul.f32 %v1465, %v320
        %v1470 = vmul.f32 %v1468, %v320
        %v1471 = vadd.f32 %v1469, 1e-05
        %v1472 = vadd.f32 %v1470, 1e-05
        %v1473 = vrsqrt.pop %v1471
        %v1474 = vrsqrt.pop %v1472
        %v1475 = vmul.f32 %v1459, %v1473
        %v1476 = vmul.f32 %v1460, %v1474
        %v1477 = vlaneseq
        %v1478 = vshrl.u32 %v1477, 7
        %v1479 = vsub.s32 2, %v1478
        %v1480 = vrot.slane %v353, %v1479
        %v1481 = vmul.f32 %v1475, %v1480
        %v1482 = vmul.f32 %v1476, %v1480
        %v1483 = vlaneseq
        %v1484 = vshrl.u32 %v1483, 7
        %v1485 = vsub.s32 3, %v1484
        %v1486 = vrot.slane %v353, %v1485
        %v1487 = vadd.f32 %v1481, %v1486
        %v1488 = vadd.f32 %v1482, %v1486
        %1489 = vmatprep.subr.mxu0 0.0
        %1490 = vmatpush1.msra.mxu0 %v1487
        %1491 = vmatprep.subr.mxu0 0.0
        %1492 = vmatpush1.msra.mxu0 %v1488
        %1493 = vmatprep.subr.mxu0 0.0
        %1494 = vmatpush1.msra.mxu0 0.0
        %1495 = vmatprep.subr.mxu0 0.0
        %1496 = vmatpush1.msra.mxu0 0.0
        %1497 = vmatprep.subr.mxu0 0.0
        %1498 = vmatpush1.msra.mxu0 0.0
        %1499 = vmatprep.subr.mxu0 0.0
        %1500 = vmatpush1.msra.mxu0 0.0
        %1501 = vmatprep.subr.mxu0 0.0
        %1502 = vmatpush1.msra.mxu0 0.0
        %1503 = vmatprep.subr.mxu0 0.0
        %1504 = vmatpush1.msra.mxu0 0.0
        %1505 = vmatprep.subr.mxu0 0.0
        %1506 = vmatpush1.msra.mxu0 0.0
        %1507 = vmatprep.subr.mxu0 0.0
        %1508 = vmatpush1.msra.mxu0 0.0
        %1509 = vmatprep.subr.mxu0 0.0
        %1510 = vmatpush1.msra.mxu0 0.0
        %1511 = vmatprep.subr.mxu0 0.0
        %1512 = vmatpush1.msra.mxu0 0.0
        %1513 = vmatprep.subr.mxu0 0.0
        %1514 = vmatpush1.msra.mxu0 0.0
        %1515 = vmatprep.subr.mxu0 0.0
        %1516 = vmatpush1.msra.mxu0 0.0
        %1517 = vmatprep.subr.mxu0 0.0
        %1518 = vmatpush1.msra.mxu0 0.0
        %1519 = vmatprep.subr.mxu0 0.0
        %1520 = vmatpush1.msra.mxu0 0.0
        %1521 = vmatprep.subr.mxu0 0.0
        %1522 = vmatpush1.msra.mxu0 0.0
        %1523 = vmatprep.subr.mxu0 0.0
        %1524 = vmatpush1.msra.mxu0 0.0
        %1525 = vmatprep.subr.mxu0 0.0
        %1526 = vmatpush1.msra.mxu0 0.0
        %1527 = vmatprep.subr.mxu0 0.0
        %1528 = vmatpush1.msra.mxu0 0.0
        %1529 = vmatprep.subr.mxu0 0.0
        %1530 = vmatpush1.msra.mxu0 0.0
        %1531 = vmatprep.subr.mxu0 0.0
        %1532 = vmatpush1.msra.mxu0 0.0
        %1533 = vmatprep.subr.mxu0 0.0
        %1534 = vmatpush1.msra.mxu0 0.0
        %1535 = vmatprep.subr.mxu0 0.0
        %1536 = vmatpush1.msra.mxu0 0.0
        %1537 = vmatprep.subr.mxu0 0.0
        %1538 = vmatpush1.msra.mxu0 0.0
        %1539 = vmatprep.subr.mxu0 0.0
        %1540 = vmatpush1.msra.mxu0 0.0
        %1541 = vmatprep.subr.mxu0 0.0
        %1542 = vmatpush1.msra.mxu0 0.0
        %1543 = vmatprep.subr.mxu0 0.0
        %1544 = vmatpush1.msra.mxu0 0.0
        %1545 = vmatprep.subr.mxu0 0.0
        %1546 = vmatpush1.msra.mxu0 0.0
        %1547 = vmatprep.subr.mxu0 0.0
        %1548 = vmatpush1.msra.mxu0 0.0
        %1549 = vmatprep.subr.mxu0 0.0
        %1550 = vmatpush1.msra.mxu0 0.0
        %1551 = vmatprep.subr.mxu0 0.0
        %1552 = vmatpush1.msra.mxu0 0.0
        %1553 = vmatprep.mubr.f32.mxu0 0.0
        %1554 = vmatmul.mubr.f32.gmra.mrb[0].mxu0 %v1166
        %v1555 = vpop.f32.mrb[0].mxu0
        %v1556 = vadd.f32 0.0, %v1555
        %v1557 = vpop.f32.mrb[0].mxu0
        %1558 = vmatprep.mubr.f32.mxu0 0.0
        %1559 = vmatmul.mubr.f32.gmra.mrb[0].mxu0 %v1169
        %v1560 = vpop.f32.mrb[0].mxu0
        %v1561 = vadd.f32 0.0, %v1560
        %v1562 = vpop.f32.mrb[0].mxu0
        %1563 = vdwg.mxu0
        %v1564 = vsub.f32 %v1487, %v1556
        %v1565 = vsub.f32 %v1488, %v1561
        %v1566 = vld [vmem:[#allocation2 + $0x150] sm:$0xf]
        %v1567 = vld [vmem:[#allocation2 + $0x1b8] sm:$0x1]
        %v1568 = vld [vmem:[#allocation2 + $0x100] sm:$0xff]
        %v1569 = vld [vmem:[#allocation2 + $0x108] sm:$0xff]
        %v1570 = vld [vmem:[#allocation2 + $0x110] sm:$0xff]
        %v1571 = vld [vmem:[#allocation2 + $0x118] sm:$0xff]
        %v1572 = vld [vmem:[#allocation2 + $0x120] sm:$0x1]
        %v1573 = vld [vmem:[#allocation2 + $0x128] sm:$0xff]
        %v1574 = vld [vmem:[#allocation2 + $0x130] sm:$0xff]
        %v1575 = vld [vmem:[#allocation2 + $0x138] sm:$0xff]
        %v1576 = vld [vmem:[#allocation2 + $0x140] sm:$0xff]
        %v1577 = vld [vmem:[#allocation2 + $0x148] sm:$0x1]
        %v1578 = vlaneseq
        %v1579 = vshrl.u32 %v1578, 7
        %v1580 = vsub.s32 0, %v1579
        %v1581 = vrot.slane %v1572, %v1580
        %v1583 = vsel %vm313, %v1564, 0
        %v1586 = vsel %vm313, %v1565, 0
        %1588 = vmatprep.subr.mxu0 0.0
        %1589 = vmatpush1.msra.mxu0 %v1568
        %1590 = vmatprep.subr.mxu0 0.0
        %1591 = vmatpush1.msra.mxu0 %v1569
        %1592 = vmatprep.subr.mxu0 0.0
        %1593 = vmatpush1.msra.mxu0 %v1570
        %1594 = vmatprep.subr.mxu0 0.0
        %1595 = vmatpush1.msra.mxu0 %v1571
        %1596 = vmatprep.subr.mxu0 0.0
        %1597 = vmatpush1.msra.mxu0 0.0
        %1598 = vmatprep.subr.mxu0 0.0
        %1599 = vmatpush1.msra.mxu0 0.0
        %1600 = vmatprep.subr.mxu0 0.0
        %1601 = vmatpush1.msra.mxu0 0.0
        %1602 = vmatprep.subr.mxu0 0.0
        %1603 = vmatpush1.msra.mxu0 0.0
        %1604 = vmatprep.subr.mxu0 0.0
        %1605 = vmatpush1.msra.mxu0 0.0
        %1606 = vmatprep.subr.mxu0 0.0
        %1607 = vmatpush1.msra.mxu0 0.0
        %1608 = vmatprep.subr.mxu0 0.0
        %1609 = vmatpush1.msra.mxu0 0.0
        %1610 = vmatprep.subr.mxu0 0.0
        %1611 = vmatpush1.msra.mxu0 0.0
        %1612 = vmatprep.subr.mxu0 0.0
        %1613 = vmatpush1.msra.mxu0 0.0
        %1614 = vmatprep.subr.mxu0 0.0
        %1615 = vmatpush1.msra.mxu0 0.0
        %1616 = vmatprep.subr.mxu0 0.0
        %1617 = vmatpush1.msra.mxu0 0.0
        %1618 = vmatprep.subr.mxu0 0.0
        %1619 = vmatpush1.msra.mxu0 0.0
        %1620 = vmatprep.subr.mxu0 0.0
        %1621 = vmatpush1.msra.mxu0 0.0
        %1622 = vmatprep.subr.mxu0 0.0
        %1623 = vmatpush1.msra.mxu0 0.0
        %1624 = vmatprep.subr.mxu0 0.0
        %1625 = vmatpush1.msra.mxu0 0.0
        %1626 = vmatprep.subr.mxu0 0.0
        %1627 = vmatpush1.msra.mxu0 0.0
        %1628 = vmatprep.subr.mxu0 0.0
        %1629 = vmatpush1.msra.mxu0 0.0
        %1630 = vmatprep.subr.mxu0 0.0
        %1631 = vmatpush1.msra.mxu0 0.0
        %1632 = vmatprep.subr.mxu0 0.0
        %1633 = vmatpush1.msra.mxu0 0.0
        %1634 = vmatprep.subr.mxu0 0.0
        %1635 = vmatpush1.msra.mxu0 0.0
        %1636 = vmatprep.subr.mxu0 0.0
        %1637 = vmatpush1.msra.mxu0 0.0
        %1638 = vmatprep.subr.mxu0 0.0
        %1639 = vmatpush1.msra.mxu0 0.0
        %1640 = vmatprep.subr.mxu0 0.0
        %1641 = vmatpush1.msra.mxu0 0.0
        %1642 = vmatprep.subr.mxu0 0.0
        %1643 = vmatpush1.msra.mxu0 0.0
        %1644 = vmatprep.subr.mxu0 0.0
        %1645 = vmatpush1.msra.mxu0 0.0
        %1646 = vmatprep.subr.mxu0 0.0
        %1647 = vmatpush1.msra.mxu0 0.0
        %1648 = vmatprep.subr.mxu0 0.0
        %1649 = vmatpush1.msra.mxu0 0.0
        %1650 = vmatprep.subr.mxu0 0.0
        %1651 = vmatpush1.msra.mxu0 0.0
        %1652 = vmatprep.mubr.f32.mxu0 0.0
        %1653 = vmatmul.mubr.f32.gmra.mrb[0].mxu0 %v1583
        %v1654 = vpop.f32.mrb[0].mxu0
        %v1655 = vadd.f32 %v1581, %v1654
        %v1656 = vpop.f32.mrb[0].mxu0
        %1657 = vmatprep.mubr.f32.mxu0 0.0
        %1658 = vmatmul.mubr.f32.gmra.mrb[0].mxu0 %v1586
        %v1659 = vpop.f32.mrb[0].mxu0
        %v1660 = vadd.f32 %v1581, %v1659
        %v1661 = vpop.f32.mrb[0].mxu0
        %1662 = vdwg.mxu0
        %1665 = vrot.lane.b32.xlu0 %v1655, 96
        %v1666 = vpop.permute.xlu0 %1665
        %1667 = vrot.lane.b32.xlu0 %v1660, 96
        %v1668 = vpop.permute.xlu0 %1667
        %v1669 = vsel %vm313, %v1655, 0
        %v1671 = vsel %vm313, %v1660, 0
        %v1673 = vsel %vm313, %v1666, 0
        %v1675 = vsel %vm313, %v1668, 0
        %1677 = vmatprep.subr.mxu0 0.0
        %1678 = vmatpush1.xpose.msra.mxu0 %v1673
        %1679 = vmatprep.subr.mxu0 0.0
        %1680 = vmatpush1.xpose.msra.mxu0 %v1675
        %1681 = vmatprep.subr.mxu0 0.0
        %1682 = vmatpush1.xpose.msra.mxu0 0.0
        %1683 = vmatprep.subr.mxu0 0.0
        %1684 = vmatpush1.xpose.msra.mxu0 0.0
        %1685 = vmatprep.subr.mxu0 0.0
        %1686 = vmatpush1.xpose.msra.mxu0 0.0
        %1687 = vmatprep.subr.mxu0 0.0
        %1688 = vmatpush1.xpose.msra.mxu0 0.0
        %1689 = vmatprep.subr.mxu0 0.0
        %1690 = vmatpush1.xpose.msra.mxu0 0.0
        %1691 = vmatprep.subr.mxu0 0.0
        %1692 = vmatpush1.xpose.msra.mxu0 0.0
        %1693 = vmatprep.subr.mxu0 0.0
        %1694 = vmatpush1.xpose.msra.mxu0 0.0
        %1695 = vmatprep.subr.mxu0 0.0
        %1696 = vmatpush1.xpose.msra.mxu0 0.0
        %1697 = vmatprep.subr.mxu0 0.0
        %1698 = vmatpush1.xpose.msra.mxu0 0.0
        %1699 = vmatprep.subr.mxu0 0.0
        %1700 = vmatpush1.xpose.msra.mxu0 0.0
        %1701 = vmatprep.subr.mxu0 0.0
        %1702 = vmatpush1.xpose.msra.mxu0 0.0
        %1703 = vmatprep.subr.mxu0 0.0
        %1704 = vmatpush1.xpose.msra.mxu0 0.0
        %1705 = vmatprep.subr.mxu0 0.0
        %1706 = vmatpush1.xpose.msra.mxu0 0.0
        %1707 = vmatprep.subr.mxu0 0.0
        %1708 = vmatpush1.xpose.msra.mxu0 0.0
        %1709 = vmatprep.subr.mxu0 0.0
        %1710 = vmatpush1.xpose.msra.mxu0 0.0
        %1711 = vmatprep.subr.mxu0 0.0
        %1712 = vmatpush1.xpose.msra.mxu0 0.0
        %1713 = vmatprep.subr.mxu0 0.0
        %1714 = vmatpush1.xpose.msra.mxu0 0.0
        %1715 = vmatprep.subr.mxu0 0.0
        %1716 = vmatpush1.xpose.msra.mxu0 0.0
        %1717 = vmatprep.subr.mxu0 0.0
        %1718 = vmatpush1.xpose.msra.mxu0 0.0
        %1719 = vmatprep.subr.mxu0 0.0
        %1720 = vmatpush1.xpose.msra.mxu0 0.0
        %1721 = vmatprep.subr.mxu0 0.0
        %1722 = vmatpush1.xpose.msra.mxu0 0.0
        %1723 = vmatprep.subr.mxu0 0.0
        %1724 = vmatpush1.xpose.msra.mxu0 0.0
        %1725 = vmatprep.subr.mxu0 0.0
        %1726 = vmatpush1.xpose.msra.mxu0 0.0
        %1727 = vmatprep.subr.mxu0 0.0
        %1728 = vmatpush1.xpose.msra.mxu0 0.0
        %1729 = vmatprep.subr.mxu0 0.0
        %1730 = vmatpush1.xpose.msra.mxu0 0.0
        %1731 = vmatprep.subr.mxu0 0.0
        %1732 = vmatpush1.xpose.msra.mxu0 0.0
        %1733 = vmatprep.subr.mxu0 0.0
        %1734 = vmatpush1.xpose.msra.mxu0 0.0
        %1735 = vmatprep.subr.mxu0 0.0
        %1736 = vmatpush1.xpose.msra.mxu0 0.0
        %1737 = vmatprep.subr.mxu0 0.0
        %1738 = vmatpush1.xpose.msra.mxu0 0.0
        %1739 = vmatprep.subr.mxu0 0.0
        %1740 = vmatpush1.xpose.msra.mxu0 0.0
        %1741 = vmatprep.mubr.f32.mxu0 0.0
        %1742 = vmatmul.mubr.f32.gmra.mrb[0].mxu0 %v1669
        %v1743 = vpop.f32.mrb[0].mxu0
        %v1744 = vadd.f32 0.0, %v1743
        %v1745 = vpop.f32.mrb[0].mxu0
        %1746 = vmatprep.mubr.f32.mxu0 0.0
        %1747 = vmatmul.mubr.f32.gmra.mrb[0].mxu0 %v1671
        %v1748 = vpop.f32.mrb[0].mxu0
        %v1749 = vadd.f32 0.0, %v1748
        %v1750 = vpop.f32.mrb[0].mxu0
        %1751 = vdwg.mxu0
        %v1752 = vmul.f32 %v1744, %v174
        %v1753 = vmul.f32 %v1749, %v175
        %v1754 = vsel %vm541, %v1752, 0.0
        %1755 = vadd.xlane.f32.xlu0 %v1754
        %v1756 = vpop.xlane.xlu0 %1755
        %v1757 = vsel %vm541, %v1753, 0.0
        %1758 = vadd.xlane.f32.xlu0 %v1757
        %v1759 = vpop.xlane.xlu0 %1758
        %v1760 = vadd.f32 %v1756, %v1759
        %v1761 = vrot.slane %v1760, 4
        %v1762 = vadd.f32 %v1760, %v1761
        %v1763 = vrot.slane %v1762, 2
        %v1764 = vadd.f32 %v1762, %v1763
        %v1765 = vrot.slane %v1764, 1
        %v1766 = vadd.f32 %v1764, %v1765
        %v1767 = vmul.f32 %v1766, %v237
        %v1768 = vadd.f32 %v1767, 0.0
        %v1769 = vmul.f32 %v1744, %v178
        %v1770 = vmul.f32 %v1749, %v179
        %v1771 = vsel %vm541, %v1769, 0.0
        %1772 = vadd.xlane.f32.xlu0 %v1771
        %v1773 = vpop.xlane.xlu0 %1772
        %v1774 = vsel %vm541, %v1770, 0.0
        %1775 = vadd.xlane.f32.xlu0 %v1774
        %v1776 = vpop.xlane.xlu0 %1775
        %v1777 = vadd.f32 %v1773, %v1776
        %v1778 = vrot.slane %v1777, 4
        %v1779 = vadd.f32 %v1777, %v1778
        %v1780 = vrot.slane %v1779, 2
        %v1781 = vadd.f32 %v1779, %v1780
        %v1782 = vrot.slane %v1781, 1
        %v1783 = vadd.f32 %v1781, %v1782
        %v1784 = vmul.f32 %v1783, %v239
        %v1785 = vadd.f32 %v1768, %v1784
        %v1786 = vmul.f32 %v1744, %v182
        %v1787 = vmul.f32 %v1749, %v183
        %v1788 = vsel %vm541, %v1786, 0.0
        %1789 = vadd.xlane.f32.xlu0 %v1788
        %v1790 = vpop.xlane.xlu0 %1789
        %v1791 = vsel %vm541, %v1787, 0.0
        %1792 = vadd.xlane.f32.xlu0 %v1791
        %v1793 = vpop.xlane.xlu0 %1792
        %v1794 = vadd.f32 %v1790, %v1793
        %v1795 = vrot.slane %v1794, 4
        %v1796 = vadd.f32 %v1794, %v1795
        %v1797 = vrot.slane %v1796, 2
        %v1798 = vadd.f32 %v1796, %v1797
        %v1799 = vrot.slane %v1798, 1
        %v1800 = vadd.f32 %v1798, %v1799
        %v1801 = vmul.f32 %v1800, %v241
        %v1802 = vadd.f32 %v1785, %v1801
        %v1803 = vmul.f32 %v1744, %v186
        %v1804 = vmul.f32 %v1749, %v187
        %v1805 = vsel %vm541, %v1803, 0.0
        %1806 = vadd.xlane.f32.xlu0 %v1805
        %v1807 = vpop.xlane.xlu0 %1806
        %v1808 = vsel %vm541, %v1804, 0.0
        %1809 = vadd.xlane.f32.xlu0 %v1808
        %v1810 = vpop.xlane.xlu0 %1809
        %v1811 = vadd.f32 %v1807, %v1810
        %v1812 = vrot.slane %v1811, 4
        %v1813 = vadd.f32 %v1811, %v1812
        %v1814 = vrot.slane %v1813, 2
        %v1815 = vadd.f32 %v1813, %v1814
        %v1816 = vrot.slane %v1815, 1
        %v1817 = vadd.f32 %v1815, %v1816
        %v1818 = vmul.f32 %v1817, %v243
        %v1819 = vadd.f32 %v1802, %v1818
        %v1820 = vmul.f32 %v1744, %v190
        %v1821 = vmul.f32 %v1749, %v191
        %v1822 = vsel %vm541, %v1820, 0.0
        %1823 = vadd.xlane.f32.xlu0 %v1822
        %v1824 = vpop.xlane.xlu0 %1823
        %v1825 = vsel %vm541, %v1821, 0.0
        %1826 = vadd.xlane.f32.xlu0 %v1825
        %v1827 = vpop.xlane.xlu0 %1826
        %v1828 = vadd.f32 %v1824, %v1827
        %v1829 = vrot.slane %v1828, 4
        %v1830 = vadd.f32 %v1828, %v1829
        %v1831 = vrot.slane %v1830, 2
        %v1832 = vadd.f32 %v1830, %v1831
        %v1833 = vrot.slane %v1832, 1
        %v1834 = vadd.f32 %v1832, %v1833
        %v1835 = vmul.f32 %v1834, %v245
        %v1836 = vadd.f32 %v1819, %v1835
        %v1837 = vmul.f32 %v1744, %v194
        %v1838 = vmul.f32 %v1749, %v195
        %v1839 = vsel %vm541, %v1837, 0.0
        %1840 = vadd.xlane.f32.xlu0 %v1839
        %v1841 = vpop.xlane.xlu0 %1840
        %v1842 = vsel %vm541, %v1838, 0.0
        %1843 = vadd.xlane.f32.xlu0 %v1842
        %v1844 = vpop.xlane.xlu0 %1843
        %v1845 = vadd.f32 %v1841, %v1844
        %v1846 = vrot.slane %v1845, 4
        %v1847 = vadd.f32 %v1845, %v1846
        %v1848 = vrot.slane %v1847, 2
        %v1849 = vadd.f32 %v1847, %v1848
        %v1850 = vrot.slane %v1849, 1
        %v1851 = vadd.f32 %v1849, %v1850
        %v1852 = vmul.f32 %v1851, %v247
        %v1853 = vadd.f32 %v1836, %v1852
        %v1854 = vmul.f32 %v1744, %v198
        %v1855 = vmul.f32 %v1749, %v199
        %v1856 = vsel %vm541, %v1854, 0.0
        %1857 = vadd.xlane.f32.xlu0 %v1856
        %v1858 = vpop.xlane.xlu0 %1857
        %v1859 = vsel %vm541, %v1855, 0.0
        %1860 = vadd.xlane.f32.xlu0 %v1859
        %v1861 = vpop.xlane.xlu0 %1860
        %v1862 = vadd.f32 %v1858, %v1861
        %v1863 = vrot.slane %v1862, 4
        %v1864 = vadd.f32 %v1862, %v1863
        %v1865 = vrot.slane %v1864, 2
        %v1866 = vadd.f32 %v1864, %v1865
        %v1867 = vrot.slane %v1866, 1
        %v1868 = vadd.f32 %v1866, %v1867
        %v1869 = vmul.f32 %v1868, %v249
        %v1870 = vadd.f32 %v1853, %v1869
        %v1871 = vmul.f32 %v1744, %v202
        %v1872 = vmul.f32 %v1749, %v203
        %v1873 = vsel %vm541, %v1871, 0.0
        %1874 = vadd.xlane.f32.xlu0 %v1873
        %v1875 = vpop.xlane.xlu0 %1874
        %v1876 = vsel %vm541, %v1872, 0.0
        %1877 = vadd.xlane.f32.xlu0 %v1876
        %v1878 = vpop.xlane.xlu0 %1877
        %v1879 = vadd.f32 %v1875, %v1878
        %v1880 = vrot.slane %v1879, 4
        %v1881 = vadd.f32 %v1879, %v1880
        %v1882 = vrot.slane %v1881, 2
        %v1883 = vadd.f32 %v1881, %v1882
        %v1884 = vrot.slane %v1883, 1
        %v1885 = vadd.f32 %v1883, %v1884
        %v1886 = vmul.f32 %v1885, %v251
        %v1887 = vadd.f32 %v1870, %v1886
        %v1888 = vmul.f32 %v1744, %v206
        %v1889 = vmul.f32 %v1749, %v207
        %v1890 = vsel %vm541, %v1888, 0.0
        %1891 = vadd.xlane.f32.xlu0 %v1890
        %v1892 = vpop.xlane.xlu0 %1891
        %v1893 = vsel %vm541, %v1889, 0.0
        %1894 = vadd.xlane.f32.xlu0 %v1893
        %v1895 = vpop.xlane.xlu0 %1894
        %v1896 = vadd.f32 %v1892, %v1895
        %v1897 = vrot.slane %v1896, 4
        %v1898 = vadd.f32 %v1896, %v1897
        %v1899 = vrot.slane %v1898, 2
        %v1900 = vadd.f32 %v1898, %v1899
        %v1901 = vrot.slane %v1900, 1
        %v1902 = vadd.f32 %v1900, %v1901
        %v1903 = vmul.f32 %v1902, %v253
        %v1904 = vadd.f32 %v1887, %v1903
        %v1905 = vmul.f32 %v1744, %v210
        %v1906 = vmul.f32 %v1749, %v211
        %v1907 = vsel %vm541, %v1905, 0.0
        %1908 = vadd.xlane.f32.xlu0 %v1907
        %v1909 = vpop.xlane.xlu0 %1908
        %v1910 = vsel %vm541, %v1906, 0.0
        %1911 = vadd.xlane.f32.xlu0 %v1910
        %v1912 = vpop.xlane.xlu0 %1911
        %v1913 = vadd.f32 %v1909, %v1912
        %v1914 = vrot.slane %v1913, 4
        %v1915 = vadd.f32 %v1913, %v1914
        %v1916 = vrot.slane %v1915, 2
        %v1917 = vadd.f32 %v1915, %v1916
        %v1918 = vrot.slane %v1917, 1
        %v1919 = vadd.f32 %v1917, %v1918
        %v1920 = vmul.f32 %v1919, %v255
        %v1921 = vadd.f32 %v1904, %v1920
        %v1922 = vmul.f32 %v1744, %v214
        %v1923 = vmul.f32 %v1749, %v215
        %v1924 = vsel %vm541, %v1922, 0.0
        %1925 = vadd.xlane.f32.xlu0 %v1924
        %v1926 = vpop.xlane.xlu0 %1925
        %v1927 = vsel %vm541, %v1923, 0.0
        %1928 = vadd.xlane.f32.xlu0 %v1927
        %v1929 = vpop.xlane.xlu0 %1928
        %v1930 = vadd.f32 %v1926, %v1929
        %v1931 = vrot.slane %v1930, 4
        %v1932 = vadd.f32 %v1930, %v1931
        %v1933 = vrot.slane %v1932, 2
        %v1934 = vadd.f32 %v1932, %v1933
        %v1935 = vrot.slane %v1934, 1
        %v1936 = vadd.f32 %v1934, %v1935
        %v1937 = vmul.f32 %v1936, %v257
        %v1938 = vadd.f32 %v1921, %v1937
        %v1939 = vmul.f32 %v1744, %v218
        %v1940 = vmul.f32 %v1749, %v219
        %v1941 = vsel %vm541, %v1939, 0.0
        %1942 = vadd.xlane.f32.xlu0 %v1941
        %v1943 = vpop.xlane.xlu0 %1942
        %v1944 = vsel %vm541, %v1940, 0.0
        %1945 = vadd.xlane.f32.xlu0 %v1944
        %v1946 = vpop.xlane.xlu0 %1945
        %v1947 = vadd.f32 %v1943, %v1946
        %v1948 = vrot.slane %v1947, 4
        %v1949 = vadd.f32 %v1947, %v1948
        %v1950 = vrot.slane %v1949, 2
        %v1951 = vadd.f32 %v1949, %v1950
        %v1952 = vrot.slane %v1951, 1
        %v1953 = vadd.f32 %v1951, %v1952
        %v1954 = vmul.f32 %v1953, %v259
        %v1955 = vadd.f32 %v1938, %v1954
        %v1956 = vmul.f32 %v1744, %v222
        %v1957 = vmul.f32 %v1749, %v223
        %v1958 = vsel %vm541, %v1956, 0.0
        %1959 = vadd.xlane.f32.xlu0 %v1958
        %v1960 = vpop.xlane.xlu0 %1959
        %v1961 = vsel %vm541, %v1957, 0.0
        %1962 = vadd.xlane.f32.xlu0 %v1961
        %v1963 = vpop.xlane.xlu0 %1962
        %v1964 = vadd.f32 %v1960, %v1963
        %v1965 = vrot.slane %v1964, 4
        %v1966 = vadd.f32 %v1964, %v1965
        %v1967 = vrot.slane %v1966, 2
        %v1968 = vadd.f32 %v1966, %v1967
        %v1969 = vrot.slane %v1968, 1
        %v1970 = vadd.f32 %v1968, %v1969
        %v1971 = vmul.f32 %v1970, %v261
        %v1972 = vadd.f32 %v1955, %v1971
        %v1973 = vmul.f32 %v1744, %v226
        %v1974 = vmul.f32 %v1749, %v227
        %v1975 = vsel %vm541, %v1973, 0.0
        %1976 = vadd.xlane.f32.xlu0 %v1975
        %v1977 = vpop.xlane.xlu0 %1976
        %v1978 = vsel %vm541, %v1974, 0.0
        %1979 = vadd.xlane.f32.xlu0 %v1978
        %v1980 = vpop.xlane.xlu0 %1979
        %v1981 = vadd.f32 %v1977, %v1980
        %v1982 = vrot.slane %v1981, 4
        %v1983 = vadd.f32 %v1981, %v1982
        %v1984 = vrot.slane %v1983, 2
        %v1985 = vadd.f32 %v1983, %v1984
        %v1986 = vrot.slane %v1985, 1
        %v1987 = vadd.f32 %v1985, %v1986
        %v1988 = vmul.f32 %v1987, %v263
        %v1989 = vadd.f32 %v1972, %v1988
        %v1990 = vmul.f32 %v1744, %v230
        %v1991 = vmul.f32 %v1749, %v231
        %v1992 = vsel %vm541, %v1990, 0.0
        %1993 = vadd.xlane.f32.xlu0 %v1992
        %v1994 = vpop.xlane.xlu0 %1993
        %v1995 = vsel %vm541, %v1991, 0.0
        %1996 = vadd.xlane.f32.xlu0 %v1995
        %v1997 = vpop.xlane.xlu0 %1996
        %v1998 = vadd.f32 %v1994, %v1997
        %v1999 = vrot.slane %v1998, 4
        %v2000 = vadd.f32 %v1998, %v1999
        %v2001 = vrot.slane %v2000, 2
        %v2002 = vadd.f32 %v2000, %v2001
        %v2003 = vrot.slane %v2002, 1
        %v2004 = vadd.f32 %v2002, %v2003
        %v2005 = vmul.f32 %v2004, %v265
        %v2006 = vadd.f32 %v1989, %v2005
        %v2007 = vmul.f32 %v1744, %v234
        %v2008 = vmul.f32 %v1749, %v235
        %v2009 = vsel %vm541, %v2007, 0.0
        %2010 = vadd.xlane.f32.xlu0 %v2009
        %v2011 = vpop.xlane.xlu0 %2010
        %v2012 = vsel %vm541, %v2008, 0.0
        %2013 = vadd.xlane.f32.xlu0 %v2012
        %v2014 = vpop.xlane.xlu0 %2013
        %v2015 = vadd.f32 %v2011, %v2014
        %v2016 = vrot.slane %v2015, 4
        %v2017 = vadd.f32 %v2015, %v2016
        %v2018 = vrot.slane %v2017, 2
        %v2019 = vadd.f32 %v2017, %v2018
        %v2020 = vrot.slane %v2019, 1
        %v2021 = vadd.f32 %v2019, %v2020
        %v2022 = vmul.f32 %v2021, %v267
        %v2023 = vadd.f32 %v2006, %v2022
        %v2024 = vmul.f32 %v2023, 0.03125
        %v2025 = vsel %vm541, %v2024, -inf
        %2026 = vmax.xlane.f32.xlu0 %v2025
        %v2027 = vpop.xlane.xlu0 %2026
        %v2028 = vsub.f32 %v2024, %v2027
        %v2029 = vmul.f32 %v2028, 1.442695
        %v2030 = vpow.pop %v2029
        %v2031 = vsel %vm541, %v2030, 0.0
        %2032 = vadd.xlane.f32.xlu0 %v2031
        %v2033 = vpop.xlane.xlu0 %2032
        %v2034 = vrcp.pop %v2033
        %v2035 = vmul.f32 %v2030, %v2034
        %2037 = vset.pattern.permute.xlu0 0
        %2038 = vperm.xlu0 %2037, %v2035
        %v2039 = vpop.permute.xlu0 %2038
        %v2041 = vmul.f32 %v2039, %v174
        %v2042 = vmul.f32 %v2039, %v175
        %v2043 = vadd.f32 %v2041, 0.0
        %v2044 = vadd.f32 %v2042, 0.0
        %2045 = vset.pattern.permute.xlu0 1
        %2046 = vperm.xlu0 %2045, %v2035
        %v2047 = vpop.permute.xlu0 %2046
        %v2049 = vmul.f32 %v2047, %v178
        %v2050 = vmul.f32 %v2047, %v179
        %v2051 = vadd.f32 %v2043, %v2049
        %v2052 = vadd.f32 %v2044, %v2050
        %2053 = vset.pattern.permute.xlu0 2
        %2054 = vperm.xlu0 %2053, %v2035
        %v2055 = vpop.permute.xlu0 %2054
        %v2057 = vmul.f32 %v2055, %v182
        %v2058 = vmul.f32 %v2055, %v183
        %v2059 = vadd.f32 %v2051, %v2057
        %v2060 = vadd.f32 %v2052, %v2058
        %2061 = vset.pattern.permute.xlu0 3
        %2062 = vperm.xlu0 %2061, %v2035
        %v2063 = vpop.permute.xlu0 %2062
        %v2065 = vmul.f32 %v2063, %v186
        %v2066 = vmul.f32 %v2063, %v187
        %v2067 = vadd.f32 %v2059, %v2065
        %v2068 = vadd.f32 %v2060, %v2066
        %2069 = vset.pattern.permute.xlu0 4
        %2070 = vperm.xlu0 %2069, %v2035
        %v2071 = vpop.permute.xlu0 %2070
        %v2073 = vmul.f32 %v2071, %v190
        %v2074 = vmul.f32 %v2071, %v191
        %v2075 = vadd.f32 %v2067, %v2073
        %v2076 = vadd.f32 %v2068, %v2074
        %2077 = vset.pattern.permute.xlu0 5
        %2078 = vperm.xlu0 %2077, %v2035
        %v2079 = vpop.permute.xlu0 %2078
        %v2081 = vmul.f32 %v2079, %v194
        %v2082 = vmul.f32 %v2079, %v195
        %v2083 = vadd.f32 %v2075, %v2081
        %v2084 = vadd.f32 %v2076, %v2082
        %2085 = vset.pattern.permute.xlu0 6
        %2086 = vperm.xlu0 %2085, %v2035
        %v2087 = vpop.permute.xlu0 %2086
        %v2089 = vmul.f32 %v2087, %v198
        %v2090 = vmul.f32 %v2087, %v199
        %v2091 = vadd.f32 %v2083, %v2089
        %v2092 = vadd.f32 %v2084, %v2090
        %2093 = vset.pattern.permute.xlu0 7
        %2094 = vperm.xlu0 %2093, %v2035
        %v2095 = vpop.permute.xlu0 %2094
        %v2097 = vmul.f32 %v2095, %v202
        %v2098 = vmul.f32 %v2095, %v203
        %v2099 = vadd.f32 %v2091, %v2097
        %v2100 = vadd.f32 %v2092, %v2098
        %2101 = vset.pattern.permute.xlu0 8
        %2102 = vperm.xlu0 %2101, %v2035
        %v2103 = vpop.permute.xlu0 %2102
        %v2105 = vmul.f32 %v2103, %v206
        %v2106 = vmul.f32 %v2103, %v207
        %v2107 = vadd.f32 %v2099, %v2105
        %v2108 = vadd.f32 %v2100, %v2106
        %2109 = vset.pattern.permute.xlu0 9
        %2110 = vperm.xlu0 %2109, %v2035
        %v2111 = vpop.permute.xlu0 %2110
        %v2113 = vmul.f32 %v2111, %v210
        %v2114 = vmul.f32 %v2111, %v211
        %v2115 = vadd.f32 %v2107, %v2113
        %v2116 = vadd.f32 %v2108, %v2114
        %2117 = vset.pattern.permute.xlu0 10
        %2118 = vperm.xlu0 %2117, %v2035
        %v2119 = vpop.permute.xlu0 %2118
        %v2121 = vmul.f32 %v2119, %v214
        %v2122 = vmul.f32 %v2119, %v215
        %v2123 = vadd.f32 %v2115, %v2121
        %v2124 = vadd.f32 %v2116, %v2122
        %2125 = vset.pattern.permute.xlu0 11
        %2126 = vperm.xlu0 %2125, %v2035
        %v2127 = vpop.permute.xlu0 %2126
        %v2129 = vmul.f32 %v2127, %v218
        %v2130 = vmul.f32 %v2127, %v219
        %v2131 = vadd.f32 %v2123, %v2129
        %v2132 = vadd.f32 %v2124, %v2130
        %2133 = vset.pattern.permute.xlu0 12
        %2134 = vperm.xlu0 %2133, %v2035
        %v2135 = vpop.permute.xlu0 %2134
        %v2137 = vmul.f32 %v2135, %v222
        %v2138 = vmul.f32 %v2135, %v223
        %v2139 = vadd.f32 %v2131, %v2137
        %v2140 = vadd.f32 %v2132, %v2138
        %2141 = vset.pattern.permute.xlu0 13
        %2142 = vperm.xlu0 %2141, %v2035
        %v2143 = vpop.permute.xlu0 %2142
        %v2145 = vmul.f32 %v2143, %v226
        %v2146 = vmul.f32 %v2143, %v227
        %v2147 = vadd.f32 %v2139, %v2145
        %v2148 = vadd.f32 %v2140, %v2146
        %2149 = vset.pattern.permute.xlu0 14
        %2150 = vperm.xlu0 %2149, %v2035
        %v2151 = vpop.permute.xlu0 %2150
        %v2153 = vmul.f32 %v2151, %v230
        %v2154 = vmul.f32 %v2151, %v231
        %v2155 = vadd.f32 %v2147, %v2153
        %v2156 = vadd.f32 %v2148, %v2154
        %2157 = vset.pattern.permute.xlu0 15
        %2158 = vperm.xlu0 %2157, %v2035
        %v2159 = vpop.permute.xlu0 %2158
        %v2161 = vmul.f32 %v2159, %v234
        %v2162 = vmul.f32 %v2159, %v235
        %v2163 = vadd.f32 %v2155, %v2161
        %v2164 = vadd.f32 %v2156, %v2162
        %2165 = vrot.lane.b32.xlu0 %v1655, 64
        %v2166 = vpop.permute.xlu0 %2165
        %2167 = vrot.lane.b32.xlu0 %v1660, 64
        %v2168 = vpop.permute.xlu0 %2167
        %v2172 = vsel %vm541, %v2163, 0
        %v2175 = vsel %vm541, %v2164, 0
        %2177 = vmatprep.subr.mxu0 0.0
        %2178 = vmatpush1.msra.mxu0 %v2166
        %2179 = vmatprep.subr.mxu0 0.0
        %2180 = vmatpush1.msra.mxu0 %v2168
        %2181 = vmatprep.subr.mxu0 0.0
        %2182 = vmatpush1.msra.mxu0 0.0
        %2183 = vmatprep.subr.mxu0 0.0
        %2184 = vmatpush1.msra.mxu0 0.0
        %2185 = vmatprep.subr.mxu0 0.0
        %2186 = vmatpush1.msra.mxu0 0.0
        %2187 = vmatprep.subr.mxu0 0.0
        %2188 = vmatpush1.msra.mxu0 0.0
        %2189 = vmatprep.subr.mxu0 0.0
        %2190 = vmatpush1.msra.mxu0 0.0
        %2191 = vmatprep.subr.mxu0 0.0
        %2192 = vmatpush1.msra.mxu0 0.0
        %2193 = vmatprep.subr.mxu0 0.0
        %2194 = vmatpush1.msra.mxu0 0.0
        %2195 = vmatprep.subr.mxu0 0.0
        %2196 = vmatpush1.msra.mxu0 0.0
        %2197 = vmatprep.subr.mxu0 0.0
        %2198 = vmatpush1.msra.mxu0 0.0
        %2199 = vmatprep.subr.mxu0 0.0
        %2200 = vmatpush1.msra.mxu0 0.0
        %2201 = vmatprep.subr.mxu0 0.0
        %2202 = vmatpush1.msra.mxu0 0.0
        %2203 = vmatprep.subr.mxu0 0.0
        %2204 = vmatpush1.msra.mxu0 0.0
        %2205 = vmatprep.subr.mxu0 0.0
        %2206 = vmatpush1.msra.mxu0 0.0
        %2207 = vmatprep.subr.mxu0 0.0
        %2208 = vmatpush1.msra.mxu0 0.0
        %2209 = vmatprep.subr.mxu0 0.0
        %2210 = vmatpush1.msra.mxu0 0.0
        %2211 = vmatprep.subr.mxu0 0.0
        %2212 = vmatpush1.msra.mxu0 0.0
        %2213 = vmatprep.subr.mxu0 0.0
        %2214 = vmatpush1.msra.mxu0 0.0
        %2215 = vmatprep.subr.mxu0 0.0
        %2216 = vmatpush1.msra.mxu0 0.0
        %2217 = vmatprep.subr.mxu0 0.0
        %2218 = vmatpush1.msra.mxu0 0.0
        %2219 = vmatprep.subr.mxu0 0.0
        %2220 = vmatpush1.msra.mxu0 0.0
        %2221 = vmatprep.subr.mxu0 0.0
        %2222 = vmatpush1.msra.mxu0 0.0
        %2223 = vmatprep.subr.mxu0 0.0
        %2224 = vmatpush1.msra.mxu0 0.0
        %2225 = vmatprep.subr.mxu0 0.0
        %2226 = vmatpush1.msra.mxu0 0.0
        %2227 = vmatprep.subr.mxu0 0.0
        %2228 = vmatpush1.msra.mxu0 0.0
        %2229 = vmatprep.subr.mxu0 0.0
        %2230 = vmatpush1.msra.mxu0 0.0
        %2231 = vmatprep.subr.mxu0 0.0
        %2232 = vmatpush1.msra.mxu0 0.0
        %2233 = vmatprep.subr.mxu0 0.0
        %2234 = vmatpush1.msra.mxu0 0.0
        %2235 = vmatprep.subr.mxu0 0.0
        %2236 = vmatpush1.msra.mxu0 0.0
        %2237 = vmatprep.subr.mxu0 0.0
        %2238 = vmatpush1.msra.mxu0 0.0
        %2239 = vmatprep.subr.mxu0 0.0
        %2240 = vmatpush1.msra.mxu0 0.0
        %2241 = vmatprep.mubr.f32.mxu0 0.0
        %2242 = vmatmul.mubr.f32.gmra.mrb[0].mxu0 %v2172
        %v2243 = vpop.f32.mrb[0].mxu0
        %v2244 = vadd.f32 0.0, %v2243
        %v2245 = vpop.f32.mrb[0].mxu0
        %2246 = vmatprep.mubr.f32.mxu0 0.0
        %2247 = vmatmul.mubr.f32.gmra.mrb[0].mxu0 %v2175
        %v2248 = vpop.f32.mrb[0].mxu0
        %v2249 = vadd.f32 0.0, %v2248
        %v2250 = vpop.f32.mrb[0].mxu0
        %2251 = vdwg.mxu0
        %v2252 = vlaneseq
        %v2253 = vshrl.u32 %v2252, 7
        %v2254 = vsub.s32 0, %v2253
        %v2255 = vrot.slane %v1577, %v2254
        %v2257 = vsel %vm313, %v2244, 0
        %v2260 = vsel %vm313, %v2249, 0
        %2262 = vmatprep.subr.mxu0 0.0
        %2263 = vmatpush1.msra.mxu0 %v1573
        %2264 = vmatprep.subr.mxu0 0.0
        %2265 = vmatpush1.msra.mxu0 %v1574
        %2266 = vmatprep.subr.mxu0 0.0
        %2267 = vmatpush1.msra.mxu0 %v1575
        %2268 = vmatprep.subr.mxu0 0.0
        %2269 = vmatpush1.msra.mxu0 %v1576
        %2270 = vmatprep.subr.mxu0 0.0
        %2271 = vmatpush1.msra.mxu0 0.0
        %2272 = vmatprep.subr.mxu0 0.0
        %2273 = vmatpush1.msra.mxu0 0.0
        %2274 = vmatprep.subr.mxu0 0.0
        %2275 = vmatpush1.msra.mxu0 0.0
        %2276 = vmatprep.subr.mxu0 0.0
        %2277 = vmatpush1.msra.mxu0 0.0
        %2278 = vmatprep.subr.mxu0 0.0
        %2279 = vmatpush1.msra.mxu0 0.0
        %2280 = vmatprep.subr.mxu0 0.0
        %2281 = vmatpush1.msra.mxu0 0.0
        %2282 = vmatprep.subr.mxu0 0.0
        %2283 = vmatpush1.msra.mxu0 0.0
        %2284 = vmatprep.subr.mxu0 0.0
        %2285 = vmatpush1.msra.mxu0 0.0
        %2286 = vmatprep.subr.mxu0 0.0
        %2287 = vmatpush1.msra.mxu0 0.0
        %2288 = vmatprep.subr.mxu0 0.0
        %2289 = vmatpush1.msra.mxu0 0.0
        %2290 = vmatprep.subr.mxu0 0.0
        %2291 = vmatpush1.msra.mxu0 0.0
        %2292 = vmatprep.subr.mxu0 0.0
        %2293 = vmatpush1.msra.mxu0 0.0
        %2294 = vmatprep.subr.mxu0 0.0
        %2295 = vmatpush1.msra.mxu0 0.0
        %2296 = vmatprep.subr.mxu0 0.0
        %2297 = vmatpush1.msra.mxu0 0.0
        %2298 = vmatprep.subr.mxu0 0.0
        %2299 = vmatpush1.msra.mxu0 0.0
        %2300 = vmatprep.subr.mxu0 0.0
        %2301 = vmatpush1.msra.mxu0 0.0
        %2302 = vmatprep.subr.mxu0 0.0
        %2303 = vmatpush1.msra.mxu0 0.0
        %2304 = vmatprep.subr.mxu0 0.0
        %2305 = vmatpush1.msra.mxu0 0.0
        %2306 = vmatprep.subr.mxu0 0.0
        %2307 = vmatpush1.msra.mxu0 0.0
        %2308 = vmatprep.subr.mxu0 0.0
        %2309 = vmatpush1.msra.mxu0 0.0
        %2310 = vmatprep.subr.mxu0 0.0
        %2311 = vmatpush1.msra.mxu0 0.0
        %2312 = vmatprep.subr.mxu0 0.0
        %2313 = vmatpush1.msra.mxu0 0.0
        %2314 = vmatprep.subr.mxu0 0.0
        %2315 = vmatpush1.msra.mxu0 0.0
        %2316 = vmatprep.subr.mxu0 0.0
        %2317 = vmatpush1.msra.mxu0 0.0
        %2318 = vmatprep.subr.mxu0 0.0
        %2319 = vmatpush1.msra.mxu0 0.0
        %2320 = vmatprep.subr.mxu0 0.0
        %2321 = vmatpush1.msra.mxu0 0.0
        %2322 = vmatprep.subr.mxu0 0.0
        %2323 = vmatpush1.msra.mxu0 0.0
        %2324 = vmatprep.subr.mxu0 0.0
        %2325 = vmatpush1.msra.mxu0 0.0
        %2326 = vmatprep.mubr.f32.mxu0 0.0
        %2327 = vmatmul.mubr.f32.gmra.mrb[0].mxu0 %v2257
        %v2328 = vpop.f32.mrb[0].mxu0
        %v2329 = vadd.f32 %v2255, %v2328
        %v2330 = vpop.f32.mrb[0].mxu0
        %2331 = vmatprep.mubr.f32.mxu0 0.0
        %2332 = vmatmul.mubr.f32.gmra.mrb[0].mxu0 %v2260
        %v2333 = vpop.f32.mrb[0].mxu0
        %v2334 = vadd.f32 %v2255, %v2333
        %v2335 = vpop.f32.mrb[0].mxu0
        %2336 = vdwg.mxu0
        %v2337 = vadd.f32 %v1564, %v2329
        %v2338 = vadd.f32 %v1565, %v2334
        %v2339 = vsel %vm313, %v2337, 0.0
        %2340 = vadd.xlane.f32.xlu0 %v2339
        %v2341 = vpop.xlane.xlu0 %2340
        %v2342 = vsel %vm313, %v2338, 0.0
        %2343 = vadd.xlane.f32.xlu0 %v2342
        %v2344 = vpop.xlane.xlu0 %2343
        %v2345 = vmul.f32 %v2341, %v320
        %v2346 = vmul.f32 %v2344, %v320
        %v2347 = vsub.f32 %v2337, %v2345
        %v2348 = vsub.f32 %v2338, %v2346
        %v2349 = vmul.f32 %v2347, %v2347
        %v2350 = vmul.f32 %v2348, %v2348
        %v2351 = vsel %vm313, %v2349, 0.0
        %2352 = vadd.xlane.f32.xlu0 %v2351
        %v2353 = vpop.xlane.xlu0 %2352
        %v2354 = vsel %vm313, %v2350, 0.0
        %2355 = vadd.xlane.f32.xlu0 %v2354
        %v2356 = vpop.xlane.xlu0 %2355
        %v2357 = vmul.f32 %v2353, %v320
        %v2358 = vmul.f32 %v2356, %v320
        %v2359 = vadd.f32 %v2357, 1e-05
        %v2360 = vadd.f32 %v2358, 1e-05
        %v2361 = vrsqrt.pop %v2359
        %v2362 = vrsqrt.pop %v2360
        %v2363 = vmul.f32 %v2347, %v2361
        %v2364 = vmul.f32 %v2348, %v2362
        %v2365 = vlaneseq
        %v2366 = vshrl.u32 %v2365, 7
        %v2367 = vsub.s32 0, %v2366
        %v2368 = vrot.slane %v1566, %v2367
        %v2369 = vmul.f32 %v2363, %v2368
        %v2370 = vmul.f32 %v2364, %v2368
        %v2371 = vlaneseq
        %v2372 = vshrl.u32 %v2371, 7
        %v2373 = vsub.s32 1, %v2372
        %v2374 = vrot.slane %v1566, %v2373
        %v2375 = vadd.f32 %v2369, %v2374
        %v2376 = vadd.f32 %v2370, %v2374
        %2377 = vmatprep.subr.mxu0 0.0
        %2378 = vmatpush1.msra.mxu0 %v2375
        %2379 = vmatprep.subr.mxu0 0.0
        %2380 = vmatpush1.msra.mxu0 %v2376
        %2381 = vmatprep.subr.mxu0 0.0
        %2382 = vmatpush1.msra.mxu0 0.0
        %2383 = vmatprep.subr.mxu0 0.0
        %2384 = vmatpush1.msra.mxu0 0.0
        %2385 = vmatprep.subr.mxu0 0.0
        %2386 = vmatpush1.msra.mxu0 0.0
        %2387 = vmatprep.subr.mxu0 0.0
        %2388 = vmatpush1.msra.mxu0 0.0
        %2389 = vmatprep.subr.mxu0 0.0
        %2390 = vmatpush1.msra.mxu0 0.0
        %2391 = vmatprep.subr.mxu0 0.0
        %2392 = vmatpush1.msra.mxu0 0.0
        %2393 = vmatprep.subr.mxu0 0.0
        %2394 = vmatpush1.msra.mxu0 0.0
        %2395 = vmatprep.subr.mxu0 0.0
        %2396 = vmatpush1.msra.mxu0 0.0
        %2397 = vmatprep.subr.mxu0 0.0
        %2398 = vmatpush1.msra.mxu0 0.0
        %2399 = vmatprep.subr.mxu0 0.0
        %2400 = vmatpush1.msra.mxu0 0.0
        %2401 = vmatprep.subr.mxu0 0.0
        %2402 = vmatpush1.msra.mxu0 0.0
        %2403 = vmatprep.subr.mxu0 0.0
        %2404 = vmatpush1.msra.mxu0 0.0
        %2405 = vmatprep.subr.mxu0 0.0
        %2406 = vmatpush1.msra.mxu0 0.0
        %2407 = vmatprep.subr.mxu0 0.0
        %2408 = vmatpush1.msra.mxu0 0.0
        %2409 = vmatprep.subr.mxu0 0.0
        %2410 = vmatpush1.msra.mxu0 0.0
        %2411 = vmatprep.subr.mxu0 0.0
        %2412 = vmatpush1.msra.mxu0 0.0
        %2413 = vmatprep.subr.mxu0 0.0
        %2414 = vmatpush1.msra.mxu0 0.0
        %2415 = vmatprep.subr.mxu0 0.0
        %2416 = vmatpush1.msra.mxu0 0.0
        %2417 = vmatprep.subr.mxu0 0.0
        %2418 = vmatpush1.msra.mxu0 0.0
        %2419 = vmatprep.subr.mxu0 0.0
        %2420 = vmatpush1.msra.mxu0 0.0
        %2421 = vmatprep.subr.mxu0 0.0
        %2422 = vmatpush1.msra.mxu0 0.0
        %2423 = vmatprep.subr.mxu0 0.0
        %2424 = vmatpush1.msra.mxu0 0.0
        %2425 = vmatprep.subr.mxu0 0.0
        %2426 = vmatpush1.msra.mxu0 0.0
        %2427 = vmatprep.subr.mxu0 0.0
        %2428 = vmatpush1.msra.mxu0 0.0
        %2429 = vmatprep.subr.mxu0 0.0
        %2430 = vmatpush1.msra.mxu0 0.0
        %2431 = vmatprep.subr.mxu0 0.0
        %2432 = vmatpush1.msra.mxu0 0.0
        %2433 = vmatprep.subr.mxu0 0.0
        %2434 = vmatpush1.msra.mxu0 0.0
        %2435 = vmatprep.subr.mxu0 0.0
        %2436 = vmatpush1.msra.mxu0 0.0
        %2437 = vmatprep.subr.mxu0 0.0
        %2438 = vmatpush1.msra.mxu0 0.0
        %2439 = vmatprep.subr.mxu0 0.0
        %2440 = vmatpush1.msra.mxu0 0.0
        %2441 = vmatprep.mubr.f32.mxu0 0.0
        %2442 = vmatmul.mubr.f32.gmra.mrb[0].mxu0 %v1166
        %v2443 = vpop.f32.mrb[0].mxu0
        %v2444 = vadd.f32 0.0, %v2443
        %v2445 = vpop.f32.mrb[0].mxu0
        %2446 = vmatprep.mubr.f32.mxu0 0.0
        %2447 = vmatmul.mubr.f32.gmra.mrb[0].mxu0 %v1169
        %v2448 = vpop.f32.mrb[0].mxu0
        %v2449 = vadd.f32 0.0, %v2448
        %v2450 = vpop.f32.mrb[0].mxu0
        %2451 = vdwg.mxu0
        %v2452 = vsub.f32 %v2375, %v2444
        %v2453 = vsub.f32 %v2376, %v2449
        %v2454 = vld [vmem:[#allocation2 + $0x158] sm:$0xff]
        %v2455 = vld [vmem:[#allocation2 + $0x160] sm:$0xff]
        %v2456 = vld [vmem:[#allocation2 + $0x168] sm:$0xff]
        %v2457 = vld [vmem:[#allocation2 + $0x170] sm:$0xff]
        %v2458 = vlaneseq
        %v2459 = vshrl.u32 %v2458, 7
        %v2460 = vsub.s32 0, %v2459
        %v2461 = vrot.slane %v1567, %v2460
        %v2463 = vsel %vm313, %v2452, 0
        %v2466 = vsel %vm313, %v2453, 0
        %2468 = vmatprep.subr.mxu0 0.0
        %2469 = vmatpush1.msra.mxu0 %v2454
        %2470 = vmatprep.subr.mxu0 0.0
        %2471 = vmatpush1.msra.mxu0 %v2455
        %2472 = vmatprep.subr.mxu0 0.0
        %2473 = vmatpush1.msra.mxu0 %v2456
        %2474 = vmatprep.subr.mxu0 0.0
        %2475 = vmatpush1.msra.mxu0 %v2457
        %2476 = vmatprep.subr.mxu0 0.0
        %2477 = vmatpush1.msra.mxu0 0.0
        %2478 = vmatprep.subr.mxu0 0.0
        %2479 = vmatpush1.msra.mxu0 0.0
        %2480 = vmatprep.subr.mxu0 0.0
        %2481 = vmatpush1.msra.mxu0 0.0
        %2482 = vmatprep.subr.mxu0 0.0
        %2483 = vmatpush1.msra.mxu0 0.0
        %2484 = vmatprep.subr.mxu0 0.0
        %2485 = vmatpush1.msra.mxu0 0.0
        %2486 = vmatprep.subr.mxu0 0.0
        %2487 = vmatpush1.msra.mxu0 0.0
        %2488 = vmatprep.subr.mxu0 0.0
        %2489 = vmatpush1.msra.mxu0 0.0
        %2490 = vmatprep.subr.mxu0 0.0
        %2491 = vmatpush1.msra.mxu0 0.0
        %2492 = vmatprep.subr.mxu0 0.0
        %2493 = vmatpush1.msra.mxu0 0.0
        %2494 = vmatprep.subr.mxu0 0.0
        %2495 = vmatpush1.msra.mxu0 0.0
        %2496 = vmatprep.subr.mxu0 0.0
        %2497 = vmatpush1.msra.mxu0 0.0
        %2498 = vmatprep.subr.mxu0 0.0
        %2499 = vmatpush1.msra.mxu0 0.0
        %2500 = vmatprep.subr.mxu0 0.0
        %2501 = vmatpush1.msra.mxu0 0.0
        %2502 = vmatprep.subr.mxu0 0.0
        %2503 = vmatpush1.msra.mxu0 0.0
        %2504 = vmatprep.subr.mxu0 0.0
        %2505 = vmatpush1.msra.mxu0 0.0
        %2506 = vmatprep.subr.mxu0 0.0
        %2507 = vmatpush1.msra.mxu0 0.0
        %2508 = vmatprep.subr.mxu0 0.0
        %2509 = vmatpush1.msra.mxu0 0.0
        %2510 = vmatprep.subr.mxu0 0.0
        %2511 = vmatpush1.msra.mxu0 0.0
        %2512 = vmatprep.subr.mxu0 0.0
        %2513 = vmatpush1.msra.mxu0 0.0
        %2514 = vmatprep.subr.mxu0 0.0
        %2515 = vmatpush1.msra.mxu0 0.0
        %2516 = vmatprep.subr.mxu0 0.0
        %2517 = vmatpush1.msra.mxu0 0.0
        %2518 = vmatprep.subr.mxu0 0.0
        %2519 = vmatpush1.msra.mxu0 0.0
        %2520 = vmatprep.subr.mxu0 0.0
        %2521 = vmatpush1.msra.mxu0 0.0
        %2522 = vmatprep.subr.mxu0 0.0
        %2523 = vmatpush1.msra.mxu0 0.0
        %2524 = vmatprep.subr.mxu0 0.0
        %2525 = vmatpush1.msra.mxu0 0.0
        %2526 = vmatprep.subr.mxu0 0.0
        %2527 = vmatpush1.msra.mxu0 0.0
        %2528 = vmatprep.subr.mxu0 0.0
        %2529 = vmatpush1.msra.mxu0 0.0
        %2530 = vmatprep.subr.mxu0 0.0
        %2531 = vmatpush1.msra.mxu0 0.0
        %2532 = vmatprep.mubr.f32.mxu0 0.0
        %2533 = vmatmul.mubr.f32.gmra.mrb[0].mxu0 %v2463
        %v2534 = vpop.f32.mrb[0].mxu0
        %v2535 = vadd.f32 %v2461, %v2534
        %v2536 = vpop.f32.mrb[0].mxu0
        %2537 = vmatprep.mubr.f32.mxu0 0.0
        %2538 = vmatmul.mubr.f32.gmra.mrb[0].mxu0 %v2466
        %v2539 = vpop.f32.mrb[0].mxu0
        %v2540 = vadd.f32 %v2461, %v2539
        %v2541 = vpop.f32.mrb[0].mxu0
        %2542 = vdwg.mxu0
        %v2543 = vmul.f32 %v2535, %v2535
        %v2544 = vmul.f32 %v2540, %v2540
        %v2545 = vmul.f32 %v2535, %v2543
        %v2546 = vmul.f32 %v2540, %v2544
        %v2547 = vmul.f32 %v2545, 0.044715
        %v2548 = vmul.f32 %v2546, 0.044715
        %v2549 = vadd.f32 %v2535, %v2547
        %v2550 = vadd.f32 %v2540, %v2548
        %v2551 = vmul.f32 %v2549, 0.7978846
        %v2552 = vmul.f32 %v2550, 0.7978846
        %v2553 = vtanh.pop %v2551
        %v2554 = vtanh.pop %v2552
        %v2555 = vadd.f32 %v2553, 1.0
        %v2556 = vadd.f32 %v2554, 1.0
        %v2557 = vmul.f32 %v2555, 0.5
        %v2558 = vmul.f32 %v2556, 0.5
        %v2559 = vmul.f32 %v2535, %v2557
        %v2560 = vmul.f32 %v2540, %v2558
        %v2561 = vld [vmem:[#allocation2 + $0x178] sm:$0xff]
        %v2562 = vld [vmem:[#allocation2 + $0x180] sm:$0xff]
        %v2563 = vld [vmem:[#allocation2 + $0x188] sm:$0xff]
        %v2564 = vld [vmem:[#allocation2 + $0x190] sm:$0xff]
        %v2565 = vld [vmem:[#allocation2 + $0x198] sm:$0xff]
        %v2566 = vld [vmem:[#allocation2 + $0x1a0] sm:$0xff]
        %v2567 = vld [vmem:[#allocation2 + $0x1a8] sm:$0xff]
        %v2568 = vld [vmem:[#allocation2 + $0x1b0] sm:$0xff]
        %2570 = vrot.lane.b32.xlu0 %v2461, 64
        %v2571 = vpop.permute.xlu0 %2570
        %v2574 = vsel %vm1367, %v2559, 0
        %v2577 = vsel %vm1367, %v2560, 0
        %2579 = vmatprep.subr.mxu0 0.0
        %2580 = vmatpush1.msra.mxu0 %v2561
        %2581 = vmatprep.subr.mxu0 0.0
        %2582 = vmatpush1.msra.mxu0 %v2562
        %2583 = vmatprep.subr.mxu0 0.0
        %2584 = vmatpush1.msra.mxu0 %v2563
        %2585 = vmatprep.subr.mxu0 0.0
        %2586 = vmatpush1.msra.mxu0 %v2564
        %2587 = vmatprep.subr.mxu0 0.0
        %2588 = vmatpush1.msra.mxu0 %v2565
        %2589 = vmatprep.subr.mxu0 0.0
        %2590 = vmatpush1.msra.mxu0 %v2566
        %2591 = vmatprep.subr.mxu0 0.0
        %2592 = vmatpush1.msra.mxu0 %v2567
        %2593 = vmatprep.subr.mxu0 0.0
        %2594 = vmatpush1.msra.mxu0 %v2568
        %2595 = vmatprep.subr.mxu0 0.0
        %2596 = vmatpush1.msra.mxu0 0.0
        %2597 = vmatprep.subr.mxu0 0.0
        %2598 = vmatpush1.msra.mxu0 0.0
        %2599 = vmatprep.subr.mxu0 0.0
        %2600 = vmatpush1.msra.mxu0 0.0
        %2601 = vmatprep.subr.mxu0 0.0
        %2602 = vmatpush1.msra.mxu0 0.0
        %2603 = vmatprep.subr.mxu0 0.0
        %2604 = vmatpush1.msra.mxu0 0.0
        %2605 = vmatprep.subr.mxu0 0.0
        %2606 = vmatpush1.msra.mxu0 0.0
        %2607 = vmatprep.subr.mxu0 0.0
        %2608 = vmatpush1.msra.mxu0 0.0
        %2609 = vmatprep.subr.mxu0 0.0
        %2610 = vmatpush1.msra.mxu0 0.0
        %2611 = vmatprep.subr.mxu0 0.0
        %2612 = vmatpush1.msra.mxu0 0.0
        %2613 = vmatprep.subr.mxu0 0.0
        %2614 = vmatpush1.msra.mxu0 0.0
        %2615 = vmatprep.subr.mxu0 0.0
        %2616 = vmatpush1.msra.mxu0 0.0
        %2617 = vmatprep.subr.mxu0 0.0
        %2618 = vmatpush1.msra.mxu0 0.0
        %2619 = vmatprep.subr.mxu0 0.0
        %2620 = vmatpush1.msra.mxu0 0.0
        %2621 = vmatprep.subr.mxu0 0.0
        %2622 = vmatpush1.msra.mxu0 0.0
        %2623 = vmatprep.subr.mxu0 0.0
        %2624 = vmatpush1.msra.mxu0 0.0
        %2625 = vmatprep.subr.mxu0 0.0
        %2626 = vmatpush1.msra.mxu0 0.0
        %2627 = vmatprep.subr.mxu0 0.0
        %2628 = vmatpush1.msra.mxu0 0.0
        %2629 = vmatprep.subr.mxu0 0.0
        %2630 = vmatpush1.msra.mxu0 0.0
        %2631 = vmatprep.subr.mxu0 0.0
        %2632 = vmatpush1.msra.mxu0 0.0
        %2633 = vmatprep.subr.mxu0 0.0
        %2634 = vmatpush1.msra.mxu0 0.0
        %2635 = vmatprep.subr.mxu0 0.0
        %2636 = vmatpush1.msra.mxu0 0.0
        %2637 = vmatprep.subr.mxu0 0.0
        %2638 = vmatpush1.msra.mxu0 0.0
        %2639 = vmatprep.subr.mxu0 0.0
        %2640 = vmatpush1.msra.mxu0 0.0
        %2641 = vmatprep.subr.mxu0 0.0
        %2642 = vmatpush1.msra.mxu0 0.0
        %2643 = vmatprep.mubr.f32.mxu0 0.0
        %2644 = vmatmul.mubr.f32.gmra.mrb[0].mxu0 %v2574
        %v2645 = vpop.f32.mrb[0].mxu0
        %v2646 = vadd.f32 %v2571, %v2645
        %v2647 = vpop.f32.mrb[0].mxu0
        %2648 = vmatprep.mubr.f32.mxu0 0.0
        %2649 = vmatmul.mubr.f32.gmra.mrb[0].mxu0 %v2577
        %v2650 = vpop.f32.mrb[0].mxu0
        %v2651 = vadd.f32 %v2571, %v2650
        %v2652 = vpop.f32.mrb[0].mxu0
        %2653 = vdwg.mxu0
        %v2654 = vadd.f32 %v2452, %v2646
        %v2655 = vadd.f32 %v2453, %v2651
        %v2656 = vsel %vm313, %v2654, 0.0
        %2657 = vadd.xlane.f32.xlu0 %v2656
        %v2658 = vpop.xlane.xlu0 %2657
        %v2659 = vsel %vm313, %v2655, 0.0
        %2660 = vadd.xlane.f32.xlu0 %v2659
        %v2661 = vpop.xlane.xlu0 %2660
        %v2662 = vmul.f32 %v2658, %v320
        %v2663 = vmul.f32 %v2661, %v320
        %v2664 = vsub.f32 %v2654, %v2662
        %v2665 = vsub.f32 %v2655, %v2663
        %v2666 = vmul.f32 %v2664, %v2664
        %v2667 = vmul.f32 %v2665, %v2665
        %v2668 = vsel %vm313, %v2666, 0.0
        %2669 = vadd.xlane.f32.xlu0 %v2668
        %v2670 = vpop.xlane.xlu0 %2669
        %v2671 = vsel %vm313, %v2667, 0.0
        %2672 = vadd.xlane.f32.xlu0 %v2671
        %v2673 = vpop.xlane.xlu0 %2672
        %v2674 = vmul.f32 %v2670, %v320
        %v2675 = vmul.f32 %v2673, %v320
        %v2676 = vadd.f32 %v2674, 1e-05
        %v2677 = vadd.f32 %v2675, 1e-05
        %v2678 = vrsqrt.pop %v2676
        %v2679 = vrsqrt.pop %v2677
        %v2680 = vmul.f32 %v2664, %v2678
        %v2681 = vmul.f32 %v2665, %v2679
        %v2682 = vlaneseq
        %v2683 = vshrl.u32 %v2682, 7
        %v2684 = vsub.s32 2, %v2683
        %v2685 = vrot.slane %v1566, %v2684
        %v2686 = vmul.f32 %v2680, %v2685
        %v2687 = vmul.f32 %v2681, %v2685
        %v2688 = vlaneseq
        %v2689 = vshrl.u32 %v2688, 7
        %v2690 = vsub.s32 3, %v2689
        %v2691 = vrot.slane %v1566, %v2690
        %v2692 = vadd.f32 %v2686, %v2691
        %v2693 = vadd.f32 %v2687, %v2691
        %2694 = vmatprep.subr.mxu0 0.0
        %2695 = vmatpush1.msra.mxu0 %v2692
        %2696 = vmatprep.subr.mxu0 0.0
        %2697 = vmatpush1.msra.mxu0 %v2693
        %2698 = vmatprep.subr.mxu0 0.0
        %2699 = vmatpush1.msra.mxu0 0.0
        %2700 = vmatprep.subr.mxu0 0.0
        %2701 = vmatpush1.msra.mxu0 0.0
        %2702 = vmatprep.subr.mxu0 0.0
        %2703 = vmatpush1.msra.mxu0 0.0
        %2704 = vmatprep.subr.mxu0 0.0
        %2705 = vmatpush1.msra.mxu0 0.0
        %2706 = vmatprep.subr.mxu0 0.0
        %2707 = vmatpush1.msra.mxu0 0.0
        %2708 = vmatprep.subr.mxu0 0.0
        %2709 = vmatpush1.msra.mxu0 0.0
        %2710 = vmatprep.subr.mxu0 0.0
        %2711 = vmatpush1.msra.mxu0 0.0
        %2712 = vmatprep.subr.mxu0 0.0
        %2713 = vmatpush1.msra.mxu0 0.0
        %2714 = vmatprep.subr.mxu0 0.0
        %2715 = vmatpush1.msra.mxu0 0.0
        %2716 = vmatprep.subr.mxu0 0.0
        %2717 = vmatpush1.msra.mxu0 0.0
        %2718 = vmatprep.subr.mxu0 0.0
        %2719 = vmatpush1.msra.mxu0 0.0
        %2720 = vmatprep.subr.mxu0 0.0
        %2721 = vmatpush1.msra.mxu0 0.0
        %2722 = vmatprep.subr.mxu0 0.0
        %2723 = vmatpush1.msra.mxu0 0.0
        %2724 = vmatprep.subr.mxu0 0.0
        %2725 = vmatpush1.msra.mxu0 0.0
        %2726 = vmatprep.subr.mxu0 0.0
        %2727 = vmatpush1.msra.mxu0 0.0
        %2728 = vmatprep.subr.mxu0 0.0
        %2729 = vmatpush1.msra.mxu0 0.0
        %2730 = vmatprep.subr.mxu0 0.0
        %2731 = vmatpush1.msra.mxu0 0.0
        %2732 = vmatprep.subr.mxu0 0.0
        %2733 = vmatpush1.msra.mxu0 0.0
        %2734 = vmatprep.subr.mxu0 0.0
        %2735 = vmatpush1.msra.mxu0 0.0
        %2736 = vmatprep.subr.mxu0 0.0
        %2737 = vmatpush1.msra.mxu0 0.0
        %2738 = vmatprep.subr.mxu0 0.0
        %2739 = vmatpush1.msra.mxu0 0.0
        %2740 = vmatprep.subr.mxu0 0.0
        %2741 = vmatpush1.msra.mxu0 0.0
        %2742 = vmatprep.subr.mxu0 0.0
        %2743 = vmatpush1.msra.mxu0 0.0
        %2744 = vmatprep.subr.mxu0 0.0
        %2745 = vmatpush1.msra.mxu0 0.0
        %2746 = vmatprep.subr.mxu0 0.0
        %2747 = vmatpush1.msra.mxu0 0.0
        %2748 = vmatprep.subr.mxu0 0.0
        %2749 = vmatpush1.msra.mxu0 0.0
        %2750 = vmatprep.subr.mxu0 0.0
        %2751 = vmatpush1.msra.mxu0 0.0
        %2752 = vmatprep.subr.mxu0 0.0
        %2753 = vmatpush1.msra.mxu0 0.0
        %2754 = vmatprep.subr.mxu0 0.0
        %2755 = vmatpush1.msra.mxu0 0.0
        %2756 = vmatprep.subr.mxu0 0.0
        %2757 = vmatpush1.msra.mxu0 0.0
        %2758 = vmatprep.mubr.f32.mxu0 0.0
        %2759 = vmatmul.mubr.f32.gmra.mrb[0].mxu0 %v1166
        %v2760 = vpop.f32.mrb[0].mxu0
        %v2761 = vadd.f32 0.0, %v2760
        %v2762 = vpop.f32.mrb[0].mxu0
        %2763 = vmatprep.mubr.f32.mxu0 0.0
        %2764 = vmatmul.mubr.f32.gmra.mrb[0].mxu0 %v1169
        %v2765 = vpop.f32.mrb[0].mxu0
        %v2766 = vadd.f32 0.0, %v2765
        %v2767 = vpop.f32.mrb[0].mxu0
        %2768 = vdwg.mxu0
        %v2769 = vsub.f32 %v2692, %v2761
        %v2770 = vsub.f32 %v2693, %v2766
        %2771 = vmatprep.subr.mxu0 0.0
        %2772 = vmatpush1.msra.mxu0 %v291
        %2773 = vmatprep.subr.mxu0 0.0
        %2774 = vmatpush1.msra.mxu0 %v292
        %2775 = vmatprep.subr.mxu0 0.0
        %2776 = vmatpush1.msra.mxu0 0.0
        %2777 = vmatprep.subr.mxu0 0.0
        %2778 = vmatpush1.msra.mxu0 0.0
        %2779 = vmatprep.subr.mxu0 0.0
        %2780 = vmatpush1.msra.mxu0 0.0
        %2781 = vmatprep.subr.mxu0 0.0
        %2782 = vmatpush1.msra.mxu0 0.0
        %2783 = vmatprep.subr.mxu0 0.0
        %2784 = vmatpush1.msra.mxu0 0.0
        %2785 = vmatprep.subr.mxu0 0.0
        %2786 = vmatpush1.msra.mxu0 0.0
        %2787 = vmatprep.subr.mxu0 0.0
        %2788 = vmatpush1.msra.mxu0 0.0
        %2789 = vmatprep.subr.mxu0 0.0
        %2790 = vmatpush1.msra.mxu0 0.0
        %2791 = vmatprep.subr.mxu0 0.0
        %2792 = vmatpush1.msra.mxu0 0.0
        %2793 = vmatprep.subr.mxu0 0.0
        %2794 = vmatpush1.msra.mxu0 0.0
        %2795 = vmatprep.subr.mxu0 0.0
        %2796 = vmatpush1.msra.mxu0 0.0
        %2797 = vmatprep.subr.mxu0 0.0
        %2798 = vmatpush1.msra.mxu0 0.0
        %2799 = vmatprep.subr.mxu0 0.0
        %2800 = vmatpush1.msra.mxu0 0.0
        %2801 = vmatprep.subr.mxu0 0.0
        %2802 = vmatpush1.msra.mxu0 0.0
        %2803 = vmatprep.subr.mxu0 0.0
        %2804 = vmatpush1.msra.mxu0 0.0
        %2805 = vmatprep.subr.mxu0 0.0
        %2806 = vmatpush1.msra.mxu0 0.0
        %2807 = vmatprep.subr.mxu0 0.0
        %2808 = vmatpush1.msra.mxu0 0.0
        %2809 = vmatprep.subr.mxu0 0.0
        %2810 = vmatpush1.msra.mxu0 0.0
        %2811 = vmatprep.subr.mxu0 0.0
        %2812 = vmatpush1.msra.mxu0 0.0
        %2813 = vmatprep.subr.mxu0 0.0
        %2814 = vmatpush1.msra.mxu0 0.0
        %2815 = vmatprep.subr.mxu0 0.0
        %2816 = vmatpush1.msra.mxu0 0.0
        %2817 = vmatprep.subr.mxu0 0.0
        %2818 = vmatpush1.msra.mxu0 0.0
        %2819 = vmatprep.subr.mxu0 0.0
        %2820 = vmatpush1.msra.mxu0 0.0
        %2821 = vmatprep.subr.mxu0 0.0
        %2822 = vmatpush1.msra.mxu0 0.0
        %2823 = vmatprep.subr.mxu0 0.0
        %2824 = vmatpush1.msra.mxu0 0.0
        %2825 = vmatprep.subr.mxu0 0.0
        %2826 = vmatpush1.msra.mxu0 0.0
        %2827 = vmatprep.subr.mxu0 0.0
        %2828 = vmatpush1.msra.mxu0 0.0
        %2829 = vmatprep.subr.mxu0 0.0
        %2830 = vmatpush1.msra.mxu0 0.0
        %2831 = vmatprep.subr.mxu0 0.0
        %2832 = vmatpush1.msra.mxu0 0.0
        %2833 = vmatprep.subr.mxu0 0.0
        %2834 = vmatpush1.msra.mxu0 0.0
        %2835 = vmatprep.mubr.f32.mxu0 0.0
        %2836 = vmatmul.mubr.f32.gmra.mrb[0].mxu0 %v1166
        %v2837 = vpop.f32.mrb[0].mxu0
        %v2838 = vpop.f32.mrb[0].mxu0
        %2839 = vmatprep.mubr.f32.mxu0 0.0
        %2840 = vmatmul.mubr.f32.gmra.mrb[0].mxu0 %v1169
        %v2841 = vpop.f32.mrb[0].mxu0
        %v2842 = vadd.f32 0.0, %v2841
        %v2843 = vpop.f32.mrb[0].mxu0
        %2844 = vdwg.mxu0
        %v2845 = vsub.f32 %v292, %v2842
        %vm2846 = vcmask 7168
        %v2847 = vsel %vm2846, %v291, 0.0
        %v2848 = vsel %vm2846, %v292, 0.0
        %v2849 = vadd.f32 %v2847, %v2848
        %v2850 = vrot.slane %v2849, 4
        %v2851 = vadd.f32 %v2849, %v2850
        %v2852 = vrot.slane %v2851, 2
        %v2853 = vadd.f32 %v2851, %v2852
        %v2854 = vrot.slane %v2853, 1
        %v2855 = vadd.f32 %v2853, %v2854
        %v2856 = vrcp.pop 16.0
        %v2857 = vmul.f32 %v2855, %v2856
        %v2859 = vrot.slane %v2845, 4
        %vm2861 = vcmask 1043456
        %v2862 = vsel %vm2861, %v2859, 0.0
        %v2863 = vadd.f32 %v2857, 0.0
        %v2865 = vrot.slane %v2842, 4
        %v2867 = vsel %vm2861, %v2865, %v2863
        %2869 = vset.pattern.permute.xlu0 0
        %2870 = vperm.xlu0 %2869, %v2862
        %v2871 = vpop.permute.xlu0 %2870
        %v2873 = vlaneseq
        %v2874 = vshrl.u32 %v2873, 7
        %v2875 = vsub.s32 1, %v2874
        %v2876 = vrot.slane %v289, %v2875
        %v2877 = vmul.f32 %v2871, %v2876
        %v2878 = vld [vmem:[#allocation2 + $0x28] sm:$0xff]
        %v2879 = vadd.f32 %v2877, %v2878
        %v2880 = vsel %vm313, %v2879, 0.0
        %2881 = vadd.xlane.f32.xlu0 %v2880
        %v2882 = vpop.xlane.xlu0 %2881
        %v2883 = vmul.f32 %v2882, %v320
        %v2884 = vsub.f32 %v2879, %v2883
        %v2885 = vmul.f32 %v2884, %v2884
        %v2886 = vsel %vm313, %v2885, 0.0
        %2887 = vadd.xlane.f32.xlu0 %v2886
        %v2888 = vpop.xlane.xlu0 %2887
        %v2889 = vmul.f32 %v2888, %v320
        %v2890 = vadd.f32 %v2889, 1e-05
        %v2891 = vrsqrt.pop %v2890
        %v2892 = vmul.f32 %v2884, %v2891
        %v2893 = vlaneseq
        %v2894 = vshrl.u32 %v2893, 7
        %v2895 = vsub.s32 2, %v2894
        %v2896 = vrot.slane %v290, %v2895
        %v2897 = vmul.f32 %v2892, %v2896
        %v2898 = vlaneseq
        %v2899 = vshrl.u32 %v2898, 7
        %v2900 = vsub.s32 3, %v2899
        %v2901 = vrot.slane %v290, %v2900
        %v2902 = vadd.f32 %v2897, %v2901
        %v2903 = vld [vmem:[#allocation2 + $0x260] sm:$0x3f]
        %v2904 = vld [vmem:[#allocation2 + $0x2c8] sm:$0x1]
        %v2905 = vld [vmem:[#allocation2 + $0x2d0] sm:$0x1]
        %v2906 = vld [vmem:[#allocation2 + $0x1c0] sm:$0xff]
        %v2907 = vld [vmem:[#allocation2 + $0x1c8] sm:$0xff]
        %v2908 = vld [vmem:[#allocation2 + $0x1d0] sm:$0xff]
        %v2909 = vld [vmem:[#allocation2 + $0x1d8] sm:$0xff]
        %v2910 = vld [vmem:[#allocation2 + $0x1e0] sm:$0x1]
        %v2911 = vld [vmem:[#allocation2 + $0x1e8] sm:$0xff]
        %v2912 = vld [vmem:[#allocation2 + $0x1f0] sm:$0xff]
        %v2913 = vld [vmem:[#allocation2 + $0x1f8] sm:$0xff]
        %v2914 = vld [vmem:[#allocation2 + $0x200] sm:$0xff]
        %v2915 = vld [vmem:[#allocation2 + $0x208] sm:$0x1]
        %v2916 = vlaneseq
        %v2917 = vshrl.u32 %v2916, 7
        %v2918 = vsub.s32 0, %v2917
        %v2919 = vrot.slane %v2910, %v2918
        %v2921 = vsel %vm313, %v2902, 0
        %2923 = vmatprep.subr.mxu0 0.0
        %2924 = vmatpush1.msra.mxu0 %v2906
        %2925 = vmatprep.subr.mxu0 0.0
        %2926 = vmatpush1.msra.mxu0 %v2907
        %2927 = vmatprep.subr.mxu0 0.0
        %2928 = vmatpush1.msra.mxu0 %v2908
        %2929 = vmatprep.subr.mxu0 0.0
        %2930 = vmatpush1.msra.mxu0 %v2909
        %2931 = vmatprep.subr.mxu0 0.0
        %2932 = vmatpush1.msra.mxu0 0.0
        %2933 = vmatprep.subr.mxu0 0.0
        %2934 = vmatpush1.msra.mxu0 0.0
        %2935 = vmatprep.subr.mxu0 0.0
        %2936 = vmatpush1.msra.mxu0 0.0
        %2937 = vmatprep.subr.mxu0 0.0
        %2938 = vmatpush1.msra.mxu0 0.0
        %2939 = vmatprep.subr.mxu0 0.0
        %2940 = vmatpush1.msra.mxu0 0.0
        %2941 = vmatprep.subr.mxu0 0.0
        %2942 = vmatpush1.msra.mxu0 0.0
        %2943 = vmatprep.subr.mxu0 0.0
        %2944 = vmatpush1.msra.mxu0 0.0
        %2945 = vmatprep.subr.mxu0 0.0
        %2946 = vmatpush1.msra.mxu0 0.0
        %2947 = vmatprep.subr.mxu0 0.0
        %2948 = vmatpush1.msra.mxu0 0.0
        %2949 = vmatprep.subr.mxu0 0.0
        %2950 = vmatpush1.msra.mxu0 0.0
        %2951 = vmatprep.subr.mxu0 0.0
        %2952 = vmatpush1.msra.mxu0 0.0
        %2953 = vmatprep.subr.mxu0 0.0
        %2954 = vmatpush1.msra.mxu0 0.0
        %2955 = vmatprep.subr.mxu0 0.0
        %2956 = vmatpush1.msra.mxu0 0.0
        %2957 = vmatprep.subr.mxu0 0.0
        %2958 = vmatpush1.msra.mxu0 0.0
        %2959 = vmatprep.subr.mxu0 0.0
        %2960 = vmatpush1.msra.mxu0 0.0
        %2961 = vmatprep.subr.mxu0 0.0
        %2962 = vmatpush1.msra.mxu0 0.0
        %2963 = vmatprep.subr.mxu0 0.0
        %2964 = vmatpush1.msra.mxu0 0.0
        %2965 = vmatprep.subr.mxu0 0.0
        %2966 = vmatpush1.msra.mxu0 0.0
        %2967 = vmatprep.subr.mxu0 0.0
        %2968 = vmatpush1.msra.mxu0 0.0
        %2969 = vmatprep.subr.mxu0 0.0
        %2970 = vmatpush1.msra.mxu0 0.0
        %2971 = vmatprep.subr.mxu0 0.0
        %2972 = vmatpush1.msra.mxu0 0.0
        %2973 = vmatprep.subr.mxu0 0.0
        %2974 = vmatpush1.msra.mxu0 0.0
        %2975 = vmatprep.subr.mxu0 0.0
        %2976 = vmatpush1.msra.mxu0 0.0
        %2977 = vmatprep.subr.mxu0 0.0
        %2978 = vmatpush1.msra.mxu0 0.0
        %2979 = vmatprep.subr.mxu0 0.0
        %2980 = vmatpush1.msra.mxu0 0.0
        %2981 = vmatprep.subr.mxu0 0.0
        %2982 = vmatpush1.msra.mxu0 0.0
        %2983 = vmatprep.subr.mxu0 0.0
        %2984 = vmatpush1.msra.mxu0 0.0
        %2985 = vmatprep.subr.mxu0 0.0
        %2986 = vmatpush1.msra.mxu0 0.0
        %2987 = vmatprep.mubr.f32.mxu0 0.0
        %2988 = vmatmul.mubr.f32.gmra.mrb[0].mxu0 %v2921
        %v2989 = vpop.f32.mrb[0].mxu0
        %v2990 = vadd.f32 %v2919, %v2989
        %v2991 = vpop.f32.mrb[0].mxu0
        %2992 = vdwg.mxu0
        %2994 = vrot.lane.b32.xlu0 %v2990, 96
        %v2995 = vpop.permute.xlu0 %2994
        %v2996 = vsel %vm313, %v2990, 0
        %v2998 = vsel %vm313, %v2995, 0
        %3000 = vmatprep.subr.mxu0 0.0
        %3001 = vmatpush1.xpose.msra.mxu0 %v2998
        %3002 = vmatprep.subr.mxu0 0.0
        %3003 = vmatpush1.xpose.msra.mxu0 0.0
        %3004 = vmatprep.subr.mxu0 0.0
        %3005 = vmatpush1.xpose.msra.mxu0 0.0
        %3006 = vmatprep.subr.mxu0 0.0
        %3007 = vmatpush1.xpose.msra.mxu0 0.0
        %3008 = vmatprep.subr.mxu0 0.0
        %3009 = vmatpush1.xpose.msra.mxu0 0.0
        %3010 = vmatprep.subr.mxu0 0.0
        %3011 = vmatpush1.xpose.msra.mxu0 0.0
        %3012 = vmatprep.subr.mxu0 0.0
        %3013 = vmatpush1.xpose.msra.mxu0 0.0
        %3014 = vmatprep.subr.mxu0 0.0
        %3015 = vmatpush1.xpose.msra.mxu0 0.0
        %3016 = vmatprep.subr.mxu0 0.0
        %3017 = vmatpush1.xpose.msra.mxu0 0.0
        %3018 = vmatprep.subr.mxu0 0.0
        %3019 = vmatpush1.xpose.msra.mxu0 0.0
        %3020 = vmatprep.subr.mxu0 0.0
        %3021 = vmatpush1.xpose.msra.mxu0 0.0
        %3022 = vmatprep.subr.mxu0 0.0
        %3023 = vmatpush1.xpose.msra.mxu0 0.0
        %3024 = vmatprep.subr.mxu0 0.0
        %3025 = vmatpush1.xpose.msra.mxu0 0.0
        %3026 = vmatprep.subr.mxu0 0.0
        %3027 = vmatpush1.xpose.msra.mxu0 0.0
        %3028 = vmatprep.subr.mxu0 0.0
        %3029 = vmatpush1.xpose.msra.mxu0 0.0
        %3030 = vmatprep.subr.mxu0 0.0
        %3031 = vmatpush1.xpose.msra.mxu0 0.0
        %3032 = vmatprep.subr.mxu0 0.0
        %3033 = vmatpush1.xpose.msra.mxu0 0.0
        %3034 = vmatprep.subr.mxu0 0.0
        %3035 = vmatpush1.xpose.msra.mxu0 0.0
        %3036 = vmatprep.subr.mxu0 0.0
        %3037 = vmatpush1.xpose.msra.mxu0 0.0
        %3038 = vmatprep.subr.mxu0 0.0
        %3039 = vmatpush1.xpose.msra.mxu0 0.0
        %3040 = vmatprep.subr.mxu0 0.0
        %3041 = vmatpush1.xpose.msra.mxu0 0.0
        %3042 = vmatprep.subr.mxu0 0.0
        %3043 = vmatpush1.xpose.msra.mxu0 0.0
        %3044 = vmatprep.subr.mxu0 0.0
        %3045 = vmatpush1.xpose.msra.mxu0 0.0
        %3046 = vmatprep.subr.mxu0 0.0
        %3047 = vmatpush1.xpose.msra.mxu0 0.0
        %3048 = vmatprep.subr.mxu0 0.0
        %3049 = vmatpush1.xpose.msra.mxu0 0.0
        %3050 = vmatprep.subr.mxu0 0.0
        %3051 = vmatpush1.xpose.msra.mxu0 0.0
        %3052 = vmatprep.subr.mxu0 0.0
        %3053 = vmatpush1.xpose.msra.mxu0 0.0
        %3054 = vmatprep.subr.mxu0 0.0
        %3055 = vmatpush1.xpose.msra.mxu0 0.0
        %3056 = vmatprep.subr.mxu0 0.0
        %3057 = vmatpush1.xpose.msra.mxu0 0.0
        %3058 = vmatprep.subr.mxu0 0.0
        %3059 = vmatpush1.xpose.msra.mxu0 0.0
        %3060 = vmatprep.subr.mxu0 0.0
        %3061 = vmatpush1.xpose.msra.mxu0 0.0
        %3062 = vmatprep.subr.mxu0 0.0
        %3063 = vmatpush1.xpose.msra.mxu0 0.0
        %3064 = vmatprep.mubr.f32.mxu0 0.0
        %3065 = vmatmul.mubr.f32.gmra.mrb[0].mxu0 %v2996
        %v3066 = vpop.f32.mrb[0].mxu0
        %v3067 = vadd.f32 0.0, %v3066
        %v3068 = vpop.f32.mrb[0].mxu0
        %3069 = vdwg.mxu0
        %v3070 = vmul.f32 %v3067, %v271
        %vm3071 = vcmask 64512
        %v3072 = vsel %vm3071, %v3070, 0.0
        %3073 = vadd.xlane.f32.xlu0 %v3072
        %v3074 = vpop.xlane.xlu0 %3073
        %v3075 = vrot.slane %v3074, 4
        %v3076 = vadd.f32 %v3074, %v3075
        %v3077 = vrot.slane %v3076, 2
        %v3078 = vadd.f32 %v3076, %v3077
        %v3079 = vrot.slane %v3078, 1
        %v3080 = vadd.f32 %v3078, %v3079
        %v3081 = vmul.f32 %v3080, %v237
        %v3082 = vadd.f32 %v3081, 0.0
        %v3083 = vmul.f32 %v3067, %v273
        %v3084 = vsel %vm3071, %v3083, 0.0
        %3085 = vadd.xlane.f32.xlu0 %v3084
        %v3086 = vpop.xlane.xlu0 %3085
        %v3087 = vrot.slane %v3086, 4
        %v3088 = vadd.f32 %v3086, %v3087
        %v3089 = vrot.slane %v3088, 2
        %v3090 = vadd.f32 %v3088, %v3089
        %v3091 = vrot.slane %v3090, 1
        %v3092 = vadd.f32 %v3090, %v3091
        %v3093 = vmul.f32 %v3092, %v239
        %v3094 = vadd.f32 %v3082, %v3093
        %v3095 = vmul.f32 %v3067, %v275
        %v3096 = vsel %vm3071, %v3095, 0.0
        %3097 = vadd.xlane.f32.xlu0 %v3096
        %v3098 = vpop.xlane.xlu0 %3097
        %v3099 = vrot.slane %v3098, 4
        %v3100 = vadd.f32 %v3098, %v3099
        %v3101 = vrot.slane %v3100, 2
        %v3102 = vadd.f32 %v3100, %v3101
        %v3103 = vrot.slane %v3102, 1
        %v3104 = vadd.f32 %v3102, %v3103
        %v3105 = vmul.f32 %v3104, %v241
        %v3106 = vadd.f32 %v3094, %v3105
        %v3107 = vmul.f32 %v3067, %v277
        %v3108 = vsel %vm3071, %v3107, 0.0
        %3109 = vadd.xlane.f32.xlu0 %v3108
        %v3110 = vpop.xlane.xlu0 %3109
        %v3111 = vrot.slane %v3110, 4
        %v3112 = vadd.f32 %v3110, %v3111
        %v3113 = vrot.slane %v3112, 2
        %v3114 = vadd.f32 %v3112, %v3113
        %v3115 = vrot.slane %v3114, 1
        %v3116 = vadd.f32 %v3114, %v3115
        %v3117 = vmul.f32 %v3116, %v243
        %v3118 = vadd.f32 %v3106, %v3117
        %v3119 = vmul.f32 %v3067, %v279
        %v3120 = vsel %vm3071, %v3119, 0.0
        %3121 = vadd.xlane.f32.xlu0 %v3120
        %v3122 = vpop.xlane.xlu0 %3121
        %v3123 = vrot.slane %v3122, 4
        %v3124 = vadd.f32 %v3122, %v3123
        %v3125 = vrot.slane %v3124, 2
        %v3126 = vadd.f32 %v3124, %v3125
        %v3127 = vrot.slane %v3126, 1
        %v3128 = vadd.f32 %v3126, %v3127
        %v3129 = vmul.f32 %v3128, %v245
        %v3130 = vadd.f32 %v3118, %v3129
        %v3131 = vmul.f32 %v3067, %v281
        %v3132 = vsel %vm3071, %v3131, 0.0
        %3133 = vadd.xlane.f32.xlu0 %v3132
        %v3134 = vpop.xlane.xlu0 %3133
        %v3135 = vrot.slane %v3134, 4
        %v3136 = vadd.f32 %v3134, %v3135
        %v3137 = vrot.slane %v3136, 2
        %v3138 = vadd.f32 %v3136, %v3137
        %v3139 = vrot.slane %v3138, 1
        %v3140 = vadd.f32 %v3138, %v3139
        %v3141 = vmul.f32 %v3140, %v247
        %v3142 = vadd.f32 %v3130, %v3141
        %v3143 = vmul.f32 %v3067, %v283
        %v3144 = vsel %vm3071, %v3143, 0.0
        %3145 = vadd.xlane.f32.xlu0 %v3144
        %v3146 = vpop.xlane.xlu0 %3145
        %v3147 = vrot.slane %v3146, 4
        %v3148 = vadd.f32 %v3146, %v3147
        %v3149 = vrot.slane %v3148, 2
        %v3150 = vadd.f32 %v3148, %v3149
        %v3151 = vrot.slane %v3150, 1
        %v3152 = vadd.f32 %v3150, %v3151
        %v3153 = vmul.f32 %v3152, %v249
        %v3154 = vadd.f32 %v3142, %v3153
        %v3155 = vmul.f32 %v3067, %v285
        %v3156 = vsel %vm3071, %v3155, 0.0
        %3157 = vadd.xlane.f32.xlu0 %v3156
        %v3158 = vpop.xlane.xlu0 %3157
        %v3159 = vrot.slane %v3158, 4
        %v3160 = vadd.f32 %v3158, %v3159
        %v3161 = vrot.slane %v3160, 2
        %v3162 = vadd.f32 %v3160, %v3161
        %v3163 = vrot.slane %v3162, 1
        %v3164 = vadd.f32 %v3162, %v3163
        %v3165 = vmul.f32 %v3164, %v251
        %v3166 = vadd.f32 %v3154, %v3165
        %v3167 = vmul.f32 %v3166, 0.03125
        %v3168 = vsel %vm3071, %v3167, -inf
        %3169 = vmax.xlane.f32.xlu0 %v3168
        %v3170 = vpop.xlane.xlu0 %3169
        %v3171 = vsub.f32 %v3167, %v3170
        %v3172 = vmul.f32 %v3171, 1.442695
        %v3173 = vpow.pop %v3172
        %v3174 = vsel %vm3071, %v3173, 0.0
        %3175 = vadd.xlane.f32.xlu0 %v3174
        %v3176 = vpop.xlane.xlu0 %3175
        %v3177 = vrcp.pop %v3176
        %v3178 = vmul.f32 %v3173, %v3177
        %3180 = vset.pattern.permute.xlu0 0
        %3181 = vperm.xlu0 %3180, %v3178
        %v3182 = vpop.permute.xlu0 %3181
        %v3184 = vmul.f32 %v3182, %v271
        %v3185 = vadd.f32 %v3184, 0.0
        %3186 = vset.pattern.permute.xlu0 1
        %3187 = vperm.xlu0 %3186, %v3178
        %v3188 = vpop.permute.xlu0 %3187
        %v3190 = vmul.f32 %v3188, %v273
        %v3191 = vadd.f32 %v3185, %v3190
        %3192 = vset.pattern.permute.xlu0 2
        %3193 = vperm.xlu0 %3192, %v3178
        %v3194 = vpop.permute.xlu0 %3193
        %v3196 = vmul.f32 %v3194, %v275
        %v3197 = vadd.f32 %v3191, %v3196
        %3198 = vset.pattern.permute.xlu0 3
        %3199 = vperm.xlu0 %3198, %v3178
        %v3200 = vpop.permute.xlu0 %3199
        %v3202 = vmul.f32 %v3200, %v277
        %v3203 = vadd.f32 %v3197, %v3202
        %3204 = vset.pattern.permute.xlu0 4
        %3205 = vperm.xlu0 %3204, %v3178
        %v3206 = vpop.permute.xlu0 %3205
        %v3208 = vmul.f32 %v3206, %v279
        %v3209 = vadd.f32 %v3203, %v3208
        %3210 = vset.pattern.permute.xlu0 5
        %3211 = vperm.xlu0 %3210, %v3178
        %v3212 = vpop.permute.xlu0 %3211
        %v3214 = vmul.f32 %v3212, %v281
        %v3215 = vadd.f32 %v3209, %v3214
        %3216 = vset.pattern.permute.xlu0 6
        %3217 = vperm.xlu0 %3216, %v3178
        %v3218 = vpop.permute.xlu0 %3217
        %v3220 = vmul.f32 %v3218, %v283
        %v3221 = vadd.f32 %v3215, %v3220
        %3222 = vset.pattern.permute.xlu0 7
        %3223 = vperm.xlu0 %3222, %v3178
        %v3224 = vpop.permute.xlu0 %3223
        %v3226 = vmul.f32 %v3224, %v285
        %v3227 = vadd.f32 %v3221, %v3226
        %3228 = vrot.lane.b32.xlu0 %v2990, 64
        %v3229 = vpop.permute.xlu0 %3228
        %v3232 = vsel %vm3071, %v3227, 0
        %3234 = vmatprep.subr.mxu0 0.0
        %3235 = vmatpush1.msra.mxu0 %v3229
        %3236 = vmatprep.subr.mxu0 0.0
        %3237 = vmatpush1.msra.mxu0 0.0
        %3238 = vmatprep.subr.mxu0 0.0
        %3239 = vmatpush1.msra.mxu0 0.0
        %3240 = vmatprep.subr.mxu0 0.0
        %3241 = vmatpush1.msra.mxu0 0.0
        %3242 = vmatprep.subr.mxu0 0.0
        %3243 = vmatpush1.msra.mxu0 0.0
        %3244 = vmatprep.subr.mxu0 0.0
        %3245 = vmatpush1.msra.mxu0 0.0
        %3246 = vmatprep.subr.mxu0 0.0
        %3247 = vmatpush1.msra.mxu0 0.0
        %3248 = vmatprep.subr.mxu0 0.0
        %3249 = vmatpush1.msra.mxu0 0.0
        %3250 = vmatprep.subr.mxu0 0.0
        %3251 = vmatpush1.msra.mxu0 0.0
        %3252 = vmatprep.subr.mxu0 0.0
        %3253 = vmatpush1.msra.mxu0 0.0
        %3254 = vmatprep.subr.mxu0 0.0
        %3255 = vmatpush1.msra.mxu0 0.0
        %3256 = vmatprep.subr.mxu0 0.0
        %3257 = vmatpush1.msra.mxu0 0.0
        %3258 = vmatprep.subr.mxu0 0.0
        %3259 = vmatpush1.msra.mxu0 0.0
        %3260 = vmatprep.subr.mxu0 0.0
        %3261 = vmatpush1.msra.mxu0 0.0
        %3262 = vmatprep.subr.mxu0 0.0
        %3263 = vmatpush1.msra.mxu0 0.0
        %3264 = vmatprep.subr.mxu0 0.0
        %3265 = vmatpush1.msra.mxu0 0.0
        %3266 = vmatprep.subr.mxu0 0.0
        %3267 = vmatpush1.msra.mxu0 0.0
        %3268 = vmatprep.subr.mxu0 0.0
        %3269 = vmatpush1.msra.mxu0 0.0
        %3270 = vmatprep.subr.mxu0 0.0
        %3271 = vmatpush1.msra.mxu0 0.0
        %3272 = vmatprep.subr.mxu0 0.0
        %3273 = vmatpush1.msra.mxu0 0.0
        %3274 = vmatprep.subr.mxu0 0.0
        %3275 = vmatpush1.msra.mxu0 0.0
        %3276 = vmatprep.subr.mxu0 0.0
        %3277 = vmatpush1.msra.mxu0 0.0
        %3278 = vmatprep.subr.mxu0 0.0
        %3279 = vmatpush1.msra.mxu0 0.0
        %3280 = vmatprep.subr.mxu0 0.0
        %3281 = vmatpush1.msra.mxu0 0.0
        %3282 = vmatprep.subr.mxu0 0.0
        %3283 = vmatpush1.msra.mxu0 0.0
        %3284 = vmatprep.subr.mxu0 0.0
        %3285 = vmatpush1.msra.mxu0 0.0
        %3286 = vmatprep.subr.mxu0 0.0
        %3287 = vmatpush1.msra.mxu0 0.0
        %3288 = vmatprep.subr.mxu0 0.0
        %3289 = vmatpush1.msra.mxu0 0.0
        %3290 = vmatprep.subr.mxu0 0.0
        %3291 = vmatpush1.msra.mxu0 0.0
        %3292 = vmatprep.subr.mxu0 0.0
        %3293 = vmatpush1.msra.mxu0 0.0
        %3294 = vmatprep.subr.mxu0 0.0
        %3295 = vmatpush1.msra.mxu0 0.0
        %3296 = vmatprep.subr.mxu0 0.0
        %3297 = vmatpush1.msra.mxu0 0.0
        %3298 = vmatprep.mubr.f32.mxu0 0.0
        %3299 = vmatmul.mubr.f32.gmra.mrb[0].mxu0 %v3232
        %v3300 = vpop.f32.mrb[0].mxu0
        %v3301 = vadd.f32 0.0, %v3300
        %v3302 = vpop.f32.mrb[0].mxu0
        %3303 = vdwg.mxu0
        %v3304 = vlaneseq
        %v3305 = vshrl.u32 %v3304, 7
        %v3306 = vsub.s32 0, %v3305
        %v3307 = vrot.slane %v2915, %v3306
        %v3309 = vsel %vm313, %v3301, 0
        %3311 = vmatprep.subr.mxu0 0.0
        %3312 = vmatpush1.msra.mxu0 %v2911
        %3313 = vmatprep.subr.mxu0 0.0
        %3314 = vmatpush1.msra.mxu0 %v2912
        %3315 = vmatprep.subr.mxu0 0.0
        %3316 = vmatpush1.msra.mxu0 %v2913
        %3317 = vmatprep.subr.mxu0 0.0
        %3318 = vmatpush1.msra.mxu0 %v2914
        %3319 = vmatprep.subr.mxu0 0.0
        %3320 = vmatpush1.msra.mxu0 0.0
        %3321 = vmatprep.subr.mxu0 0.0
        %3322 = vmatpush1.msra.mxu0 0.0
        %3323 = vmatprep.subr.mxu0 0.0
        %3324 = vmatpush1.msra.mxu0 0.0
        %3325 = vmatprep.subr.mxu0 0.0
        %3326 = vmatpush1.msra.mxu0 0.0
        %3327 = vmatprep.subr.mxu0 0.0
        %3328 = vmatpush1.msra.mxu0 0.0
        %3329 = vmatprep.subr.mxu0 0.0
        %3330 = vmatpush1.msra.mxu0 0.0
        %3331 = vmatprep.subr.mxu0 0.0
        %3332 = vmatpush1.msra.mxu0 0.0
        %3333 = vmatprep.subr.mxu0 0.0
        %3334 = vmatpush1.msra.mxu0 0.0
        %3335 = vmatprep.subr.mxu0 0.0
        %3336 = vmatpush1.msra.mxu0 0.0
        %3337 = vmatprep.subr.mxu0 0.0
        %3338 = vmatpush1.msra.mxu0 0.0
        %3339 = vmatprep.subr.mxu0 0.0
        %3340 = vmatpush1.msra.mxu0 0.0
        %3341 = vmatprep.subr.mxu0 0.0
        %3342 = vmatpush1.msra.mxu0 0.0
        %3343 = vmatprep.subr.mxu0 0.0
        %3344 = vmatpush1.msra.mxu0 0.0
        %3345 = vmatprep.subr.mxu0 0.0
        %3346 = vmatpush1.msra.mxu0 0.0
        %3347 = vmatprep.subr.mxu0 0.0
        %3348 = vmatpush1.msra.mxu0 0.0
        %3349 = vmatprep.subr.mxu0 0.0
        %3350 = vmatpush1.msra.mxu0 0.0
        %3351 = vmatprep.subr.mxu0 0.0
        %3352 = vmatpush1.msra.mxu0 0.0
        %3353 = vmatprep.subr.mxu0 0.0
        %3354 = vmatpush1.msra.mxu0 0.0
        %3355 = vmatprep.subr.mxu0 0.0
        %3356 = vmatpush1.msra.mxu0 0.0
        %3357 = vmatprep.subr.mxu0 0.0
        %3358 = vmatpush1.msra.mxu0 0.0
        %3359 = vmatprep.subr.mxu0 0.0
        %3360 = vmatpush1.msra.mxu0 0.0
        %3361 = vmatprep.subr.mxu0 0.0
        %3362 = vmatpush1.msra.mxu0 0.0
        %3363 = vmatprep.subr.mxu0 0.0
        %3364 = vmatpush1.msra.mxu0 0.0
        %3365 = vmatprep.subr.mxu0 0.0
        %3366 = vmatpush1.msra.mxu0 0.0
        %3367 = vmatprep.subr.mxu0 0.0
        %3368 = vmatpush1.msra.mxu0 0.0
        %3369 = vmatprep.subr.mxu0 0.0
        %3370 = vmatpush1.msra.mxu0 0.0
        %3371 = vmatprep.subr.mxu0 0.0
        %3372 = vmatpush1.msra.mxu0 0.0
        %3373 = vmatprep.subr.mxu0 0.0
        %3374 = vmatpush1.msra.mxu0 0.0
        %3375 = vmatprep.mubr.f32.mxu0 0.0
        %3376 = vmatmul.mubr.f32.gmra.mrb[0].mxu0 %v3309
        %v3377 = vpop.f32.mrb[0].mxu0
        %v3378 = vadd.f32 %v3307, %v3377
        %v3379 = vpop.f32.mrb[0].mxu0
        %3380 = vdwg.mxu0
        %v3381 = vadd.f32 %v2902, %v3378
        %v3383 = vsel %vm3071, %v288, 0
        %3385 = vmatprep.subr.mxu0 0.0
        %3386 = vmatpush1.msra.mxu0 %v3381
        %3387 = vmatprep.subr.mxu0 0.0
        %3388 = vmatpush1.msra.mxu0 0.0
        %3389 = vmatprep.subr.mxu0 0.0
        %3390 = vmatpush1.msra.mxu0 0.0
        %3391 = vmatprep.subr.mxu0 0.0
        %3392 = vmatpush1.msra.mxu0 0.0
        %3393 = vmatprep.subr.mxu0 0.0
        %3394 = vmatpush1.msra.mxu0 0.0
        %3395 = vmatprep.subr.mxu0 0.0
        %3396 = vmatpush1.msra.mxu0 0.0
        %3397 = vmatprep.subr.mxu0 0.0
        %3398 = vmatpush1.msra.mxu0 0.0
        %3399 = vmatprep.subr.mxu0 0.0
        %3400 = vmatpush1.msra.mxu0 0.0
        %3401 = vmatprep.subr.mxu0 0.0
        %3402 = vmatpush1.msra.mxu0 0.0
        %3403 = vmatprep.subr.mxu0 0.0
        %3404 = vmatpush1.msra.mxu0 0.0
        %3405 = vmatprep.subr.mxu0 0.0
        %3406 = vmatpush1.msra.mxu0 0.0
        %3407 = vmatprep.subr.mxu0 0.0
        %3408 = vmatpush1.msra.mxu0 0.0
        %3409 = vmatprep.subr.mxu0 0.0
        %3410 = vmatpush1.msra.mxu0 0.0
        %3411 = vmatprep.subr.mxu0 0.0
        %3412 = vmatpush1.msra.mxu0 0.0
        %3413 = vmatprep.subr.mxu0 0.0
        %3414 = vmatpush1.msra.mxu0 0.0
        %3415 = vmatprep.subr.mxu0 0.0
        %3416 = vmatpush1.msra.mxu0 0.0
        %3417 = vmatprep.subr.mxu0 0.0
        %3418 = vmatpush1.msra.mxu0 0.0
        %3419 = vmatprep.subr.mxu0 0.0
        %3420 = vmatpush1.msra.mxu0 0.0
        %3421 = vmatprep.subr.mxu0 0.0
        %3422 = vmatpush1.msra.mxu0 0.0
        %3423 = vmatprep.subr.mxu0 0.0
        %3424 = vmatpush1.msra.mxu0 0.0
        %3425 = vmatprep.subr.mxu0 0.0
        %3426 = vmatpush1.msra.mxu0 0.0
        %3427 = vmatprep.subr.mxu0 0.0
        %3428 = vmatpush1.msra.mxu0 0.0
        %3429 = vmatprep.subr.mxu0 0.0
        %3430 = vmatpush1.msra.mxu0 0.0
        %3431 = vmatprep.subr.mxu0 0.0
        %3432 = vmatpush1.msra.mxu0 0.0
        %3433 = vmatprep.subr.mxu0 0.0
        %3434 = vmatpush1.msra.mxu0 0.0
        %3435 = vmatprep.subr.mxu0 0.0
        %3436 = vmatpush1.msra.mxu0 0.0
        %3437 = vmatprep.subr.mxu0 0.0
        %3438 = vmatpush1.msra.mxu0 0.0
        %3439 = vmatprep.subr.mxu0 0.0
        %3440 = vmatpush1.msra.mxu0 0.0
        %3441 = vmatprep.subr.mxu0 0.0
        %3442 = vmatpush1.msra.mxu0 0.0
        %3443 = vmatprep.subr.mxu0 0.0
        %3444 = vmatpush1.msra.mxu0 0.0
        %3445 = vmatprep.subr.mxu0 0.0
        %3446 = vmatpush1.msra.mxu0 0.0
        %3447 = vmatprep.subr.mxu0 0.0
        %3448 = vmatpush1.msra.mxu0 0.0
        %3449 = vmatprep.mubr.f32.mxu0 0.0
        %3450 = vmatmul.mubr.f32.gmra.mrb[0].mxu0 %v3383
        %v3451 = vpop.f32.mrb[0].mxu0
        %v3452 = vadd.f32 0.0, %v3451
        %v3453 = vpop.f32.mrb[0].mxu0
        %3454 = vdwg.mxu0
        %v3455 = vsub.f32 %v3381, %v3452
        %v3456 = vsel %vm313, %v3455, 0.0
        %3457 = vadd.xlane.f32.xlu0 %v3456
        %v3458 = vpop.xlane.xlu0 %3457
        %v3459 = vmul.f32 %v3458, %v320
        %v3460 = vsub.f32 %v3455, %v3459
        %v3461 = vmul.f32 %v3460, %v3460
        %v3462 = vsel %vm313, %v3461, 0.0
        %3463 = vadd.xlane.f32.xlu0 %v3462
        %v3464 = vpop.xlane.xlu0 %3463
        %v3465 = vmul.f32 %v3464, %v320
        %v3466 = vadd.f32 %v3465, 1e-05
        %v3467 = vrsqrt.pop %v3466
        %v3468 = vmul.f32 %v3460, %v3467
        %v3469 = vlaneseq
        %v3470 = vshrl.u32 %v3469, 7
        %v3471 = vsub.s32 0, %v3470
        %v3472 = vrot.slane %v2903, %v3471
        %v3473 = vmul.f32 %v3468, %v3472
        %v3474 = vlaneseq
        %v3475 = vshrl.u32 %v3474, 7
        %v3476 = vsub.s32 1, %v3475
        %v3477 = vrot.slane %v2903, %v3476
        %v3478 = vadd.f32 %v3473, %v3477
        %v3479 = vld [vmem:[#allocation2 + $0x210] sm:$0xff]
        %v3480 = vld [vmem:[#allocation2 + $0x218] sm:$0xff]
        %v3481 = vld [vmem:[#allocation2 + $0x220] sm:$0xff]
        %v3482 = vld [vmem:[#allocation2 + $0x228] sm:$0xff]
        %v3483 = vld [vmem:[#allocation2 + $0x230] sm:$0x1]
        %v3484 = vld [vmem:[#allocation2 + $0x238] sm:$0xff]
        %v3485 = vld [vmem:[#allocation2 + $0x240] sm:$0xff]
        %v3486 = vld [vmem:[#allocation2 + $0x248] sm:$0xff]
        %v3487 = vld [vmem:[#allocation2 + $0x250] sm:$0xff]
        %v3488 = vld [vmem:[#allocation2 + $0x258] sm:$0x1]
        %v3489 = vlaneseq
        %v3490 = vshrl.u32 %v3489, 7
        %v3491 = vsub.s32 0, %v3490
        %v3492 = vrot.slane %v3483, %v3491
        %v3494 = vsel %vm313, %v3478, 0
        %3496 = vmatprep.subr.mxu0 0.0
        %3497 = vmatpush1.msra.mxu0 %v3479
        %3498 = vmatprep.subr.mxu0 0.0
        %3499 = vmatpush1.msra.mxu0 %v3480
        %3500 = vmatprep.subr.mxu0 0.0
        %3501 = vmatpush1.msra.mxu0 %v3481
        %3502 = vmatprep.subr.mxu0 0.0
        %3503 = vmatpush1.msra.mxu0 %v3482
        %3504 = vmatprep.subr.mxu0 0.0
        %3505 = vmatpush1.msra.mxu0 0.0
        %3506 = vmatprep.subr.mxu0 0.0
        %3507 = vmatpush1.msra.mxu0 0.0
        %3508 = vmatprep.subr.mxu0 0.0
        %3509 = vmatpush1.msra.mxu0 0.0
        %3510 = vmatprep.subr.mxu0 0.0
        %3511 = vmatpush1.msra.mxu0 0.0
        %3512 = vmatprep.subr.mxu0 0.0
        %3513 = vmatpush1.msra.mxu0 0.0
        %3514 = vmatprep.subr.mxu0 0.0
        %3515 = vmatpush1.msra.mxu0 0.0
        %3516 = vmatprep.subr.mxu0 0.0
        %3517 = vmatpush1.msra.mxu0 0.0
        %3518 = vmatprep.subr.mxu0 0.0
        %3519 = vmatpush1.msra.mxu0 0.0
        %3520 = vmatprep.subr.mxu0 0.0
        %3521 = vmatpush1.msra.mxu0 0.0
        %3522 = vmatprep.subr.mxu0 0.0
        %3523 = vmatpush1.msra.mxu0 0.0
        %3524 = vmatprep.subr.mxu0 0.0
        %3525 = vmatpush1.msra.mxu0 0.0
        %3526 = vmatprep.subr.mxu0 0.0
        %3527 = vmatpush1.msra.mxu0 0.0
        %3528 = vmatprep.subr.mxu0 0.0
        %3529 = vmatpush1.msra.mxu0 0.0
        %3530 = vmatprep.subr.mxu0 0.0
        %3531 = vmatpush1.msra.mxu0 0.0
        %3532 = vmatprep.subr.mxu0 0.0
        %3533 = vmatpush1.msra.mxu0 0.0
        %3534 = vmatprep.subr.mxu0 0.0
        %3535 = vmatpush1.msra.mxu0 0.0
        %3536 = vmatprep.subr.mxu0 0.0
        %3537 = vmatpush1.msra.mxu0 0.0
        %3538 = vmatprep.subr.mxu0 0.0
        %3539 = vmatpush1.msra.mxu0 0.0
        %3540 = vmatprep.subr.mxu0 0.0
        %3541 = vmatpush1.msra.mxu0 0.0
        %3542 = vmatprep.subr.mxu0 0.0
        %3543 = vmatpush1.msra.mxu0 0.0
        %3544 = vmatprep.subr.mxu0 0.0
        %3545 = vmatpush1.msra.mxu0 0.0
        %3546 = vmatprep.subr.mxu0 0.0
        %3547 = vmatpush1.msra.mxu0 0.0
        %3548 = vmatprep.subr.mxu0 0.0
        %3549 = vmatpush1.msra.mxu0 0.0
        %3550 = vmatprep.subr.mxu0 0.0
        %3551 = vmatpush1.msra.mxu0 0.0
        %3552 = vmatprep.subr.mxu0 0.0
        %3553 = vmatpush1.msra.mxu0 0.0
        %3554 = vmatprep.subr.mxu0 0.0
        %3555 = vmatpush1.msra.mxu0 0.0
        %3556 = vmatprep.subr.mxu0 0.0
        %3557 = vmatpush1.msra.mxu0 0.0
        %3558 = vmatprep.subr.mxu0 0.0
        %3559 = vmatpush1.msra.mxu0 0.0
        %3560 = vmatprep.mubr.f32.mxu0 0.0
        %3561 = vmatmul.mubr.f32.gmra.mrb[0].mxu0 %v3494
        %v3562 = vpop.f32.mrb[0].mxu0
        %v3563 = vadd.f32 %v3492, %v3562
        %v3564 = vpop.f32.mrb[0].mxu0
        %3565 = vdwg.mxu0
        %v3567 = vsel %vm313, %v2769, 0
        %v3570 = vsel %vm313, %v2770, 0
        %3572 = vmatprep.subr.mxu0 0.0
        %3573 = vmatpush1.msra.mxu0 %v3479
        %3574 = vmatprep.subr.mxu0 0.0
        %3575 = vmatpush1.msra.mxu0 %v3480
        %3576 = vmatprep.subr.mxu0 0.0
        %3577 = vmatpush1.msra.mxu0 %v3481
        %3578 = vmatprep.subr.mxu0 0.0
        %3579 = vmatpush1.msra.mxu0 %v3482
        %3580 = vmatprep.subr.mxu0 0.0
        %3581 = vmatpush1.msra.mxu0 0.0
        %3582 = vmatprep.subr.mxu0 0.0
        %3583 = vmatpush1.msra.mxu0 0.0
        %3584 = vmatprep.subr.mxu0 0.0
        %3585 = vmatpush1.msra.mxu0 0.0
        %3586 = vmatprep.subr.mxu0 0.0
        %3587 = vmatpush1.msra.mxu0 0.0
        %3588 = vmatprep.subr.mxu0 0.0
        %3589 = vmatpush1.msra.mxu0 0.0
        %3590 = vmatprep.subr.mxu0 0.0
        %3591 = vmatpush1.msra.mxu0 0.0
        %3592 = vmatprep.subr.mxu0 0.0
        %3593 = vmatpush1.msra.mxu0 0.0
        %3594 = vmatprep.subr.mxu0 0.0
        %3595 = vmatpush1.msra.mxu0 0.0
        %3596 = vmatprep.subr.mxu0 0.0
        %3597 = vmatpush1.msra.mxu0 0.0
        %3598 = vmatprep.subr.mxu0 0.0
        %3599 = vmatpush1.msra.mxu0 0.0
        %3600 = vmatprep.subr.mxu0 0.0
        %3601 = vmatpush1.msra.mxu0 0.0
        %3602 = vmatprep.subr.mxu0 0.0
        %3603 = vmatpush1.msra.mxu0 0.0
        %3604 = vmatprep.subr.mxu0 0.0
        %3605 = vmatpush1.msra.mxu0 0.0
        %3606 = vmatprep.subr.mxu0 0.0
        %3607 = vmatpush1.msra.mxu0 0.0
        %3608 = vmatprep.subr.mxu0 0.0
        %3609 = vmatpush1.msra.mxu0 0.0
        %3610 = vmatprep.subr.mxu0 0.0
        %3611 = vmatpush1.msra.mxu0 0.0
        %3612 = vmatprep.subr.mxu0 0.0
        %3613 = vmatpush1.msra.mxu0 0.0
        %3614 = vmatprep.subr.mxu0 0.0
        %3615 = vmatpush1.msra.mxu0 0.0
        %3616 = vmatprep.subr.mxu0 0.0
        %3617 = vmatpush1.msra.mxu0 0.0
        %3618 = vmatprep.subr.mxu0 0.0
        %3619 = vmatpush1.msra.mxu0 0.0
        %3620 = vmatprep.subr.mxu0 0.0
        %3621 = vmatpush1.msra.mxu0 0.0
        %3622 = vmatprep.subr.mxu0 0.0
        %3623 = vmatpush1.msra.mxu0 0.0
        %3624 = vmatprep.subr.mxu0 0.0
        %3625 = vmatpush1.msra.mxu0 0.0
        %3626 = vmatprep.subr.mxu0 0.0
        %3627 = vmatpush1.msra.mxu0 0.0
        %3628 = vmatprep.subr.mxu0 0.0
        %3629 = vmatpush1.msra.mxu0 0.0
        %3630 = vmatprep.subr.mxu0 0.0
        %3631 = vmatpush1.msra.mxu0 0.0
        %3632 = vmatprep.subr.mxu0 0.0
        %3633 = vmatpush1.msra.mxu0 0.0
        %3634 = vmatprep.subr.mxu0 0.0
        %3635 = vmatpush1.msra.mxu0 0.0
        %3636 = vmatprep.mubr.f32.mxu0 0.0
        %3637 = vmatmul.mubr.f32.gmra.mrb[0].mxu0 %v3567
        %v3638 = vpop.f32.mrb[0].mxu0
        %v3639 = vadd.f32 %v3492, %v3638
        %v3640 = vpop.f32.mrb[0].mxu0
        %3641 = vmatprep.mubr.f32.mxu0 0.0
        %3642 = vmatmul.mubr.f32.gmra.mrb[0].mxu0 %v3570
        %v3643 = vpop.f32.mrb[0].mxu0
        %v3644 = vpop.f32.mrb[0].mxu0
        %3645 = vdwg.mxu0
        %3647 = vrot.lane.b32.xlu0 %v3639, 96
        %v3648 = vpop.permute.xlu0 %3647
        %v3650 = vsel %vm313, %v3563, 0
        %v3652 = vsel %vm313, %v3648, 0
        %3654 = vmatprep.subr.mxu0 0.0
        %3655 = vmatpush1.xpose.msra.mxu0 %v3652
        %3656 = vmatprep.subr.mxu0 0.0
        %3657 = vmatpush1.xpose.msra.mxu0 0.0
        %3658 = vmatprep.subr.mxu0 0.0
        %3659 = vmatpush1.xpose.msra.mxu0 0.0
        %3660 = vmatprep.subr.mxu0 0.0
        %3661 = vmatpush1.xpose.msra.mxu0 0.0
        %3662 = vmatprep.subr.mxu0 0.0
        %3663 = vmatpush1.xpose.msra.mxu0 0.0
        %3664 = vmatprep.subr.mxu0 0.0
        %3665 = vmatpush1.xpose.msra.mxu0 0.0
        %3666 = vmatprep.subr.mxu0 0.0
        %3667 = vmatpush1.xpose.msra.mxu0 0.0
        %3668 = vmatprep.subr.mxu0 0.0
        %3669 = vmatpush1.xpose.msra.mxu0 0.0
        %3670 = vmatprep.subr.mxu0 0.0
        %3671 = vmatpush1.xpose.msra.mxu0 0.0
        %3672 = vmatprep.subr.mxu0 0.0
        %3673 = vmatpush1.xpose.msra.mxu0 0.0
        %3674 = vmatprep.subr.mxu0 0.0
        %3675 = vmatpush1.xpose.msra.mxu0 0.0
        %3676 = vmatprep.subr.mxu0 0.0
        %3677 = vmatpush1.xpose.msra.mxu0 0.0
        %3678 = vmatprep.subr.mxu0 0.0
        %3679 = vmatpush1.xpose.msra.mxu0 0.0
        %3680 = vmatprep.subr.mxu0 0.0
        %3681 = vmatpush1.xpose.msra.mxu0 0.0
        %3682 = vmatprep.subr.mxu0 0.0
        %3683 = vmatpush1.xpose.msra.mxu0 0.0
        %3684 = vmatprep.subr.mxu0 0.0
        %3685 = vmatpush1.xpose.msra.mxu0 0.0
        %3686 = vmatprep.subr.mxu0 0.0
        %3687 = vmatpush1.xpose.msra.mxu0 0.0
        %3688 = vmatprep.subr.mxu0 0.0
        %3689 = vmatpush1.xpose.msra.mxu0 0.0
        %3690 = vmatprep.subr.mxu0 0.0
        %3691 = vmatpush1.xpose.msra.mxu0 0.0
        %3692 = vmatprep.subr.mxu0 0.0
        %3693 = vmatpush1.xpose.msra.mxu0 0.0
        %3694 = vmatprep.subr.mxu0 0.0
        %3695 = vmatpush1.xpose.msra.mxu0 0.0
        %3696 = vmatprep.subr.mxu0 0.0
        %3697 = vmatpush1.xpose.msra.mxu0 0.0
        %3698 = vmatprep.subr.mxu0 0.0
        %3699 = vmatpush1.xpose.msra.mxu0 0.0
        %3700 = vmatprep.subr.mxu0 0.0
        %3701 = vmatpush1.xpose.msra.mxu0 0.0
        %3702 = vmatprep.subr.mxu0 0.0
        %3703 = vmatpush1.xpose.msra.mxu0 0.0
        %3704 = vmatprep.subr.mxu0 0.0
        %3705 = vmatpush1.xpose.msra.mxu0 0.0
        %3706 = vmatprep.subr.mxu0 0.0
        %3707 = vmatpush1.xpose.msra.mxu0 0.0
        %3708 = vmatprep.subr.mxu0 0.0
        %3709 = vmatpush1.xpose.msra.mxu0 0.0
        %3710 = vmatprep.subr.mxu0 0.0
        %3711 = vmatpush1.xpose.msra.mxu0 0.0
        %3712 = vmatprep.subr.mxu0 0.0
        %3713 = vmatpush1.xpose.msra.mxu0 0.0
        %3714 = vmatprep.subr.mxu0 0.0
        %3715 = vmatpush1.xpose.msra.mxu0 0.0
        %3716 = vmatprep.subr.mxu0 0.0
        %3717 = vmatpush1.xpose.msra.mxu0 0.0
        %3718 = vmatprep.mubr.f32.mxu0 0.0
        %3719 = vmatmul.mubr.f32.gmra.mrb[0].mxu0 %v3650
        %v3720 = vpop.f32.mrb[0].mxu0
        %v3721 = vadd.f32 0.0, %v3720
        %v3722 = vpop.f32.mrb[0].mxu0
        %3723 = vdwg.mxu0
        %v3724 = vmul.f32 %v3721, %v271
        %v3725 = vsel %vm3071, %v3724, 0.0
        %3726 = vadd.xlane.f32.xlu0 %v3725
        %v3727 = vpop.xlane.xlu0 %3726
        %v3728 = vrot.slane %v3727, 4
        %v3729 = vadd.f32 %v3727, %v3728
        %v3730 = vrot.slane %v3729, 2
        %v3731 = vadd.f32 %v3729, %v3730
        %v3732 = vrot.slane %v3731, 1
        %v3733 = vadd.f32 %v3731, %v3732
        %v3734 = vmul.f32 %v3733, %v237
        %v3735 = vadd.f32 %v3734, 0.0
        %v3736 = vmul.f32 %v3721, %v273
        %v3737 = vsel %vm3071, %v3736, 0.0
        %3738 = vadd.xlane.f32.xlu0 %v3737
        %v3739 = vpop.xlane.xlu0 %3738
        %v3740 = vrot.slane %v3739, 4
        %v3741 = vadd.f32 %v3739, %v3740
        %v3742 = vrot.slane %v3741, 2
        %v3743 = vadd.f32 %v3741, %v3742
        %v3744 = vrot.slane %v3743, 1
        %v3745 = vadd.f32 %v3743, %v3744
        %v3746 = vmul.f32 %v3745, %v239
        %v3747 = vadd.f32 %v3735, %v3746
        %v3748 = vmul.f32 %v3721, %v275
        %v3749 = vsel %vm3071, %v3748, 0.0
        %3750 = vadd.xlane.f32.xlu0 %v3749
        %v3751 = vpop.xlane.xlu0 %3750
        %v3752 = vrot.slane %v3751, 4
        %v3753 = vadd.f32 %v3751, %v3752
        %v3754 = vrot.slane %v3753, 2
        %v3755 = vadd.f32 %v3753, %v3754
        %v3756 = vrot.slane %v3755, 1
        %v3757 = vadd.f32 %v3755, %v3756
        %v3758 = vmul.f32 %v3757, %v241
        %v3759 = vadd.f32 %v3747, %v3758
        %v3760 = vmul.f32 %v3721, %v277
        %v3761 = vsel %vm3071, %v3760, 0.0
        %3762 = vadd.xlane.f32.xlu0 %v3761
        %v3763 = vpop.xlane.xlu0 %3762
        %v3764 = vrot.slane %v3763, 4
        %v3765 = vadd.f32 %v3763, %v3764
        %v3766 = vrot.slane %v3765, 2
        %v3767 = vadd.f32 %v3765, %v3766
        %v3768 = vrot.slane %v3767, 1
        %v3769 = vadd.f32 %v3767, %v3768
        %v3770 = vmul.f32 %v3769, %v243
        %v3771 = vadd.f32 %v3759, %v3770
        %v3772 = vmul.f32 %v3721, %v279
        %v3773 = vsel %vm3071, %v3772, 0.0
        %3774 = vadd.xlane.f32.xlu0 %v3773
        %v3775 = vpop.xlane.xlu0 %3774
        %v3776 = vrot.slane %v3775, 4
        %v3777 = vadd.f32 %v3775, %v3776
        %v3778 = vrot.slane %v3777, 2
        %v3779 = vadd.f32 %v3777, %v3778
        %v3780 = vrot.slane %v3779, 1
        %v3781 = vadd.f32 %v3779, %v3780
        %v3782 = vmul.f32 %v3781, %v245
        %v3783 = vadd.f32 %v3771, %v3782
        %v3784 = vmul.f32 %v3721, %v281
        %v3785 = vsel %vm3071, %v3784, 0.0
        %3786 = vadd.xlane.f32.xlu0 %v3785
        %v3787 = vpop.xlane.xlu0 %3786
        %v3788 = vrot.slane %v3787, 4
        %v3789 = vadd.f32 %v3787, %v3788
        %v3790 = vrot.slane %v3789, 2
        %v3791 = vadd.f32 %v3789, %v3790
        %v3792 = vrot.slane %v3791, 1
        %v3793 = vadd.f32 %v3791, %v3792
        %v3794 = vmul.f32 %v3793, %v247
        %v3795 = vadd.f32 %v3783, %v3794
        %v3796 = vmul.f32 %v3721, %v283
        %v3797 = vsel %vm3071, %v3796, 0.0
        %3798 = vadd.xlane.f32.xlu0 %v3797
        %v3799 = vpop.xlane.xlu0 %3798
        %v3800 = vrot.slane %v3799, 4
        %v3801 = vadd.f32 %v3799, %v3800
        %v3802 = vrot.slane %v3801, 2
        %v3803 = vadd.f32 %v3801, %v3802
        %v3804 = vrot.slane %v3803, 1
        %v3805 = vadd.f32 %v3803, %v3804
        %v3806 = vmul.f32 %v3805, %v249
        %v3807 = vadd.f32 %v3795, %v3806
        %v3808 = vmul.f32 %v3721, %v285
        %v3809 = vsel %vm3071, %v3808, 0.0
        %3810 = vadd.xlane.f32.xlu0 %v3809
        %v3811 = vpop.xlane.xlu0 %3810
        %v3812 = vrot.slane %v3811, 4
        %v3813 = vadd.f32 %v3811, %v3812
        %v3814 = vrot.slane %v3813, 2
        %v3815 = vadd.f32 %v3813, %v3814
        %v3816 = vrot.slane %v3815, 1
        %v3817 = vadd.f32 %v3815, %v3816
        %v3818 = vmul.f32 %v3817, %v251
        %v3819 = vadd.f32 %v3807, %v3818
        %v3820 = vmul.f32 %v3819, 0.03125
        %v3821 = vsel %vm3071, %v3820, -inf
        %3822 = vmax.xlane.f32.xlu0 %v3821
        %v3823 = vpop.xlane.xlu0 %3822
        %v3824 = vsub.f32 %v3820, %v3823
        %v3825 = vmul.f32 %v3824, 1.442695
        %v3826 = vpow.pop %v3825
        %v3827 = vsel %vm3071, %v3826, 0.0
        %3828 = vadd.xlane.f32.xlu0 %v3827
        %v3829 = vpop.xlane.xlu0 %3828
        %v3830 = vrcp.pop %v3829
        %v3831 = vmul.f32 %v3826, %v3830
        %3833 = vset.pattern.permute.xlu0 0
        %3834 = vperm.xlu0 %3833, %v3831
        %v3835 = vpop.permute.xlu0 %3834
        %v3837 = vmul.f32 %v3835, %v271
        %v3838 = vadd.f32 %v3837, 0.0
        %3839 = vset.pattern.permute.xlu0 1
        %3840 = vperm.xlu0 %3839, %v3831
        %v3841 = vpop.permute.xlu0 %3840
        %v3843 = vmul.f32 %v3841, %v273
        %v3844 = vadd.f32 %v3838, %v3843
        %3845 = vset.pattern.permute.xlu0 2
        %3846 = vperm.xlu0 %3845, %v3831
        %v3847 = vpop.permute.xlu0 %3846
        %v3849 = vmul.f32 %v3847, %v275
        %v3850 = vadd.f32 %v3844, %v3849
        %3851 = vset.pattern.permute.xlu0 3
        %3852 = vperm.xlu0 %3851, %v3831
        %v3853 = vpop.permute.xlu0 %3852
        %v3855 = vmul.f32 %v3853, %v277
        %v3856 = vadd.f32 %v3850, %v3855
        %3857 = vset.pattern.permute.xlu0 4
        %3858 = vperm.xlu0 %3857, %v3831
        %v3859 = vpop.permute.xlu0 %3858
        %v3861 = vmul.f32 %v3859, %v279
        %v3862 = vadd.f32 %v3856, %v3861
        %3863 = vset.pattern.permute.xlu0 5
        %3864 = vperm.xlu0 %3863, %v3831
        %v3865 = vpop.permute.xlu0 %3864
        %v3867 = vmul.f32 %v3865, %v281
        %v3868 = vadd.f32 %v3862, %v3867
        %3869 = vset.pattern.permute.xlu0 6
        %3870 = vperm.xlu0 %3869, %v3831
        %v3871 = vpop.permute.xlu0 %3870
        %v3873 = vmul.f32 %v3871, %v283
        %v3874 = vadd.f32 %v3868, %v3873
        %3875 = vset.pattern.permute.xlu0 7
        %3876 = vperm.xlu0 %3875, %v3831
        %v3877 = vpop.permute.xlu0 %3876
        %v3879 = vmul.f32 %v3877, %v285
        %v3880 = vadd.f32 %v3874, %v3879
        %3881 = vrot.lane.b32.xlu0 %v3639, 64
        %v3882 = vpop.permute.xlu0 %3881
        %v3885 = vsel %vm3071, %v3880, 0
        %3887 = vmatprep.subr.mxu0 0.0
        %3888 = vmatpush1.msra.mxu0 %v3882
        %3889 = vmatprep.subr.mxu0 0.0
        %3890 = vmatpush1.msra.mxu0 0.0
        %3891 = vmatprep.subr.mxu0 0.0
        %3892 = vmatpush1.msra.mxu0 0.0
        %3893 = vmatprep.subr.mxu0 0.0
        %3894 = vmatpush1.msra.mxu0 0.0
        %3895 = vmatprep.subr.mxu0 0.0
        %3896 = vmatpush1.msra.mxu0 0.0
        %3897 = vmatprep.subr.mxu0 0.0
        %3898 = vmatpush1.msra.mxu0 0.0
        %3899 = vmatprep.subr.mxu0 0.0
        %3900 = vmatpush1.msra.mxu0 0.0
        %3901 = vmatprep.subr.mxu0 0.0
        %3902 = vmatpush1.msra.mxu0 0.0
        %3903 = vmatprep.subr.mxu0 0.0
        %3904 = vmatpush1.msra.mxu0 0.0
        %3905 = vmatprep.subr.mxu0 0.0
        %3906 = vmatpush1.msra.mxu0 0.0
        %3907 = vmatprep.subr.mxu0 0.0
        %3908 = vmatpush1.msra.mxu0 0.0
        %3909 = vmatprep.subr.mxu0 0.0
        %3910 = vmatpush1.msra.mxu0 0.0
        %3911 = vmatprep.subr.mxu0 0.0
        %3912 = vmatpush1.msra.mxu0 0.0
        %3913 = vmatprep.subr.mxu0 0.0
        %3914 = vmatpush1.msra.mxu0 0.0
        %3915 = vmatprep.subr.mxu0 0.0
        %3916 = vmatpush1.msra.mxu0 0.0
        %3917 = vmatprep.subr.mxu0 0.0
        %3918 = vmatpush1.msra.mxu0 0.0
        %3919 = vmatprep.subr.mxu0 0.0
        %3920 = vmatpush1.msra.mxu0 0.0
        %3921 = vmatprep.subr.mxu0 0.0
        %3922 = vmatpush1.msra.mxu0 0.0
        %3923 = vmatprep.subr.mxu0 0.0
        %3924 = vmatpush1.msra.mxu0 0.0
        %3925 = vmatprep.subr.mxu0 0.0
        %3926 = vmatpush1.msra.mxu0 0.0
        %3927 = vmatprep.subr.mxu0 0.0
        %3928 = vmatpush1.msra.mxu0 0.0
        %3929 = vmatprep.subr.mxu0 0.0
        %3930 = vmatpush1.msra.mxu0 0.0
        %3931 = vmatprep.subr.mxu0 0.0
        %3932 = vmatpush1.msra.mxu0 0.0
        %3933 = vmatprep.subr.mxu0 0.0
        %3934 = vmatpush1.msra.mxu0 0.0
        %3935 = vmatprep.subr.mxu0 0.0
        %3936 = vmatpush1.msra.mxu0 0.0
        %3937 = vmatprep.subr.mxu0 0.0
        %3938 = vmatpush1.msra.mxu0 0.0
        %3939 = vmatprep.subr.mxu0 0.0
        %3940 = vmatpush1.msra.mxu0 0.0
        %3941 = vmatprep.subr.mxu0 0.0
        %3942 = vmatpush1.msra.mxu0 0.0
        %3943 = vmatprep.subr.mxu0 0.0
        %3944 = vmatpush1.msra.mxu0 0.0
        %3945 = vmatprep.subr.mxu0 0.0
        %3946 = vmatpush1.msra.mxu0 0.0
        %3947 = vmatprep.subr.mxu0 0.0
        %3948 = vmatpush1.msra.mxu0 0.0
        %3949 = vmatprep.subr.mxu0 0.0
        %3950 = vmatpush1.msra.mxu0 0.0
        %3951 = vmatprep.mubr.f32.mxu0 0.0
        %3952 = vmatmul.mubr.f32.gmra.mrb[0].mxu0 %v3885
        %v3953 = vpop.f32.mrb[0].mxu0
        %v3954 = vadd.f32 0.0, %v3953
        %v3955 = vpop.f32.mrb[0].mxu0
        %3956 = vdwg.mxu0
        %v3957 = vlaneseq
        %v3958 = vshrl.u32 %v3957, 7
        %v3959 = vsub.s32 0, %v3958
        %v3960 = vrot.slane %v3488, %v3959
        %v3962 = vsel %vm313, %v3954, 0
        %3964 = vmatprep.subr.mxu0 0.0
        %3965 = vmatpush1.msra.mxu0 %v3484
        %3966 = vmatprep.subr.mxu0 0.0
        %3967 = vmatpush1.msra.mxu0 %v3485
        %3968 = vmatprep.subr.mxu0 0.0
        %3969 = vmatpush1.msra.mxu0 %v3486
        %3970 = vmatprep.subr.mxu0 0.0
        %3971 = vmatpush1.msra.mxu0 %v3487
        %3972 = vmatprep.subr.mxu0 0.0
        %3973 = vmatpush1.msra.mxu0 0.0
        %3974 = vmatprep.subr.mxu0 0.0
        %3975 = vmatpush1.msra.mxu0 0.0
        %3976 = vmatprep.subr.mxu0 0.0
        %3977 = vmatpush1.msra.mxu0 0.0
        %3978 = vmatprep.subr.mxu0 0.0
        %3979 = vmatpush1.msra.mxu0 0.0
        %3980 = vmatprep.subr.mxu0 0.0
        %3981 = vmatpush1.msra.mxu0 0.0
        %3982 = vmatprep.subr.mxu0 0.0
        %3983 = vmatpush1.msra.mxu0 0.0
        %3984 = vmatprep.subr.mxu0 0.0
        %3985 = vmatpush1.msra.mxu0 0.0
        %3986 = vmatprep.subr.mxu0 0.0
        %3987 = vmatpush1.msra.mxu0 0.0
        %3988 = vmatprep.subr.mxu0 0.0
        %3989 = vmatpush1.msra.mxu0 0.0
        %3990 = vmatprep.subr.mxu0 0.0
        %3991 = vmatpush1.msra.mxu0 0.0
        %3992 = vmatprep.subr.mxu0 0.0
        %3993 = vmatpush1.msra.mxu0 0.0
        %3994 = vmatprep.subr.mxu0 0.0
        %3995 = vmatpush1.msra.mxu0 0.0
        %3996 = vmatprep.subr.mxu0 0.0
        %3997 = vmatpush1.msra.mxu0 0.0
        %3998 = vmatprep.subr.mxu0 0.0
        %3999 = vmatpush1.msra.mxu0 0.0
        %4000 = vmatprep.subr.mxu0 0.0
        %4001 = vmatpush1.msra.mxu0 0.0
        %4002 = vmatprep.subr.mxu0 0.0
        %4003 = vmatpush1.msra.mxu0 0.0
        %4004 = vmatprep.subr.mxu0 0.0
        %4005 = vmatpush1.msra.mxu0 0.0
        %4006 = vmatprep.subr.mxu0 0.0
        %4007 = vmatpush1.msra.mxu0 0.0
        %4008 = vmatprep.subr.mxu0 0.0
        %4009 = vmatpush1.msra.mxu0 0.0
        %4010 = vmatprep.subr.mxu0 0.0
        %4011 = vmatpush1.msra.mxu0 0.0
        %4012 = vmatprep.subr.mxu0 0.0
        %4013 = vmatpush1.msra.mxu0 0.0
        %4014 = vmatprep.subr.mxu0 0.0
        %4015 = vmatpush1.msra.mxu0 0.0
        %4016 = vmatprep.subr.mxu0 0.0
        %4017 = vmatpush1.msra.mxu0 0.0
        %4018 = vmatprep.subr.mxu0 0.0
        %4019 = vmatpush1.msra.mxu0 0.0
        %4020 = vmatprep.subr.mxu0 0.0
        %4021 = vmatpush1.msra.mxu0 0.0
        %4022 = vmatprep.subr.mxu0 0.0
        %4023 = vmatpush1.msra.mxu0 0.0
        %4024 = vmatprep.subr.mxu0 0.0
        %4025 = vmatpush1.msra.mxu0 0.0
        %4026 = vmatprep.subr.mxu0 0.0
        %4027 = vmatpush1.msra.mxu0 0.0
        %4028 = vmatprep.mubr.f32.mxu0 0.0
        %4029 = vmatmul.mubr.f32.gmra.mrb[0].mxu0 %v3962
        %v4030 = vpop.f32.mrb[0].mxu0
        %v4031 = vadd.f32 %v3960, %v4030
        %v4032 = vpop.f32.mrb[0].mxu0
        %4033 = vdwg.mxu0
        %v4034 = vadd.f32 %v3478, %v4031
        %4035 = vmatprep.subr.mxu0 0.0
        %4036 = vmatpush1.msra.mxu0 %v4034
        %4037 = vmatprep.subr.mxu0 0.0
        %4038 = vmatpush1.msra.mxu0 0.0
        %4039 = vmatprep.subr.mxu0 0.0
        %4040 = vmatpush1.msra.mxu0 0.0
        %4041 = vmatprep.subr.mxu0 0.0
        %4042 = vmatpush1.msra.mxu0 0.0
        %4043 = vmatprep.subr.mxu0 0.0
        %4044 = vmatpush1.msra.mxu0 0.0
        %4045 = vmatprep.subr.mxu0 0.0
        %4046 = vmatpush1.msra.mxu0 0.0
        %4047 = vmatprep.subr.mxu0 0.0
        %4048 = vmatpush1.msra.mxu0 0.0
        %4049 = vmatprep.subr.mxu0 0.0
        %4050 = vmatpush1.msra.mxu0 0.0
        %4051 = vmatprep.subr.mxu0 0.0
        %4052 = vmatpush1.msra.mxu0 0.0
        %4053 = vmatprep.subr.mxu0 0.0
        %4054 = vmatpush1.msra.mxu0 0.0
        %4055 = vmatprep.subr.mxu0 0.0
        %4056 = vmatpush1.msra.mxu0 0.0
        %4057 = vmatprep.subr.mxu0 0.0
        %4058 = vmatpush1.msra.mxu0 0.0
        %4059 = vmatprep.subr.mxu0 0.0
        %4060 = vmatpush1.msra.mxu0 0.0
        %4061 = vmatprep.subr.mxu0 0.0
        %4062 = vmatpush1.msra.mxu0 0.0
        %4063 = vmatprep.subr.mxu0 0.0
        %4064 = vmatpush1.msra.mxu0 0.0
        %4065 = vmatprep.subr.mxu0 0.0
        %4066 = vmatpush1.msra.mxu0 0.0
        %4067 = vmatprep.subr.mxu0 0.0
        %4068 = vmatpush1.msra.mxu0 0.0
        %4069 = vmatprep.subr.mxu0 0.0
        %4070 = vmatpush1.msra.mxu0 0.0
        %4071 = vmatprep.subr.mxu0 0.0
        %4072 = vmatpush1.msra.mxu0 0.0
        %4073 = vmatprep.subr.mxu0 0.0
        %4074 = vmatpush1.msra.mxu0 0.0
        %4075 = vmatprep.subr.mxu0 0.0
        %4076 = vmatpush1.msra.mxu0 0.0
        %4077 = vmatprep.subr.mxu0 0.0
        %4078 = vmatpush1.msra.mxu0 0.0
        %4079 = vmatprep.subr.mxu0 0.0
        %4080 = vmatpush1.msra.mxu0 0.0
        %4081 = vmatprep.subr.mxu0 0.0
        %4082 = vmatpush1.msra.mxu0 0.0
        %4083 = vmatprep.subr.mxu0 0.0
        %4084 = vmatpush1.msra.mxu0 0.0
        %4085 = vmatprep.subr.mxu0 0.0
        %4086 = vmatpush1.msra.mxu0 0.0
        %4087 = vmatprep.subr.mxu0 0.0
        %4088 = vmatpush1.msra.mxu0 0.0
        %4089 = vmatprep.subr.mxu0 0.0
        %4090 = vmatpush1.msra.mxu0 0.0
        %4091 = vmatprep.subr.mxu0 0.0
        %4092 = vmatpush1.msra.mxu0 0.0
        %4093 = vmatprep.subr.mxu0 0.0
        %4094 = vmatpush1.msra.mxu0 0.0
        %4095 = vmatprep.subr.mxu0 0.0
        %4096 = vmatpush1.msra.mxu0 0.0
        %4097 = vmatprep.subr.mxu0 0.0
        %4098 = vmatpush1.msra.mxu0 0.0
        %4099 = vmatprep.mubr.f32.mxu0 0.0
        %4100 = vmatmul.mubr.f32.gmra.mrb[0].mxu0 %v3383
        %v4101 = vpop.f32.mrb[0].mxu0
        %v4102 = vadd.f32 0.0, %v4101
        %v4103 = vpop.f32.mrb[0].mxu0
        %4104 = vdwg.mxu0
        %v4105 = vsub.f32 %v4034, %v4102
        %v4106 = vsel %vm313, %v4105, 0.0
        %4107 = vadd.xlane.f32.xlu0 %v4106
        %v4108 = vpop.xlane.xlu0 %4107
        %v4109 = vmul.f32 %v4108, %v320
        %v4110 = vsub.f32 %v4105, %v4109
        %v4111 = vmul.f32 %v4110, %v4110
        %v4112 = vsel %vm313, %v4111, 0.0
        %4113 = vadd.xlane.f32.xlu0 %v4112
        %v4114 = vpop.xlane.xlu0 %4113
        %v4115 = vmul.f32 %v4114, %v320
        %v4116 = vadd.f32 %v4115, 1e-05
        %v4117 = vrsqrt.pop %v4116
        %v4118 = vmul.f32 %v4110, %v4117
        %v4119 = vlaneseq
        %v4120 = vshrl.u32 %v4119, 7
        %v4121 = vsub.s32 2, %v4120
        %v4122 = vrot.slane %v2903, %v4121
        %v4123 = vmul.f32 %v4118, %v4122
        %v4124 = vlaneseq
        %v4125 = vshrl.u32 %v4124, 7
        %v4126 = vsub.s32 3, %v4125
        %v4127 = vrot.slane %v2903, %v4126
        %v4128 = vadd.f32 %v4123, %v4127
        %v4129 = vld [vmem:[#allocation2 + $0x268] sm:$0xff]
        %v4130 = vld [vmem:[#allocation2 + $0x270] sm:$0xff]
        %v4131 = vld [vmem:[#allocation2 + $0x278] sm:$0xff]
        %v4132 = vld [vmem:[#allocation2 + $0x280] sm:$0xff]
        %v4133 = vlaneseq
        %v4134 = vshrl.u32 %v4133, 7
        %v4135 = vsub.s32 0, %v4134
        %v4136 = vrot.slane %v2904, %v4135
        %v4138 = vsel %vm313, %v4128, 0
        %4140 = vmatprep.subr.mxu0 0.0
        %4141 = vmatpush1.msra.mxu0 %v4129
        %4142 = vmatprep.subr.mxu0 0.0
        %4143 = vmatpush1.msra.mxu0 %v4130
        %4144 = vmatprep.subr.mxu0 0.0
        %4145 = vmatpush1.msra.mxu0 %v4131
        %4146 = vmatprep.subr.mxu0 0.0
        %4147 = vmatpush1.msra.mxu0 %v4132
        %4148 = vmatprep.subr.mxu0 0.0
        %4149 = vmatpush1.msra.mxu0 0.0
        %4150 = vmatprep.subr.mxu0 0.0
        %4151 = vmatpush1.msra.mxu0 0.0
        %4152 = vmatprep.subr.mxu0 0.0
        %4153 = vmatpush1.msra.mxu0 0.0
        %4154 = vmatprep.subr.mxu0 0.0
        %4155 = vmatpush1.msra.mxu0 0.0
        %4156 = vmatprep.subr.mxu0 0.0
        %4157 = vmatpush1.msra.mxu0 0.0
        %4158 = vmatprep.subr.mxu0 0.0
        %4159 = vmatpush1.msra.mxu0 0.0
        %4160 = vmatprep.subr.mxu0 0.0
        %4161 = vmatpush1.msra.mxu0 0.0
        %4162 = vmatprep.subr.mxu0 0.0
        %4163 = vmatpush1.msra.mxu0 0.0
        %4164 = vmatprep.subr.mxu0 0.0
        %4165 = vmatpush1.msra.mxu0 0.0
        %4166 = vmatprep.subr.mxu0 0.0
        %4167 = vmatpush1.msra.mxu0 0.0
        %4168 = vmatprep.subr.mxu0 0.0
        %4169 = vmatpush1.msra.mxu0 0.0
        %4170 = vmatprep.subr.mxu0 0.0
        %4171 = vmatpush1.msra.mxu0 0.0
        %4172 = vmatprep.subr.mxu0 0.0
        %4173 = vmatpush1.msra.mxu0 0.0
        %4174 = vmatprep.subr.mxu0 0.0
        %4175 = vmatpush1.msra.mxu0 0.0
        %4176 = vmatprep.subr.mxu0 0.0
        %4177 = vmatpush1.msra.mxu0 0.0
        %4178 = vmatprep.subr.mxu0 0.0
        %4179 = vmatpush1.msra.mxu0 0.0
        %4180 = vmatprep.subr.mxu0 0.0
        %4181 = vmatpush1.msra.mxu0 0.0
        %4182 = vmatprep.subr.mxu0 0.0
        %4183 = vmatpush1.msra.mxu0 0.0
        %4184 = vmatprep.subr.mxu0 0.0
        %4185 = vmatpush1.msra.mxu0 0.0
        %4186 = vmatprep.subr.mxu0 0.0
        %4187 = vmatpush1.msra.mxu0 0.0
        %4188 = vmatprep.subr.mxu0 0.0
        %4189 = vmatpush1.msra.mxu0 0.0
        %4190 = vmatprep.subr.mxu0 0.0
        %4191 = vmatpush1.msra.mxu0 0.0
        %4192 = vmatprep.subr.mxu0 0.0
        %4193 = vmatpush1.msra.mxu0 0.0
        %4194 = vmatprep.subr.mxu0 0.0
        %4195 = vmatpush1.msra.mxu0 0.0
        %4196 = vmatprep.subr.mxu0 0.0
        %4197 = vmatpush1.msra.mxu0 0.0
        %4198 = vmatprep.subr.mxu0 0.0
        %4199 = vmatpush1.msra.mxu0 0.0
        %4200 = vmatprep.subr.mxu0 0.0
        %4201 = vmatpush1.msra.mxu0 0.0
        %4202 = vmatprep.subr.mxu0 0.0
        %4203 = vmatpush1.msra.mxu0 0.0
        %4204 = vmatprep.mubr.f32.mxu0 0.0
        %4205 = vmatmul.mubr.f32.gmra.mrb[0].mxu0 %v4138
        %v4206 = vpop.f32.mrb[0].mxu0
        %v4207 = vadd.f32 %v4136, %v4206
        %v4208 = vpop.f32.mrb[0].mxu0
        %4209 = vdwg.mxu0
        %v4210 = vmul.f32 %v4207, %v4207
        %v4211 = vmul.f32 %v4207, %v4210
        %v4212 = vmul.f32 %v4211, 0.044715
        %v4213 = vadd.f32 %v4207, %v4212
        %v4214 = vmul.f32 %v4213, 0.7978846
        %v4215 = vtanh.pop %v4214
        %v4216 = vadd.f32 %v4215, 1.0
        %v4217 = vmul.f32 %v4216, 0.5
        %v4218 = vmul.f32 %v4207, %v4217
        %v4219 = vld [vmem:[#allocation2 + $0x288] sm:$0xff]
        %v4220 = vld [vmem:[#allocation2 + $0x290] sm:$0xff]
        %v4221 = vld [vmem:[#allocation2 + $0x298] sm:$0xff]
        %v4222 = vld [vmem:[#allocation2 + $0x2a0] sm:$0xff]
        %v4223 = vld [vmem:[#allocation2 + $0x2a8] sm:$0xff]
        %v4224 = vld [vmem:[#allocation2 + $0x2b0] sm:$0xff]
        %v4225 = vld [vmem:[#allocation2 + $0x2b8] sm:$0xff]
        %v4226 = vld [vmem:[#allocation2 + $0x2c0] sm:$0xff]
        %4228 = vrot.lane.b32.xlu0 %v4136, 64
        %v4229 = vpop.permute.xlu0 %4228
        %v4232 = vsel %vm1367, %v4218, 0
        %4234 = vmatprep.subr.mxu0 0.0
        %4235 = vmatpush1.msra.mxu0 %v4219
        %4236 = vmatprep.subr.mxu0 0.0
        %4237 = vmatpush1.msra.mxu0 %v4220
        %4238 = vmatprep.subr.mxu0 0.0
        %4239 = vmatpush1.msra.mxu0 %v4221
        %4240 = vmatprep.subr.mxu0 0.0
        %4241 = vmatpush1.msra.mxu0 %v4222
        %4242 = vmatprep.subr.mxu0 0.0
        %4243 = vmatpush1.msra.mxu0 %v4223
        %4244 = vmatprep.subr.mxu0 0.0
        %4245 = vmatpush1.msra.mxu0 %v4224
        %4246 = vmatprep.subr.mxu0 0.0
        %4247 = vmatpush1.msra.mxu0 %v4225
        %4248 = vmatprep.subr.mxu0 0.0
        %4249 = vmatpush1.msra.mxu0 %v4226
        %4250 = vmatprep.subr.mxu0 0.0
        %4251 = vmatpush1.msra.mxu0 0.0
        %4252 = vmatprep.subr.mxu0 0.0
        %4253 = vmatpush1.msra.mxu0 0.0
        %4254 = vmatprep.subr.mxu0 0.0
        %4255 = vmatpush1.msra.mxu0 0.0
        %4256 = vmatprep.subr.mxu0 0.0
        %4257 = vmatpush1.msra.mxu0 0.0
        %4258 = vmatprep.subr.mxu0 0.0
        %4259 = vmatpush1.msra.mxu0 0.0
        %4260 = vmatprep.subr.mxu0 0.0
        %4261 = vmatpush1.msra.mxu0 0.0
        %4262 = vmatprep.subr.mxu0 0.0
        %4263 = vmatpush1.msra.mxu0 0.0
        %4264 = vmatprep.subr.mxu0 0.0
        %4265 = vmatpush1.msra.mxu0 0.0
        %4266 = vmatprep.subr.mxu0 0.0
        %4267 = vmatpush1.msra.mxu0 0.0
        %4268 = vmatprep.subr.mxu0 0.0
        %4269 = vmatpush1.msra.mxu0 0.0
        %4270 = vmatprep.subr.mxu0 0.0
        %4271 = vmatpush1.msra.mxu0 0.0
        %4272 = vmatprep.subr.mxu0 0.0
        %4273 = vmatpush1.msra.mxu0 0.0
        %4274 = vmatprep.subr.mxu0 0.0
        %4275 = vmatpush1.msra.mxu0 0.0
        %4276 = vmatprep.subr.mxu0 0.0
        %4277 = vmatpush1.msra.mxu0 0.0
        %4278 = vmatprep.subr.mxu0 0.0
        %4279 = vmatpush1.msra.mxu0 0.0
        %4280 = vmatprep.subr.mxu0 0.0
        %4281 = vmatpush1.msra.mxu0 0.0
        %4282 = vmatprep.subr.mxu0 0.0
        %4283 = vmatpush1.msra.mxu0 0.0
        %4284 = vmatprep.subr.mxu0 0.0
        %4285 = vmatpush1.msra.mxu0 0.0
        %4286 = vmatprep.subr.mxu0 0.0
        %4287 = vmatpush1.msra.mxu0 0.0
        %4288 = vmatprep.subr.mxu0 0.0
        %4289 = vmatpush1.msra.mxu0 0.0
        %4290 = vmatprep.subr.mxu0 0.0
        %4291 = vmatpush1.msra.mxu0 0.0
        %4292 = vmatprep.subr.mxu0 0.0
        %4293 = vmatpush1.msra.mxu0 0.0
        %4294 = vmatprep.subr.mxu0 0.0
        %4295 = vmatpush1.msra.mxu0 0.0
        %4296 = vmatprep.subr.mxu0 0.0
        %4297 = vmatpush1.msra.mxu0 0.0
        %4298 = vmatprep.mubr.f32.mxu0 0.0
        %4299 = vmatmul.mubr.f32.gmra.mrb[0].mxu0 %v4232
        %v4300 = vpop.f32.mrb[0].mxu0
        %v4301 = vadd.f32 %v4229, %v4300
        %v4302 = vpop.f32.mrb[0].mxu0
        %4303 = vdwg.mxu0
        %v4304 = vadd.f32 %v4128, %v4301
        %4305 = vmatprep.subr.mxu0 0.0
        %4306 = vmatpush1.msra.mxu0 %v4304
        %4307 = vmatprep.subr.mxu0 0.0
        %4308 = vmatpush1.msra.mxu0 0.0
        %4309 = vmatprep.subr.mxu0 0.0
        %4310 = vmatpush1.msra.mxu0 0.0
        %4311 = vmatprep.subr.mxu0 0.0
        %4312 = vmatpush1.msra.mxu0 0.0
        %4313 = vmatprep.subr.mxu0 0.0
        %4314 = vmatpush1.msra.mxu0 0.0
        %4315 = vmatprep.subr.mxu0 0.0
        %4316 = vmatpush1.msra.mxu0 0.0
        %4317 = vmatprep.subr.mxu0 0.0
        %4318 = vmatpush1.msra.mxu0 0.0
        %4319 = vmatprep.subr.mxu0 0.0
        %4320 = vmatpush1.msra.mxu0 0.0
        %4321 = vmatprep.subr.mxu0 0.0
        %4322 = vmatpush1.msra.mxu0 0.0
        %4323 = vmatprep.subr.mxu0 0.0
        %4324 = vmatpush1.msra.mxu0 0.0
        %4325 = vmatprep.subr.mxu0 0.0
        %4326 = vmatpush1.msra.mxu0 0.0
        %4327 = vmatprep.subr.mxu0 0.0
        %4328 = vmatpush1.msra.mxu0 0.0
        %4329 = vmatprep.subr.mxu0 0.0
        %4330 = vmatpush1.msra.mxu0 0.0
        %4331 = vmatprep.subr.mxu0 0.0
        %4332 = vmatpush1.msra.mxu0 0.0
        %4333 = vmatprep.subr.mxu0 0.0
        %4334 = vmatpush1.msra.mxu0 0.0
        %4335 = vmatprep.subr.mxu0 0.0
        %4336 = vmatpush1.msra.mxu0 0.0
        %4337 = vmatprep.subr.mxu0 0.0
        %4338 = vmatpush1.msra.mxu0 0.0
        %4339 = vmatprep.subr.mxu0 0.0
        %4340 = vmatpush1.msra.mxu0 0.0
        %4341 = vmatprep.subr.mxu0 0.0
        %4342 = vmatpush1.msra.mxu0 0.0
        %4343 = vmatprep.subr.mxu0 0.0
        %4344 = vmatpush1.msra.mxu0 0.0
        %4345 = vmatprep.subr.mxu0 0.0
        %4346 = vmatpush1.msra.mxu0 0.0
        %4347 = vmatprep.subr.mxu0 0.0
        %4348 = vmatpush1.msra.mxu0 0.0
        %4349 = vmatprep.subr.mxu0 0.0
        %4350 = vmatpush1.msra.mxu0 0.0
        %4351 = vmatprep.subr.mxu0 0.0
        %4352 = vmatpush1.msra.mxu0 0.0
        %4353 = vmatprep.subr.mxu0 0.0
        %4354 = vmatpush1.msra.mxu0 0.0
        %4355 = vmatprep.subr.mxu0 0.0
        %4356 = vmatpush1.msra.mxu0 0.0
        %4357 = vmatprep.subr.mxu0 0.0
        %4358 = vmatpush1.msra.mxu0 0.0
        %4359 = vmatprep.subr.mxu0 0.0
        %4360 = vmatpush1.msra.mxu0 0.0
        %4361 = vmatprep.subr.mxu0 0.0
        %4362 = vmatpush1.msra.mxu0 0.0
        %4363 = vmatprep.subr.mxu0 0.0
        %4364 = vmatpush1.msra.mxu0 0.0
        %4365 = vmatprep.subr.mxu0 0.0
        %4366 = vmatpush1.msra.mxu0 0.0
        %4367 = vmatprep.subr.mxu0 0.0
        %4368 = vmatpush1.msra.mxu0 0.0
        %4369 = vmatprep.mubr.f32.mxu0 0.0
        %4370 = vmatmul.mubr.f32.gmra.mrb[0].mxu0 %v3383
        %v4371 = vpop.f32.mrb[0].mxu0
        %v4372 = vadd.f32 0.0, %v4371
        %v4373 = vpop.f32.mrb[0].mxu0
        %4374 = vdwg.mxu0
        %v4375 = vsub.f32 %v4304, %v4372
        %v4376 = vsel %vm313, %v4375, 0.0
        %4377 = vadd.xlane.f32.xlu0 %v4376
        %v4378 = vpop.xlane.xlu0 %4377
        %v4379 = vmul.f32 %v4378, %v320
        %v4380 = vsub.f32 %v4375, %v4379
        %v4381 = vmul.f32 %v4380, %v4380
        %v4382 = vsel %vm313, %v4381, 0.0
        %4383 = vadd.xlane.f32.xlu0 %v4382
        %v4384 = vpop.xlane.xlu0 %4383
        %v4385 = vmul.f32 %v4384, %v320
        %v4386 = vadd.f32 %v4385, 1e-05
        %v4387 = vrsqrt.pop %v4386
        %v4388 = vmul.f32 %v4380, %v4387
        %v4389 = vlaneseq
        %v4390 = vshrl.u32 %v4389, 7
        %v4391 = vsub.s32 4, %v4390
        %v4392 = vrot.slane %v2903, %v4391
        %v4393 = vmul.f32 %v4388, %v4392
        %v4394 = vlaneseq
        %v4395 = vshrl.u32 %v4394, 7
        %v4396 = vsub.s32 5, %v4395
        %v4397 = vrot.slane %v2903, %v4396
        %v4398 = vadd.f32 %v4393, %v4397
        %v4399 = vadd.f32 %v3452, %v4102
        %v4400 = vadd.f32 %v4399, %v4372
        %v4402 = vrot.slane %v4400, 7
        %vm4404 = vcmask 1040384
        %v4405 = vsel %vm4404, %v4402, %v4402
        %v4406 = vrot.slane %v4400, 1
        %vm4408 = vcmask 1046528
        %v4409 = vsel %vm4408, %v4406, %v4406
        %v4410 = vlaneseq
        %v4411 = vshrl.u32 %v4410, 7
        %v4412 = vsub.s32 0, %v4411
        %v4413 = vrot.slane %v2905, %v4412
        %v4414 = vmul.f32 %v4405, %v4413
        %v4415 = vsel %vm313, %v4414, 0.0
        %4416 = vadd.xlane.f32.xlu0 %v4415
        %v4417 = vpop.xlane.xlu0 %4416
        %4419 = vrot.lane.b32.xlu0 %v4413, 96
        %v4420 = vpop.permute.xlu0 %4419
        %v4422 = vmul.f32 %v4400, %v4420
        %v4423 = vsel %vm313, %v4422, 0.0
        %4424 = vadd.xlane.f32.xlu0 %v4423
        %v4425 = vpop.xlane.xlu0 %4424
        %v4426 = vadd.f32 %v4417, %v4425
        %4427 = vrot.lane.b32.xlu0 %v4413, 64
        %v4428 = vpop.permute.xlu0 %4427
        %v4430 = vmul.f32 %v4409, %v4428
        %v4431 = vsel %vm313, %v4430, 0.0
        %4432 = vadd.xlane.f32.xlu0 %v4431
        %v4433 = vpop.xlane.xlu0 %4432
        %v4434 = vadd.f32 %v4426, %v4433
        %v4435 = vadd.f32 %v2867, %v4434
        %v4436 = vsel %vm2846, %v4435, 0.0
        %4439 = vrot.lane.b32.xlu0 %v4398, 32
        %v4440 = vpop.permute.xlu0 %4439
        %4441 = vrot.lane.b32.xlu0 0.0, 32
        %v4442 = vpop.permute.xlu0 %4441
        %4446 = vrot.lane.b32.xlu0 %v4436, 64
        %v4447 = vpop.permute.xlu0 %4446
        %4448 = vrot.lane.b32.xlu0 0.0, 64
        %v4449 = vpop.permute.xlu0 %4448
        %v4452 = vsel %vm313, %v2769, %v4440
        %v4453 = vsel %vm313, %v2770, %v4442
        %v4454 = vsel %vm1367, %v4452, %v4447
        %v4455 = vsel %vm1367, %v4453, %v4449
        %vm4456 = vcmask 785408
        %v4457 = vsel %vm4456, %v4454, 0.0
        %v4458 = vsel %vm4456, %v4455, 0.0
        %4459 = vst [vmem:[%s158] sm:$0xff] %v4457
        %4460 = vst [vmem:[%s158 + $0x8] sm:$0xff] %v4458
        %p4461 = scmp.lt.s32.totalorder %s14, 1
        %s4462 = scalar_select %p4461, %s14, 1
        %s4463 = smul.addr %s4462, 2
        %s4464 = smul.addr %s4463, 8
        %s4465 = scalar_lea.vmem %s2, %s4464
        // Predicated region
        $region33: #{autoformer_forward.1} parent=27 // pred_check
          %p4466 = pneg %p79
        $region34: #{autoformer_forward.1} parent=27 // pred_check_branch
          %4468 = sbr.rel (%p4466) target = $region36
        $region35: #{autoformer_forward.1} parent=27 // pred_region
          _
        $region36: #{autoformer_forward.1} parent=27 // pred_fallthru
          _
      $region28: #{autoformer_forward.1} parent=5 // pred_fallthru
        _
      %p4469 = scmp.le.s32.totalorder 2, %s9
      // Predicated region
      $region37: #{autoformer_forward.1} parent=5 // pred_check
        %p4470 = pneg %p4469
      $region38: #{autoformer_forward.1} parent=5 // pred_check_branch
        %4472 = sbr.rel (%p4470) target = $region40
      $region39: #{autoformer_forward.1} parent=5 // pred_region
        %s4473 = ssub.s32 %s9, 2
        // Predicated region
        $region41: #{autoformer_forward.1} parent=39 // pred_check
          %p4474 = pneg %p85
        $region42: #{autoformer_forward.1} parent=39 // pred_check_branch
          %4476 = sbr.rel (%p4474) target = $region44
        $region43: #{autoformer_forward.1} parent=39 // pred_region
          %p4477 = scmp.lt.s32.totalorder %s15, 1
          %s4478 = scalar_select %p4477, %s15, 1
          %s4479 = smul.addr %s4478, 2
          %s4480 = smul.addr %s4479, 8
          %s4481 = scalar_lea.vmem %s2, %s4480
        $region44: #{autoformer_forward.1} parent=39 // pred_fallthru
          _
      $region40: #{autoformer_forward.1} parent=5 // pred_fallthru
        _
    $region6: #{autoformer_forward.1} parent=1 // loop_footer
      %s13 = sadd.s32 1, %s9
    $region7: #{autoformer_forward.1} parent=1 // loop_footer_branch
      %8 = sbr.rel target = $region3
    $region8: #{autoformer_forward.1} parent=1 // loop_exit
      _
    %4482 = vsyncpa [#allocation3], 1
    %s4483 = scalar_lea.sflag [#allocation3], 1
    %4484 = vsyncpa %s4483, 1

</llo_original>
